<compile_context>
chip_gen: v5e
topology: v5e:2x2
jax: 0.10.0
libtpu: 0.0.40
codegen_flags: <defaults>
</compile_context>

<pallas_src>
import functools

import jax
import jax.numpy as jnp
from jax.experimental import pallas as pl
from jax.experimental.pallas import tpu as pltpu


# ---------------------------------------------------------------------------
# Fused forward kernel (single grid point, everything resident in VMEM)
# ---------------------------------------------------------------------------
def _fused_forward_kernel(
    # ---- inputs ----
    x_ref,                 # [B*16, Cin]   bf16, NHWC-flattened input (rows = b*16 + h*4 + w)
    w0_ref, b0_ref,        # [Cin, 128]    bf16 / [1, 128]  f32   resnet_conv_0 (1x1)
    wc1_ref, bc1_ref,      # [512, 512]    bf16 / [1, 512]  f32   rb1_1 | rc1 (2x2, merged along N)
    w12_ref, b12_ref,      # [256, 256]    bf16 / [1, 256]  f32   rb1_2 (1x1)
    wc2_ref, bc2_ref,      # [1024, 1024]  bf16 / [1, 1024] f32   rb2_1 | rc2 (2x2, merged along N)
    w22_ref, b22_ref,      # [512, 512]    bf16 / [1, 512]  f32   rb2_2 (1x1)
    wf1_ref, bf1_ref,      # [2048, 512]   bf16 / [1, 512]  f32   fc1_adv | fc1_val (rows NCHW-permuted)
    w2a_ref, b2a_ref,      # [256, A]      bf16 / [1, A]    f32   fc2_adv
    w2v_ref, b2v_ref,      # [256, 1]      bf16 / [1, 1]    f32   fc2_val
    # ---- output ----
    o_ref,                 # [B, A] f32 log-probs
    # ---- VMEM scratch ----
    h0_s,                  # [B*16, 128]  f32
    p1_s,                  # [B*9,  512]  f32  stage-1 im2col patches
    h1_s,                  # [B*9,  256]  f32
    p2_s,                  # [B*4, 1024]  f32  stage-2 im2col patches
    h2_s,                  # [B*4,  512]  f32
    xf_s,                  # [B,   2048]  f32  flattened features for the FC head
    *, batch):
    B = batch
    bf16 = jnp.bfloat16
    f32 = jnp.float32

    def mm(a, w_ref):      # MXU: bf16 x bf16 -> f32 accumulation
        return jnp.dot(a.astype(bf16), w_ref[...], preferred_element_type=f32)

    # --- stage 0: x = relu(resnet_conv_0(x))  (1x1 conv == plain matmul) ---------
    h0_s[...] = jnp.maximum(mm(x_ref[...], w0_ref) + b0_ref[...], 0.0)      # [B*16, 128]

    # --- stage 1: 2x2 convs on the 4x4 map -> 3x3 --------------------------------
    # In-VMEM im2col: both consumers of h0 (resnet_block1_1 and resnet_conv_1)
    # share the same patch matrix and one merged matmul.
    for b in range(B):
        for oh in range(3):
            dst = b * 9 + oh * 3
            for dh in range(2):
                for dw in range(2):
                    src = b * 16 + (oh + dh) * 4 + dw
                    col = (dh * 2 + dw) * 128
                    p1_s[dst:dst + 3, col:col + 128] = h0_s[src:src + 3, :]
    y1 = mm(p1_s[...], wc1_ref) + bc1_ref[...]                               # [B*9, 512]
    a1 = jnp.maximum(y1[:, 0:256], 0.0)                                      # relu(resnet_block1_1)
    b1 = mm(a1, w12_ref) + b12_ref[...]                                      # resnet_block1_2 (1x1)
    h1_s[...] = jnp.maximum(y1[:, 256:512] + b1, 0.0)                        # relu(resnet_conv_1 + b1)

    # --- stage 2: 2x2 convs on the 3x3 map -> 2x2 --------------------------------
    for b in range(B):
        for oh in range(2):
            dst = b * 4 + oh * 2
            for dh in range(2):
                for dw in range(2):
                    src = b * 9 + (oh + dh) * 3 + dw
                    col = (dh * 2 + dw) * 256
                    p2_s[dst:dst + 2, col:col + 256] = h1_s[src:src + 2, :]
    y2 = mm(p2_s[...], wc2_ref) + bc2_ref[...]                               # [B*4, 1024]
    a2 = jnp.maximum(y2[:, 0:512], 0.0)                                      # relu(resnet_block2_1)
    b2 = mm(a2, w22_ref) + b22_ref[...]                                      # resnet_block2_2 (1x1)
    h2_s[...] = jnp.maximum(y2[:, 512:1024] + b2, 0.0)                       # relu(resnet_conv_2 + b2)

    # --- flatten in NHWC order (fc1 weight rows are pre-permuted so this equals
    #     PyTorch's NCHW x.view(-1, 2048)) ---------------------------------------
    for b in range(B):
        for p in range(4):
            xf_s[b:b + 1, p * 512:(p + 1) * 512] = h2_s[b * 4 + p:b * 4 + p + 1, :]

    # --- dueling head: merged fc1 (adv|val), tiny fc2 matmuls, dueling combine,
    #     stable log-softmax over actions (dim=1) ---------------------------------
    hid = mm(xf_s[...], wf1_ref) + bf1_ref[...]                              # [B, 512]
    adv = mm(hid[:, 0:256], w2a_ref) + b2a_ref[...]                          # [B, A]
    val = mm(hid[:, 256:512], w2v_ref) + b2v_ref[...]                        # [B, 1]

    q = val + adv - jnp.mean(adv, axis=1, keepdims=True)
    q = q - jnp.max(q, axis=1, keepdims=True)
    o_ref[...] = q - jnp.log(jnp.sum(jnp.exp(q), axis=1, keepdims=True))


# ---------------------------------------------------------------------------
# Wrapper: one pallas_call for the whole forward pass
# ---------------------------------------------------------------------------
def conv_block_forward(x_nchw, fp):
    """x_nchw: [B, state_size, 4, 4] f32; fp: fused params (see fuse_params)."""
    B, C, H, W = x_nchw.shape
    A = fp["w2a"].shape[1]

    # Tiny (2 KB) one-off NCHW->NHWC reorder of the input; everything downstream
    # runs inside the single fused kernel.
    x = jnp.transpose(x_nchw, (0, 2, 3, 1)).reshape(B * H * W, C).astype(jnp.bfloat16)

    kernel = functools.partial(_fused_forward_kernel, batch=B)

    # TODO(synk): cross-call weight residency (persistent-VMEM / prefetch-future
    # pattern) is not implemented; the ~5.3 MB of bf16 weights are re-DMA'd per call.
    return pl.pallas_call(
        kernel,
        out_shape=jax.ShapeDtypeStruct((B, A), jnp.float32),
        scratch_shapes=[
            pltpu.VMEM((B * 16, 128), jnp.float32),    # h0
            pltpu.VMEM((B * 9, 512), jnp.float32),     # stage-1 patches
            pltpu.VMEM((B * 9, 256), jnp.float32),     # h1
            pltpu.VMEM((B * 4, 1024), jnp.float32),    # stage-2 patches
            pltpu.VMEM((B * 4, 512), jnp.float32),     # h2
            pltpu.VMEM((B, 2048), jnp.float32),        # flattened FC input
        ],
        compiler_params=pltpu.CompilerParams(vmem_limit_bytes=32 * 1024 * 1024),
    )(
        x,
        fp["w0"], fp["b0"],
        fp["wc1"], fp["bc1"],
        fp["w12"], fp["b12"],
        fp["wc2"], fp["bc2"],
        fp["w22"], fp["b22"],
        fp["wf1"], fp["bf1"],
        fp["w2a"], fp["b2a"],
        fp["w2v"], fp["b2v"],
    )


# ---------------------------------------------------------------------------
# Parameter prep: reshape / merge / permute / cast (done once, off the hot path)
# ---------------------------------------------------------------------------
def fuse_params(p):
    bf16 = jnp.bfloat16
    f32 = jnp.float32

    def w_(x):
        return x.astype(bf16)

    def b_(x):
        return x.reshape(1, -1).astype(f32)

    # conv weights HWIO -> im2col layout [kh*kw*Cin, Cout]
    rc0 = p["rc0_w"].reshape(-1, 128)                    # 1x1
    rb1_1 = p["rb1_1_w"].reshape(4 * 128, 256)
    rc1 = p["rc1_w"].reshape(4 * 128, 256)
    rb1_2 = p["rb1_2_w"].reshape(256, 256)
    rb2_1 = p["rb2_1_w"].reshape(4 * 256, 512)
    rc2 = p["rc2_w"].reshape(4 * 256, 512)
    rb2_2 = p["rb2_2_w"].reshape(512, 512)

    # merge sibling convs (shared LHS / patch matrix) along N
    wc1 = jnp.concatenate([rb1_1, rc1], axis=1)                          # [512, 512]
    bc1 = jnp.concatenate([p["rb1_1_b"], p["rc1_b"]])                    # [512]
    wc2 = jnp.concatenate([rb2_1, rc2], axis=1)                          # [1024, 1024]
    bc2 = jnp.concatenate([p["rb2_1_b"], p["rc2_b"]])                    # [1024]

    # fc1: permute rows so an NHWC flatten of the [B,2,2,512] activation is
    # equivalent to PyTorch's NCHW x.view(-1, 2048); then merge adv|val along N.
    pos = jnp.arange(2048)
    h = pos // 1024
    w = (pos // 512) % 2
    c = pos % 512
    perm = c * 4 + h * 2 + w                                             # NHWC pos -> NCHW row
    wf1 = jnp.concatenate([p["fc1_adv_w"][perm], p["fc1_val_w"][perm]], axis=1)   # [2048, 512]
    bf1 = jnp.concatenate([p["fc1_adv_b"], p["fc1_val_b"]])                       # [512]

    return dict(
        w0=w_(rc0), b0=b_(p["rc0_b"]),
        wc1=w_(wc1), bc1=b_(bc1),
        w12=w_(rb1_2), b12=b_(p["rb1_2_b"]),
        wc2=w_(wc2), bc2=b_(bc2),
        w22=w_(rb2_2), b22=b_(p["rb2_2_b"]),
        wf1=w_(wf1), bf1=b_(bf1),
        w2a=w_(p["fc2_adv_w"]), b2a=b_(p["fc2_adv_b"]),
        w2v=w_(p["fc2_val_w"]), b2v=b_(p["fc2_val_b"]),
    )


# ---------------------------------------------------------------------------
# Deterministic synthetic parameters (shapes follow nn.Module.__init__, HWIO / [in,out])
# ---------------------------------------------------------------------------
def init_params(key, state_size, action_size):
    specs = {
        "rc0":    ((1, 1, state_size, 128), 128),   # resnet_conv_0
        "rb1_1":  ((2, 2, 128, 256), 256),          # resnet_block1_1
        "rb1_2":  ((1, 1, 256, 256), 256),          # resnet_block1_2
        "rc1":    ((2, 2, 128, 256), 256),          # resnet_conv_1
        "rb2_1":  ((2, 2, 256, 512), 512),          # resnet_block2_1
        "rb2_2":  ((1, 1, 512, 512), 512),          # resnet_block2_2
        "rc2":    ((2, 2, 256, 512), 512),          # resnet_conv_2
        "fc1_adv": ((2048, 256), 256),
        "fc1_val": ((2048, 256), 256),
        "fc2_adv": ((256, action_size), action_size),
        "fc2_val": ((256, 1), 1),
    }
    params = {}
    keys = jax.random.split(key, 2 * len(specs))
    for i, (name, (wshape, bdim)) in enumerate(specs.items()):
        kw, kb = keys[2 * i], keys[2 * i + 1]
        params[f"{name}_w"] = 0.05 * jax.random.normal(kw, wshape, dtype=jnp.float32)
        params[f"{name}_b"] = 0.01 * jax.random.normal(kb, (bdim,), dtype=jnp.float32)
    return params


# ---------------------------------------------------------------------------
# Pure-JAX reference of the PyTorch forward (f32, XLA convs) for validation
# ---------------------------------------------------------------------------
def reference_forward(x_nchw, p):
    def conv(x, w_hwio, b):
        y = jax.lax.conv_general_dilated(
            x, w_hwio, window_strides=(1, 1), padding="VALID",
            dimension_numbers=("NCHW", "HWIO", "NCHW"))
        return y + b[None, :, None, None]

    relu = jax.nn.relu
    x = relu(conv(x_nchw, p["rc0_w"], p["rc0_b"]))
    a1 = relu(conv(x, p["rb1_1_w"], p["rb1_1_b"]))
    b1 = conv(a1, p["rb1_2_w"], p["rb1_2_b"])
    x = relu(conv(x, p["rc1_w"], p["rc1_b"]) + b1)
    a2 = relu(conv(x, p["rb2_1_w"], p["rb2_1_b"]))
    b2 = conv(a2, p["rb2_2_w"], p["rb2_2_b"])
    x = relu(conv(x, p["rc2_w"], p["rc2_b"]) + b2)
    x = x.reshape(x.shape[0], -1)                       # NCHW flatten == torch .view(-1, 2048)
    adv = x @ p["fc1_adv_w"] + p["fc1_adv_b"]
    val = x @ p["fc1_val_w"] + p["fc1_val_b"]
    adv = adv @ p["fc2_adv_w"] + p["fc2_adv_b"]
    val = val @ p["fc2_val_w"] + p["fc2_val_b"]
    q = val + adv - jnp.mean(adv, axis=1, keepdims=True)
    return jax.nn.log_softmax(q, axis=1)


if __name__ == "__main__":
    B, STATE_SIZE, ACTION_SIZE = 2, 16, 4

    key = jax.random.PRNGKey(0)
    k_x, k_p = jax.random.split(key)
    x = jax.random.normal(k_x, (B, STATE_SIZE, 4, 4), dtype=jnp.float32)
    params = init_params(k_p, STATE_SIZE, ACTION_SIZE)
    fp = fuse_params(params)

    fwd = jax.jit(conv_block_forward)
    out = jax.block_until_ready(fwd(x, fp))             # [B, ACTION_SIZE] log-probs

    assert out.shape == (B, ACTION_SIZE)
    # log_softmax rows must exp-sum to 1
    assert bool(jnp.allclose(jnp.sum(jnp.exp(out), axis=1), 1.0, atol=1e-4))
    # fused bf16 kernel must match the f32 XLA reference of the PyTorch forward
    ref = reference_forward(x, params)
    assert float(jnp.max(jnp.abs(out - ref))) < 5e-2

    print("KERNEL_OK")
</pallas_src>

<mosaic_0001>
module attributes {stable_mosaic.version = 11 : i64} {
  func.func @_fused_forward_kernel(%arg0: memref<32x16xbf16, #tpu.memory_space<vmem>>, %arg1: memref<16x128xbf16, #tpu.memory_space<vmem>>, %arg2: memref<1x128xf32, #tpu.memory_space<vmem>>, %arg3: memref<512x512xbf16, #tpu.memory_space<vmem>>, %arg4: memref<1x512xf32, #tpu.memory_space<vmem>>, %arg5: memref<256x256xbf16, #tpu.memory_space<vmem>>, %arg6: memref<1x256xf32, #tpu.memory_space<vmem>>, %arg7: memref<1024x1024xbf16, #tpu.memory_space<vmem>>, %arg8: memref<1x1024xf32, #tpu.memory_space<vmem>>, %arg9: memref<512x512xbf16, #tpu.memory_space<vmem>>, %arg10: memref<1x512xf32, #tpu.memory_space<vmem>>, %arg11: memref<2048x512xbf16, #tpu.memory_space<vmem>>, %arg12: memref<1x512xf32, #tpu.memory_space<vmem>>, %arg13: memref<256x4xbf16, #tpu.memory_space<vmem>>, %arg14: memref<1x4xf32, #tpu.memory_space<vmem>>, %arg15: memref<256x1xbf16, #tpu.memory_space<vmem>>, %arg16: memref<1x1xf32, #tpu.memory_space<vmem>>, %arg17: memref<2x4xf32, #tpu.memory_space<vmem>>, %arg18: memref<32x128xf32, #tpu.memory_space<vmem>>, %arg19: memref<18x512xf32, #tpu.memory_space<vmem>>, %arg20: memref<18x256xf32, #tpu.memory_space<vmem>>, %arg21: memref<8x1024xf32, #tpu.memory_space<vmem>>, %arg22: memref<8x512xf32, #tpu.memory_space<vmem>>, %arg23: memref<2x2048xf32, #tpu.memory_space<vmem>>) attributes {dimension_semantics = [], scalar_prefetch = 0 : i64, scratch_operands = 6 : i64, tpu.core_type = #tpu.core_type<tc>} {
    %c0 = arith.constant 0 : index
    %c0_0 = arith.constant 0 : index
    %0 = vector.load %arg0[%c0, %c0_0] : memref<32x16xbf16, #tpu.memory_space<vmem>>, vector<32x16xbf16>
    %c0_1 = arith.constant 0 : index
    %c0_2 = arith.constant 0 : index
    %1 = vector.load %arg1[%c0_1, %c0_2] : memref<16x128xbf16, #tpu.memory_space<vmem>>, vector<16x128xbf16>
    %cst = arith.constant dense<0.000000e+00> : vector<32x128xf32>
    %2 = tpu.matmul %0, %1, %cst {dimension_numbers = #tpu.dot_dimension_numbers<[1], [0], [0], [1], [0, 0, 1, 1], [], []>} : vector<32x16xbf16>, vector<16x128xbf16>, vector<32x128xf32> -> vector<32x128xf32>
    %c0_3 = arith.constant 0 : index
    %c0_4 = arith.constant 0 : index
    %3 = vector.load %arg2[%c0_3, %c0_4] : memref<1x128xf32, #tpu.memory_space<vmem>>, vector<1x128xf32>
    %4 = vector.broadcast %3 : vector<1x128xf32> to vector<32x128xf32>
    %5 = arith.addf %2, %4 : vector<32x128xf32>
    %cst_5 = arith.constant 0.000000e+00 : f32
    %6 = vector.broadcast %cst_5 : f32 to vector<32x128xf32>
    %7 = arith.maximumf %5, %6 : vector<32x128xf32>
    %c0_6 = arith.constant 0 : index
    %c0_7 = arith.constant 0 : index
    %8 = vector.load %arg18[%c0_6, %c0_7] : memref<32x128xf32, #tpu.memory_space<vmem>>, vector<32x128xf32>
    tpu.vector_store %arg18[%c0_6, %c0_7], %7 {strides = array<i32>} : memref<32x128xf32, #tpu.memory_space<vmem>>, vector<32x128xf32>,
    %c0_8 = arith.constant 0 : index
    %c0_9 = arith.constant 0 : index
    %9 = vector.load %arg18[%c0_8, %c0_9] : memref<32x128xf32, #tpu.memory_space<vmem>>, vector<3x128xf32>
    %c0_10 = arith.constant 0 : index
    %c0_11 = arith.constant 0 : index
    %10 = vector.load %arg19[%c0_10, %c0_11] : memref<18x512xf32, #tpu.memory_space<vmem>>, vector<3x128xf32>
    tpu.vector_store %arg19[%c0_10, %c0_11], %9 {strides = array<i32>} : memref<18x512xf32, #tpu.memory_space<vmem>>, vector<3x128xf32>,
    %c1 = arith.constant 1 : index
    %c0_12 = arith.constant 0 : index
    %11 = vector.load %arg18[%c1, %c0_12] : memref<32x128xf32, #tpu.memory_space<vmem>>, vector<3x128xf32>
    %c0_13 = arith.constant 0 : index
    %c128 = arith.constant 128 : index
    %12 = vector.load %arg19[%c0_13, %c128] : memref<18x512xf32, #tpu.memory_space<vmem>>, vector<3x128xf32>
    tpu.vector_store %arg19[%c0_13, %c128], %11 {strides = array<i32>} : memref<18x512xf32, #tpu.memory_space<vmem>>, vector<3x128xf32>,
    %c4 = arith.constant 4 : index
    %c0_14 = arith.constant 0 : index
    %13 = vector.load %arg18[%c4, %c0_14] : memref<32x128xf32, #tpu.memory_space<vmem>>, vector<3x128xf32>
    %c0_15 = arith.constant 0 : index
    %c256 = arith.constant 256 : index
    %14 = vector.load %arg19[%c0_15, %c256] : memref<18x512xf32, #tpu.memory_space<vmem>>, vector<3x128xf32>
    tpu.vector_store %arg19[%c0_15, %c256], %13 {strides = array<i32>} : memref<18x512xf32, #tpu.memory_space<vmem>>, vector<3x128xf32>,
    %c5 = arith.constant 5 : index
    %c0_16 = arith.constant 0 : index
    %15 = vector.load %arg18[%c5, %c0_16] : memref<32x128xf32, #tpu.memory_space<vmem>>, vector<3x128xf32>
    %c0_17 = arith.constant 0 : index
    %c384 = arith.constant 384 : index
    %16 = vector.load %arg19[%c0_17, %c384] : memref<18x512xf32, #tpu.memory_space<vmem>>, vector<3x128xf32>
    tpu.vector_store %arg19[%c0_17, %c384], %15 {strides = array<i32>} : memref<18x512xf32, #tpu.memory_space<vmem>>, vector<3x128xf32>,
    %c4_18 = arith.constant 4 : index
    %c0_19 = arith.constant 0 : index
    %17 = vector.load %arg18[%c4_18, %c0_19] : memref<32x128xf32, #tpu.memory_space<vmem>>, vector<3x128xf32>
    %c3 = arith.constant 3 : index
    %c0_20 = arith.constant 0 : index
    %18 = vector.load %arg19[%c3, %c0_20] : memref<18x512xf32, #tpu.memory_space<vmem>>, vector<3x128xf32>
    tpu.vector_store %arg19[%c3, %c0_20], %17 {strides = array<i32>} : memref<18x512xf32, #tpu.memory_space<vmem>>, vector<3x128xf32>,
    %c5_21 = arith.constant 5 : index
    %c0_22 = arith.constant 0 : index
    %19 = vector.load %arg18[%c5_21, %c0_22] : memref<32x128xf32, #tpu.memory_space<vmem>>, vector<3x128xf32>
    %c3_23 = arith.constant 3 : index
    %c128_24 = arith.constant 128 : index
    %20 = vector.load %arg19[%c3_23, %c128_24] : memref<18x512xf32, #tpu.memory_space<vmem>>, vector<3x128xf32>
    tpu.vector_store %arg19[%c3_23, %c128_24], %19 {strides = array<i32>} : memref<18x512xf32, #tpu.memory_space<vmem>>, vector<3x128xf32>,
    %c8 = arith.constant 8 : index
    %c0_25 = arith.constant 0 : index
    %21 = vector.load %arg18[%c8, %c0_25] : memref<32x128xf32, #tpu.memory_space<vmem>>, vector<3x128xf32>
    %c3_26 = arith.constant 3 : index
    %c256_27 = arith.constant 256 : index
    %22 = vector.load %arg19[%c3_26, %c256_27] : memref<18x512xf32, #tpu.memory_space<vmem>>, vector<3x128xf32>
    tpu.vector_store %arg19[%c3_26, %c256_27], %21 {strides = array<i32>} : memref<18x512xf32, #tpu.memory_space<vmem>>, vector<3x128xf32>,
    %c9 = arith.constant 9 : index
    %c0_28 = arith.constant 0 : index
    %23 = vector.load %arg18[%c9, %c0_28] : memref<32x128xf32, #tpu.memory_space<vmem>>, vector<3x128xf32>
    %c3_29 = arith.constant 3 : index
    %c384_30 = arith.constant 384 : index
    %24 = vector.load %arg19[%c3_29, %c384_30] : memref<18x512xf32, #tpu.memory_space<vmem>>, vector<3x128xf32>
    tpu.vector_store %arg19[%c3_29, %c384_30], %23 {strides = array<i32>} : memref<18x512xf32, #tpu.memory_space<vmem>>, vector<3x128xf32>,
    %c8_31 = arith.constant 8 : index
    %c0_32 = arith.constant 0 : index
    %25 = vector.load %arg18[%c8_31, %c0_32] : memref<32x128xf32, #tpu.memory_space<vmem>>, vector<3x128xf32>
    %c6 = arith.constant 6 : index
    %c0_33 = arith.constant 0 : index
    %26 = vector.load %arg19[%c6, %c0_33] : memref<18x512xf32, #tpu.memory_space<vmem>>, vector<3x128xf32>
    tpu.vector_store %arg19[%c6, %c0_33], %25 {strides = array<i32>} : memref<18x512xf32, #tpu.memory_space<vmem>>, vector<3x128xf32>,
    %c9_34 = arith.constant 9 : index
    %c0_35 = arith.constant 0 : index
    %27 = vector.load %arg18[%c9_34, %c0_35] : memref<32x128xf32, #tpu.memory_space<vmem>>, vector<3x128xf32>
    %c6_36 = arith.constant 6 : index
    %c128_37 = arith.constant 128 : index
    %28 = vector.load %arg19[%c6_36, %c128_37] : memref<18x512xf32, #tpu.memory_space<vmem>>, vector<3x128xf32>
    tpu.vector_store %arg19[%c6_36, %c128_37], %27 {strides = array<i32>} : memref<18x512xf32, #tpu.memory_space<vmem>>, vector<3x128xf32>,
    %c12 = arith.constant 12 : index
    %c0_38 = arith.constant 0 : index
    %29 = vector.load %arg18[%c12, %c0_38] : memref<32x128xf32, #tpu.memory_space<vmem>>, vector<3x128xf32>
    %c6_39 = arith.constant 6 : index
    %c256_40 = arith.constant 256 : index
    %30 = vector.load %arg19[%c6_39, %c256_40] : memref<18x512xf32, #tpu.memory_space<vmem>>, vector<3x128xf32>
    tpu.vector_store %arg19[%c6_39, %c256_40], %29 {strides = array<i32>} : memref<18x512xf32, #tpu.memory_space<vmem>>, vector<3x128xf32>,
    %c13 = arith.constant 13 : index
    %c0_41 = arith.constant 0 : index
    %31 = vector.load %arg18[%c13, %c0_41] : memref<32x128xf32, #tpu.memory_space<vmem>>, vector<3x128xf32>
    %c6_42 = arith.constant 6 : index
    %c384_43 = arith.constant 384 : index
    %32 = vector.load %arg19[%c6_42, %c384_43] : memref<18x512xf32, #tpu.memory_space<vmem>>, vector<3x128xf32>
    tpu.vector_store %arg19[%c6_42, %c384_43], %31 {strides = array<i32>} : memref<18x512xf32, #tpu.memory_space<vmem>>, vector<3x128xf32>,
    %c16 = arith.constant 16 : index
    %c0_44 = arith.constant 0 : index
    %33 = vector.load %arg18[%c16, %c0_44] : memref<32x128xf32, #tpu.memory_space<vmem>>, vector<3x128xf32>
    %c9_45 = arith.constant 9 : index
    %c0_46 = arith.constant 0 : index
    %34 = vector.load %arg19[%c9_45, %c0_46] : memref<18x512xf32, #tpu.memory_space<vmem>>, vector<3x128xf32>
    tpu.vector_store %arg19[%c9_45, %c0_46], %33 {strides = array<i32>} : memref<18x512xf32, #tpu.memory_space<vmem>>, vector<3x128xf32>,
    %c17 = arith.constant 17 : index
    %c0_47 = arith.constant 0 : index
    %35 = vector.load %arg18[%c17, %c0_47] : memref<32x128xf32, #tpu.memory_space<vmem>>, vector<3x128xf32>
    %c9_48 = arith.constant 9 : index
    %c128_49 = arith.constant 128 : index
    %36 = vector.load %arg19[%c9_48, %c128_49] : memref<18x512xf32, #tpu.memory_space<vmem>>, vector<3x128xf32>
    tpu.vector_store %arg19[%c9_48, %c128_49], %35 {strides = array<i32>} : memref<18x512xf32, #tpu.memory_space<vmem>>, vector<3x128xf32>,
    %c20 = arith.constant 20 : index
    %c0_50 = arith.constant 0 : index
    %37 = vector.load %arg18[%c20, %c0_50] : memref<32x128xf32, #tpu.memory_space<vmem>>, vector<3x128xf32>
    %c9_51 = arith.constant 9 : index
    %c256_52 = arith.constant 256 : index
    %38 = vector.load %arg19[%c9_51, %c256_52] : memref<18x512xf32, #tpu.memory_space<vmem>>, vector<3x128xf32>
    tpu.vector_store %arg19[%c9_51, %c256_52], %37 {strides = array<i32>} : memref<18x512xf32, #tpu.memory_space<vmem>>, vector<3x128xf32>,
    %c21 = arith.constant 21 : index
    %c0_53 = arith.constant 0 : index
    %39 = vector.load %arg18[%c21, %c0_53] : memref<32x128xf32, #tpu.memory_space<vmem>>, vector<3x128xf32>
    %c9_54 = arith.constant 9 : index
    %c384_55 = arith.constant 384 : index
    %40 = vector.load %arg19[%c9_54, %c384_55] : memref<18x512xf32, #tpu.memory_space<vmem>>, vector<3x128xf32>
    tpu.vector_store %arg19[%c9_54, %c384_55], %39 {strides = array<i32>} : memref<18x512xf32, #tpu.memory_space<vmem>>, vector<3x128xf32>,
    %c20_56 = arith.constant 20 : index
    %c0_57 = arith.constant 0 : index
    %41 = vector.load %arg18[%c20_56, %c0_57] : memref<32x128xf32, #tpu.memory_space<vmem>>, vector<3x128xf32>
    %c12_58 = arith.constant 12 : index
    %c0_59 = arith.constant 0 : index
    %42 = vector.load %arg19[%c12_58, %c0_59] : memref<18x512xf32, #tpu.memory_space<vmem>>, vector<3x128xf32>
    tpu.vector_store %arg19[%c12_58, %c0_59], %41 {strides = array<i32>} : memref<18x512xf32, #tpu.memory_space<vmem>>, vector<3x128xf32>,
    %c21_60 = arith.constant 21 : index
    %c0_61 = arith.constant 0 : index
    %43 = vector.load %arg18[%c21_60, %c0_61] : memref<32x128xf32, #tpu.memory_space<vmem>>, vector<3x128xf32>
    %c12_62 = arith.constant 12 : index
    %c128_63 = arith.constant 128 : index
    %44 = vector.load %arg19[%c12_62, %c128_63] : memref<18x512xf32, #tpu.memory_space<vmem>>, vector<3x128xf32>
    tpu.vector_store %arg19[%c12_62, %c128_63], %43 {strides = array<i32>} : memref<18x512xf32, #tpu.memory_space<vmem>>, vector<3x128xf32>,
    %c24 = arith.constant 24 : index
    %c0_64 = arith.constant 0 : index
    %45 = vector.load %arg18[%c24, %c0_64] : memref<32x128xf32, #tpu.memory_space<vmem>>, vector<3x128xf32>
    %c12_65 = arith.constant 12 : index
    %c256_66 = arith.constant 256 : index
    %46 = vector.load %arg19[%c12_65, %c256_66] : memref<18x512xf32, #tpu.memory_space<vmem>>, vector<3x128xf32>
    tpu.vector_store %arg19[%c12_65, %c256_66], %45 {strides = array<i32>} : memref<18x512xf32, #tpu.memory_space<vmem>>, vector<3x128xf32>,
    %c25 = arith.constant 25 : index
    %c0_67 = arith.constant 0 : index
    %47 = vector.load %arg18[%c25, %c0_67] : memref<32x128xf32, #tpu.memory_space<vmem>>, vector<3x128xf32>
    %c12_68 = arith.constant 12 : index
    %c384_69 = arith.constant 384 : index
    %48 = vector.load %arg19[%c12_68, %c384_69] : memref<18x512xf32, #tpu.memory_space<vmem>>, vector<3x128xf32>
    tpu.vector_store %arg19[%c12_68, %c384_69], %47 {strides = array<i32>} : memref<18x512xf32, #tpu.memory_space<vmem>>, vector<3x128xf32>,
    %c24_70 = arith.constant 24 : index
    %c0_71 = arith.constant 0 : index
    %49 = vector.load %arg18[%c24_70, %c0_71] : memref<32x128xf32, #tpu.memory_space<vmem>>, vector<3x128xf32>
    %c15 = arith.constant 15 : index
    %c0_72 = arith.constant 0 : index
    %50 = vector.load %arg19[%c15, %c0_72] : memref<18x512xf32, #tpu.memory_space<vmem>>, vector<3x128xf32>
    tpu.vector_store %arg19[%c15, %c0_72], %49 {strides = array<i32>} : memref<18x512xf32, #tpu.memory_space<vmem>>, vector<3x128xf32>,
    %c25_73 = arith.constant 25 : index
    %c0_74 = arith.constant 0 : index
    %51 = vector.load %arg18[%c25_73, %c0_74] : memref<32x128xf32, #tpu.memory_space<vmem>>, vector<3x128xf32>
    %c15_75 = arith.constant 15 : index
    %c128_76 = arith.constant 128 : index
    %52 = vector.load %arg19[%c15_75, %c128_76] : memref<18x512xf32, #tpu.memory_space<vmem>>, vector<3x128xf32>
    tpu.vector_store %arg19[%c15_75, %c128_76], %51 {strides = array<i32>} : memref<18x512xf32, #tpu.memory_space<vmem>>, vector<3x128xf32>,
    %c28 = arith.constant 28 : index
    %c0_77 = arith.constant 0 : index
    %53 = vector.load %arg18[%c28, %c0_77] : memref<32x128xf32, #tpu.memory_space<vmem>>, vector<3x128xf32>
    %c15_78 = arith.constant 15 : index
    %c256_79 = arith.constant 256 : index
    %54 = vector.load %arg19[%c15_78, %c256_79] : memref<18x512xf32, #tpu.memory_space<vmem>>, vector<3x128xf32>
    tpu.vector_store %arg19[%c15_78, %c256_79], %53 {strides = array<i32>} : memref<18x512xf32, #tpu.memory_space<vmem>>, vector<3x128xf32>,
    %c29 = arith.constant 29 : index
    %c0_80 = arith.constant 0 : index
    %55 = vector.load %arg18[%c29, %c0_80] : memref<32x128xf32, #tpu.memory_space<vmem>>, vector<3x128xf32>
    %c15_81 = arith.constant 15 : index
    %c384_82 = arith.constant 384 : index
    %56 = vector.load %arg19[%c15_81, %c384_82] : memref<18x512xf32, #tpu.memory_space<vmem>>, vector<3x128xf32>
    tpu.vector_store %arg19[%c15_81, %c384_82], %55 {strides = array<i32>} : memref<18x512xf32, #tpu.memory_space<vmem>>, vector<3x128xf32>,
    %c0_83 = arith.constant 0 : index
    %c0_84 = arith.constant 0 : index
    %57 = vector.load %arg19[%c0_83, %c0_84] : memref<18x512xf32, #tpu.memory_space<vmem>>, vector<18x512xf32>
    %58 = arith.truncf %57 : vector<18x512xf32> to vector<18x512xbf16>
    %c0_85 = arith.constant 0 : index
    %c0_86 = arith.constant 0 : index
    %59 = vector.load %arg3[%c0_85, %c0_86] : memref<512x512xbf16, #tpu.memory_space<vmem>>, vector<512x512xbf16>
    %cst_87 = arith.constant dense<0.000000e+00> : vector<18x512xf32>
    %60 = tpu.matmul %58, %59, %cst_87 {dimension_numbers = #tpu.dot_dimension_numbers<[1], [0], [0], [1], [0, 0, 1, 1], [], []>} : vector<18x512xbf16>, vector<512x512xbf16>, vector<18x512xf32> -> vector<18x512xf32>
    %c0_88 = arith.constant 0 : index
    %c0_89 = arith.constant 0 : index
    %61 = vector.load %arg4[%c0_88, %c0_89] : memref<1x512xf32, #tpu.memory_space<vmem>>, vector<1x512xf32>
    %62 = vector.broadcast %61 : vector<1x512xf32> to vector<18x512xf32>
    %63 = arith.addf %60, %62 : vector<18x512xf32>
    %64 = vector.extract_strided_slice %63 {offsets = [0, 0], sizes = [18, 256], strides = [1, 1]} : vector<18x512xf32> to vector<18x256xf32>
    %cst_90 = arith.constant 0.000000e+00 : f32
    %65 = vector.broadcast %cst_90 : f32 to vector<18x256xf32>
    %66 = arith.maximumf %64, %65 : vector<18x256xf32>
    %67 = arith.truncf %66 : vector<18x256xf32> to vector<18x256xbf16>
    %c0_91 = arith.constant 0 : index
    %c0_92 = arith.constant 0 : index
    %68 = vector.load %arg5[%c0_91, %c0_92] : memref<256x256xbf16, #tpu.memory_space<vmem>>, vector<256x256xbf16>
    %cst_93 = arith.constant dense<0.000000e+00> : vector<18x256xf32>
    %69 = tpu.matmul %67, %68, %cst_93 {dimension_numbers = #tpu.dot_dimension_numbers<[1], [0], [0], [1], [0, 0, 1, 1], [], []>} : vector<18x256xbf16>, vector<256x256xbf16>, vector<18x256xf32> -> vector<18x256xf32>
    %c0_94 = arith.constant 0 : index
    %c0_95 = arith.constant 0 : index
    %70 = vector.load %arg6[%c0_94, %c0_95] : memref<1x256xf32, #tpu.memory_space<vmem>>, vector<1x256xf32>
    %71 = vector.broadcast %70 : vector<1x256xf32> to vector<18x256xf32>
    %72 = arith.addf %69, %71 : vector<18x256xf32>
    %73 = vector.extract_strided_slice %63 {offsets = [0, 256], sizes = [18, 256], strides = [1, 1]} : vector<18x512xf32> to vector<18x256xf32>
    %74 = arith.addf %73, %72 : vector<18x256xf32>
    %cst_96 = arith.constant 0.000000e+00 : f32
    %75 = vector.broadcast %cst_96 : f32 to vector<18x256xf32>
    %76 = arith.maximumf %74, %75 : vector<18x256xf32>
    %c0_97 = arith.constant 0 : index
    %c0_98 = arith.constant 0 : index
    %77 = vector.load %arg20[%c0_97, %c0_98] : memref<18x256xf32, #tpu.memory_space<vmem>>, vector<18x256xf32>
    tpu.vector_store %arg20[%c0_97, %c0_98], %76 {strides = array<i32>} : memref<18x256xf32, #tpu.memory_space<vmem>>, vector<18x256xf32>,
    %c0_99 = arith.constant 0 : index
    %c0_100 = arith.constant 0 : index
    %78 = vector.load %arg20[%c0_99, %c0_100] : memref<18x256xf32, #tpu.memory_space<vmem>>, vector<2x256xf32>
    %c0_101 = arith.constant 0 : index
    %c0_102 = arith.constant 0 : index
    %79 = vector.load %arg21[%c0_101, %c0_102] : memref<8x1024xf32, #tpu.memory_space<vmem>>, vector<2x256xf32>
    tpu.vector_store %arg21[%c0_101, %c0_102], %78 {strides = array<i32>} : memref<8x1024xf32, #tpu.memory_space<vmem>>, vector<2x256xf32>,
    %c1_103 = arith.constant 1 : index
    %c0_104 = arith.constant 0 : index
    %80 = vector.load %arg20[%c1_103, %c0_104] : memref<18x256xf32, #tpu.memory_space<vmem>>, vector<2x256xf32>
    %c0_105 = arith.constant 0 : index
    %c256_106 = arith.constant 256 : index
    %81 = vector.load %arg21[%c0_105, %c256_106] : memref<8x1024xf32, #tpu.memory_space<vmem>>, vector<2x256xf32>
    tpu.vector_store %arg21[%c0_105, %c256_106], %80 {strides = array<i32>} : memref<8x1024xf32, #tpu.memory_space<vmem>>, vector<2x256xf32>,
    %c3_107 = arith.constant 3 : index
    %c0_108 = arith.constant 0 : index
    %82 = vector.load %arg20[%c3_107, %c0_108] : memref<18x256xf32, #tpu.memory_space<vmem>>, vector<2x256xf32>
    %c0_109 = arith.constant 0 : index
    %c512 = arith.constant 512 : index
    %83 = vector.load %arg21[%c0_109, %c512] : memref<8x1024xf32, #tpu.memory_space<vmem>>, vector<2x256xf32>
    tpu.vector_store %arg21[%c0_109, %c512], %82 {strides = array<i32>} : memref<8x1024xf32, #tpu.memory_space<vmem>>, vector<2x256xf32>,
    %c4_110 = arith.constant 4 : index
    %c0_111 = arith.constant 0 : index
    %84 = vector.load %arg20[%c4_110, %c0_111] : memref<18x256xf32, #tpu.memory_space<vmem>>, vector<2x256xf32>
    %c0_112 = arith.constant 0 : index
    %c768 = arith.constant 768 : index
    %85 = vector.load %arg21[%c0_112, %c768] : memref<8x1024xf32, #tpu.memory_space<vmem>>, vector<2x256xf32>
    tpu.vector_store %arg21[%c0_112, %c768], %84 {strides = array<i32>} : memref<8x1024xf32, #tpu.memory_space<vmem>>, vector<2x256xf32>,
    %c3_113 = arith.constant 3 : index
    %c0_114 = arith.constant 0 : index
    %86 = vector.load %arg20[%c3_113, %c0_114] : memref<18x256xf32, #tpu.memory_space<vmem>>, vector<2x256xf32>
    %c2 = arith.constant 2 : index
    %c0_115 = arith.constant 0 : index
    %87 = vector.load %arg21[%c2, %c0_115] : memref<8x1024xf32, #tpu.memory_space<vmem>>, vector<2x256xf32>
    tpu.vector_store %arg21[%c2, %c0_115], %86 {strides = array<i32>} : memref<8x1024xf32, #tpu.memory_space<vmem>>, vector<2x256xf32>,
    %c4_116 = arith.constant 4 : index
    %c0_117 = arith.constant 0 : index
    %88 = vector.load %arg20[%c4_116, %c0_117] : memref<18x256xf32, #tpu.memory_space<vmem>>, vector<2x256xf32>
    %c2_118 = arith.constant 2 : index
    %c256_119 = arith.constant 256 : index
    %89 = vector.load %arg21[%c2_118, %c256_119] : memref<8x1024xf32, #tpu.memory_space<vmem>>, vector<2x256xf32>
    tpu.vector_store %arg21[%c2_118, %c256_119], %88 {strides = array<i32>} : memref<8x1024xf32, #tpu.memory_space<vmem>>, vector<2x256xf32>,
    %c6_120 = arith.constant 6 : index
    %c0_121 = arith.constant 0 : index
    %90 = vector.load %arg20[%c6_120, %c0_121] : memref<18x256xf32, #tpu.memory_space<vmem>>, vector<2x256xf32>
    %c2_122 = arith.constant 2 : index
    %c512_123 = arith.constant 512 : index
    %91 = vector.load %arg21[%c2_122, %c512_123] : memref<8x1024xf32, #tpu.memory_space<vmem>>, vector<2x256xf32>
    tpu.vector_store %arg21[%c2_122, %c512_123], %90 {strides = array<i32>} : memref<8x1024xf32, #tpu.memory_space<vmem>>, vector<2x256xf32>,
    %c7 = arith.constant 7 : index
    %c0_124 = arith.constant 0 : index
    %92 = vector.load %arg20[%c7, %c0_124] : memref<18x256xf32, #tpu.memory_space<vmem>>, vector<2x256xf32>
    %c2_125 = arith.constant 2 : index
    %c768_126 = arith.constant 768 : index
    %93 = vector.load %arg21[%c2_125, %c768_126] : memref<8x1024xf32, #tpu.memory_space<vmem>>, vector<2x256xf32>
    tpu.vector_store %arg21[%c2_125, %c768_126], %92 {strides = array<i32>} : memref<8x1024xf32, #tpu.memory_space<vmem>>, vector<2x256xf32>,
    %c9_127 = arith.constant 9 : index
    %c0_128 = arith.constant 0 : index
    %94 = vector.load %arg20[%c9_127, %c0_128] : memref<18x256xf32, #tpu.memory_space<vmem>>, vector<2x256xf32>
    %c4_129 = arith.constant 4 : index
    %c0_130 = arith.constant 0 : index
    %95 = vector.load %arg21[%c4_129, %c0_130] : memref<8x1024xf32, #tpu.memory_space<vmem>>, vector<2x256xf32>
    tpu.vector_store %arg21[%c4_129, %c0_130], %94 {strides = array<i32>} : memref<8x1024xf32, #tpu.memory_space<vmem>>, vector<2x256xf32>,
    %c10 = arith.constant 10 : index
    %c0_131 = arith.constant 0 : index
    %96 = vector.load %arg20[%c10, %c0_131] : memref<18x256xf32, #tpu.memory_space<vmem>>, vector<2x256xf32>
    %c4_132 = arith.constant 4 : index
    %c256_133 = arith.constant 256 : index
    %97 = vector.load %arg21[%c4_132, %c256_133] : memref<8x1024xf32, #tpu.memory_space<vmem>>, vector<2x256xf32>
    tpu.vector_store %arg21[%c4_132, %c256_133], %96 {strides = array<i32>} : memref<8x1024xf32, #tpu.memory_space<vmem>>, vector<2x256xf32>,
    %c12_134 = arith.constant 12 : index
    %c0_135 = arith.constant 0 : index
    %98 = vector.load %arg20[%c12_134, %c0_135] : memref<18x256xf32, #tpu.memory_space<vmem>>, vector<2x256xf32>
    %c4_136 = arith.constant 4 : index
    %c512_137 = arith.constant 512 : index
    %99 = vector.load %arg21[%c4_136, %c512_137] : memref<8x1024xf32, #tpu.memory_space<vmem>>, vector<2x256xf32>
    tpu.vector_store %arg21[%c4_136, %c512_137], %98 {strides = array<i32>} : memref<8x1024xf32, #tpu.memory_space<vmem>>, vector<2x256xf32>,
    %c13_138 = arith.constant 13 : index
    %c0_139 = arith.constant 0 : index
    %100 = vector.load %arg20[%c13_138, %c0_139] : memref<18x256xf32, #tpu.memory_space<vmem>>, vector<2x256xf32>
    %c4_140 = arith.constant 4 : index
    %c768_141 = arith.constant 768 : index
    %101 = vector.load %arg21[%c4_140, %c768_141] : memref<8x1024xf32, #tpu.memory_space<vmem>>, vector<2x256xf32>
    tpu.vector_store %arg21[%c4_140, %c768_141], %100 {strides = array<i32>} : memref<8x1024xf32, #tpu.memory_space<vmem>>, vector<2x256xf32>,
    %c12_142 = arith.constant 12 : index
    %c0_143 = arith.constant 0 : index
    %102 = vector.load %arg20[%c12_142, %c0_143] : memref<18x256xf32, #tpu.memory_space<vmem>>, vector<2x256xf32>
    %c6_144 = arith.constant 6 : index
    %c0_145 = arith.constant 0 : index
    %103 = vector.load %arg21[%c6_144, %c0_145] : memref<8x1024xf32, #tpu.memory_space<vmem>>, vector<2x256xf32>
    tpu.vector_store %arg21[%c6_144, %c0_145], %102 {strides = array<i32>} : memref<8x1024xf32, #tpu.memory_space<vmem>>, vector<2x256xf32>,
    %c13_146 = arith.constant 13 : index
    %c0_147 = arith.constant 0 : index
    %104 = vector.load %arg20[%c13_146, %c0_147] : memref<18x256xf32, #tpu.memory_space<vmem>>, vector<2x256xf32>
    %c6_148 = arith.constant 6 : index
    %c256_149 = arith.constant 256 : index
    %105 = vector.load %arg21[%c6_148, %c256_149] : memref<8x1024xf32, #tpu.memory_space<vmem>>, vector<2x256xf32>
    tpu.vector_store %arg21[%c6_148, %c256_149], %104 {strides = array<i32>} : memref<8x1024xf32, #tpu.memory_space<vmem>>, vector<2x256xf32>,
    %c15_150 = arith.constant 15 : index
    %c0_151 = arith.constant 0 : index
    %106 = vector.load %arg20[%c15_150, %c0_151] : memref<18x256xf32, #tpu.memory_space<vmem>>, vector<2x256xf32>
    %c6_152 = arith.constant 6 : index
    %c512_153 = arith.constant 512 : index
    %107 = vector.load %arg21[%c6_152, %c512_153] : memref<8x1024xf32, #tpu.memory_space<vmem>>, vector<2x256xf32>
    tpu.vector_store %arg21[%c6_152, %c512_153], %106 {strides = array<i32>} : memref<8x1024xf32, #tpu.memory_space<vmem>>, vector<2x256xf32>,
    %c16_154 = arith.constant 16 : index
    %c0_155 = arith.constant 0 : index
    %108 = vector.load %arg20[%c16_154, %c0_155] : memref<18x256xf32, #tpu.memory_space<vmem>>, vector<2x256xf32>
    %c6_156 = arith.constant 6 : index
    %c768_157 = arith.constant 768 : index
    %109 = vector.load %arg21[%c6_156, %c768_157] : memref<8x1024xf32, #tpu.memory_space<vmem>>, vector<2x256xf32>
    tpu.vector_store %arg21[%c6_156, %c768_157], %108 {strides = array<i32>} : memref<8x1024xf32, #tpu.memory_space<vmem>>, vector<2x256xf32>,
    %c0_158 = arith.constant 0 : index
    %c0_159 = arith.constant 0 : index
    %110 = vector.load %arg21[%c0_158, %c0_159] : memref<8x1024xf32, #tpu.memory_space<vmem>>, vector<8x1024xf32>
    %111 = arith.truncf %110 : vector<8x1024xf32> to vector<8x1024xbf16>
    %c0_160 = arith.constant 0 : index
    %c0_161 = arith.constant 0 : index
    %112 = vector.load %arg7[%c0_160, %c0_161] : memref<1024x1024xbf16, #tpu.memory_space<vmem>>, vector<1024x1024xbf16>
    %cst_162 = arith.constant dense<0.000000e+00> : vector<8x1024xf32>
    %113 = tpu.matmul %111, %112, %cst_162 {dimension_numbers = #tpu.dot_dimension_numbers<[1], [0], [0], [1], [0, 0, 1, 1], [], []>} : vector<8x1024xbf16>, vector<1024x1024xbf16>, vector<8x1024xf32> -> vector<8x1024xf32>
    %c0_163 = arith.constant 0 : index
    %c0_164 = arith.constant 0 : index
    %114 = vector.load %arg8[%c0_163, %c0_164] : memref<1x1024xf32, #tpu.memory_space<vmem>>, vector<1x1024xf32>
    %115 = vector.broadcast %114 : vector<1x1024xf32> to vector<8x1024xf32>
    %116 = arith.addf %113, %115 : vector<8x1024xf32>
    %117 = vector.extract_strided_slice %116 {offsets = [0, 0], sizes = [8, 512], strides = [1, 1]} : vector<8x1024xf32> to vector<8x512xf32>
    %cst_165 = arith.constant 0.000000e+00 : f32
    %118 = vector.broadcast %cst_165 : f32 to vector<8x512xf32>
    %119 = arith.maximumf %117, %118 : vector<8x512xf32>
    %120 = arith.truncf %119 : vector<8x512xf32> to vector<8x512xbf16>
    %c0_166 = arith.constant 0 : index
    %c0_167 = arith.constant 0 : index
    %121 = vector.load %arg9[%c0_166, %c0_167] : memref<512x512xbf16, #tpu.memory_space<vmem>>, vector<512x512xbf16>
    %cst_168 = arith.constant dense<0.000000e+00> : vector<8x512xf32>
    %122 = tpu.matmul %120, %121, %cst_168 {dimension_numbers = #tpu.dot_dimension_numbers<[1], [0], [0], [1], [0, 0, 1, 1], [], []>} : vector<8x512xbf16>, vector<512x512xbf16>, vector<8x512xf32> -> vector<8x512xf32>
    %c0_169 = arith.constant 0 : index
    %c0_170 = arith.constant 0 : index
    %123 = vector.load %arg10[%c0_169, %c0_170] : memref<1x512xf32, #tpu.memory_space<vmem>>, vector<1x512xf32>
    %124 = vector.broadcast %123 : vector<1x512xf32> to vector<8x512xf32>
    %125 = arith.addf %122, %124 : vector<8x512xf32>
    %126 = vector.extract_strided_slice %116 {offsets = [0, 512], sizes = [8, 512], strides = [1, 1]} : vector<8x1024xf32> to vector<8x512xf32>
    %127 = arith.addf %126, %125 : vector<8x512xf32>
    %cst_171 = arith.constant 0.000000e+00 : f32
    %128 = vector.broadcast %cst_171 : f32 to vector<8x512xf32>
    %129 = arith.maximumf %127, %128 : vector<8x512xf32>
    %c0_172 = arith.constant 0 : index
    %c0_173 = arith.constant 0 : index
    %130 = vector.load %arg22[%c0_172, %c0_173] : memref<8x512xf32, #tpu.memory_space<vmem>>, vector<8x512xf32>
    tpu.vector_store %arg22[%c0_172, %c0_173], %129 {strides = array<i32>} : memref<8x512xf32, #tpu.memory_space<vmem>>, vector<8x512xf32>,
    %c0_174 = arith.constant 0 : index
    %c0_175 = arith.constant 0 : index
    %131 = vector.load %arg22[%c0_174, %c0_175] : memref<8x512xf32, #tpu.memory_space<vmem>>, vector<1x512xf32>
    %c0_176 = arith.constant 0 : index
    %c0_177 = arith.constant 0 : index
    %132 = vector.load %arg23[%c0_176, %c0_177] : memref<2x2048xf32, #tpu.memory_space<vmem>>, vector<1x512xf32>
    tpu.vector_store %arg23[%c0_176, %c0_177], %131 {strides = array<i32>} : memref<2x2048xf32, #tpu.memory_space<vmem>>, vector<1x512xf32>,
    %c1_178 = arith.constant 1 : index
    %c0_179 = arith.constant 0 : index
    %133 = vector.load %arg22[%c1_178, %c0_179] : memref<8x512xf32, #tpu.memory_space<vmem>>, vector<1x512xf32>
    %c0_180 = arith.constant 0 : index
    %c512_181 = arith.constant 512 : index
    %134 = vector.load %arg23[%c0_180, %c512_181] : memref<2x2048xf32, #tpu.memory_space<vmem>>, vector<1x512xf32>
    tpu.vector_store %arg23[%c0_180, %c512_181], %133 {strides = array<i32>} : memref<2x2048xf32, #tpu.memory_space<vmem>>, vector<1x512xf32>,
    %c2_182 = arith.constant 2 : index
    %c0_183 = arith.constant 0 : index
    %135 = vector.load %arg22[%c2_182, %c0_183] : memref<8x512xf32, #tpu.memory_space<vmem>>, vector<1x512xf32>
    %c0_184 = arith.constant 0 : index
    %c1024 = arith.constant 1024 : index
    %136 = vector.load %arg23[%c0_184, %c1024] : memref<2x2048xf32, #tpu.memory_space<vmem>>, vector<1x512xf32>
    tpu.vector_store %arg23[%c0_184, %c1024], %135 {strides = array<i32>} : memref<2x2048xf32, #tpu.memory_space<vmem>>, vector<1x512xf32>,
    %c3_185 = arith.constant 3 : index
    %c0_186 = arith.constant 0 : index
    %137 = vector.load %arg22[%c3_185, %c0_186] : memref<8x512xf32, #tpu.memory_space<vmem>>, vector<1x512xf32>
    %c0_187 = arith.constant 0 : index
    %c1536 = arith.constant 1536 : index
    %138 = vector.load %arg23[%c0_187, %c1536] : memref<2x2048xf32, #tpu.memory_space<vmem>>, vector<1x512xf32>
    tpu.vector_store %arg23[%c0_187, %c1536], %137 {strides = array<i32>} : memref<2x2048xf32, #tpu.memory_space<vmem>>, vector<1x512xf32>,
    %c4_188 = arith.constant 4 : index
    %c0_189 = arith.constant 0 : index
    %139 = vector.load %arg22[%c4_188, %c0_189] : memref<8x512xf32, #tpu.memory_space<vmem>>, vector<1x512xf32>
    %c1_190 = arith.constant 1 : index
    %c0_191 = arith.constant 0 : index
    %140 = vector.load %arg23[%c1_190, %c0_191] : memref<2x2048xf32, #tpu.memory_space<vmem>>, vector<1x512xf32>
    tpu.vector_store %arg23[%c1_190, %c0_191], %139 {strides = array<i32>} : memref<2x2048xf32, #tpu.memory_space<vmem>>, vector<1x512xf32>,
    %c5_192 = arith.constant 5 : index
    %c0_193 = arith.constant 0 : index
    %141 = vector.load %arg22[%c5_192, %c0_193] : memref<8x512xf32, #tpu.memory_space<vmem>>, vector<1x512xf32>
    %c1_194 = arith.constant 1 : index
    %c512_195 = arith.constant 512 : index
    %142 = vector.load %arg23[%c1_194, %c512_195] : memref<2x2048xf32, #tpu.memory_space<vmem>>, vector<1x512xf32>
    tpu.vector_store %arg23[%c1_194, %c512_195], %141 {strides = array<i32>} : memref<2x2048xf32, #tpu.memory_space<vmem>>, vector<1x512xf32>,
    %c6_196 = arith.constant 6 : index
    %c0_197 = arith.constant 0 : index
    %143 = vector.load %arg22[%c6_196, %c0_197] : memref<8x512xf32, #tpu.memory_space<vmem>>, vector<1x512xf32>
    %c1_198 = arith.constant 1 : index
    %c1024_199 = arith.constant 1024 : index
    %144 = vector.load %arg23[%c1_198, %c1024_199] : memref<2x2048xf32, #tpu.memory_space<vmem>>, vector<1x512xf32>
    tpu.vector_store %arg23[%c1_198, %c1024_199], %143 {strides = array<i32>} : memref<2x2048xf32, #tpu.memory_space<vmem>>, vector<1x512xf32>,
    %c7_200 = arith.constant 7 : index
    %c0_201 = arith.constant 0 : index
    %145 = vector.load %arg22[%c7_200, %c0_201] : memref<8x512xf32, #tpu.memory_space<vmem>>, vector<1x512xf32>
    %c1_202 = arith.constant 1 : index
    %c1536_203 = arith.constant 1536 : index
    %146 = vector.load %arg23[%c1_202, %c1536_203] : memref<2x2048xf32, #tpu.memory_space<vmem>>, vector<1x512xf32>
    tpu.vector_store %arg23[%c1_202, %c1536_203], %145 {strides = array<i32>} : memref<2x2048xf32, #tpu.memory_space<vmem>>, vector<1x512xf32>,
    %c0_204 = arith.constant 0 : index
    %c0_205 = arith.constant 0 : index
    %147 = vector.load %arg23[%c0_204, %c0_205] : memref<2x2048xf32, #tpu.memory_space<vmem>>, vector<2x2048xf32>
    %148 = arith.truncf %147 : vector<2x2048xf32> to vector<2x2048xbf16>
    %c0_206 = arith.constant 0 : index
    %c0_207 = arith.constant 0 : index
    %149 = vector.load %arg11[%c0_206, %c0_207] : memref<2048x512xbf16, #tpu.memory_space<vmem>>, vector<2048x512xbf16>
    %cst_208 = arith.constant dense<0.000000e+00> : vector<2x512xf32>
    %150 = tpu.matmul %148, %149, %cst_208 {dimension_numbers = #tpu.dot_dimension_numbers<[1], [0], [0], [1], [0, 0, 1, 1], [], []>} : vector<2x2048xbf16>, vector<2048x512xbf16>, vector<2x512xf32> -> vector<2x512xf32>
    %c0_209 = arith.constant 0 : index
    %c0_210 = arith.constant 0 : index
    %151 = vector.load %arg12[%c0_209, %c0_210] : memref<1x512xf32, #tpu.memory_space<vmem>>, vector<1x512xf32>
    %152 = vector.broadcast %151 : vector<1x512xf32> to vector<2x512xf32>
    %153 = arith.addf %150, %152 : vector<2x512xf32>
    %154 = vector.extract_strided_slice %153 {offsets = [0, 0], sizes = [2, 256], strides = [1, 1]} : vector<2x512xf32> to vector<2x256xf32>
    %155 = arith.truncf %154 : vector<2x256xf32> to vector<2x256xbf16>
    %c0_211 = arith.constant 0 : index
    %c0_212 = arith.constant 0 : index
    %156 = vector.load %arg13[%c0_211, %c0_212] : memref<256x4xbf16, #tpu.memory_space<vmem>>, vector<256x4xbf16>
    %cst_213 = arith.constant dense<0.000000e+00> : vector<2x4xf32>
    %157 = tpu.matmul %155, %156, %cst_213 {dimension_numbers = #tpu.dot_dimension_numbers<[1], [0], [0], [1], [0, 0, 1, 1], [], []>} : vector<2x256xbf16>, vector<256x4xbf16>, vector<2x4xf32> -> vector<2x4xf32>
    %c0_214 = arith.constant 0 : index
    %c0_215 = arith.constant 0 : index
    %158 = vector.load %arg14[%c0_214, %c0_215] : memref<1x4xf32, #tpu.memory_space<vmem>>, vector<1x4xf32>
    %159 = vector.broadcast %158 : vector<1x4xf32> to vector<2x4xf32>
    %160 = arith.addf %157, %159 : vector<2x4xf32>
    %161 = vector.extract_strided_slice %153 {offsets = [0, 256], sizes = [2, 256], strides = [1, 1]} : vector<2x512xf32> to vector<2x256xf32>
    %162 = arith.truncf %161 : vector<2x256xf32> to vector<2x256xbf16>
    %c0_216 = arith.constant 0 : index
    %c0_217 = arith.constant 0 : index
    %163 = vector.load %arg15[%c0_216, %c0_217] : memref<256x1xbf16, #tpu.memory_space<vmem>>, vector<256x1xbf16>
    %cst_218 = arith.constant dense<0.000000e+00> : vector<2x1xf32>
    %164 = tpu.matmul %162, %163, %cst_218 {dimension_numbers = #tpu.dot_dimension_numbers<[1], [0], [0], [1], [0, 0, 1, 1], [], []>} : vector<2x256xbf16>, vector<256x1xbf16>, vector<2x1xf32> -> vector<2x1xf32>
    %c0_219 = arith.constant 0 : index
    %c0_220 = arith.constant 0 : index
    %165 = vector.load %arg16[%c0_219, %c0_220] : memref<1x1xf32, #tpu.memory_space<vmem>>, vector<1x1xf32>
    %166 = vector.broadcast %165 : vector<1x1xf32> to vector<2x1xf32>
    %167 = arith.addf %164, %166 : vector<2x1xf32>
    %168 = vector.broadcast %167 : vector<2x1xf32> to vector<2x4xf32>
    %169 = arith.addf %168, %160 : vector<2x4xf32>
    %cst_221 = arith.constant dense<0.000000e+00> : vector<2xf32>
    %170 = vector.multi_reduction <add>, %160, %cst_221 [1] : vector<2x4xf32> to vector<2xf32>
    %171 = vector.shape_cast %170 : vector<2xf32> to vector<2x1xf32>
    %cst_222 = arith.constant 4.000000e+00 : f32
    %172 = vector.broadcast %cst_222 : f32 to vector<2x1xf32>
    %173 = arith.divf %171, %172 : vector<2x1xf32>
    %174 = vector.broadcast %173 : vector<2x1xf32> to vector<2x4xf32>
    %175 = arith.subf %169, %174 : vector<2x4xf32>
    %cst_223 = arith.constant dense<0xFF800000> : vector<2xf32>
    %176 = vector.multi_reduction <maximumf>, %175, %cst_223 [1] : vector<2x4xf32> to vector<2xf32>
    %177 = vector.shape_cast %176 : vector<2xf32> to vector<2x1xf32>
    %178 = vector.broadcast %177 : vector<2x1xf32> to vector<2x4xf32>
    %179 = arith.subf %175, %178 : vector<2x4xf32>
    %180 = math.exp %179 : vector<2x4xf32>
    %cst_224 = arith.constant dense<0.000000e+00> : vector<2xf32>
    %181 = vector.multi_reduction <add>, %180, %cst_224 [1] : vector<2x4xf32> to vector<2xf32>
    %182 = vector.shape_cast %181 : vector<2xf32> to vector<2x1xf32>
    %183 = math.log %182 : vector<2x1xf32>
    %184 = vector.broadcast %183 : vector<2x1xf32> to vector<2x4xf32>
    %185 = arith.subf %179, %184 : vector<2x4xf32>
    %c0_225 = arith.constant 0 : index
    %c0_226 = arith.constant 0 : index
    %186 = vector.load %arg17[%c0_225, %c0_226] : memref<2x4xf32, #tpu.memory_space<vmem>>, vector<2x4xf32>
    tpu.vector_store %arg17[%c0_225, %c0_226], %185 {strides = array<i32>} : memref<2x4xf32, #tpu.memory_space<vmem>>, vector<2x4xf32>,
    return
  }
}

</mosaic_0001>

<llo_original>
// kernel: conv_block_forward.1
$region0: #{conv_block_forward.1}
  #allocation0 [shape = 'u32[]', space=smem, size = 0x4, offset = 0x4, fixed_abs, tag = 'smem constant byte address 0x4 - core index']
  #allocation1 [shape = 'u32[72,128]{1,0:T(1,128)}', space=vmem, size = 0x9000, scoped, tag = 'internal scratch']
  #allocation2 [shape = 'f32[32,128]{1,0:T(8,128)}', space=vmem, size = 0x4000, scoped, tag = 'scratch operand']
  #allocation3 [shape = 'f32[18,512]{1,0:T(8,128)}', space=vmem, size = 0xc000, scoped, tag = 'scratch operand']
  #allocation4 [shape = 'f32[18,256]{1,0:T(8,128)}', space=vmem, size = 0x6000, scoped, tag = 'scratch operand']
  #allocation5 [shape = 'f32[8,1024]{1,0:T(8,128)}', space=vmem, size = 0x8000, scoped, tag = 'scratch operand']
  #allocation6 [shape = 'f32[8,512]{1,0:T(8,128)}', space=vmem, size = 0x4000, scoped, tag = 'scratch operand']
  #allocation7 [shape = 'f32[2,2048]{1,0:T(2,128)}', space=vmem, size = 0x4000, scoped, tag = 'scratch operand']
  #allocation8 [shape = 'f32[1,1]{1,0:T(1,128)S(1)}', space=vmem, size = 0x200, scoped, tag = 'scoped memory for conv_block_forward.1']
  %s0 = inlined_call_operand.vmem [shape: bf16[32,16], index: 0, kind: input, shape index: {}]
  %s1 = inlined_call_operand.hbm [shape: bf16[16,128], index: 1, kind: input, shape index: {}]
  %s2 = inlined_call_operand.hbm [shape: f32[1,128], index: 2, kind: input, shape index: {}]
  %s3 = inlined_call_operand.hbm [shape: bf16[512,512], index: 3, kind: input, shape index: {}]
  %s4 = inlined_call_operand.hbm [shape: f32[1,512], index: 4, kind: input, shape index: {}]
  %s5 = inlined_call_operand.hbm [shape: bf16[256,256], index: 5, kind: input, shape index: {}]
  %s6 = inlined_call_operand.hbm [shape: f32[1,256], index: 6, kind: input, shape index: {}]
  %s7 = inlined_call_operand.hbm [shape: bf16[1024,1024], index: 7, kind: input, shape index: {}]
  %s8 = inlined_call_operand.hbm [shape: f32[1,1024], index: 8, kind: input, shape index: {}]
  %s9 = inlined_call_operand.hbm [shape: bf16[512,512], index: 9, kind: input, shape index: {}]
  %s10 = inlined_call_operand.hbm [shape: f32[1,512], index: 10, kind: input, shape index: {}]
  %s11 = inlined_call_operand.hbm [shape: bf16[2048,512], index: 11, kind: input, shape index: {}]
  %s12 = inlined_call_operand.hbm [shape: f32[1,512], index: 12, kind: input, shape index: {}]
  %s13 = inlined_call_operand.vmem [shape: bf16[256,4], index: 13, kind: input, shape index: {}]
  %s14 = inlined_call_operand.hbm [shape: f32[1,4], index: 14, kind: input, shape index: {}]
  %s15 = inlined_call_operand.vmem [shape: bf16[256,1], index: 15, kind: input, shape index: {}]
  %s16 = inlined_call_operand.<no memory space> [shape: f32[1,1], index: 16, kind: input, shape index: {}]
  %s17 = inlined_call_operand.hbm [shape: f32[2,4], index: 17, kind: output, shape index: {}]
  %s18 = sld [smem:[#allocation0]]
  $region130: #{conv_block_forward.1} parent=0
    _
  %s20 = ssub.s32 1, %s18
  %s21 = scalar_select 0, %s20, %s18
  %v22 = vstv %s16
  %23 = vst [vmem:[#allocation8] sm:$0x1] %v22
  $region1: #{conv_block_forward.1} parent=0
    #allocation9 [shape = 'u8[4096]{0}', space=vmem, size = 0x1000, scoped, tag = 'input window, operand 1, single buffered']
    #allocation10 [shape = 's32[1]{0}', space=sflag, size = 0x4, scoped, tag = 'scoped memory for conv_block_forward.1']
    #allocation11 [shape = 's32[1]{0}', space=sflag, size = 0x4, scoped, tag = 'scoped memory for conv_block_forward.1']
    #allocation12 [shape = 'u8[512]{0}', space=vmem, size = 0x400, scoped, tag = 'input window, operand 2, single buffered']
    #allocation13 [shape = 's32[1]{0}', space=sflag, size = 0x4, scoped, tag = 'scoped memory for conv_block_forward.1']
    #allocation14 [shape = 'u8[524288]{0}', space=vmem, size = 0x80000, scoped, tag = 'input window, operand 3, single buffered']
    #allocation15 [shape = 'u8[2048]{0}', space=vmem, size = 0x800, scoped, tag = 'input window, operand 4, single buffered']
    #allocation16 [shape = 's32[1]{0}', space=sflag, size = 0x4, scoped, tag = 'scoped memory for conv_block_forward.1']
    #allocation17 [shape = 'u8[131072]{0}', space=vmem, size = 0x20000, scoped, tag = 'input window, operand 5, single buffered']
    #allocation18 [shape = 'u8[1024]{0}', space=vmem, size = 0x400, scoped, tag = 'input window, operand 6, single buffered']
    #allocation19 [shape = 's32[1]{0}', space=sflag, size = 0x4, scoped, tag = 'scoped memory for conv_block_forward.1']
    #allocation20 [shape = 'u8[2097152]{0}', space=vmem, size = 0x200000, scoped, tag = 'input window, operand 7, single buffered']
    #allocation21 [shape = 'u8[4096]{0}', space=vmem, size = 0x1000, scoped, tag = 'input window, operand 8, single buffered']
    #allocation22 [shape = 's32[1]{0}', space=sflag, size = 0x4, scoped, tag = 'scoped memory for conv_block_forward.1']
    #allocation23 [shape = 'u8[524288]{0}', space=vmem, size = 0x80000, scoped, tag = 'input window, operand 9, single buffered']
    #allocation24 [shape = 'u8[2048]{0}', space=vmem, size = 0x800, scoped, tag = 'input window, operand 10, single buffered']
    #allocation25 [shape = 's32[1]{0}', space=sflag, size = 0x4, scoped, tag = 'scoped memory for conv_block_forward.1']
    #allocation26 [shape = 'u8[2097152]{0}', space=vmem, size = 0x200000, scoped, tag = 'input window, operand 11, single buffered']
    #allocation27 [shape = 'u8[2048]{0}', space=vmem, size = 0x800, scoped, tag = 'input window, operand 12, single buffered']
    #allocation28 [shape = 's32[1]{0}', space=sflag, size = 0x4, scoped, tag = 'scoped memory for conv_block_forward.1']
    #allocation29 [shape = 'u8[512]{0}', space=vmem, size = 0x400, scoped, tag = 'input window, operand 14, single buffered']
    #allocation30 [shape = 'u8[1024]{0}', space=vmem, size = 0x400, scoped, tag = 'output window, operand 0, single buffered']
    %24 = vsyncpa [#allocation10], 0
    %25 = vsyncpa [#allocation13], 0
    %26 = vsyncpa [#allocation16], 0
    %27 = vsyncpa [#allocation19], 0
    %28 = vsyncpa [#allocation22], 0
    %29 = vsyncpa [#allocation25], 0
    %30 = vsyncpa [#allocation28], 0
    %31 = vsyncpa [#allocation11], 0
    // Predicated region
    $region2: #{conv_block_forward.1} parent=1 // pred_check
      _
    $region3: #{conv_block_forward.1} parent=1 // pred_check_branch
      %33 = sbr.rel (0) target = $region5
    $region4: #{conv_block_forward.1} parent=1 // pred_region
      _
    $region5: #{conv_block_forward.1} parent=1 // pred_fallthru
      _
    // Predicated region
    $region6: #{conv_block_forward.1} parent=1 // pred_check
      _
    $region7: #{conv_block_forward.1} parent=1 // pred_check_branch
      %35 = sbr.rel (0) target = $region9
    $region8: #{conv_block_forward.1} parent=1 // pred_region
      %37 = vsyncadd [#allocation10], 0
      %s38 = sshll.u32 %s1, 4
      %s39 = int_to_ptr.hbm [resolvable:$true] %s38
      %s40 = sshll.u32 [#allocation9], 4
      %s41 = int_to_ptr.vmem [resolvable:$true] %s40
      %46 = dma.hbm_to_vmem [thread:$0]  %s39, 128, %s41, [#allocation10], 64, 64, 4
    $region9: #{conv_block_forward.1} parent=1 // pred_fallthru
      _
    // Predicated region
    $region10: #{conv_block_forward.1} parent=1 // pred_check
      _
    $region11: #{conv_block_forward.1} parent=1 // pred_check_branch
      %48 = sbr.rel (0) target = $region13
    $region12: #{conv_block_forward.1} parent=1 // pred_region
      %50 = vsyncadd [#allocation13], 0
      %s52 = sshll.u32 %s2, 4
      %s53 = int_to_ptr.hbm [resolvable:$true] %s52
      %s54 = sshll.u32 [#allocation12], 4
      %s55 = int_to_ptr.vmem [resolvable:$true] %s54
      %57 = dma.hbm_to_vmem [thread:$0]  %s53, 16, %s55, [#allocation13]
    $region13: #{conv_block_forward.1} parent=1 // pred_fallthru
      _
    // Predicated region
    $region14: #{conv_block_forward.1} parent=1 // pred_check
      _
    $region15: #{conv_block_forward.1} parent=1 // pred_check_branch
      %59 = sbr.rel (0) target = $region17
    $region16: #{conv_block_forward.1} parent=1 // pred_region
      %61 = vsyncadd [#allocation13], 0
      %s62 = sshll.u32 %s3, 4
      %s63 = int_to_ptr.hbm [resolvable:$true] %s62
      %s64 = sshll.u32 [#allocation14], 4
      %s65 = int_to_ptr.vmem [resolvable:$true] %s64
      %70 = dma.hbm_to_vmem [thread:$0]  %s63, 16384, %s65, [#allocation13], 256, 256, 16
    $region17: #{conv_block_forward.1} parent=1 // pred_fallthru
      _
    // Predicated region
    $region18: #{conv_block_forward.1} parent=1 // pred_check
      _
    $region19: #{conv_block_forward.1} parent=1 // pred_check_branch
      %72 = sbr.rel (0) target = $region21
    $region20: #{conv_block_forward.1} parent=1 // pred_region
      %74 = vsyncadd [#allocation16], 0
      %s76 = sshll.u32 %s4, 4
      %s77 = int_to_ptr.hbm [resolvable:$true] %s76
      %s78 = sshll.u32 [#allocation15], 4
      %s79 = int_to_ptr.vmem [resolvable:$true] %s78
      %81 = dma.hbm_to_vmem [thread:$0]  %s77, 64, %s79, [#allocation16]
    $region21: #{conv_block_forward.1} parent=1 // pred_fallthru
      _
    // Predicated region
    $region22: #{conv_block_forward.1} parent=1 // pred_check
      _
    $region23: #{conv_block_forward.1} parent=1 // pred_check_branch
      %83 = sbr.rel (0) target = $region25
    $region24: #{conv_block_forward.1} parent=1 // pred_region
      %85 = vsyncadd [#allocation16], 0
      %s86 = sshll.u32 %s5, 4
      %s87 = int_to_ptr.hbm [resolvable:$true] %s86
      %s88 = sshll.u32 [#allocation17], 4
      %s89 = int_to_ptr.vmem [resolvable:$true] %s88
      %94 = dma.hbm_to_vmem [thread:$0]  %s87, 4096, %s89, [#allocation16], 128, 128, 8
    $region25: #{conv_block_forward.1} parent=1 // pred_fallthru
      _
    // Predicated region
    $region26: #{conv_block_forward.1} parent=1 // pred_check
      _
    $region27: #{conv_block_forward.1} parent=1 // pred_check_branch
      %96 = sbr.rel (0) target = $region29
    $region28: #{conv_block_forward.1} parent=1 // pred_region
      %98 = vsyncadd [#allocation19], 0
      %s100 = sshll.u32 %s6, 4
      %s101 = int_to_ptr.hbm [resolvable:$true] %s100
      %s102 = sshll.u32 [#allocation18], 4
      %s103 = int_to_ptr.vmem [resolvable:$true] %s102
      %105 = dma.hbm_to_vmem [thread:$0]  %s101, 32, %s103, [#allocation19]
    $region29: #{conv_block_forward.1} parent=1 // pred_fallthru
      _
    // Predicated region
    $region30: #{conv_block_forward.1} parent=1 // pred_check
      _
    $region31: #{conv_block_forward.1} parent=1 // pred_check_branch
      %107 = sbr.rel (0) target = $region33
    $region32: #{conv_block_forward.1} parent=1 // pred_region
      %109 = vsyncadd [#allocation19], 0
      %s110 = sshll.u32 %s7, 4
      %s111 = int_to_ptr.hbm [resolvable:$true] %s110
      %s112 = sshll.u32 [#allocation20], 4
      %s113 = int_to_ptr.vmem [resolvable:$true] %s112
      %118 = dma.hbm_to_vmem [thread:$0]  %s111, 65536, %s113, [#allocation19], 512, 512, 32
    $region33: #{conv_block_forward.1} parent=1 // pred_fallthru
      _
    // Predicated region
    $region34: #{conv_block_forward.1} parent=1 // pred_check
      _
    $region35: #{conv_block_forward.1} parent=1 // pred_check_branch
      %120 = sbr.rel (0) target = $region37
    $region36: #{conv_block_forward.1} parent=1 // pred_region
      %122 = vsyncadd [#allocation22], 0
      %s124 = sshll.u32 %s8, 4
      %s125 = int_to_ptr.hbm [resolvable:$true] %s124
      %s126 = sshll.u32 [#allocation21], 4
      %s127 = int_to_ptr.vmem [resolvable:$true] %s126
      %129 = dma.hbm_to_vmem [thread:$0]  %s125, 128, %s127, [#allocation22]
    $region37: #{conv_block_forward.1} parent=1 // pred_fallthru
      _
    // Predicated region
    $region38: #{conv_block_forward.1} parent=1 // pred_check
      _
    $region39: #{conv_block_forward.1} parent=1 // pred_check_branch
      %131 = sbr.rel (0) target = $region41
    $region40: #{conv_block_forward.1} parent=1 // pred_region
      %133 = vsyncadd [#allocation22], 0
      %s134 = sshll.u32 %s9, 4
      %s135 = int_to_ptr.hbm [resolvable:$true] %s134
      %s136 = sshll.u32 [#allocation23], 4
      %s137 = int_to_ptr.vmem [resolvable:$true] %s136
      %142 = dma.hbm_to_vmem [thread:$0]  %s135, 16384, %s137, [#allocation22], 256, 256, 16
    $region41: #{conv_block_forward.1} parent=1 // pred_fallthru
      _
    // Predicated region
    $region42: #{conv_block_forward.1} parent=1 // pred_check
      _
    $region43: #{conv_block_forward.1} parent=1 // pred_check_branch
      %144 = sbr.rel (0) target = $region45
    $region44: #{conv_block_forward.1} parent=1 // pred_region
      %146 = vsyncadd [#allocation25], 0
      %s148 = sshll.u32 %s10, 4
      %s149 = int_to_ptr.hbm [resolvable:$true] %s148
      %s150 = sshll.u32 [#allocation24], 4
      %s151 = int_to_ptr.vmem [resolvable:$true] %s150
      %153 = dma.hbm_to_vmem [thread:$0]  %s149, 64, %s151, [#allocation25]
    $region45: #{conv_block_forward.1} parent=1 // pred_fallthru
      _
    // Predicated region
    $region46: #{conv_block_forward.1} parent=1 // pred_check
      _
    $region47: #{conv_block_forward.1} parent=1 // pred_check_branch
      %155 = sbr.rel (0) target = $region49
    $region48: #{conv_block_forward.1} parent=1 // pred_region
      %157 = vsyncadd [#allocation25], 0
      %s158 = sshll.u32 %s11, 4
      %s159 = int_to_ptr.hbm [resolvable:$true] %s158
      %s160 = sshll.u32 [#allocation26], 4
      %s161 = int_to_ptr.vmem [resolvable:$true] %s160
      %166 = dma.hbm_to_vmem [thread:$0]  %s159, 65536, %s161, [#allocation25], 256, 256, 16
    $region49: #{conv_block_forward.1} parent=1 // pred_fallthru
      _
    // Predicated region
    $region50: #{conv_block_forward.1} parent=1 // pred_check
      _
    $region51: #{conv_block_forward.1} parent=1 // pred_check_branch
      %168 = sbr.rel (0) target = $region53
    $region52: #{conv_block_forward.1} parent=1 // pred_region
      %170 = vsyncadd [#allocation28], 0
      %s172 = sshll.u32 %s12, 4
      %s173 = int_to_ptr.hbm [resolvable:$true] %s172
      %s174 = sshll.u32 [#allocation27], 4
      %s175 = int_to_ptr.vmem [resolvable:$true] %s174
      %177 = dma.hbm_to_vmem [thread:$0]  %s173, 64, %s175, [#allocation28]
    $region53: #{conv_block_forward.1} parent=1 // pred_fallthru
      _
    // Predicated region
    $region54: #{conv_block_forward.1} parent=1 // pred_check
      _
    $region55: #{conv_block_forward.1} parent=1 // pred_check_branch
      %179 = sbr.rel (0) target = $region57
    $region56: #{conv_block_forward.1} parent=1 // pred_region
      _
    $region57: #{conv_block_forward.1} parent=1 // pred_fallthru
      _
    // Predicated region
    $region58: #{conv_block_forward.1} parent=1 // pred_check
      _
    $region59: #{conv_block_forward.1} parent=1 // pred_check_branch
      %181 = sbr.rel (0) target = $region61
    $region60: #{conv_block_forward.1} parent=1 // pred_region
      %183 = vsyncadd [#allocation28], 0
      %s185 = sshll.u32 %s14, 4
      %s186 = int_to_ptr.hbm [resolvable:$true] %s185
      %s187 = sshll.u32 [#allocation29], 4
      %s188 = int_to_ptr.vmem [resolvable:$true] %s187
      %190 = dma.hbm_to_vmem [thread:$0]  %s186, 16, %s188, [#allocation28]
    $region61: #{conv_block_forward.1} parent=1 // pred_fallthru
      _
    // Predicated region
    $region62: #{conv_block_forward.1} parent=1 // pred_check
      _
    $region63: #{conv_block_forward.1} parent=1 // pred_check_branch
      %192 = sbr.rel (0) target = $region65
    $region64: #{conv_block_forward.1} parent=1 // pred_region
      _
    $region65: #{conv_block_forward.1} parent=1 // pred_fallthru
      _
    // Predicated region
    $region66: #{conv_block_forward.1} parent=1 // pred_check
      _
    $region67: #{conv_block_forward.1} parent=1 // pred_check_branch
      %194 = sbr.rel (0) target = $region69
    $region68: #{conv_block_forward.1} parent=1 // pred_region
      _
    $region69: #{conv_block_forward.1} parent=1 // pred_fallthru
      _
    // Predicated region
    $region70: #{conv_block_forward.1} parent=1 // pred_check
      _
    $region71: #{conv_block_forward.1} parent=1 // pred_check_branch
      %196 = sbr.rel (0) target = $region73
    $region72: #{conv_block_forward.1} parent=1 // pred_region
      %198 = dma.done [#allocation10], 128
    $region73: #{conv_block_forward.1} parent=1 // pred_fallthru
      _
    // Predicated region
    $region74: #{conv_block_forward.1} parent=1 // pred_check
      _
    $region75: #{conv_block_forward.1} parent=1 // pred_check_branch
      %200 = sbr.rel (0) target = $region77
    $region76: #{conv_block_forward.1} parent=1 // pred_region
      %202 = dma.done [#allocation13], 16
    $region77: #{conv_block_forward.1} parent=1 // pred_fallthru
      _
    // Predicated region
    $region78: #{conv_block_forward.1} parent=1 // pred_check
      _
    $region79: #{conv_block_forward.1} parent=1 // pred_check_branch
      %204 = sbr.rel (0) target = $region81
    $region80: #{conv_block_forward.1} parent=1 // pred_region
      %206 = dma.done [#allocation13], 16384
    $region81: #{conv_block_forward.1} parent=1 // pred_fallthru
      _
    // Predicated region
    $region82: #{conv_block_forward.1} parent=1 // pred_check
      _
    $region83: #{conv_block_forward.1} parent=1 // pred_check_branch
      %208 = sbr.rel (0) target = $region85
    $region84: #{conv_block_forward.1} parent=1 // pred_region
      %210 = dma.done [#allocation16], 64
    $region85: #{conv_block_forward.1} parent=1 // pred_fallthru
      _
    // Predicated region
    $region86: #{conv_block_forward.1} parent=1 // pred_check
      _
    $region87: #{conv_block_forward.1} parent=1 // pred_check_branch
      %212 = sbr.rel (0) target = $region89
    $region88: #{conv_block_forward.1} parent=1 // pred_region
      %214 = dma.done [#allocation16], 4096
    $region89: #{conv_block_forward.1} parent=1 // pred_fallthru
      _
    // Predicated region
    $region90: #{conv_block_forward.1} parent=1 // pred_check
      _
    $region91: #{conv_block_forward.1} parent=1 // pred_check_branch
      %216 = sbr.rel (0) target = $region93
    $region92: #{conv_block_forward.1} parent=1 // pred_region
      %218 = dma.done [#allocation19], 32
    $region93: #{conv_block_forward.1} parent=1 // pred_fallthru
      _
    // Predicated region
    $region94: #{conv_block_forward.1} parent=1 // pred_check
      _
    $region95: #{conv_block_forward.1} parent=1 // pred_check_branch
      %220 = sbr.rel (0) target = $region97
    $region96: #{conv_block_forward.1} parent=1 // pred_region
      %222 = dma.done [#allocation19], 65536
    $region97: #{conv_block_forward.1} parent=1 // pred_fallthru
      _
    // Predicated region
    $region98: #{conv_block_forward.1} parent=1 // pred_check
      _
    $region99: #{conv_block_forward.1} parent=1 // pred_check_branch
      %224 = sbr.rel (0) target = $region101
    $region100: #{conv_block_forward.1} parent=1 // pred_region
      %226 = dma.done [#allocation22], 128
    $region101: #{conv_block_forward.1} parent=1 // pred_fallthru
      _
    // Predicated region
    $region102: #{conv_block_forward.1} parent=1 // pred_check
      _
    $region103: #{conv_block_forward.1} parent=1 // pred_check_branch
      %228 = sbr.rel (0) target = $region105
    $region104: #{conv_block_forward.1} parent=1 // pred_region
      %230 = dma.done [#allocation22], 16384
    $region105: #{conv_block_forward.1} parent=1 // pred_fallthru
      _
    // Predicated region
    $region106: #{conv_block_forward.1} parent=1 // pred_check
      _
    $region107: #{conv_block_forward.1} parent=1 // pred_check_branch
      %232 = sbr.rel (0) target = $region109
    $region108: #{conv_block_forward.1} parent=1 // pred_region
      %234 = dma.done [#allocation25], 64
    $region109: #{conv_block_forward.1} parent=1 // pred_fallthru
      _
    // Predicated region
    $region110: #{conv_block_forward.1} parent=1 // pred_check
      _
    $region111: #{conv_block_forward.1} parent=1 // pred_check_branch
      %236 = sbr.rel (0) target = $region113
    $region112: #{conv_block_forward.1} parent=1 // pred_region
      %238 = dma.done [#allocation25], 65536
    $region113: #{conv_block_forward.1} parent=1 // pred_fallthru
      _
    // Predicated region
    $region114: #{conv_block_forward.1} parent=1 // pred_check
      _
    $region115: #{conv_block_forward.1} parent=1 // pred_check_branch
      %240 = sbr.rel (0) target = $region117
    $region116: #{conv_block_forward.1} parent=1 // pred_region
      %242 = dma.done [#allocation28], 64
    $region117: #{conv_block_forward.1} parent=1 // pred_fallthru
      _
    // Predicated region
    $region118: #{conv_block_forward.1} parent=1 // pred_check
      _
    $region119: #{conv_block_forward.1} parent=1 // pred_check_branch
      %244 = sbr.rel (0) target = $region121
    $region120: #{conv_block_forward.1} parent=1 // pred_region
      %246 = dma.done [#allocation28], 16
    $region121: #{conv_block_forward.1} parent=1 // pred_fallthru
      _
    %v248 = vld [vmem:[%s0] sm:$0xf]
    %v249 = vld [vmem:[%s0 + $0x4] sm:$0xf]
    %v250 = vld [vmem:[%s0 + $0x8] sm:$0xf]
    %v251 = vld [vmem:[%s0 + $0xc] sm:$0xf]
    %v252 = vld [vmem:[#allocation9] sm:$0xf]
    %v253 = vld [vmem:[#allocation9 + $0x4] sm:$0xf]
    %v254 = vld [vmem:[#allocation12] sm:$0x1]
    %v256 = vperm.slane %v254, 0
    %v262 = vunpack.c.l.b16 %v248
    %v263 = vunpack.c.l.b16 %v249
    %v264 = vunpack.c.l.b16 %v250
    %v265 = vunpack.c.l.b16 %v251
    %v266 = vpack.c.b16 %v263, %v262
    %v267 = vpack.c.b16 %v265, %v264
    %v270 = vunpack.c.l.b16 %v252
    %v271 = vunpack.c.l.b16 %v253
    %v272 = vpack.c.b16 %v271, %v270
    %vm274 = vcmask 130048
    %v276 = vsel %vm274, %v266, 0
    %v279 = vsel %vm274, %v267, 0
    %281 = vmatpush.bf16.msra.mxu0 0
    %282 = vmatpush.bf16.msra.mxu0 0
    %283 = vmatpush.bf16.msra.mxu0 0
    %284 = vmatpush.bf16.msra.mxu0 0
    %285 = vmatpush.bf16.msra.mxu0 0
    %286 = vmatpush.bf16.msra.mxu0 0
    %287 = vmatpush.bf16.msra.mxu0 0
    %288 = vmatpush.bf16.msra.mxu0 %v272
    %289 = vmatmul.bf16.gmra.mxu0 %v276
    %v290 = vpop.f32.mrf.mxu0
    %v291 = vadd.f32 %v256, %v290
    %v292 = vpop.f32.mrf.mxu0
    %v293 = vadd.f32 %v256, %v292
    %294 = vmatmul.bf16.gmra.mxu0 %v279
    %v295 = vpop.f32.mrf.mxu0
    %v296 = vadd.f32 %v256, %v295
    %v297 = vpop.f32.mrf.mxu0
    %v298 = vadd.f32 %v256, %v297
    %299 = vdwg.mxu0
    %v300 = vmax.f32 %v291, 0.0
    %v301 = vmax.f32 %v293, 0.0
    %v302 = vmax.f32 %v296, 0.0
    %v303 = vmax.f32 %v298, 0.0
    %304 = vst [vmem:[#allocation2] sm:$0xff] %v300
    %305 = vst [vmem:[#allocation2 + $0x8] sm:$0xff] %v301
    %306 = vst [vmem:[#allocation2 + $0x10] sm:$0xff] %v302
    %307 = vst [vmem:[#allocation2 + $0x18] sm:$0xff] %v303
    %v308 = vld [vmem:[#allocation2] sm:$0x7]
    %309 = vst [vmem:[#allocation3] sm:$0x7] %v308
    %v310 = vld [vmem:[#allocation2 + $0x1] sm:$0x7]
    %311 = vst [vmem:[#allocation3 + $0x8] sm:$0x7] %v310
    %v312 = vld [vmem:[#allocation2 + $0x4] sm:$0x7]
    %313 = vst [vmem:[#allocation3 + $0x10] sm:$0x7] %v312
    %v314 = vld [vmem:[#allocation2 + $0x5] sm:$0x7]
    %315 = vst [vmem:[#allocation3 + $0x18] sm:$0x7] %v314
    %v316 = vld [vmem:[#allocation2 + $0x4] sm:$0x7]
    %v318 = vrot.slane %v316, 5
    %320 = vst [vmem:[#allocation3] sm:$0x38] %v318
    %v321 = vld [vmem:[#allocation2 + $0x5] sm:$0x7]
    %v323 = vrot.slane %v321, 5
    %325 = vst [vmem:[#allocation3 + $0x8] sm:$0x38] %v323
    %v326 = vld [vmem:[#allocation2 + $0x8] sm:$0x7]
    %v328 = vrot.slane %v326, 5
    %330 = vst [vmem:[#allocation3 + $0x10] sm:$0x38] %v328
    %v331 = vld [vmem:[#allocation2 + $0x9] sm:$0x7]
    %v333 = vrot.slane %v331, 5
    %335 = vst [vmem:[#allocation3 + $0x18] sm:$0x38] %v333
    %v336 = vld [vmem:[#allocation2 + $0x8] sm:$0x7]
    %v338 = vrot.slane %v336, 2
    %340 = vst [vmem:[#allocation3] sm:$0xc0] %v338
    %341 = vst [vmem:[#allocation3 + $0x20] sm:$0x1] %v338
    %v342 = vld [vmem:[#allocation2 + $0x9] sm:$0x7]
    %v344 = vrot.slane %v342, 2
    %346 = vst [vmem:[#allocation3 + $0x8] sm:$0xc0] %v344
    %347 = vst [vmem:[#allocation3 + $0x28] sm:$0x1] %v344
    %v348 = vld [vmem:[#allocation2 + $0xc] sm:$0x7]
    %v350 = vrot.slane %v348, 2
    %352 = vst [vmem:[#allocation3 + $0x10] sm:$0xc0] %v350
    %353 = vst [vmem:[#allocation3 + $0x30] sm:$0x1] %v350
    %v354 = vld [vmem:[#allocation2 + $0xd] sm:$0x7]
    %v356 = vrot.slane %v354, 2
    %358 = vst [vmem:[#allocation3 + $0x18] sm:$0xc0] %v356
    %359 = vst [vmem:[#allocation3 + $0x38] sm:$0x1] %v356
    %v360 = vld [vmem:[#allocation2 + $0x10] sm:$0x7]
    %v362 = vrot.slane %v360, 7
    %364 = vst [vmem:[#allocation3 + $0x20] sm:$0xe] %v362
    %v365 = vld [vmem:[#allocation2 + $0x11] sm:$0x7]
    %v367 = vrot.slane %v365, 7
    %369 = vst [vmem:[#allocation3 + $0x28] sm:$0xe] %v367
    %v370 = vld [vmem:[#allocation2 + $0x14] sm:$0x7]
    %v372 = vrot.slane %v370, 7
    %374 = vst [vmem:[#allocation3 + $0x30] sm:$0xe] %v372
    %v375 = vld [vmem:[#allocation2 + $0x15] sm:$0x7]
    %v377 = vrot.slane %v375, 7
    %379 = vst [vmem:[#allocation3 + $0x38] sm:$0xe] %v377
    %v380 = vld [vmem:[#allocation2 + $0x14] sm:$0x7]
    %v382 = vrot.slane %v380, 4
    %384 = vst [vmem:[#allocation3 + $0x20] sm:$0x70] %v382
    %v385 = vld [vmem:[#allocation2 + $0x15] sm:$0x7]
    %v387 = vrot.slane %v385, 4
    %389 = vst [vmem:[#allocation3 + $0x28] sm:$0x70] %v387
    %v390 = vld [vmem:[#allocation2 + $0x18] sm:$0x7]
    %v392 = vrot.slane %v390, 4
    %394 = vst [vmem:[#allocation3 + $0x30] sm:$0x70] %v392
    %v395 = vld [vmem:[#allocation2 + $0x19] sm:$0x7]
    %v397 = vrot.slane %v395, 4
    %399 = vst [vmem:[#allocation3 + $0x38] sm:$0x70] %v397
    %v400 = vld [vmem:[#allocation2 + $0x18] sm:$0x7]
    %v402 = vrot.slane %v400, 1
    %404 = vst [vmem:[#allocation3 + $0x20] sm:$0x80] %v402
    %405 = vst [vmem:[#allocation3 + $0x40] sm:$0x3] %v402
    %v406 = vld [vmem:[#allocation2 + $0x19] sm:$0x7]
    %v408 = vrot.slane %v406, 1
    %410 = vst [vmem:[#allocation3 + $0x28] sm:$0x80] %v408
    %411 = vst [vmem:[#allocation3 + $0x48] sm:$0x3] %v408
    %v412 = vld [vmem:[#allocation2 + $0x1c] sm:$0x7]
    %v414 = vrot.slane %v412, 1
    %416 = vst [vmem:[#allocation3 + $0x30] sm:$0x80] %v414
    %417 = vst [vmem:[#allocation3 + $0x50] sm:$0x3] %v414
    %v418 = vld [vmem:[#allocation2 + $0x1d] sm:$0x7]
    %v420 = vrot.slane %v418, 1
    %422 = vst [vmem:[#allocation3 + $0x38] sm:$0x80] %v420
    %423 = vst [vmem:[#allocation3 + $0x58] sm:$0x3] %v420
    %v424 = vld [vmem:[#allocation3] sm:$0xff]
    %v425 = vld [vmem:[#allocation3 + $0x8] sm:$0xff]
    %v426 = vld [vmem:[#allocation3 + $0x10] sm:$0xff]
    %v427 = vld [vmem:[#allocation3 + $0x18] sm:$0xff]
    %v428 = vld [vmem:[#allocation3 + $0x20] sm:$0xff]
    %v429 = vld [vmem:[#allocation3 + $0x28] sm:$0xff]
    %v430 = vld [vmem:[#allocation3 + $0x30] sm:$0xff]
    %v431 = vld [vmem:[#allocation3 + $0x38] sm:$0xff]
    %v432 = vld [vmem:[#allocation3 + $0x40] sm:$0x3]
    %v433 = vld [vmem:[#allocation3 + $0x48] sm:$0x3]
    %v434 = vld [vmem:[#allocation3 + $0x50] sm:$0x3]
    %v435 = vld [vmem:[#allocation3 + $0x58] sm:$0x3]
    %v436 = vpack.c.bf16 %v428, %v424
    %v437 = vpack.c.bf16 %v429, %v425
    %v438 = vpack.c.bf16 %v430, %v426
    %v439 = vpack.c.bf16 %v431, %v427
    %v440 = vpack.c.bf16 %v432, %v432
    %v441 = vpack.c.bf16 %v433, %v433
    %v442 = vpack.c.bf16 %v434, %v434
    %v443 = vpack.c.bf16 %v435, %v435
    %v444 = vld [vmem:[#allocation14] sm:$0xff]
    %v445 = vld [vmem:[#allocation14 + $0x8] sm:$0xff]
    %v446 = vld [vmem:[#allocation14 + $0x10] sm:$0xff]
    %v447 = vld [vmem:[#allocation14 + $0x18] sm:$0xff]
    %v448 = vld [vmem:[#allocation14 + $0x20] sm:$0xff]
    %v449 = vld [vmem:[#allocation14 + $0x28] sm:$0xff]
    %v450 = vld [vmem:[#allocation14 + $0x30] sm:$0xff]
    %v451 = vld [vmem:[#allocation14 + $0x38] sm:$0xff]
    %v452 = vld [vmem:[#allocation14 + $0x40] sm:$0xff]
    %v453 = vld [vmem:[#allocation14 + $0x48] sm:$0xff]
    %v454 = vld [vmem:[#allocation14 + $0x50] sm:$0xff]
    %v455 = vld [vmem:[#allocation14 + $0x58] sm:$0xff]
    %v456 = vld [vmem:[#allocation14 + $0x60] sm:$0xff]
    %v457 = vld [vmem:[#allocation14 + $0x68] sm:$0xff]
    %v458 = vld [vmem:[#allocation14 + $0x70] sm:$0xff]
    %v459 = vld [vmem:[#allocation14 + $0x78] sm:$0xff]
    %v460 = vld [vmem:[#allocation14 + $0x80] sm:$0xff]
    %v461 = vld [vmem:[#allocation14 + $0x88] sm:$0xff]
    %v462 = vld [vmem:[#allocation14 + $0x90] sm:$0xff]
    %v463 = vld [vmem:[#allocation14 + $0x98] sm:$0xff]
    %v464 = vld [vmem:[#allocation14 + $0xa0] sm:$0xff]
    %v465 = vld [vmem:[#allocation14 + $0xa8] sm:$0xff]
    %v466 = vld [vmem:[#allocation14 + $0xb0] sm:$0xff]
    %v467 = vld [vmem:[#allocation14 + $0xb8] sm:$0xff]
    %v468 = vld [vmem:[#allocation14 + $0xc0] sm:$0xff]
    %v469 = vld [vmem:[#allocation14 + $0xc8] sm:$0xff]
    %v470 = vld [vmem:[#allocation14 + $0xd0] sm:$0xff]
    %v471 = vld [vmem:[#allocation14 + $0xd8] sm:$0xff]
    %v472 = vld [vmem:[#allocation14 + $0xe0] sm:$0xff]
    %v473 = vld [vmem:[#allocation14 + $0xe8] sm:$0xff]
    %v474 = vld [vmem:[#allocation14 + $0xf0] sm:$0xff]
    %v475 = vld [vmem:[#allocation14 + $0xf8] sm:$0xff]
    %v476 = vld [vmem:[#allocation14 + $0x100] sm:$0xff]
    %v477 = vld [vmem:[#allocation14 + $0x108] sm:$0xff]
    %v478 = vld [vmem:[#allocation14 + $0x110] sm:$0xff]
    %v479 = vld [vmem:[#allocation14 + $0x118] sm:$0xff]
    %v480 = vld [vmem:[#allocation14 + $0x120] sm:$0xff]
    %v481 = vld [vmem:[#allocation14 + $0x128] sm:$0xff]
    %v482 = vld [vmem:[#allocation14 + $0x130] sm:$0xff]
    %v483 = vld [vmem:[#allocation14 + $0x138] sm:$0xff]
    %v484 = vld [vmem:[#allocation14 + $0x140] sm:$0xff]
    %v485 = vld [vmem:[#allocation14 + $0x148] sm:$0xff]
    %v486 = vld [vmem:[#allocation14 + $0x150] sm:$0xff]
    %v487 = vld [vmem:[#allocation14 + $0x158] sm:$0xff]
    %v488 = vld [vmem:[#allocation14 + $0x160] sm:$0xff]
    %v489 = vld [vmem:[#allocation14 + $0x168] sm:$0xff]
    %v490 = vld [vmem:[#allocation14 + $0x170] sm:$0xff]
    %v491 = vld [vmem:[#allocation14 + $0x178] sm:$0xff]
    %v492 = vld [vmem:[#allocation14 + $0x180] sm:$0xff]
    %v493 = vld [vmem:[#allocation14 + $0x188] sm:$0xff]
    %v494 = vld [vmem:[#allocation14 + $0x190] sm:$0xff]
    %v495 = vld [vmem:[#allocation14 + $0x198] sm:$0xff]
    %v496 = vld [vmem:[#allocation14 + $0x1a0] sm:$0xff]
    %v497 = vld [vmem:[#allocation14 + $0x1a8] sm:$0xff]
    %v498 = vld [vmem:[#allocation14 + $0x1b0] sm:$0xff]
    %v499 = vld [vmem:[#allocation14 + $0x1b8] sm:$0xff]
    %v500 = vld [vmem:[#allocation14 + $0x1c0] sm:$0xff]
    %v501 = vld [vmem:[#allocation14 + $0x1c8] sm:$0xff]
    %v502 = vld [vmem:[#allocation14 + $0x1d0] sm:$0xff]
    %v503 = vld [vmem:[#allocation14 + $0x1d8] sm:$0xff]
    %v504 = vld [vmem:[#allocation14 + $0x1e0] sm:$0xff]
    %v505 = vld [vmem:[#allocation14 + $0x1e8] sm:$0xff]
    %v506 = vld [vmem:[#allocation14 + $0x1f0] sm:$0xff]
    %v507 = vld [vmem:[#allocation14 + $0x1f8] sm:$0xff]
    %v508 = vld [vmem:[#allocation14 + $0x200] sm:$0xff]
    %v509 = vld [vmem:[#allocation14 + $0x208] sm:$0xff]
    %v510 = vld [vmem:[#allocation14 + $0x210] sm:$0xff]
    %v511 = vld [vmem:[#allocation14 + $0x218] sm:$0xff]
    %v512 = vld [vmem:[#allocation14 + $0x220] sm:$0xff]
    %v513 = vld [vmem:[#allocation14 + $0x228] sm:$0xff]
    %v514 = vld [vmem:[#allocation14 + $0x230] sm:$0xff]
    %v515 = vld [vmem:[#allocation14 + $0x238] sm:$0xff]
    %v516 = vld [vmem:[#allocation14 + $0x240] sm:$0xff]
    %v517 = vld [vmem:[#allocation14 + $0x248] sm:$0xff]
    %v518 = vld [vmem:[#allocation14 + $0x250] sm:$0xff]
    %v519 = vld [vmem:[#allocation14 + $0x258] sm:$0xff]
    %v520 = vld [vmem:[#allocation14 + $0x260] sm:$0xff]
    %v521 = vld [vmem:[#allocation14 + $0x268] sm:$0xff]
    %v522 = vld [vmem:[#allocation14 + $0x270] sm:$0xff]
    %v523 = vld [vmem:[#allocation14 + $0x278] sm:$0xff]
    %v524 = vld [vmem:[#allocation14 + $0x280] sm:$0xff]
    %v525 = vld [vmem:[#allocation14 + $0x288] sm:$0xff]
    %v526 = vld [vmem:[#allocation14 + $0x290] sm:$0xff]
    %v527 = vld [vmem:[#allocation14 + $0x298] sm:$0xff]
    %v528 = vld [vmem:[#allocation14 + $0x2a0] sm:$0xff]
    %v529 = vld [vmem:[#allocation14 + $0x2a8] sm:$0xff]
    %v530 = vld [vmem:[#allocation14 + $0x2b0] sm:$0xff]
    %v531 = vld [vmem:[#allocation14 + $0x2b8] sm:$0xff]
    %v532 = vld [vmem:[#allocation14 + $0x2c0] sm:$0xff]
    %v533 = vld [vmem:[#allocation14 + $0x2c8] sm:$0xff]
    %v534 = vld [vmem:[#allocation14 + $0x2d0] sm:$0xff]
    %v535 = vld [vmem:[#allocation14 + $0x2d8] sm:$0xff]
    %v536 = vld [vmem:[#allocation14 + $0x2e0] sm:$0xff]
    %v537 = vld [vmem:[#allocation14 + $0x2e8] sm:$0xff]
    %v538 = vld [vmem:[#allocation14 + $0x2f0] sm:$0xff]
    %v539 = vld [vmem:[#allocation14 + $0x2f8] sm:$0xff]
    %v540 = vld [vmem:[#allocation14 + $0x300] sm:$0xff]
    %v541 = vld [vmem:[#allocation14 + $0x308] sm:$0xff]
    %v542 = vld [vmem:[#allocation14 + $0x310] sm:$0xff]
    %v543 = vld [vmem:[#allocation14 + $0x318] sm:$0xff]
    %v544 = vld [vmem:[#allocation14 + $0x320] sm:$0xff]
    %v545 = vld [vmem:[#allocation14 + $0x328] sm:$0xff]
    %v546 = vld [vmem:[#allocation14 + $0x330] sm:$0xff]
    %v547 = vld [vmem:[#allocation14 + $0x338] sm:$0xff]
    %v548 = vld [vmem:[#allocation14 + $0x340] sm:$0xff]
    %v549 = vld [vmem:[#allocation14 + $0x348] sm:$0xff]
    %v550 = vld [vmem:[#allocation14 + $0x350] sm:$0xff]
    %v551 = vld [vmem:[#allocation14 + $0x358] sm:$0xff]
    %v552 = vld [vmem:[#allocation14 + $0x360] sm:$0xff]
    %v553 = vld [vmem:[#allocation14 + $0x368] sm:$0xff]
    %v554 = vld [vmem:[#allocation14 + $0x370] sm:$0xff]
    %v555 = vld [vmem:[#allocation14 + $0x378] sm:$0xff]
    %v556 = vld [vmem:[#allocation14 + $0x380] sm:$0xff]
    %v557 = vld [vmem:[#allocation14 + $0x388] sm:$0xff]
    %v558 = vld [vmem:[#allocation14 + $0x390] sm:$0xff]
    %v559 = vld [vmem:[#allocation14 + $0x398] sm:$0xff]
    %v560 = vld [vmem:[#allocation14 + $0x3a0] sm:$0xff]
    %v561 = vld [vmem:[#allocation14 + $0x3a8] sm:$0xff]
    %v562 = vld [vmem:[#allocation14 + $0x3b0] sm:$0xff]
    %v563 = vld [vmem:[#allocation14 + $0x3b8] sm:$0xff]
    %v564 = vld [vmem:[#allocation14 + $0x3c0] sm:$0xff]
    %v565 = vld [vmem:[#allocation14 + $0x3c8] sm:$0xff]
    %v566 = vld [vmem:[#allocation14 + $0x3d0] sm:$0xff]
    %v567 = vld [vmem:[#allocation14 + $0x3d8] sm:$0xff]
    %v568 = vld [vmem:[#allocation14 + $0x3e0] sm:$0xff]
    %v569 = vld [vmem:[#allocation14 + $0x3e8] sm:$0xff]
    %v570 = vld [vmem:[#allocation14 + $0x3f0] sm:$0xff]
    %v571 = vld [vmem:[#allocation14 + $0x3f8] sm:$0xff]
    %v572 = vld [vmem:[#allocation15] sm:$0xf]
    %v574 = vperm.slane %v572, 0
    %v575 = vperm.slane %v572, 1
    %v576 = vperm.slane %v572, 2
    %v577 = vperm.slane %v572, 3
    %v710 = vunpack.c.l.b16 %v444
    %v711 = vunpack.c.h.b16 %v444
    %v712 = vunpack.c.l.b16 %v445
    %v713 = vunpack.c.h.b16 %v445
    %v714 = vunpack.c.l.b16 %v446
    %v715 = vunpack.c.h.b16 %v446
    %v716 = vunpack.c.l.b16 %v447
    %v717 = vunpack.c.h.b16 %v447
    %v718 = vunpack.c.l.b16 %v448
    %v719 = vunpack.c.h.b16 %v448
    %v720 = vunpack.c.l.b16 %v449
    %v721 = vunpack.c.h.b16 %v449
    %v722 = vunpack.c.l.b16 %v450
    %v723 = vunpack.c.h.b16 %v450
    %v724 = vunpack.c.l.b16 %v451
    %v725 = vunpack.c.h.b16 %v451
    %v726 = vunpack.c.l.b16 %v452
    %v727 = vunpack.c.h.b16 %v452
    %v728 = vunpack.c.l.b16 %v453
    %v729 = vunpack.c.h.b16 %v453
    %v730 = vunpack.c.l.b16 %v454
    %v731 = vunpack.c.h.b16 %v454
    %v732 = vunpack.c.l.b16 %v455
    %v733 = vunpack.c.h.b16 %v455
    %v734 = vunpack.c.l.b16 %v456
    %v735 = vunpack.c.h.b16 %v456
    %v736 = vunpack.c.l.b16 %v457
    %v737 = vunpack.c.h.b16 %v457
    %v738 = vunpack.c.l.b16 %v458
    %v739 = vunpack.c.h.b16 %v458
    %v740 = vunpack.c.l.b16 %v459
    %v741 = vunpack.c.h.b16 %v459
    %v742 = vunpack.c.l.b16 %v460
    %v743 = vunpack.c.h.b16 %v460
    %v744 = vunpack.c.l.b16 %v461
    %v745 = vunpack.c.h.b16 %v461
    %v746 = vunpack.c.l.b16 %v462
    %v747 = vunpack.c.h.b16 %v462
    %v748 = vunpack.c.l.b16 %v463
    %v749 = vunpack.c.h.b16 %v463
    %v750 = vunpack.c.l.b16 %v464
    %v751 = vunpack.c.h.b16 %v464
    %v752 = vunpack.c.l.b16 %v465
    %v753 = vunpack.c.h.b16 %v465
    %v754 = vunpack.c.l.b16 %v466
    %v755 = vunpack.c.h.b16 %v466
    %v756 = vunpack.c.l.b16 %v467
    %v757 = vunpack.c.h.b16 %v467
    %v758 = vunpack.c.l.b16 %v468
    %v759 = vunpack.c.h.b16 %v468
    %v760 = vunpack.c.l.b16 %v469
    %v761 = vunpack.c.h.b16 %v469
    %v762 = vunpack.c.l.b16 %v470
    %v763 = vunpack.c.h.b16 %v470
    %v764 = vunpack.c.l.b16 %v471
    %v765 = vunpack.c.h.b16 %v471
    %v766 = vunpack.c.l.b16 %v472
    %v767 = vunpack.c.h.b16 %v472
    %v768 = vunpack.c.l.b16 %v473
    %v769 = vunpack.c.h.b16 %v473
    %v770 = vunpack.c.l.b16 %v474
    %v771 = vunpack.c.h.b16 %v474
    %v772 = vunpack.c.l.b16 %v475
    %v773 = vunpack.c.h.b16 %v475
    %v774 = vunpack.c.l.b16 %v476
    %v775 = vunpack.c.h.b16 %v476
    %v776 = vunpack.c.l.b16 %v477
    %v777 = vunpack.c.h.b16 %v477
    %v778 = vunpack.c.l.b16 %v478
    %v779 = vunpack.c.h.b16 %v478
    %v780 = vunpack.c.l.b16 %v479
    %v781 = vunpack.c.h.b16 %v479
    %v782 = vunpack.c.l.b16 %v480
    %v783 = vunpack.c.h.b16 %v480
    %v784 = vunpack.c.l.b16 %v481
    %v785 = vunpack.c.h.b16 %v481
    %v786 = vunpack.c.l.b16 %v482
    %v787 = vunpack.c.h.b16 %v482
    %v788 = vunpack.c.l.b16 %v483
    %v789 = vunpack.c.h.b16 %v483
    %v790 = vunpack.c.l.b16 %v484
    %v791 = vunpack.c.h.b16 %v484
    %v792 = vunpack.c.l.b16 %v485
    %v793 = vunpack.c.h.b16 %v485
    %v794 = vunpack.c.l.b16 %v486
    %v795 = vunpack.c.h.b16 %v486
    %v796 = vunpack.c.l.b16 %v487
    %v797 = vunpack.c.h.b16 %v487
    %v798 = vunpack.c.l.b16 %v488
    %v799 = vunpack.c.h.b16 %v488
    %v800 = vunpack.c.l.b16 %v489
    %v801 = vunpack.c.h.b16 %v489
    %v802 = vunpack.c.l.b16 %v490
    %v803 = vunpack.c.h.b16 %v490
    %v804 = vunpack.c.l.b16 %v491
    %v805 = vunpack.c.h.b16 %v491
    %v806 = vunpack.c.l.b16 %v492
    %v807 = vunpack.c.h.b16 %v492
    %v808 = vunpack.c.l.b16 %v493
    %v809 = vunpack.c.h.b16 %v493
    %v810 = vunpack.c.l.b16 %v494
    %v811 = vunpack.c.h.b16 %v494
    %v812 = vunpack.c.l.b16 %v495
    %v813 = vunpack.c.h.b16 %v495
    %v814 = vunpack.c.l.b16 %v496
    %v815 = vunpack.c.h.b16 %v496
    %v816 = vunpack.c.l.b16 %v497
    %v817 = vunpack.c.h.b16 %v497
    %v818 = vunpack.c.l.b16 %v498
    %v819 = vunpack.c.h.b16 %v498
    %v820 = vunpack.c.l.b16 %v499
    %v821 = vunpack.c.h.b16 %v499
    %v822 = vunpack.c.l.b16 %v500
    %v823 = vunpack.c.h.b16 %v500
    %v824 = vunpack.c.l.b16 %v501
    %v825 = vunpack.c.h.b16 %v501
    %v826 = vunpack.c.l.b16 %v502
    %v827 = vunpack.c.h.b16 %v502
    %v828 = vunpack.c.l.b16 %v503
    %v829 = vunpack.c.h.b16 %v503
    %v830 = vunpack.c.l.b16 %v504
    %v831 = vunpack.c.h.b16 %v504
    %v832 = vunpack.c.l.b16 %v505
    %v833 = vunpack.c.h.b16 %v505
    %v834 = vunpack.c.l.b16 %v506
    %v835 = vunpack.c.h.b16 %v506
    %v836 = vunpack.c.l.b16 %v507
    %v837 = vunpack.c.h.b16 %v507
    %v838 = vunpack.c.l.b16 %v508
    %v839 = vunpack.c.h.b16 %v508
    %v840 = vunpack.c.l.b16 %v509
    %v841 = vunpack.c.h.b16 %v509
    %v842 = vunpack.c.l.b16 %v510
    %v843 = vunpack.c.h.b16 %v510
    %v844 = vunpack.c.l.b16 %v511
    %v845 = vunpack.c.h.b16 %v511
    %v846 = vunpack.c.l.b16 %v512
    %v847 = vunpack.c.h.b16 %v512
    %v848 = vunpack.c.l.b16 %v513
    %v849 = vunpack.c.h.b16 %v513
    %v850 = vunpack.c.l.b16 %v514
    %v851 = vunpack.c.h.b16 %v514
    %v852 = vunpack.c.l.b16 %v515
    %v853 = vunpack.c.h.b16 %v515
    %v854 = vunpack.c.l.b16 %v516
    %v855 = vunpack.c.h.b16 %v516
    %v856 = vunpack.c.l.b16 %v517
    %v857 = vunpack.c.h.b16 %v517
    %v858 = vunpack.c.l.b16 %v518
    %v859 = vunpack.c.h.b16 %v518
    %v860 = vunpack.c.l.b16 %v519
    %v861 = vunpack.c.h.b16 %v519
    %v862 = vunpack.c.l.b16 %v520
    %v863 = vunpack.c.h.b16 %v520
    %v864 = vunpack.c.l.b16 %v521
    %v865 = vunpack.c.h.b16 %v521
    %v866 = vunpack.c.l.b16 %v522
    %v867 = vunpack.c.h.b16 %v522
    %v868 = vunpack.c.l.b16 %v523
    %v869 = vunpack.c.h.b16 %v523
    %v870 = vunpack.c.l.b16 %v524
    %v871 = vunpack.c.h.b16 %v524
    %v872 = vunpack.c.l.b16 %v525
    %v873 = vunpack.c.h.b16 %v525
    %v874 = vunpack.c.l.b16 %v526
    %v875 = vunpack.c.h.b16 %v526
    %v876 = vunpack.c.l.b16 %v527
    %v877 = vunpack.c.h.b16 %v527
    %v878 = vunpack.c.l.b16 %v528
    %v879 = vunpack.c.h.b16 %v528
    %v880 = vunpack.c.l.b16 %v529
    %v881 = vunpack.c.h.b16 %v529
    %v882 = vunpack.c.l.b16 %v530
    %v883 = vunpack.c.h.b16 %v530
    %v884 = vunpack.c.l.b16 %v531
    %v885 = vunpack.c.h.b16 %v531
    %v886 = vunpack.c.l.b16 %v532
    %v887 = vunpack.c.h.b16 %v532
    %v888 = vunpack.c.l.b16 %v533
    %v889 = vunpack.c.h.b16 %v533
    %v890 = vunpack.c.l.b16 %v534
    %v891 = vunpack.c.h.b16 %v534
    %v892 = vunpack.c.l.b16 %v535
    %v893 = vunpack.c.h.b16 %v535
    %v894 = vunpack.c.l.b16 %v536
    %v895 = vunpack.c.h.b16 %v536
    %v896 = vunpack.c.l.b16 %v537
    %v897 = vunpack.c.h.b16 %v537
    %v898 = vunpack.c.l.b16 %v538
    %v899 = vunpack.c.h.b16 %v538
    %v900 = vunpack.c.l.b16 %v539
    %v901 = vunpack.c.h.b16 %v539
    %v902 = vunpack.c.l.b16 %v540
    %v903 = vunpack.c.h.b16 %v540
    %v904 = vunpack.c.l.b16 %v541
    %v905 = vunpack.c.h.b16 %v541
    %v906 = vunpack.c.l.b16 %v542
    %v907 = vunpack.c.h.b16 %v542
    %v908 = vunpack.c.l.b16 %v543
    %v909 = vunpack.c.h.b16 %v543
    %v910 = vunpack.c.l.b16 %v544
    %v911 = vunpack.c.h.b16 %v544
    %v912 = vunpack.c.l.b16 %v545
    %v913 = vunpack.c.h.b16 %v545
    %v914 = vunpack.c.l.b16 %v546
    %v915 = vunpack.c.h.b16 %v546
    %v916 = vunpack.c.l.b16 %v547
    %v917 = vunpack.c.h.b16 %v547
    %v918 = vunpack.c.l.b16 %v548
    %v919 = vunpack.c.h.b16 %v548
    %v920 = vunpack.c.l.b16 %v549
    %v921 = vunpack.c.h.b16 %v549
    %v922 = vunpack.c.l.b16 %v550
    %v923 = vunpack.c.h.b16 %v550
    %v924 = vunpack.c.l.b16 %v551
    %v925 = vunpack.c.h.b16 %v551
    %v926 = vunpack.c.l.b16 %v552
    %v927 = vunpack.c.h.b16 %v552
    %v928 = vunpack.c.l.b16 %v553
    %v929 = vunpack.c.h.b16 %v553
    %v930 = vunpack.c.l.b16 %v554
    %v931 = vunpack.c.h.b16 %v554
    %v932 = vunpack.c.l.b16 %v555
    %v933 = vunpack.c.h.b16 %v555
    %v934 = vunpack.c.l.b16 %v556
    %v935 = vunpack.c.h.b16 %v556
    %v936 = vunpack.c.l.b16 %v557
    %v937 = vunpack.c.h.b16 %v557
    %v938 = vunpack.c.l.b16 %v558
    %v939 = vunpack.c.h.b16 %v558
    %v940 = vunpack.c.l.b16 %v559
    %v941 = vunpack.c.h.b16 %v559
    %v942 = vunpack.c.l.b16 %v560
    %v943 = vunpack.c.h.b16 %v560
    %v944 = vunpack.c.l.b16 %v561
    %v945 = vunpack.c.h.b16 %v561
    %v946 = vunpack.c.l.b16 %v562
    %v947 = vunpack.c.h.b16 %v562
    %v948 = vunpack.c.l.b16 %v563
    %v949 = vunpack.c.h.b16 %v563
    %v950 = vunpack.c.l.b16 %v564
    %v951 = vunpack.c.h.b16 %v564
    %v952 = vunpack.c.l.b16 %v565
    %v953 = vunpack.c.h.b16 %v565
    %v954 = vunpack.c.l.b16 %v566
    %v955 = vunpack.c.h.b16 %v566
    %v956 = vunpack.c.l.b16 %v567
    %v957 = vunpack.c.h.b16 %v567
    %v958 = vunpack.c.l.b16 %v568
    %v959 = vunpack.c.h.b16 %v568
    %v960 = vunpack.c.l.b16 %v569
    %v961 = vunpack.c.h.b16 %v569
    %v962 = vunpack.c.l.b16 %v570
    %v963 = vunpack.c.h.b16 %v570
    %v964 = vunpack.c.l.b16 %v571
    %v965 = vunpack.c.h.b16 %v571
    %v966 = vpack.c.b16 %v714, %v710
    %v967 = vpack.c.b16 %v715, %v711
    %v968 = vpack.c.b16 %v716, %v712
    %v969 = vpack.c.b16 %v717, %v713
    %v970 = vpack.c.b16 %v722, %v718
    %v971 = vpack.c.b16 %v723, %v719
    %v972 = vpack.c.b16 %v724, %v720
    %v973 = vpack.c.b16 %v725, %v721
    %v974 = vpack.c.b16 %v730, %v726
    %v975 = vpack.c.b16 %v731, %v727
    %v976 = vpack.c.b16 %v732, %v728
    %v977 = vpack.c.b16 %v733, %v729
    %v978 = vpack.c.b16 %v738, %v734
    %v979 = vpack.c.b16 %v739, %v735
    %v980 = vpack.c.b16 %v740, %v736
    %v981 = vpack.c.b16 %v741, %v737
    %v982 = vpack.c.b16 %v746, %v742
    %v983 = vpack.c.b16 %v747, %v743
    %v984 = vpack.c.b16 %v748, %v744
    %v985 = vpack.c.b16 %v749, %v745
    %v986 = vpack.c.b16 %v754, %v750
    %v987 = vpack.c.b16 %v755, %v751
    %v988 = vpack.c.b16 %v756, %v752
    %v989 = vpack.c.b16 %v757, %v753
    %v990 = vpack.c.b16 %v762, %v758
    %v991 = vpack.c.b16 %v763, %v759
    %v992 = vpack.c.b16 %v764, %v760
    %v993 = vpack.c.b16 %v765, %v761
    %v994 = vpack.c.b16 %v770, %v766
    %v995 = vpack.c.b16 %v771, %v767
    %v996 = vpack.c.b16 %v772, %v768
    %v997 = vpack.c.b16 %v773, %v769
    %v998 = vpack.c.b16 %v778, %v774
    %v999 = vpack.c.b16 %v779, %v775
    %v1000 = vpack.c.b16 %v780, %v776
    %v1001 = vpack.c.b16 %v781, %v777
    %v1002 = vpack.c.b16 %v786, %v782
    %v1003 = vpack.c.b16 %v787, %v783
    %v1004 = vpack.c.b16 %v788, %v784
    %v1005 = vpack.c.b16 %v789, %v785
    %v1006 = vpack.c.b16 %v794, %v790
    %v1007 = vpack.c.b16 %v795, %v791
    %v1008 = vpack.c.b16 %v796, %v792
    %v1009 = vpack.c.b16 %v797, %v793
    %v1010 = vpack.c.b16 %v802, %v798
    %v1011 = vpack.c.b16 %v803, %v799
    %v1012 = vpack.c.b16 %v804, %v800
    %v1013 = vpack.c.b16 %v805, %v801
    %v1014 = vpack.c.b16 %v810, %v806
    %v1015 = vpack.c.b16 %v811, %v807
    %v1016 = vpack.c.b16 %v812, %v808
    %v1017 = vpack.c.b16 %v813, %v809
    %v1018 = vpack.c.b16 %v818, %v814
    %v1019 = vpack.c.b16 %v819, %v815
    %v1020 = vpack.c.b16 %v820, %v816
    %v1021 = vpack.c.b16 %v821, %v817
    %v1022 = vpack.c.b16 %v826, %v822
    %v1023 = vpack.c.b16 %v827, %v823
    %v1024 = vpack.c.b16 %v828, %v824
    %v1025 = vpack.c.b16 %v829, %v825
    %v1026 = vpack.c.b16 %v834, %v830
    %v1027 = vpack.c.b16 %v835, %v831
    %v1028 = vpack.c.b16 %v836, %v832
    %v1029 = vpack.c.b16 %v837, %v833
    %v1030 = vpack.c.b16 %v842, %v838
    %v1031 = vpack.c.b16 %v843, %v839
    %v1032 = vpack.c.b16 %v844, %v840
    %v1033 = vpack.c.b16 %v845, %v841
    %v1034 = vpack.c.b16 %v850, %v846
    %v1035 = vpack.c.b16 %v851, %v847
    %v1036 = vpack.c.b16 %v852, %v848
    %v1037 = vpack.c.b16 %v853, %v849
    %v1038 = vpack.c.b16 %v858, %v854
    %v1039 = vpack.c.b16 %v859, %v855
    %v1040 = vpack.c.b16 %v860, %v856
    %v1041 = vpack.c.b16 %v861, %v857
    %v1042 = vpack.c.b16 %v866, %v862
    %v1043 = vpack.c.b16 %v867, %v863
    %v1044 = vpack.c.b16 %v868, %v864
    %v1045 = vpack.c.b16 %v869, %v865
    %v1046 = vpack.c.b16 %v874, %v870
    %v1047 = vpack.c.b16 %v875, %v871
    %v1048 = vpack.c.b16 %v876, %v872
    %v1049 = vpack.c.b16 %v877, %v873
    %v1050 = vpack.c.b16 %v882, %v878
    %v1051 = vpack.c.b16 %v883, %v879
    %v1052 = vpack.c.b16 %v884, %v880
    %v1053 = vpack.c.b16 %v885, %v881
    %v1054 = vpack.c.b16 %v890, %v886
    %v1055 = vpack.c.b16 %v891, %v887
    %v1056 = vpack.c.b16 %v892, %v888
    %v1057 = vpack.c.b16 %v893, %v889
    %v1058 = vpack.c.b16 %v898, %v894
    %v1059 = vpack.c.b16 %v899, %v895
    %v1060 = vpack.c.b16 %v900, %v896
    %v1061 = vpack.c.b16 %v901, %v897
    %v1062 = vpack.c.b16 %v906, %v902
    %v1063 = vpack.c.b16 %v907, %v903
    %v1064 = vpack.c.b16 %v908, %v904
    %v1065 = vpack.c.b16 %v909, %v905
    %v1066 = vpack.c.b16 %v914, %v910
    %v1067 = vpack.c.b16 %v915, %v911
    %v1068 = vpack.c.b16 %v916, %v912
    %v1069 = vpack.c.b16 %v917, %v913
    %v1070 = vpack.c.b16 %v922, %v918
    %v1071 = vpack.c.b16 %v923, %v919
    %v1072 = vpack.c.b16 %v924, %v920
    %v1073 = vpack.c.b16 %v925, %v921
    %v1074 = vpack.c.b16 %v930, %v926
    %v1075 = vpack.c.b16 %v931, %v927
    %v1076 = vpack.c.b16 %v932, %v928
    %v1077 = vpack.c.b16 %v933, %v929
    %v1078 = vpack.c.b16 %v938, %v934
    %v1079 = vpack.c.b16 %v939, %v935
    %v1080 = vpack.c.b16 %v940, %v936
    %v1081 = vpack.c.b16 %v941, %v937
    %v1082 = vpack.c.b16 %v946, %v942
    %v1083 = vpack.c.b16 %v947, %v943
    %v1084 = vpack.c.b16 %v948, %v944
    %v1085 = vpack.c.b16 %v949, %v945
    %v1086 = vpack.c.b16 %v954, %v950
    %v1087 = vpack.c.b16 %v955, %v951
    %v1088 = vpack.c.b16 %v956, %v952
    %v1089 = vpack.c.b16 %v957, %v953
    %v1090 = vpack.c.b16 %v962, %v958
    %v1091 = vpack.c.b16 %v963, %v959
    %v1092 = vpack.c.b16 %v964, %v960
    %v1093 = vpack.c.b16 %v965, %v961
    %1222 = vmatpush.bf16.msra.mxu0 %v994
    %1223 = vmatpush.bf16.msra.mxu0 %v990
    %1224 = vmatpush.bf16.msra.mxu0 %v986
    %1225 = vmatpush.bf16.msra.mxu0 %v982
    %1226 = vmatpush.bf16.msra.mxu0 %v978
    %1227 = vmatpush.bf16.msra.mxu0 %v974
    %1228 = vmatpush.bf16.msra.mxu0 %v970
    %1229 = vmatpush.bf16.msra.mxu0 %v966
    %1230 = vmatmul.bf16.gmra.mxu0 %v436
    %v1231 = vpop.f32.mrf.mxu0
    %v1232 = vadd.f32 %v574, %v1231
    %v1233 = vpop.f32.mrf.mxu0
    %v1234 = vadd.f32 %v574, %v1233
    %1235 = vmatmul.bf16.gmra.mxu0 %v440
    %v1236 = vpop.f32.mrf.mxu0
    %v1237 = vadd.f32 %v574, %v1236
    %v1238 = vpop.f32.mrf.mxu0
    %1239 = vdwg.mxu0
    %1240 = vmatpush.bf16.msra.mxu0 %v1026
    %1241 = vmatpush.bf16.msra.mxu0 %v1022
    %1242 = vmatpush.bf16.msra.mxu0 %v1018
    %1243 = vmatpush.bf16.msra.mxu0 %v1014
    %1244 = vmatpush.bf16.msra.mxu0 %v1010
    %1245 = vmatpush.bf16.msra.mxu0 %v1006
    %1246 = vmatpush.bf16.msra.mxu0 %v1002
    %1247 = vmatpush.bf16.msra.mxu0 %v998
    %1248 = vmatmul.bf16.gmra.mxu0 %v437
    %v1249 = vpop.f32.mrf.mxu0
    %v1250 = vadd.f32 %v1232, %v1249
    %v1251 = vpop.f32.mrf.mxu0
    %v1252 = vadd.f32 %v1234, %v1251
    %1253 = vmatmul.bf16.gmra.mxu0 %v441
    %v1254 = vpop.f32.mrf.mxu0
    %v1255 = vadd.f32 %v1237, %v1254
    %v1256 = vpop.f32.mrf.mxu0
    %1257 = vdwg.mxu0
    %1258 = vmatpush.bf16.msra.mxu0 %v1058
    %1259 = vmatpush.bf16.msra.mxu0 %v1054
    %1260 = vmatpush.bf16.msra.mxu0 %v1050
    %1261 = vmatpush.bf16.msra.mxu0 %v1046
    %1262 = vmatpush.bf16.msra.mxu0 %v1042
    %1263 = vmatpush.bf16.msra.mxu0 %v1038
    %1264 = vmatpush.bf16.msra.mxu0 %v1034
    %1265 = vmatpush.bf16.msra.mxu0 %v1030
    %1266 = vmatmul.bf16.gmra.mxu0 %v438
    %v1267 = vpop.f32.mrf.mxu0
    %v1268 = vadd.f32 %v1250, %v1267
    %v1269 = vpop.f32.mrf.mxu0
    %v1270 = vadd.f32 %v1252, %v1269
    %1271 = vmatmul.bf16.gmra.mxu0 %v442
    %v1272 = vpop.f32.mrf.mxu0
    %v1273 = vadd.f32 %v1255, %v1272
    %v1274 = vpop.f32.mrf.mxu0
    %1275 = vdwg.mxu0
    %1276 = vmatpush.bf16.msra.mxu0 %v1090
    %1277 = vmatpush.bf16.msra.mxu0 %v1086
    %1278 = vmatpush.bf16.msra.mxu0 %v1082
    %1279 = vmatpush.bf16.msra.mxu0 %v1078
    %1280 = vmatpush.bf16.msra.mxu0 %v1074
    %1281 = vmatpush.bf16.msra.mxu0 %v1070
    %1282 = vmatpush.bf16.msra.mxu0 %v1066
    %1283 = vmatpush.bf16.msra.mxu0 %v1062
    %1284 = vmatmul.bf16.gmra.mxu0 %v439
    %v1285 = vpop.f32.mrf.mxu0
    %v1286 = vadd.f32 %v1268, %v1285
    %v1287 = vpop.f32.mrf.mxu0
    %v1288 = vadd.f32 %v1270, %v1287
    %1289 = vmatmul.bf16.gmra.mxu0 %v443
    %v1290 = vpop.f32.mrf.mxu0
    %v1291 = vadd.f32 %v1273, %v1290
    %v1292 = vpop.f32.mrf.mxu0
    %1293 = vdwg.mxu0
    %1294 = vmatpush.bf16.msra.mxu0 %v995
    %1295 = vmatpush.bf16.msra.mxu0 %v991
    %1296 = vmatpush.bf16.msra.mxu0 %v987
    %1297 = vmatpush.bf16.msra.mxu0 %v983
    %1298 = vmatpush.bf16.msra.mxu0 %v979
    %1299 = vmatpush.bf16.msra.mxu0 %v975
    %1300 = vmatpush.bf16.msra.mxu0 %v971
    %1301 = vmatpush.bf16.msra.mxu0 %v967
    %1302 = vmatmul.bf16.gmra.mxu0 %v436
    %v1303 = vpop.f32.mrf.mxu0
    %v1304 = vadd.f32 %v575, %v1303
    %v1305 = vpop.f32.mrf.mxu0
    %v1306 = vadd.f32 %v575, %v1305
    %1307 = vmatmul.bf16.gmra.mxu0 %v440
    %v1308 = vpop.f32.mrf.mxu0
    %v1309 = vadd.f32 %v575, %v1308
    %v1310 = vpop.f32.mrf.mxu0
    %1311 = vdwg.mxu0
    %1312 = vmatpush.bf16.msra.mxu0 %v1027
    %1313 = vmatpush.bf16.msra.mxu0 %v1023
    %1314 = vmatpush.bf16.msra.mxu0 %v1019
    %1315 = vmatpush.bf16.msra.mxu0 %v1015
    %1316 = vmatpush.bf16.msra.mxu0 %v1011
    %1317 = vmatpush.bf16.msra.mxu0 %v1007
    %1318 = vmatpush.bf16.msra.mxu0 %v1003
    %1319 = vmatpush.bf16.msra.mxu0 %v999
    %1320 = vmatmul.bf16.gmra.mxu0 %v437
    %v1321 = vpop.f32.mrf.mxu0
    %v1322 = vadd.f32 %v1304, %v1321
    %v1323 = vpop.f32.mrf.mxu0
    %v1324 = vadd.f32 %v1306, %v1323
    %1325 = vmatmul.bf16.gmra.mxu0 %v441
    %v1326 = vpop.f32.mrf.mxu0
    %v1327 = vadd.f32 %v1309, %v1326
    %v1328 = vpop.f32.mrf.mxu0
    %1329 = vdwg.mxu0
    %1330 = vmatpush.bf16.msra.mxu0 %v1059
    %1331 = vmatpush.bf16.msra.mxu0 %v1055
    %1332 = vmatpush.bf16.msra.mxu0 %v1051
    %1333 = vmatpush.bf16.msra.mxu0 %v1047
    %1334 = vmatpush.bf16.msra.mxu0 %v1043
    %1335 = vmatpush.bf16.msra.mxu0 %v1039
    %1336 = vmatpush.bf16.msra.mxu0 %v1035
    %1337 = vmatpush.bf16.msra.mxu0 %v1031
    %1338 = vmatmul.bf16.gmra.mxu0 %v438
    %v1339 = vpop.f32.mrf.mxu0
    %v1340 = vadd.f32 %v1322, %v1339
    %v1341 = vpop.f32.mrf.mxu0
    %v1342 = vadd.f32 %v1324, %v1341
    %1343 = vmatmul.bf16.gmra.mxu0 %v442
    %v1344 = vpop.f32.mrf.mxu0
    %v1345 = vadd.f32 %v1327, %v1344
    %v1346 = vpop.f32.mrf.mxu0
    %1347 = vdwg.mxu0
    %1348 = vmatpush.bf16.msra.mxu0 %v1091
    %1349 = vmatpush.bf16.msra.mxu0 %v1087
    %1350 = vmatpush.bf16.msra.mxu0 %v1083
    %1351 = vmatpush.bf16.msra.mxu0 %v1079
    %1352 = vmatpush.bf16.msra.mxu0 %v1075
    %1353 = vmatpush.bf16.msra.mxu0 %v1071
    %1354 = vmatpush.bf16.msra.mxu0 %v1067
    %1355 = vmatpush.bf16.msra.mxu0 %v1063
    %1356 = vmatmul.bf16.gmra.mxu0 %v439
    %v1357 = vpop.f32.mrf.mxu0
    %v1358 = vadd.f32 %v1340, %v1357
    %v1359 = vpop.f32.mrf.mxu0
    %v1360 = vadd.f32 %v1342, %v1359
    %1361 = vmatmul.bf16.gmra.mxu0 %v443
    %v1362 = vpop.f32.mrf.mxu0
    %v1363 = vadd.f32 %v1345, %v1362
    %v1364 = vpop.f32.mrf.mxu0
    %1365 = vdwg.mxu0
    %1366 = vmatpush.bf16.msra.mxu0 %v996
    %1367 = vmatpush.bf16.msra.mxu0 %v992
    %1368 = vmatpush.bf16.msra.mxu0 %v988
    %1369 = vmatpush.bf16.msra.mxu0 %v984
    %1370 = vmatpush.bf16.msra.mxu0 %v980
    %1371 = vmatpush.bf16.msra.mxu0 %v976
    %1372 = vmatpush.bf16.msra.mxu0 %v972
    %1373 = vmatpush.bf16.msra.mxu0 %v968
    %1374 = vmatmul.bf16.gmra.mxu0 %v436
    %v1375 = vpop.f32.mrf.mxu0
    %v1376 = vadd.f32 %v576, %v1375
    %v1377 = vpop.f32.mrf.mxu0
    %v1378 = vadd.f32 %v576, %v1377
    %1379 = vmatmul.bf16.gmra.mxu0 %v440
    %v1380 = vpop.f32.mrf.mxu0
    %v1381 = vadd.f32 %v576, %v1380
    %v1382 = vpop.f32.mrf.mxu0
    %1383 = vdwg.mxu0
    %1384 = vmatpush.bf16.msra.mxu0 %v1028
    %1385 = vmatpush.bf16.msra.mxu0 %v1024
    %1386 = vmatpush.bf16.msra.mxu0 %v1020
    %1387 = vmatpush.bf16.msra.mxu0 %v1016
    %1388 = vmatpush.bf16.msra.mxu0 %v1012
    %1389 = vmatpush.bf16.msra.mxu0 %v1008
    %1390 = vmatpush.bf16.msra.mxu0 %v1004
    %1391 = vmatpush.bf16.msra.mxu0 %v1000
    %1392 = vmatmul.bf16.gmra.mxu0 %v437
    %v1393 = vpop.f32.mrf.mxu0
    %v1394 = vadd.f32 %v1376, %v1393
    %v1395 = vpop.f32.mrf.mxu0
    %v1396 = vadd.f32 %v1378, %v1395
    %1397 = vmatmul.bf16.gmra.mxu0 %v441
    %v1398 = vpop.f32.mrf.mxu0
    %v1399 = vadd.f32 %v1381, %v1398
    %v1400 = vpop.f32.mrf.mxu0
    %1401 = vdwg.mxu0
    %1402 = vmatpush.bf16.msra.mxu0 %v1060
    %1403 = vmatpush.bf16.msra.mxu0 %v1056
    %1404 = vmatpush.bf16.msra.mxu0 %v1052
    %1405 = vmatpush.bf16.msra.mxu0 %v1048
    %1406 = vmatpush.bf16.msra.mxu0 %v1044
    %1407 = vmatpush.bf16.msra.mxu0 %v1040
    %1408 = vmatpush.bf16.msra.mxu0 %v1036
    %1409 = vmatpush.bf16.msra.mxu0 %v1032
    %1410 = vmatmul.bf16.gmra.mxu0 %v438
    %v1411 = vpop.f32.mrf.mxu0
    %v1412 = vadd.f32 %v1394, %v1411
    %v1413 = vpop.f32.mrf.mxu0
    %v1414 = vadd.f32 %v1396, %v1413
    %1415 = vmatmul.bf16.gmra.mxu0 %v442
    %v1416 = vpop.f32.mrf.mxu0
    %v1417 = vadd.f32 %v1399, %v1416
    %v1418 = vpop.f32.mrf.mxu0
    %1419 = vdwg.mxu0
    %1420 = vmatpush.bf16.msra.mxu0 %v1092
    %1421 = vmatpush.bf16.msra.mxu0 %v1088
    %1422 = vmatpush.bf16.msra.mxu0 %v1084
    %1423 = vmatpush.bf16.msra.mxu0 %v1080
    %1424 = vmatpush.bf16.msra.mxu0 %v1076
    %1425 = vmatpush.bf16.msra.mxu0 %v1072
    %1426 = vmatpush.bf16.msra.mxu0 %v1068
    %1427 = vmatpush.bf16.msra.mxu0 %v1064
    %1428 = vmatmul.bf16.gmra.mxu0 %v439
    %v1429 = vpop.f32.mrf.mxu0
    %v1430 = vadd.f32 %v1412, %v1429
    %v1431 = vpop.f32.mrf.mxu0
    %v1432 = vadd.f32 %v1414, %v1431
    %1433 = vmatmul.bf16.gmra.mxu0 %v443
    %v1434 = vpop.f32.mrf.mxu0
    %v1435 = vadd.f32 %v1417, %v1434
    %v1436 = vpop.f32.mrf.mxu0
    %1437 = vdwg.mxu0
    %1438 = vmatpush.bf16.msra.mxu0 %v997
    %1439 = vmatpush.bf16.msra.mxu0 %v993
    %1440 = vmatpush.bf16.msra.mxu0 %v989
    %1441 = vmatpush.bf16.msra.mxu0 %v985
    %1442 = vmatpush.bf16.msra.mxu0 %v981
    %1443 = vmatpush.bf16.msra.mxu0 %v977
    %1444 = vmatpush.bf16.msra.mxu0 %v973
    %1445 = vmatpush.bf16.msra.mxu0 %v969
    %1446 = vmatmul.bf16.gmra.mxu0 %v436
    %v1447 = vpop.f32.mrf.mxu0
    %v1448 = vadd.f32 %v577, %v1447
    %v1449 = vpop.f32.mrf.mxu0
    %v1450 = vadd.f32 %v577, %v1449
    %1451 = vmatmul.bf16.gmra.mxu0 %v440
    %v1452 = vpop.f32.mrf.mxu0
    %v1453 = vadd.f32 %v577, %v1452
    %v1454 = vpop.f32.mrf.mxu0
    %1455 = vdwg.mxu0
    %1456 = vmatpush.bf16.msra.mxu0 %v1029
    %1457 = vmatpush.bf16.msra.mxu0 %v1025
    %1458 = vmatpush.bf16.msra.mxu0 %v1021
    %1459 = vmatpush.bf16.msra.mxu0 %v1017
    %1460 = vmatpush.bf16.msra.mxu0 %v1013
    %1461 = vmatpush.bf16.msra.mxu0 %v1009
    %1462 = vmatpush.bf16.msra.mxu0 %v1005
    %1463 = vmatpush.bf16.msra.mxu0 %v1001
    %1464 = vmatmul.bf16.gmra.mxu0 %v437
    %v1465 = vpop.f32.mrf.mxu0
    %v1466 = vadd.f32 %v1448, %v1465
    %v1467 = vpop.f32.mrf.mxu0
    %v1468 = vadd.f32 %v1450, %v1467
    %1469 = vmatmul.bf16.gmra.mxu0 %v441
    %v1470 = vpop.f32.mrf.mxu0
    %v1471 = vadd.f32 %v1453, %v1470
    %v1472 = vpop.f32.mrf.mxu0
    %1473 = vdwg.mxu0
    %1474 = vmatpush.bf16.msra.mxu0 %v1061
    %1475 = vmatpush.bf16.msra.mxu0 %v1057
    %1476 = vmatpush.bf16.msra.mxu0 %v1053
    %1477 = vmatpush.bf16.msra.mxu0 %v1049
    %1478 = vmatpush.bf16.msra.mxu0 %v1045
    %1479 = vmatpush.bf16.msra.mxu0 %v1041
    %1480 = vmatpush.bf16.msra.mxu0 %v1037
    %1481 = vmatpush.bf16.msra.mxu0 %v1033
    %1482 = vmatmul.bf16.gmra.mxu0 %v438
    %v1483 = vpop.f32.mrf.mxu0
    %v1484 = vadd.f32 %v1466, %v1483
    %v1485 = vpop.f32.mrf.mxu0
    %v1486 = vadd.f32 %v1468, %v1485
    %1487 = vmatmul.bf16.gmra.mxu0 %v442
    %v1488 = vpop.f32.mrf.mxu0
    %v1489 = vadd.f32 %v1471, %v1488
    %v1490 = vpop.f32.mrf.mxu0
    %1491 = vdwg.mxu0
    %1492 = vmatpush.bf16.msra.mxu0 %v1093
    %1493 = vmatpush.bf16.msra.mxu0 %v1089
    %1494 = vmatpush.bf16.msra.mxu0 %v1085
    %1495 = vmatpush.bf16.msra.mxu0 %v1081
    %1496 = vmatpush.bf16.msra.mxu0 %v1077
    %1497 = vmatpush.bf16.msra.mxu0 %v1073
    %1498 = vmatpush.bf16.msra.mxu0 %v1069
    %1499 = vmatpush.bf16.msra.mxu0 %v1065
    %1500 = vmatmul.bf16.gmra.mxu0 %v439
    %v1501 = vpop.f32.mrf.mxu0
    %v1502 = vadd.f32 %v1484, %v1501
    %v1503 = vpop.f32.mrf.mxu0
    %v1504 = vadd.f32 %v1486, %v1503
    %1505 = vmatmul.bf16.gmra.mxu0 %v443
    %v1506 = vpop.f32.mrf.mxu0
    %v1507 = vadd.f32 %v1489, %v1506
    %v1508 = vpop.f32.mrf.mxu0
    %1509 = vdwg.mxu0
    %v1510 = vmax.f32 %v1286, 0.0
    %v1511 = vmax.f32 %v1358, 0.0
    %v1512 = vmax.f32 %v1288, 0.0
    %v1513 = vmax.f32 %v1360, 0.0
    %v1514 = vmax.f32 %v1291, 0.0
    %v1515 = vmax.f32 %v1363, 0.0
    %v1516 = vpack.c.bf16 %v1512, %v1510
    %v1517 = vpack.c.bf16 %v1513, %v1511
    %v1518 = vpack.c.bf16 %v1514, %v1514
    %v1519 = vpack.c.bf16 %v1515, %v1515
    %v1520 = vld [vmem:[#allocation17] sm:$0xff]
    %v1521 = vld [vmem:[#allocation17 + $0x8] sm:$0xff]
    %v1522 = vld [vmem:[#allocation17 + $0x10] sm:$0xff]
    %v1523 = vld [vmem:[#allocation17 + $0x18] sm:$0xff]
    %v1524 = vld [vmem:[#allocation17 + $0x20] sm:$0xff]
    %v1525 = vld [vmem:[#allocation17 + $0x28] sm:$0xff]
    %v1526 = vld [vmem:[#allocation17 + $0x30] sm:$0xff]
    %v1527 = vld [vmem:[#allocation17 + $0x38] sm:$0xff]
    %v1528 = vld [vmem:[#allocation17 + $0x40] sm:$0xff]
    %v1529 = vld [vmem:[#allocation17 + $0x48] sm:$0xff]
    %v1530 = vld [vmem:[#allocation17 + $0x50] sm:$0xff]
    %v1531 = vld [vmem:[#allocation17 + $0x58] sm:$0xff]
    %v1532 = vld [vmem:[#allocation17 + $0x60] sm:$0xff]
    %v1533 = vld [vmem:[#allocation17 + $0x68] sm:$0xff]
    %v1534 = vld [vmem:[#allocation17 + $0x70] sm:$0xff]
    %v1535 = vld [vmem:[#allocation17 + $0x78] sm:$0xff]
    %v1536 = vld [vmem:[#allocation17 + $0x80] sm:$0xff]
    %v1537 = vld [vmem:[#allocation17 + $0x88] sm:$0xff]
    %v1538 = vld [vmem:[#allocation17 + $0x90] sm:$0xff]
    %v1539 = vld [vmem:[#allocation17 + $0x98] sm:$0xff]
    %v1540 = vld [vmem:[#allocation17 + $0xa0] sm:$0xff]
    %v1541 = vld [vmem:[#allocation17 + $0xa8] sm:$0xff]
    %v1542 = vld [vmem:[#allocation17 + $0xb0] sm:$0xff]
    %v1543 = vld [vmem:[#allocation17 + $0xb8] sm:$0xff]
    %v1544 = vld [vmem:[#allocation17 + $0xc0] sm:$0xff]
    %v1545 = vld [vmem:[#allocation17 + $0xc8] sm:$0xff]
    %v1546 = vld [vmem:[#allocation17 + $0xd0] sm:$0xff]
    %v1547 = vld [vmem:[#allocation17 + $0xd8] sm:$0xff]
    %v1548 = vld [vmem:[#allocation17 + $0xe0] sm:$0xff]
    %v1549 = vld [vmem:[#allocation17 + $0xe8] sm:$0xff]
    %v1550 = vld [vmem:[#allocation17 + $0xf0] sm:$0xff]
    %v1551 = vld [vmem:[#allocation17 + $0xf8] sm:$0xff]
    %v1552 = vld [vmem:[#allocation18] sm:$0x3]
    %v1554 = vperm.slane %v1552, 0
    %v1555 = vperm.slane %v1552, 1
    %v1590 = vunpack.c.l.b16 %v1520
    %v1591 = vunpack.c.h.b16 %v1520
    %v1592 = vunpack.c.l.b16 %v1521
    %v1593 = vunpack.c.h.b16 %v1521
    %v1594 = vunpack.c.l.b16 %v1522
    %v1595 = vunpack.c.h.b16 %v1522
    %v1596 = vunpack.c.l.b16 %v1523
    %v1597 = vunpack.c.h.b16 %v1523
    %v1598 = vunpack.c.l.b16 %v1524
    %v1599 = vunpack.c.h.b16 %v1524
    %v1600 = vunpack.c.l.b16 %v1525
    %v1601 = vunpack.c.h.b16 %v1525
    %v1602 = vunpack.c.l.b16 %v1526
    %v1603 = vunpack.c.h.b16 %v1526
    %v1604 = vunpack.c.l.b16 %v1527
    %v1605 = vunpack.c.h.b16 %v1527
    %v1606 = vunpack.c.l.b16 %v1528
    %v1607 = vunpack.c.h.b16 %v1528
    %v1608 = vunpack.c.l.b16 %v1529
    %v1609 = vunpack.c.h.b16 %v1529
    %v1610 = vunpack.c.l.b16 %v1530
    %v1611 = vunpack.c.h.b16 %v1530
    %v1612 = vunpack.c.l.b16 %v1531
    %v1613 = vunpack.c.h.b16 %v1531
    %v1614 = vunpack.c.l.b16 %v1532
    %v1615 = vunpack.c.h.b16 %v1532
    %v1616 = vunpack.c.l.b16 %v1533
    %v1617 = vunpack.c.h.b16 %v1533
    %v1618 = vunpack.c.l.b16 %v1534
    %v1619 = vunpack.c.h.b16 %v1534
    %v1620 = vunpack.c.l.b16 %v1535
    %v1621 = vunpack.c.h.b16 %v1535
    %v1622 = vunpack.c.l.b16 %v1536
    %v1623 = vunpack.c.h.b16 %v1536
    %v1624 = vunpack.c.l.b16 %v1537
    %v1625 = vunpack.c.h.b16 %v1537
    %v1626 = vunpack.c.l.b16 %v1538
    %v1627 = vunpack.c.h.b16 %v1538
    %v1628 = vunpack.c.l.b16 %v1539
    %v1629 = vunpack.c.h.b16 %v1539
    %v1630 = vunpack.c.l.b16 %v1540
    %v1631 = vunpack.c.h.b16 %v1540
    %v1632 = vunpack.c.l.b16 %v1541
    %v1633 = vunpack.c.h.b16 %v1541
    %v1634 = vunpack.c.l.b16 %v1542
    %v1635 = vunpack.c.h.b16 %v1542
    %v1636 = vunpack.c.l.b16 %v1543
    %v1637 = vunpack.c.h.b16 %v1543
    %v1638 = vunpack.c.l.b16 %v1544
    %v1639 = vunpack.c.h.b16 %v1544
    %v1640 = vunpack.c.l.b16 %v1545
    %v1641 = vunpack.c.h.b16 %v1545
    %v1642 = vunpack.c.l.b16 %v1546
    %v1643 = vunpack.c.h.b16 %v1546
    %v1644 = vunpack.c.l.b16 %v1547
    %v1645 = vunpack.c.h.b16 %v1547
    %v1646 = vunpack.c.l.b16 %v1548
    %v1647 = vunpack.c.h.b16 %v1548
    %v1648 = vunpack.c.l.b16 %v1549
    %v1649 = vunpack.c.h.b16 %v1549
    %v1650 = vunpack.c.l.b16 %v1550
    %v1651 = vunpack.c.h.b16 %v1550
    %v1652 = vunpack.c.l.b16 %v1551
    %v1653 = vunpack.c.h.b16 %v1551
    %v1654 = vpack.c.b16 %v1592, %v1590
    %v1655 = vpack.c.b16 %v1593, %v1591
    %v1656 = vpack.c.b16 %v1596, %v1594
    %v1657 = vpack.c.b16 %v1597, %v1595
    %v1658 = vpack.c.b16 %v1600, %v1598
    %v1659 = vpack.c.b16 %v1601, %v1599
    %v1660 = vpack.c.b16 %v1604, %v1602
    %v1661 = vpack.c.b16 %v1605, %v1603
    %v1662 = vpack.c.b16 %v1608, %v1606
    %v1663 = vpack.c.b16 %v1609, %v1607
    %v1664 = vpack.c.b16 %v1612, %v1610
    %v1665 = vpack.c.b16 %v1613, %v1611
    %v1666 = vpack.c.b16 %v1616, %v1614
    %v1667 = vpack.c.b16 %v1617, %v1615
    %v1668 = vpack.c.b16 %v1620, %v1618
    %v1669 = vpack.c.b16 %v1621, %v1619
    %v1670 = vpack.c.b16 %v1624, %v1622
    %v1671 = vpack.c.b16 %v1625, %v1623
    %v1672 = vpack.c.b16 %v1628, %v1626
    %v1673 = vpack.c.b16 %v1629, %v1627
    %v1674 = vpack.c.b16 %v1632, %v1630
    %v1675 = vpack.c.b16 %v1633, %v1631
    %v1676 = vpack.c.b16 %v1636, %v1634
    %v1677 = vpack.c.b16 %v1637, %v1635
    %v1678 = vpack.c.b16 %v1640, %v1638
    %v1679 = vpack.c.b16 %v1641, %v1639
    %v1680 = vpack.c.b16 %v1644, %v1642
    %v1681 = vpack.c.b16 %v1645, %v1643
    %v1682 = vpack.c.b16 %v1648, %v1646
    %v1683 = vpack.c.b16 %v1649, %v1647
    %v1684 = vpack.c.b16 %v1652, %v1650
    %v1685 = vpack.c.b16 %v1653, %v1651
    %1718 = vmatpush.bf16.msra.mxu0 %v1668
    %1719 = vmatpush.bf16.msra.mxu0 %v1666
    %1720 = vmatpush.bf16.msra.mxu0 %v1664
    %1721 = vmatpush.bf16.msra.mxu0 %v1662
    %1722 = vmatpush.bf16.msra.mxu0 %v1660
    %1723 = vmatpush.bf16.msra.mxu0 %v1658
    %1724 = vmatpush.bf16.msra.mxu0 %v1656
    %1725 = vmatpush.bf16.msra.mxu0 %v1654
    %1726 = vmatmul.bf16.gmra.mxu0 %v1516
    %v1727 = vpop.f32.mrf.mxu0
    %v1728 = vadd.f32 %v1554, %v1727
    %v1729 = vpop.f32.mrf.mxu0
    %v1730 = vadd.f32 %v1554, %v1729
    %1731 = vmatmul.bf16.gmra.mxu0 %v1518
    %v1732 = vpop.f32.mrf.mxu0
    %v1733 = vadd.f32 %v1554, %v1732
    %v1734 = vpop.f32.mrf.mxu0
    %1735 = vdwg.mxu0
    %1736 = vmatpush.bf16.msra.mxu0 %v1684
    %1737 = vmatpush.bf16.msra.mxu0 %v1682
    %1738 = vmatpush.bf16.msra.mxu0 %v1680
    %1739 = vmatpush.bf16.msra.mxu0 %v1678
    %1740 = vmatpush.bf16.msra.mxu0 %v1676
    %1741 = vmatpush.bf16.msra.mxu0 %v1674
    %1742 = vmatpush.bf16.msra.mxu0 %v1672
    %1743 = vmatpush.bf16.msra.mxu0 %v1670
    %1744 = vmatmul.bf16.gmra.mxu0 %v1517
    %v1745 = vpop.f32.mrf.mxu0
    %v1746 = vadd.f32 %v1728, %v1745
    %v1747 = vpop.f32.mrf.mxu0
    %v1748 = vadd.f32 %v1730, %v1747
    %1749 = vmatmul.bf16.gmra.mxu0 %v1519
    %v1750 = vpop.f32.mrf.mxu0
    %v1751 = vadd.f32 %v1733, %v1750
    %v1752 = vpop.f32.mrf.mxu0
    %1753 = vdwg.mxu0
    %1754 = vmatpush.bf16.msra.mxu0 %v1669
    %1755 = vmatpush.bf16.msra.mxu0 %v1667
    %1756 = vmatpush.bf16.msra.mxu0 %v1665
    %1757 = vmatpush.bf16.msra.mxu0 %v1663
    %1758 = vmatpush.bf16.msra.mxu0 %v1661
    %1759 = vmatpush.bf16.msra.mxu0 %v1659
    %1760 = vmatpush.bf16.msra.mxu0 %v1657
    %1761 = vmatpush.bf16.msra.mxu0 %v1655
    %1762 = vmatmul.bf16.gmra.mxu0 %v1516
    %v1763 = vpop.f32.mrf.mxu0
    %v1764 = vadd.f32 %v1555, %v1763
    %v1765 = vpop.f32.mrf.mxu0
    %v1766 = vadd.f32 %v1555, %v1765
    %1767 = vmatmul.bf16.gmra.mxu0 %v1518
    %v1768 = vpop.f32.mrf.mxu0
    %v1769 = vadd.f32 %v1555, %v1768
    %v1770 = vpop.f32.mrf.mxu0
    %1771 = vdwg.mxu0
    %1772 = vmatpush.bf16.msra.mxu0 %v1685
    %1773 = vmatpush.bf16.msra.mxu0 %v1683
    %1774 = vmatpush.bf16.msra.mxu0 %v1681
    %1775 = vmatpush.bf16.msra.mxu0 %v1679
    %1776 = vmatpush.bf16.msra.mxu0 %v1677
    %1777 = vmatpush.bf16.msra.mxu0 %v1675
    %1778 = vmatpush.bf16.msra.mxu0 %v1673
    %1779 = vmatpush.bf16.msra.mxu0 %v1671
    %1780 = vmatmul.bf16.gmra.mxu0 %v1517
    %v1781 = vpop.f32.mrf.mxu0
    %v1782 = vadd.f32 %v1764, %v1781
    %v1783 = vpop.f32.mrf.mxu0
    %v1784 = vadd.f32 %v1766, %v1783
    %1785 = vmatmul.bf16.gmra.mxu0 %v1519
    %v1786 = vpop.f32.mrf.mxu0
    %v1787 = vadd.f32 %v1769, %v1786
    %v1788 = vpop.f32.mrf.mxu0
    %1789 = vdwg.mxu0
    %v1790 = vadd.f32 %v1430, %v1746
    %v1791 = vadd.f32 %v1502, %v1782
    %v1792 = vadd.f32 %v1432, %v1748
    %v1793 = vadd.f32 %v1504, %v1784
    %v1794 = vadd.f32 %v1435, %v1751
    %v1795 = vadd.f32 %v1507, %v1787
    %v1796 = vmax.f32 %v1790, 0.0
    %v1797 = vmax.f32 %v1791, 0.0
    %v1798 = vmax.f32 %v1792, 0.0
    %v1799 = vmax.f32 %v1793, 0.0
    %v1800 = vmax.f32 %v1794, 0.0
    %v1801 = vmax.f32 %v1795, 0.0
    %1802 = vst [vmem:[#allocation4] sm:$0xff] %v1796
    %1803 = vst [vmem:[#allocation4 + $0x8] sm:$0xff] %v1797
    %1804 = vst [vmem:[#allocation4 + $0x10] sm:$0xff] %v1798
    %1805 = vst [vmem:[#allocation4 + $0x18] sm:$0xff] %v1799
    %1806 = vst [vmem:[#allocation4 + $0x20] sm:$0x3] %v1800
    %1807 = vst [vmem:[#allocation4 + $0x28] sm:$0x3] %v1801
    %v1808 = vld [vmem:[#allocation4] sm:$0x3]
    %v1809 = vld [vmem:[#allocation4 + $0x8] sm:$0x3]
    %1810 = vst [vmem:[#allocation5] sm:$0x3] %v1808
    %1811 = vst [vmem:[#allocation5 + $0x8] sm:$0x3] %v1809
    %v1812 = vld [vmem:[#allocation4] sm:$0x6]
    %v1813 = vld [vmem:[#allocation4 + $0x8] sm:$0x6]
    %v1816 = vrot.slane %v1812, 1
    %v1817 = vrot.slane %v1813, 1
    %1820 = vst [vmem:[#allocation5 + $0x10] sm:$0x3] %v1816
    %1821 = vst [vmem:[#allocation5 + $0x18] sm:$0x3] %v1817
    %v1822 = vld [vmem:[#allocation4] sm:$0x18]
    %v1823 = vld [vmem:[#allocation4 + $0x8] sm:$0x18]
    %v1826 = vrot.slane %v1822, 3
    %v1827 = vrot.slane %v1823, 3
    %1830 = vst [vmem:[#allocation5 + $0x20] sm:$0x3] %v1826
    %1831 = vst [vmem:[#allocation5 + $0x28] sm:$0x3] %v1827
    %v1832 = vld [vmem:[#allocation4] sm:$0x30]
    %v1833 = vld [vmem:[#allocation4 + $0x8] sm:$0x30]
    %v1836 = vrot.slane %v1832, 4
    %v1837 = vrot.slane %v1833, 4
    %1840 = vst [vmem:[#allocation5 + $0x30] sm:$0x3] %v1836
    %1841 = vst [vmem:[#allocation5 + $0x38] sm:$0x3] %v1837
    %v1842 = vld [vmem:[#allocation4] sm:$0x18]
    %v1843 = vld [vmem:[#allocation4 + $0x8] sm:$0x18]
    %v1846 = vrot.slane %v1842, 1
    %v1847 = vrot.slane %v1843, 1
    %1850 = vst [vmem:[#allocation5] sm:$0xc] %v1846
    %1851 = vst [vmem:[#allocation5 + $0x8] sm:$0xc] %v1847
    %v1852 = vld [vmem:[#allocation4] sm:$0x30]
    %v1853 = vld [vmem:[#allocation4 + $0x8] sm:$0x30]
    %v1856 = vrot.slane %v1852, 2
    %v1857 = vrot.slane %v1853, 2
    %1860 = vst [vmem:[#allocation5 + $0x10] sm:$0xc] %v1856
    %1861 = vst [vmem:[#allocation5 + $0x18] sm:$0xc] %v1857
    %v1862 = vld [vmem:[#allocation4] sm:$0xc0]
    %v1863 = vld [vmem:[#allocation4 + $0x8] sm:$0xc0]
    %v1866 = vrot.slane %v1862, 4
    %v1867 = vrot.slane %v1863, 4
    %1870 = vst [vmem:[#allocation5 + $0x20] sm:$0xc] %v1866
    %1871 = vst [vmem:[#allocation5 + $0x28] sm:$0xc] %v1867
    %v1872 = vld [vmem:[#allocation4] sm:$0x80]
    %v1873 = vld [vmem:[#allocation4 + $0x8] sm:$0x80]
    %v1874 = vld [vmem:[#allocation4 + $0x10] sm:$0x1]
    %v1875 = vld [vmem:[#allocation4 + $0x18] sm:$0x1]
    %vm1880 = vcmask 1042432
    %v1881 = vrot.slane %v1872, 5
    %v1882 = vrot.slane %v1874, 5
    %v1883 = vsel %vm1880, %v1881, %v1882
    %v1884 = vrot.slane %v1873, 5
    %v1885 = vrot.slane %v1875, 5
    %v1886 = vsel %vm1880, %v1884, %v1885
    %1889 = vst [vmem:[#allocation5 + $0x30] sm:$0xc] %v1883
    %1890 = vst [vmem:[#allocation5 + $0x38] sm:$0xc] %v1886
    %v1891 = vld [vmem:[#allocation4 + $0x10] sm:$0x6]
    %v1892 = vld [vmem:[#allocation4 + $0x18] sm:$0x6]
    %v1895 = vrot.slane %v1891, 5
    %v1896 = vrot.slane %v1892, 5
    %1899 = vst [vmem:[#allocation5] sm:$0x30] %v1895
    %1900 = vst [vmem:[#allocation5 + $0x8] sm:$0x30] %v1896
    %v1901 = vld [vmem:[#allocation4 + $0x10] sm:$0xc]
    %v1902 = vld [vmem:[#allocation4 + $0x18] sm:$0xc]
    %v1905 = vrot.slane %v1901, 6
    %v1906 = vrot.slane %v1902, 6
    %1909 = vst [vmem:[#allocation5 + $0x10] sm:$0x30] %v1905
    %1910 = vst [vmem:[#allocation5 + $0x18] sm:$0x30] %v1906
    %v1911 = vld [vmem:[#allocation4 + $0x10] sm:$0x30]
    %v1912 = vld [vmem:[#allocation4 + $0x18] sm:$0x30]
    %1913 = vst [vmem:[#allocation5 + $0x20] sm:$0x30] %v1911
    %1914 = vst [vmem:[#allocation5 + $0x28] sm:$0x30] %v1912
    %v1915 = vld [vmem:[#allocation4 + $0x10] sm:$0x60]
    %v1916 = vld [vmem:[#allocation4 + $0x18] sm:$0x60]
    %v1919 = vrot.slane %v1915, 1
    %v1920 = vrot.slane %v1916, 1
    %1923 = vst [vmem:[#allocation5 + $0x30] sm:$0x30] %v1919
    %1924 = vst [vmem:[#allocation5 + $0x38] sm:$0x30] %v1920
    %v1925 = vld [vmem:[#allocation4 + $0x10] sm:$0x30]
    %v1926 = vld [vmem:[#allocation4 + $0x18] sm:$0x30]
    %v1929 = vrot.slane %v1925, 6
    %v1930 = vrot.slane %v1926, 6
    %1933 = vst [vmem:[#allocation5] sm:$0xc0] %v1929
    %1934 = vst [vmem:[#allocation5 + $0x8] sm:$0xc0] %v1930
    %v1935 = vld [vmem:[#allocation4 + $0x10] sm:$0x60]
    %v1936 = vld [vmem:[#allocation4 + $0x18] sm:$0x60]
    %v1939 = vrot.slane %v1935, 7
    %v1940 = vrot.slane %v1936, 7
    %1943 = vst [vmem:[#allocation5 + $0x10] sm:$0xc0] %v1939
    %1944 = vst [vmem:[#allocation5 + $0x18] sm:$0xc0] %v1940
    %v1945 = vld [vmem:[#allocation4 + $0x10] sm:$0x80]
    %v1946 = vld [vmem:[#allocation4 + $0x18] sm:$0x80]
    %v1947 = vld [vmem:[#allocation4 + $0x20] sm:$0x1]
    %v1948 = vld [vmem:[#allocation4 + $0x28] sm:$0x1]
    %vm1953 = vcmask 1046528
    %v1954 = vrot.slane %v1945, 1
    %v1955 = vrot.slane %v1947, 1
    %v1956 = vsel %vm1953, %v1954, %v1955
    %v1957 = vrot.slane %v1946, 1
    %v1958 = vrot.slane %v1948, 1
    %v1959 = vsel %vm1953, %v1957, %v1958
    %1962 = vst [vmem:[#allocation5 + $0x20] sm:$0xc0] %v1956
    %1963 = vst [vmem:[#allocation5 + $0x28] sm:$0xc0] %v1959
    %v1964 = vld [vmem:[#allocation4 + $0x20] sm:$0x3]
    %v1965 = vld [vmem:[#allocation4 + $0x28] sm:$0x3]
    %v1968 = vrot.slane %v1964, 2
    %v1969 = vrot.slane %v1965, 2
    %1972 = vst [vmem:[#allocation5 + $0x30] sm:$0xc0] %v1968
    %1973 = vst [vmem:[#allocation5 + $0x38] sm:$0xc0] %v1969
    %v1974 = vld [vmem:[#allocation5] sm:$0xff]
    %v1975 = vld [vmem:[#allocation5 + $0x8] sm:$0xff]
    %v1976 = vld [vmem:[#allocation5 + $0x10] sm:$0xff]
    %v1977 = vld [vmem:[#allocation5 + $0x18] sm:$0xff]
    %v1978 = vld [vmem:[#allocation5 + $0x20] sm:$0xff]
    %v1979 = vld [vmem:[#allocation5 + $0x28] sm:$0xff]
    %v1980 = vld [vmem:[#allocation5 + $0x30] sm:$0xff]
    %v1981 = vld [vmem:[#allocation5 + $0x38] sm:$0xff]
    %v1982 = vpack.c.bf16 %v1974, %v1974
    %v1983 = vpack.c.bf16 %v1975, %v1975
    %v1984 = vpack.c.bf16 %v1976, %v1976
    %v1985 = vpack.c.bf16 %v1977, %v1977
    %v1986 = vpack.c.bf16 %v1978, %v1978
    %v1987 = vpack.c.bf16 %v1979, %v1979
    %v1988 = vpack.c.bf16 %v1980, %v1980
    %v1989 = vpack.c.bf16 %v1981, %v1981
    %v1990 = vld [vmem:[#allocation20] sm:$0xff]
    %v1991 = vld [vmem:[#allocation20 + $0x8] sm:$0xff]
    %v1992 = vld [vmem:[#allocation20 + $0x10] sm:$0xff]
    %v1993 = vld [vmem:[#allocation20 + $0x18] sm:$0xff]
    %v1994 = vld [vmem:[#allocation20 + $0x20] sm:$0xff]
    %v1995 = vld [vmem:[#allocation20 + $0x28] sm:$0xff]
    %v1996 = vld [vmem:[#allocation20 + $0x30] sm:$0xff]
    %v1997 = vld [vmem:[#allocation20 + $0x38] sm:$0xff]
    %v1998 = vld [vmem:[#allocation20 + $0x40] sm:$0xff]
    %v1999 = vld [vmem:[#allocation20 + $0x48] sm:$0xff]
    %v2000 = vld [vmem:[#allocation20 + $0x50] sm:$0xff]
    %v2001 = vld [vmem:[#allocation20 + $0x58] sm:$0xff]
    %v2002 = vld [vmem:[#allocation20 + $0x60] sm:$0xff]
    %v2003 = vld [vmem:[#allocation20 + $0x68] sm:$0xff]
    %v2004 = vld [vmem:[#allocation20 + $0x70] sm:$0xff]
    %v2005 = vld [vmem:[#allocation20 + $0x78] sm:$0xff]
    %v2006 = vld [vmem:[#allocation20 + $0x80] sm:$0xff]
    %v2007 = vld [vmem:[#allocation20 + $0x88] sm:$0xff]
    %v2008 = vld [vmem:[#allocation20 + $0x90] sm:$0xff]
    %v2009 = vld [vmem:[#allocation20 + $0x98] sm:$0xff]
    %v2010 = vld [vmem:[#allocation20 + $0xa0] sm:$0xff]
    %v2011 = vld [vmem:[#allocation20 + $0xa8] sm:$0xff]
    %v2012 = vld [vmem:[#allocation20 + $0xb0] sm:$0xff]
    %v2013 = vld [vmem:[#allocation20 + $0xb8] sm:$0xff]
    %v2014 = vld [vmem:[#allocation20 + $0xc0] sm:$0xff]
    %v2015 = vld [vmem:[#allocation20 + $0xc8] sm:$0xff]
    %v2016 = vld [vmem:[#allocation20 + $0xd0] sm:$0xff]
    %v2017 = vld [vmem:[#allocation20 + $0xd8] sm:$0xff]
    %v2018 = vld [vmem:[#allocation20 + $0xe0] sm:$0xff]
    %v2019 = vld [vmem:[#allocation20 + $0xe8] sm:$0xff]
    %v2020 = vld [vmem:[#allocation20 + $0xf0] sm:$0xff]
    %v2021 = vld [vmem:[#allocation20 + $0xf8] sm:$0xff]
    %v2022 = vld [vmem:[#allocation20 + $0x100] sm:$0xff]
    %v2023 = vld [vmem:[#allocation20 + $0x108] sm:$0xff]
    %v2024 = vld [vmem:[#allocation20 + $0x110] sm:$0xff]
    %v2025 = vld [vmem:[#allocation20 + $0x118] sm:$0xff]
    %v2026 = vld [vmem:[#allocation20 + $0x120] sm:$0xff]
    %v2027 = vld [vmem:[#allocation20 + $0x128] sm:$0xff]
    %v2028 = vld [vmem:[#allocation20 + $0x130] sm:$0xff]
    %v2029 = vld [vmem:[#allocation20 + $0x138] sm:$0xff]
    %v2030 = vld [vmem:[#allocation20 + $0x140] sm:$0xff]
    %v2031 = vld [vmem:[#allocation20 + $0x148] sm:$0xff]
    %v2032 = vld [vmem:[#allocation20 + $0x150] sm:$0xff]
    %v2033 = vld [vmem:[#allocation20 + $0x158] sm:$0xff]
    %v2034 = vld [vmem:[#allocation20 + $0x160] sm:$0xff]
    %v2035 = vld [vmem:[#allocation20 + $0x168] sm:$0xff]
    %v2036 = vld [vmem:[#allocation20 + $0x170] sm:$0xff]
    %v2037 = vld [vmem:[#allocation20 + $0x178] sm:$0xff]
    %v2038 = vld [vmem:[#allocation20 + $0x180] sm:$0xff]
    %v2039 = vld [vmem:[#allocation20 + $0x188] sm:$0xff]
    %v2040 = vld [vmem:[#allocation20 + $0x190] sm:$0xff]
    %v2041 = vld [vmem:[#allocation20 + $0x198] sm:$0xff]
    %v2042 = vld [vmem:[#allocation20 + $0x1a0] sm:$0xff]
    %v2043 = vld [vmem:[#allocation20 + $0x1a8] sm:$0xff]
    %v2044 = vld [vmem:[#allocation20 + $0x1b0] sm:$0xff]
    %v2045 = vld [vmem:[#allocation20 + $0x1b8] sm:$0xff]
    %v2046 = vld [vmem:[#allocation20 + $0x1c0] sm:$0xff]
    %v2047 = vld [vmem:[#allocation20 + $0x1c8] sm:$0xff]
    %v2048 = vld [vmem:[#allocation20 + $0x1d0] sm:$0xff]
    %v2049 = vld [vmem:[#allocation20 + $0x1d8] sm:$0xff]
    %v2050 = vld [vmem:[#allocation20 + $0x1e0] sm:$0xff]
    %v2051 = vld [vmem:[#allocation20 + $0x1e8] sm:$0xff]
    %v2052 = vld [vmem:[#allocation20 + $0x1f0] sm:$0xff]
    %v2053 = vld [vmem:[#allocation20 + $0x1f8] sm:$0xff]
    %v2054 = vld [vmem:[#allocation20 + $0x200] sm:$0xff]
    %v2055 = vld [vmem:[#allocation20 + $0x208] sm:$0xff]
    %v2056 = vld [vmem:[#allocation20 + $0x210] sm:$0xff]
    %v2057 = vld [vmem:[#allocation20 + $0x218] sm:$0xff]
    %v2058 = vld [vmem:[#allocation20 + $0x220] sm:$0xff]
    %v2059 = vld [vmem:[#allocation20 + $0x228] sm:$0xff]
    %v2060 = vld [vmem:[#allocation20 + $0x230] sm:$0xff]
    %v2061 = vld [vmem:[#allocation20 + $0x238] sm:$0xff]
    %v2062 = vld [vmem:[#allocation20 + $0x240] sm:$0xff]
    %v2063 = vld [vmem:[#allocation20 + $0x248] sm:$0xff]
    %v2064 = vld [vmem:[#allocation20 + $0x250] sm:$0xff]
    %v2065 = vld [vmem:[#allocation20 + $0x258] sm:$0xff]
    %v2066 = vld [vmem:[#allocation20 + $0x260] sm:$0xff]
    %v2067 = vld [vmem:[#allocation20 + $0x268] sm:$0xff]
    %v2068 = vld [vmem:[#allocation20 + $0x270] sm:$0xff]
    %v2069 = vld [vmem:[#allocation20 + $0x278] sm:$0xff]
    %v2070 = vld [vmem:[#allocation20 + $0x280] sm:$0xff]
    %v2071 = vld [vmem:[#allocation20 + $0x288] sm:$0xff]
    %v2072 = vld [vmem:[#allocation20 + $0x290] sm:$0xff]
    %v2073 = vld [vmem:[#allocation20 + $0x298] sm:$0xff]
    %v2074 = vld [vmem:[#allocation20 + $0x2a0] sm:$0xff]
    %v2075 = vld [vmem:[#allocation20 + $0x2a8] sm:$0xff]
    %v2076 = vld [vmem:[#allocation20 + $0x2b0] sm:$0xff]
    %v2077 = vld [vmem:[#allocation20 + $0x2b8] sm:$0xff]
    %v2078 = vld [vmem:[#allocation20 + $0x2c0] sm:$0xff]
    %v2079 = vld [vmem:[#allocation20 + $0x2c8] sm:$0xff]
    %v2080 = vld [vmem:[#allocation20 + $0x2d0] sm:$0xff]
    %v2081 = vld [vmem:[#allocation20 + $0x2d8] sm:$0xff]
    %v2082 = vld [vmem:[#allocation20 + $0x2e0] sm:$0xff]
    %v2083 = vld [vmem:[#allocation20 + $0x2e8] sm:$0xff]
    %v2084 = vld [vmem:[#allocation20 + $0x2f0] sm:$0xff]
    %v2085 = vld [vmem:[#allocation20 + $0x2f8] sm:$0xff]
    %v2086 = vld [vmem:[#allocation20 + $0x300] sm:$0xff]
    %v2087 = vld [vmem:[#allocation20 + $0x308] sm:$0xff]
    %v2088 = vld [vmem:[#allocation20 + $0x310] sm:$0xff]
    %v2089 = vld [vmem:[#allocation20 + $0x318] sm:$0xff]
    %v2090 = vld [vmem:[#allocation20 + $0x320] sm:$0xff]
    %v2091 = vld [vmem:[#allocation20 + $0x328] sm:$0xff]
    %v2092 = vld [vmem:[#allocation20 + $0x330] sm:$0xff]
    %v2093 = vld [vmem:[#allocation20 + $0x338] sm:$0xff]
    %v2094 = vld [vmem:[#allocation20 + $0x340] sm:$0xff]
    %v2095 = vld [vmem:[#allocation20 + $0x348] sm:$0xff]
    %v2096 = vld [vmem:[#allocation20 + $0x350] sm:$0xff]
    %v2097 = vld [vmem:[#allocation20 + $0x358] sm:$0xff]
    %v2098 = vld [vmem:[#allocation20 + $0x360] sm:$0xff]
    %v2099 = vld [vmem:[#allocation20 + $0x368] sm:$0xff]
    %v2100 = vld [vmem:[#allocation20 + $0x370] sm:$0xff]
    %v2101 = vld [vmem:[#allocation20 + $0x378] sm:$0xff]
    %v2102 = vld [vmem:[#allocation20 + $0x380] sm:$0xff]
    %v2103 = vld [vmem:[#allocation20 + $0x388] sm:$0xff]
    %v2104 = vld [vmem:[#allocation20 + $0x390] sm:$0xff]
    %v2105 = vld [vmem:[#allocation20 + $0x398] sm:$0xff]
    %v2106 = vld [vmem:[#allocation20 + $0x3a0] sm:$0xff]
    %v2107 = vld [vmem:[#allocation20 + $0x3a8] sm:$0xff]
    %v2108 = vld [vmem:[#allocation20 + $0x3b0] sm:$0xff]
    %v2109 = vld [vmem:[#allocation20 + $0x3b8] sm:$0xff]
    %v2110 = vld [vmem:[#allocation20 + $0x3c0] sm:$0xff]
    %v2111 = vld [vmem:[#allocation20 + $0x3c8] sm:$0xff]
    %v2112 = vld [vmem:[#allocation20 + $0x3d0] sm:$0xff]
    %v2113 = vld [vmem:[#allocation20 + $0x3d8] sm:$0xff]
    %v2114 = vld [vmem:[#allocation20 + $0x3e0] sm:$0xff]
    %v2115 = vld [vmem:[#allocation20 + $0x3e8] sm:$0xff]
    %v2116 = vld [vmem:[#allocation20 + $0x3f0] sm:$0xff]
    %v2117 = vld [vmem:[#allocation20 + $0x3f8] sm:$0xff]
    %v2118 = vld [vmem:[#allocation20 + $0x400] sm:$0xff]
    %v2119 = vld [vmem:[#allocation20 + $0x408] sm:$0xff]
    %v2120 = vld [vmem:[#allocation20 + $0x410] sm:$0xff]
    %v2121 = vld [vmem:[#allocation20 + $0x418] sm:$0xff]
    %v2122 = vld [vmem:[#allocation20 + $0x420] sm:$0xff]
    %v2123 = vld [vmem:[#allocation20 + $0x428] sm:$0xff]
    %v2124 = vld [vmem:[#allocation20 + $0x430] sm:$0xff]
    %v2125 = vld [vmem:[#allocation20 + $0x438] sm:$0xff]
    %v2126 = vld [vmem:[#allocation20 + $0x440] sm:$0xff]
    %v2127 = vld [vmem:[#allocation20 + $0x448] sm:$0xff]
    %v2128 = vld [vmem:[#allocation20 + $0x450] sm:$0xff]
    %v2129 = vld [vmem:[#allocation20 + $0x458] sm:$0xff]
    %v2130 = vld [vmem:[#allocation20 + $0x460] sm:$0xff]
    %v2131 = vld [vmem:[#allocation20 + $0x468] sm:$0xff]
    %v2132 = vld [vmem:[#allocation20 + $0x470] sm:$0xff]
    %v2133 = vld [vmem:[#allocation20 + $0x478] sm:$0xff]
    %v2134 = vld [vmem:[#allocation20 + $0x480] sm:$0xff]
    %v2135 = vld [vmem:[#allocation20 + $0x488] sm:$0xff]
    %v2136 = vld [vmem:[#allocation20 + $0x490] sm:$0xff]
    %v2137 = vld [vmem:[#allocation20 + $0x498] sm:$0xff]
    %v2138 = vld [vmem:[#allocation20 + $0x4a0] sm:$0xff]
    %v2139 = vld [vmem:[#allocation20 + $0x4a8] sm:$0xff]
    %v2140 = vld [vmem:[#allocation20 + $0x4b0] sm:$0xff]
    %v2141 = vld [vmem:[#allocation20 + $0x4b8] sm:$0xff]
    %v2142 = vld [vmem:[#allocation20 + $0x4c0] sm:$0xff]
    %v2143 = vld [vmem:[#allocation20 + $0x4c8] sm:$0xff]
    %v2144 = vld [vmem:[#allocation20 + $0x4d0] sm:$0xff]
    %v2145 = vld [vmem:[#allocation20 + $0x4d8] sm:$0xff]
    %v2146 = vld [vmem:[#allocation20 + $0x4e0] sm:$0xff]
    %v2147 = vld [vmem:[#allocation20 + $0x4e8] sm:$0xff]
    %v2148 = vld [vmem:[#allocation20 + $0x4f0] sm:$0xff]
    %v2149 = vld [vmem:[#allocation20 + $0x4f8] sm:$0xff]
    %v2150 = vld [vmem:[#allocation20 + $0x500] sm:$0xff]
    %v2151 = vld [vmem:[#allocation20 + $0x508] sm:$0xff]
    %v2152 = vld [vmem:[#allocation20 + $0x510] sm:$0xff]
    %v2153 = vld [vmem:[#allocation20 + $0x518] sm:$0xff]
    %v2154 = vld [vmem:[#allocation20 + $0x520] sm:$0xff]
    %v2155 = vld [vmem:[#allocation20 + $0x528] sm:$0xff]
    %v2156 = vld [vmem:[#allocation20 + $0x530] sm:$0xff]
    %v2157 = vld [vmem:[#allocation20 + $0x538] sm:$0xff]
    %v2158 = vld [vmem:[#allocation20 + $0x540] sm:$0xff]
    %v2159 = vld [vmem:[#allocation20 + $0x548] sm:$0xff]
    %v2160 = vld [vmem:[#allocation20 + $0x550] sm:$0xff]
    %v2161 = vld [vmem:[#allocation20 + $0x558] sm:$0xff]
    %v2162 = vld [vmem:[#allocation20 + $0x560] sm:$0xff]
    %v2163 = vld [vmem:[#allocation20 + $0x568] sm:$0xff]
    %v2164 = vld [vmem:[#allocation20 + $0x570] sm:$0xff]
    %v2165 = vld [vmem:[#allocation20 + $0x578] sm:$0xff]
    %v2166 = vld [vmem:[#allocation20 + $0x580] sm:$0xff]
    %v2167 = vld [vmem:[#allocation20 + $0x588] sm:$0xff]
    %v2168 = vld [vmem:[#allocation20 + $0x590] sm:$0xff]
    %v2169 = vld [vmem:[#allocation20 + $0x598] sm:$0xff]
    %v2170 = vld [vmem:[#allocation20 + $0x5a0] sm:$0xff]
    %v2171 = vld [vmem:[#allocation20 + $0x5a8] sm:$0xff]
    %v2172 = vld [vmem:[#allocation20 + $0x5b0] sm:$0xff]
    %v2173 = vld [vmem:[#allocation20 + $0x5b8] sm:$0xff]
    %v2174 = vld [vmem:[#allocation20 + $0x5c0] sm:$0xff]
    %v2175 = vld [vmem:[#allocation20 + $0x5c8] sm:$0xff]
    %v2176 = vld [vmem:[#allocation20 + $0x5d0] sm:$0xff]
    %v2177 = vld [vmem:[#allocation20 + $0x5d8] sm:$0xff]
    %v2178 = vld [vmem:[#allocation20 + $0x5e0] sm:$0xff]
    %v2179 = vld [vmem:[#allocation20 + $0x5e8] sm:$0xff]
    %v2180 = vld [vmem:[#allocation20 + $0x5f0] sm:$0xff]
    %v2181 = vld [vmem:[#allocation20 + $0x5f8] sm:$0xff]
    %v2182 = vld [vmem:[#allocation20 + $0x600] sm:$0xff]
    %v2183 = vld [vmem:[#allocation20 + $0x608] sm:$0xff]
    %v2184 = vld [vmem:[#allocation20 + $0x610] sm:$0xff]
    %v2185 = vld [vmem:[#allocation20 + $0x618] sm:$0xff]
    %v2186 = vld [vmem:[#allocation20 + $0x620] sm:$0xff]
    %v2187 = vld [vmem:[#allocation20 + $0x628] sm:$0xff]
    %v2188 = vld [vmem:[#allocation20 + $0x630] sm:$0xff]
    %v2189 = vld [vmem:[#allocation20 + $0x638] sm:$0xff]
    %v2190 = vld [vmem:[#allocation20 + $0x640] sm:$0xff]
    %v2191 = vld [vmem:[#allocation20 + $0x648] sm:$0xff]
    %v2192 = vld [vmem:[#allocation20 + $0x650] sm:$0xff]
    %v2193 = vld [vmem:[#allocation20 + $0x658] sm:$0xff]
    %v2194 = vld [vmem:[#allocation20 + $0x660] sm:$0xff]
    %v2195 = vld [vmem:[#allocation20 + $0x668] sm:$0xff]
    %v2196 = vld [vmem:[#allocation20 + $0x670] sm:$0xff]
    %v2197 = vld [vmem:[#allocation20 + $0x678] sm:$0xff]
    %v2198 = vld [vmem:[#allocation20 + $0x680] sm:$0xff]
    %v2199 = vld [vmem:[#allocation20 + $0x688] sm:$0xff]
    %v2200 = vld [vmem:[#allocation20 + $0x690] sm:$0xff]
    %v2201 = vld [vmem:[#allocation20 + $0x698] sm:$0xff]
    %v2202 = vld [vmem:[#allocation20 + $0x6a0] sm:$0xff]
    %v2203 = vld [vmem:[#allocation20 + $0x6a8] sm:$0xff]
    %v2204 = vld [vmem:[#allocation20 + $0x6b0] sm:$0xff]
    %v2205 = vld [vmem:[#allocation20 + $0x6b8] sm:$0xff]
    %v2206 = vld [vmem:[#allocation20 + $0x6c0] sm:$0xff]
    %v2207 = vld [vmem:[#allocation20 + $0x6c8] sm:$0xff]
    %v2208 = vld [vmem:[#allocation20 + $0x6d0] sm:$0xff]
    %v2209 = vld [vmem:[#allocation20 + $0x6d8] sm:$0xff]
    %v2210 = vld [vmem:[#allocation20 + $0x6e0] sm:$0xff]
    %v2211 = vld [vmem:[#allocation20 + $0x6e8] sm:$0xff]
    %v2212 = vld [vmem:[#allocation20 + $0x6f0] sm:$0xff]
    %v2213 = vld [vmem:[#allocation20 + $0x6f8] sm:$0xff]
    %v2214 = vld [vmem:[#allocation20 + $0x700] sm:$0xff]
    %v2215 = vld [vmem:[#allocation20 + $0x708] sm:$0xff]
    %v2216 = vld [vmem:[#allocation20 + $0x710] sm:$0xff]
    %v2217 = vld [vmem:[#allocation20 + $0x718] sm:$0xff]
    %v2218 = vld [vmem:[#allocation20 + $0x720] sm:$0xff]
    %v2219 = vld [vmem:[#allocation20 + $0x728] sm:$0xff]
    %v2220 = vld [vmem:[#allocation20 + $0x730] sm:$0xff]
    %v2221 = vld [vmem:[#allocation20 + $0x738] sm:$0xff]
    %v2222 = vld [vmem:[#allocation20 + $0x740] sm:$0xff]
    %v2223 = vld [vmem:[#allocation20 + $0x748] sm:$0xff]
    %v2224 = vld [vmem:[#allocation20 + $0x750] sm:$0xff]
    %v2225 = vld [vmem:[#allocation20 + $0x758] sm:$0xff]
    %v2226 = vld [vmem:[#allocation20 + $0x760] sm:$0xff]
    %v2227 = vld [vmem:[#allocation20 + $0x768] sm:$0xff]
    %v2228 = vld [vmem:[#allocation20 + $0x770] sm:$0xff]
    %v2229 = vld [vmem:[#allocation20 + $0x778] sm:$0xff]
    %v2230 = vld [vmem:[#allocation20 + $0x780] sm:$0xff]
    %v2231 = vld [vmem:[#allocation20 + $0x788] sm:$0xff]
    %v2232 = vld [vmem:[#allocation20 + $0x790] sm:$0xff]
    %v2233 = vld [vmem:[#allocation20 + $0x798] sm:$0xff]
    %v2234 = vld [vmem:[#allocation20 + $0x7a0] sm:$0xff]
    %v2235 = vld [vmem:[#allocation20 + $0x7a8] sm:$0xff]
    %v2236 = vld [vmem:[#allocation20 + $0x7b0] sm:$0xff]
    %v2237 = vld [vmem:[#allocation20 + $0x7b8] sm:$0xff]
    %v2238 = vld [vmem:[#allocation20 + $0x7c0] sm:$0xff]
    %v2239 = vld [vmem:[#allocation20 + $0x7c8] sm:$0xff]
    %v2240 = vld [vmem:[#allocation20 + $0x7d0] sm:$0xff]
    %v2241 = vld [vmem:[#allocation20 + $0x7d8] sm:$0xff]
    %v2242 = vld [vmem:[#allocation20 + $0x7e0] sm:$0xff]
    %v2243 = vld [vmem:[#allocation20 + $0x7e8] sm:$0xff]
    %v2244 = vld [vmem:[#allocation20 + $0x7f0] sm:$0xff]
    %v2245 = vld [vmem:[#allocation20 + $0x7f8] sm:$0xff]
    %v2246 = vld [vmem:[#allocation20 + $0x800] sm:$0xff]
    %v2247 = vld [vmem:[#allocation20 + $0x808] sm:$0xff]
    %v2248 = vld [vmem:[#allocation20 + $0x810] sm:$0xff]
    %v2249 = vld [vmem:[#allocation20 + $0x818] sm:$0xff]
    %v2250 = vld [vmem:[#allocation20 + $0x820] sm:$0xff]
    %v2251 = vld [vmem:[#allocation20 + $0x828] sm:$0xff]
    %v2252 = vld [vmem:[#allocation20 + $0x830] sm:$0xff]
    %v2253 = vld [vmem:[#allocation20 + $0x838] sm:$0xff]
    %v2254 = vld [vmem:[#allocation20 + $0x840] sm:$0xff]
    %v2255 = vld [vmem:[#allocation20 + $0x848] sm:$0xff]
    %v2256 = vld [vmem:[#allocation20 + $0x850] sm:$0xff]
    %v2257 = vld [vmem:[#allocation20 + $0x858] sm:$0xff]
    %v2258 = vld [vmem:[#allocation20 + $0x860] sm:$0xff]
    %v2259 = vld [vmem:[#allocation20 + $0x868] sm:$0xff]
    %v2260 = vld [vmem:[#allocation20 + $0x870] sm:$0xff]
    %v2261 = vld [vmem:[#allocation20 + $0x878] sm:$0xff]
    %v2262 = vld [vmem:[#allocation20 + $0x880] sm:$0xff]
    %v2263 = vld [vmem:[#allocation20 + $0x888] sm:$0xff]
    %v2264 = vld [vmem:[#allocation20 + $0x890] sm:$0xff]
    %v2265 = vld [vmem:[#allocation20 + $0x898] sm:$0xff]
    %v2266 = vld [vmem:[#allocation20 + $0x8a0] sm:$0xff]
    %v2267 = vld [vmem:[#allocation20 + $0x8a8] sm:$0xff]
    %v2268 = vld [vmem:[#allocation20 + $0x8b0] sm:$0xff]
    %v2269 = vld [vmem:[#allocation20 + $0x8b8] sm:$0xff]
    %v2270 = vld [vmem:[#allocation20 + $0x8c0] sm:$0xff]
    %v2271 = vld [vmem:[#allocation20 + $0x8c8] sm:$0xff]
    %v2272 = vld [vmem:[#allocation20 + $0x8d0] sm:$0xff]
    %v2273 = vld [vmem:[#allocation20 + $0x8d8] sm:$0xff]
    %v2274 = vld [vmem:[#allocation20 + $0x8e0] sm:$0xff]
    %v2275 = vld [vmem:[#allocation20 + $0x8e8] sm:$0xff]
    %v2276 = vld [vmem:[#allocation20 + $0x8f0] sm:$0xff]
    %v2277 = vld [vmem:[#allocation20 + $0x8f8] sm:$0xff]
    %v2278 = vld [vmem:[#allocation20 + $0x900] sm:$0xff]
    %v2279 = vld [vmem:[#allocation20 + $0x908] sm:$0xff]
    %v2280 = vld [vmem:[#allocation20 + $0x910] sm:$0xff]
    %v2281 = vld [vmem:[#allocation20 + $0x918] sm:$0xff]
    %v2282 = vld [vmem:[#allocation20 + $0x920] sm:$0xff]
    %v2283 = vld [vmem:[#allocation20 + $0x928] sm:$0xff]
    %v2284 = vld [vmem:[#allocation20 + $0x930] sm:$0xff]
    %v2285 = vld [vmem:[#allocation20 + $0x938] sm:$0xff]
    %v2286 = vld [vmem:[#allocation20 + $0x940] sm:$0xff]
    %v2287 = vld [vmem:[#allocation20 + $0x948] sm:$0xff]
    %v2288 = vld [vmem:[#allocation20 + $0x950] sm:$0xff]
    %v2289 = vld [vmem:[#allocation20 + $0x958] sm:$0xff]
    %v2290 = vld [vmem:[#allocation20 + $0x960] sm:$0xff]
    %v2291 = vld [vmem:[#allocation20 + $0x968] sm:$0xff]
    %v2292 = vld [vmem:[#allocation20 + $0x970] sm:$0xff]
    %v2293 = vld [vmem:[#allocation20 + $0x978] sm:$0xff]
    %v2294 = vld [vmem:[#allocation20 + $0x980] sm:$0xff]
    %v2295 = vld [vmem:[#allocation20 + $0x988] sm:$0xff]
    %v2296 = vld [vmem:[#allocation20 + $0x990] sm:$0xff]
    %v2297 = vld [vmem:[#allocation20 + $0x998] sm:$0xff]
    %v2298 = vld [vmem:[#allocation20 + $0x9a0] sm:$0xff]
    %v2299 = vld [vmem:[#allocation20 + $0x9a8] sm:$0xff]
    %v2300 = vld [vmem:[#allocation20 + $0x9b0] sm:$0xff]
    %v2301 = vld [vmem:[#allocation20 + $0x9b8] sm:$0xff]
    %v2302 = vld [vmem:[#allocation20 + $0x9c0] sm:$0xff]
    %v2303 = vld [vmem:[#allocation20 + $0x9c8] sm:$0xff]
    %v2304 = vld [vmem:[#allocation20 + $0x9d0] sm:$0xff]
    %v2305 = vld [vmem:[#allocation20 + $0x9d8] sm:$0xff]
    %v2306 = vld [vmem:[#allocation20 + $0x9e0] sm:$0xff]
    %v2307 = vld [vmem:[#allocation20 + $0x9e8] sm:$0xff]
    %v2308 = vld [vmem:[#allocation20 + $0x9f0] sm:$0xff]
    %v2309 = vld [vmem:[#allocation20 + $0x9f8] sm:$0xff]
    %v2310 = vld [vmem:[#allocation20 + $0xa00] sm:$0xff]
    %v2311 = vld [vmem:[#allocation20 + $0xa08] sm:$0xff]
    %v2312 = vld [vmem:[#allocation20 + $0xa10] sm:$0xff]
    %v2313 = vld [vmem:[#allocation20 + $0xa18] sm:$0xff]
    %v2314 = vld [vmem:[#allocation20 + $0xa20] sm:$0xff]
    %v2315 = vld [vmem:[#allocation20 + $0xa28] sm:$0xff]
    %v2316 = vld [vmem:[#allocation20 + $0xa30] sm:$0xff]
    %v2317 = vld [vmem:[#allocation20 + $0xa38] sm:$0xff]
    %v2318 = vld [vmem:[#allocation20 + $0xa40] sm:$0xff]
    %v2319 = vld [vmem:[#allocation20 + $0xa48] sm:$0xff]
    %v2320 = vld [vmem:[#allocation20 + $0xa50] sm:$0xff]
    %v2321 = vld [vmem:[#allocation20 + $0xa58] sm:$0xff]
    %v2322 = vld [vmem:[#allocation20 + $0xa60] sm:$0xff]
    %v2323 = vld [vmem:[#allocation20 + $0xa68] sm:$0xff]
    %v2324 = vld [vmem:[#allocation20 + $0xa70] sm:$0xff]
    %v2325 = vld [vmem:[#allocation20 + $0xa78] sm:$0xff]
    %v2326 = vld [vmem:[#allocation20 + $0xa80] sm:$0xff]
    %v2327 = vld [vmem:[#allocation20 + $0xa88] sm:$0xff]
    %v2328 = vld [vmem:[#allocation20 + $0xa90] sm:$0xff]
    %v2329 = vld [vmem:[#allocation20 + $0xa98] sm:$0xff]
    %v2330 = vld [vmem:[#allocation20 + $0xaa0] sm:$0xff]
    %v2331 = vld [vmem:[#allocation20 + $0xaa8] sm:$0xff]
    %v2332 = vld [vmem:[#allocation20 + $0xab0] sm:$0xff]
    %v2333 = vld [vmem:[#allocation20 + $0xab8] sm:$0xff]
    %v2334 = vld [vmem:[#allocation20 + $0xac0] sm:$0xff]
    %v2335 = vld [vmem:[#allocation20 + $0xac8] sm:$0xff]
    %v2336 = vld [vmem:[#allocation20 + $0xad0] sm:$0xff]
    %v2337 = vld [vmem:[#allocation20 + $0xad8] sm:$0xff]
    %v2338 = vld [vmem:[#allocation20 + $0xae0] sm:$0xff]
    %v2339 = vld [vmem:[#allocation20 + $0xae8] sm:$0xff]
    %v2340 = vld [vmem:[#allocation20 + $0xaf0] sm:$0xff]
    %v2341 = vld [vmem:[#allocation20 + $0xaf8] sm:$0xff]
    %v2342 = vld [vmem:[#allocation20 + $0xb00] sm:$0xff]
    %v2343 = vld [vmem:[#allocation20 + $0xb08] sm:$0xff]
    %v2344 = vld [vmem:[#allocation20 + $0xb10] sm:$0xff]
    %v2345 = vld [vmem:[#allocation20 + $0xb18] sm:$0xff]
    %v2346 = vld [vmem:[#allocation20 + $0xb20] sm:$0xff]
    %v2347 = vld [vmem:[#allocation20 + $0xb28] sm:$0xff]
    %v2348 = vld [vmem:[#allocation20 + $0xb30] sm:$0xff]
    %v2349 = vld [vmem:[#allocation20 + $0xb38] sm:$0xff]
    %v2350 = vld [vmem:[#allocation20 + $0xb40] sm:$0xff]
    %v2351 = vld [vmem:[#allocation20 + $0xb48] sm:$0xff]
    %v2352 = vld [vmem:[#allocation20 + $0xb50] sm:$0xff]
    %v2353 = vld [vmem:[#allocation20 + $0xb58] sm:$0xff]
    %v2354 = vld [vmem:[#allocation20 + $0xb60] sm:$0xff]
    %v2355 = vld [vmem:[#allocation20 + $0xb68] sm:$0xff]
    %v2356 = vld [vmem:[#allocation20 + $0xb70] sm:$0xff]
    %v2357 = vld [vmem:[#allocation20 + $0xb78] sm:$0xff]
    %v2358 = vld [vmem:[#allocation20 + $0xb80] sm:$0xff]
    %v2359 = vld [vmem:[#allocation20 + $0xb88] sm:$0xff]
    %v2360 = vld [vmem:[#allocation20 + $0xb90] sm:$0xff]
    %v2361 = vld [vmem:[#allocation20 + $0xb98] sm:$0xff]
    %v2362 = vld [vmem:[#allocation20 + $0xba0] sm:$0xff]
    %v2363 = vld [vmem:[#allocation20 + $0xba8] sm:$0xff]
    %v2364 = vld [vmem:[#allocation20 + $0xbb0] sm:$0xff]
    %v2365 = vld [vmem:[#allocation20 + $0xbb8] sm:$0xff]
    %v2366 = vld [vmem:[#allocation20 + $0xbc0] sm:$0xff]
    %v2367 = vld [vmem:[#allocation20 + $0xbc8] sm:$0xff]
    %v2368 = vld [vmem:[#allocation20 + $0xbd0] sm:$0xff]
    %v2369 = vld [vmem:[#allocation20 + $0xbd8] sm:$0xff]
    %v2370 = vld [vmem:[#allocation20 + $0xbe0] sm:$0xff]
    %v2371 = vld [vmem:[#allocation20 + $0xbe8] sm:$0xff]
    %v2372 = vld [vmem:[#allocation20 + $0xbf0] sm:$0xff]
    %v2373 = vld [vmem:[#allocation20 + $0xbf8] sm:$0xff]
    %v2374 = vld [vmem:[#allocation20 + $0xc00] sm:$0xff]
    %v2375 = vld [vmem:[#allocation20 + $0xc08] sm:$0xff]
    %v2376 = vld [vmem:[#allocation20 + $0xc10] sm:$0xff]
    %v2377 = vld [vmem:[#allocation20 + $0xc18] sm:$0xff]
    %v2378 = vld [vmem:[#allocation20 + $0xc20] sm:$0xff]
    %v2379 = vld [vmem:[#allocation20 + $0xc28] sm:$0xff]
    %v2380 = vld [vmem:[#allocation20 + $0xc30] sm:$0xff]
    %v2381 = vld [vmem:[#allocation20 + $0xc38] sm:$0xff]
    %v2382 = vld [vmem:[#allocation20 + $0xc40] sm:$0xff]
    %v2383 = vld [vmem:[#allocation20 + $0xc48] sm:$0xff]
    %v2384 = vld [vmem:[#allocation20 + $0xc50] sm:$0xff]
    %v2385 = vld [vmem:[#allocation20 + $0xc58] sm:$0xff]
    %v2386 = vld [vmem:[#allocation20 + $0xc60] sm:$0xff]
    %v2387 = vld [vmem:[#allocation20 + $0xc68] sm:$0xff]
    %v2388 = vld [vmem:[#allocation20 + $0xc70] sm:$0xff]
    %v2389 = vld [vmem:[#allocation20 + $0xc78] sm:$0xff]
    %v2390 = vld [vmem:[#allocation20 + $0xc80] sm:$0xff]
    %v2391 = vld [vmem:[#allocation20 + $0xc88] sm:$0xff]
    %v2392 = vld [vmem:[#allocation20 + $0xc90] sm:$0xff]
    %v2393 = vld [vmem:[#allocation20 + $0xc98] sm:$0xff]
    %v2394 = vld [vmem:[#allocation20 + $0xca0] sm:$0xff]
    %v2395 = vld [vmem:[#allocation20 + $0xca8] sm:$0xff]
    %v2396 = vld [vmem:[#allocation20 + $0xcb0] sm:$0xff]
    %v2397 = vld [vmem:[#allocation20 + $0xcb8] sm:$0xff]
    %v2398 = vld [vmem:[#allocation20 + $0xcc0] sm:$0xff]
    %v2399 = vld [vmem:[#allocation20 + $0xcc8] sm:$0xff]
    %v2400 = vld [vmem:[#allocation20 + $0xcd0] sm:$0xff]
    %v2401 = vld [vmem:[#allocation20 + $0xcd8] sm:$0xff]
    %v2402 = vld [vmem:[#allocation20 + $0xce0] sm:$0xff]
    %v2403 = vld [vmem:[#allocation20 + $0xce8] sm:$0xff]
    %v2404 = vld [vmem:[#allocation20 + $0xcf0] sm:$0xff]
    %v2405 = vld [vmem:[#allocation20 + $0xcf8] sm:$0xff]
    %v2406 = vld [vmem:[#allocation20 + $0xd00] sm:$0xff]
    %v2407 = vld [vmem:[#allocation20 + $0xd08] sm:$0xff]
    %v2408 = vld [vmem:[#allocation20 + $0xd10] sm:$0xff]
    %v2409 = vld [vmem:[#allocation20 + $0xd18] sm:$0xff]
    %v2410 = vld [vmem:[#allocation20 + $0xd20] sm:$0xff]
    %v2411 = vld [vmem:[#allocation20 + $0xd28] sm:$0xff]
    %v2412 = vld [vmem:[#allocation20 + $0xd30] sm:$0xff]
    %v2413 = vld [vmem:[#allocation20 + $0xd38] sm:$0xff]
    %v2414 = vld [vmem:[#allocation20 + $0xd40] sm:$0xff]
    %v2415 = vld [vmem:[#allocation20 + $0xd48] sm:$0xff]
    %v2416 = vld [vmem:[#allocation20 + $0xd50] sm:$0xff]
    %v2417 = vld [vmem:[#allocation20 + $0xd58] sm:$0xff]
    %v2418 = vld [vmem:[#allocation20 + $0xd60] sm:$0xff]
    %v2419 = vld [vmem:[#allocation20 + $0xd68] sm:$0xff]
    %v2420 = vld [vmem:[#allocation20 + $0xd70] sm:$0xff]
    %v2421 = vld [vmem:[#allocation20 + $0xd78] sm:$0xff]
    %v2422 = vld [vmem:[#allocation20 + $0xd80] sm:$0xff]
    %v2423 = vld [vmem:[#allocation20 + $0xd88] sm:$0xff]
    %v2424 = vld [vmem:[#allocation20 + $0xd90] sm:$0xff]
    %v2425 = vld [vmem:[#allocation20 + $0xd98] sm:$0xff]
    %v2426 = vld [vmem:[#allocation20 + $0xda0] sm:$0xff]
    %v2427 = vld [vmem:[#allocation20 + $0xda8] sm:$0xff]
    %v2428 = vld [vmem:[#allocation20 + $0xdb0] sm:$0xff]
    %v2429 = vld [vmem:[#allocation20 + $0xdb8] sm:$0xff]
    %v2430 = vld [vmem:[#allocation20 + $0xdc0] sm:$0xff]
    %v2431 = vld [vmem:[#allocation20 + $0xdc8] sm:$0xff]
    %v2432 = vld [vmem:[#allocation20 + $0xdd0] sm:$0xff]
    %v2433 = vld [vmem:[#allocation20 + $0xdd8] sm:$0xff]
    %v2434 = vld [vmem:[#allocation20 + $0xde0] sm:$0xff]
    %v2435 = vld [vmem:[#allocation20 + $0xde8] sm:$0xff]
    %v2436 = vld [vmem:[#allocation20 + $0xdf0] sm:$0xff]
    %v2437 = vld [vmem:[#allocation20 + $0xdf8] sm:$0xff]
    %v2438 = vld [vmem:[#allocation20 + $0xe00] sm:$0xff]
    %v2439 = vld [vmem:[#allocation20 + $0xe08] sm:$0xff]
    %v2440 = vld [vmem:[#allocation20 + $0xe10] sm:$0xff]
    %v2441 = vld [vmem:[#allocation20 + $0xe18] sm:$0xff]
    %v2442 = vld [vmem:[#allocation20 + $0xe20] sm:$0xff]
    %v2443 = vld [vmem:[#allocation20 + $0xe28] sm:$0xff]
    %v2444 = vld [vmem:[#allocation20 + $0xe30] sm:$0xff]
    %v2445 = vld [vmem:[#allocation20 + $0xe38] sm:$0xff]
    %v2446 = vld [vmem:[#allocation20 + $0xe40] sm:$0xff]
    %v2447 = vld [vmem:[#allocation20 + $0xe48] sm:$0xff]
    %v2448 = vld [vmem:[#allocation20 + $0xe50] sm:$0xff]
    %v2449 = vld [vmem:[#allocation20 + $0xe58] sm:$0xff]
    %v2450 = vld [vmem:[#allocation20 + $0xe60] sm:$0xff]
    %v2451 = vld [vmem:[#allocation20 + $0xe68] sm:$0xff]
    %v2452 = vld [vmem:[#allocation20 + $0xe70] sm:$0xff]
    %v2453 = vld [vmem:[#allocation20 + $0xe78] sm:$0xff]
    %v2454 = vld [vmem:[#allocation20 + $0xe80] sm:$0xff]
    %v2455 = vld [vmem:[#allocation20 + $0xe88] sm:$0xff]
    %v2456 = vld [vmem:[#allocation20 + $0xe90] sm:$0xff]
    %v2457 = vld [vmem:[#allocation20 + $0xe98] sm:$0xff]
    %v2458 = vld [vmem:[#allocation20 + $0xea0] sm:$0xff]
    %v2459 = vld [vmem:[#allocation20 + $0xea8] sm:$0xff]
    %v2460 = vld [vmem:[#allocation20 + $0xeb0] sm:$0xff]
    %v2461 = vld [vmem:[#allocation20 + $0xeb8] sm:$0xff]
    %v2462 = vld [vmem:[#allocation20 + $0xec0] sm:$0xff]
    %v2463 = vld [vmem:[#allocation20 + $0xec8] sm:$0xff]
    %v2464 = vld [vmem:[#allocation20 + $0xed0] sm:$0xff]
    %v2465 = vld [vmem:[#allocation20 + $0xed8] sm:$0xff]
    %v2466 = vld [vmem:[#allocation20 + $0xee0] sm:$0xff]
    %v2467 = vld [vmem:[#allocation20 + $0xee8] sm:$0xff]
    %v2468 = vld [vmem:[#allocation20 + $0xef0] sm:$0xff]
    %v2469 = vld [vmem:[#allocation20 + $0xef8] sm:$0xff]
    %v2470 = vld [vmem:[#allocation20 + $0xf00] sm:$0xff]
    %v2471 = vld [vmem:[#allocation20 + $0xf08] sm:$0xff]
    %v2472 = vld [vmem:[#allocation20 + $0xf10] sm:$0xff]
    %v2473 = vld [vmem:[#allocation20 + $0xf18] sm:$0xff]
    %v2474 = vld [vmem:[#allocation20 + $0xf20] sm:$0xff]
    %v2475 = vld [vmem:[#allocation20 + $0xf28] sm:$0xff]
    %v2476 = vld [vmem:[#allocation20 + $0xf30] sm:$0xff]
    %v2477 = vld [vmem:[#allocation20 + $0xf38] sm:$0xff]
    %v2478 = vld [vmem:[#allocation20 + $0xf40] sm:$0xff]
    %v2479 = vld [vmem:[#allocation20 + $0xf48] sm:$0xff]
    %v2480 = vld [vmem:[#allocation20 + $0xf50] sm:$0xff]
    %v2481 = vld [vmem:[#allocation20 + $0xf58] sm:$0xff]
    %v2482 = vld [vmem:[#allocation20 + $0xf60] sm:$0xff]
    %v2483 = vld [vmem:[#allocation20 + $0xf68] sm:$0xff]
    %v2484 = vld [vmem:[#allocation20 + $0xf70] sm:$0xff]
    %v2485 = vld [vmem:[#allocation20 + $0xf78] sm:$0xff]
    %v2486 = vld [vmem:[#allocation20 + $0xf80] sm:$0xff]
    %v2487 = vld [vmem:[#allocation20 + $0xf88] sm:$0xff]
    %v2488 = vld [vmem:[#allocation20 + $0xf90] sm:$0xff]
    %v2489 = vld [vmem:[#allocation20 + $0xf98] sm:$0xff]
    %v2490 = vld [vmem:[#allocation20 + $0xfa0] sm:$0xff]
    %v2491 = vld [vmem:[#allocation20 + $0xfa8] sm:$0xff]
    %v2492 = vld [vmem:[#allocation20 + $0xfb0] sm:$0xff]
    %v2493 = vld [vmem:[#allocation20 + $0xfb8] sm:$0xff]
    %v2494 = vld [vmem:[#allocation20 + $0xfc0] sm:$0xff]
    %v2495 = vld [vmem:[#allocation20 + $0xfc8] sm:$0xff]
    %v2496 = vld [vmem:[#allocation20 + $0xfd0] sm:$0xff]
    %v2497 = vld [vmem:[#allocation20 + $0xfd8] sm:$0xff]
    %v2498 = vld [vmem:[#allocation20 + $0xfe0] sm:$0xff]
    %v2499 = vld [vmem:[#allocation20 + $0xfe8] sm:$0xff]
    %v2500 = vld [vmem:[#allocation20 + $0xff0] sm:$0xff]
    %v2501 = vld [vmem:[#allocation20 + $0xff8] sm:$0xff]
    %v2502 = vld [vmem:[#allocation21] sm:$0xff]
    %v2504 = vperm.slane %v2502, 0
    %v2505 = vperm.slane %v2502, 1
    %v2506 = vperm.slane %v2502, 2
    %v2507 = vperm.slane %v2502, 3
    %v2508 = vperm.slane %v2502, 4
    %v2509 = vperm.slane %v2502, 5
    %v2510 = vperm.slane %v2502, 6
    %v2511 = vperm.slane %v2502, 7
    %v3032 = vunpack.c.l.b16 %v1990
    %v3033 = vunpack.c.h.b16 %v1990
    %v3034 = vunpack.c.l.b16 %v1991
    %v3035 = vunpack.c.h.b16 %v1991
    %v3036 = vunpack.c.l.b16 %v1992
    %v3037 = vunpack.c.h.b16 %v1992
    %v3038 = vunpack.c.l.b16 %v1993
    %v3039 = vunpack.c.h.b16 %v1993
    %v3040 = vunpack.c.l.b16 %v1994
    %v3041 = vunpack.c.h.b16 %v1994
    %v3042 = vunpack.c.l.b16 %v1995
    %v3043 = vunpack.c.h.b16 %v1995
    %v3044 = vunpack.c.l.b16 %v1996
    %v3045 = vunpack.c.h.b16 %v1996
    %v3046 = vunpack.c.l.b16 %v1997
    %v3047 = vunpack.c.h.b16 %v1997
    %v3048 = vunpack.c.l.b16 %v1998
    %v3049 = vunpack.c.h.b16 %v1998
    %v3050 = vunpack.c.l.b16 %v1999
    %v3051 = vunpack.c.h.b16 %v1999
    %v3052 = vunpack.c.l.b16 %v2000
    %v3053 = vunpack.c.h.b16 %v2000
    %v3054 = vunpack.c.l.b16 %v2001
    %v3055 = vunpack.c.h.b16 %v2001
    %v3056 = vunpack.c.l.b16 %v2002
    %v3057 = vunpack.c.h.b16 %v2002
    %v3058 = vunpack.c.l.b16 %v2003
    %v3059 = vunpack.c.h.b16 %v2003
    %v3060 = vunpack.c.l.b16 %v2004
    %v3061 = vunpack.c.h.b16 %v2004
    %v3062 = vunpack.c.l.b16 %v2005
    %v3063 = vunpack.c.h.b16 %v2005
    %v3064 = vunpack.c.l.b16 %v2006
    %v3065 = vunpack.c.h.b16 %v2006
    %v3066 = vunpack.c.l.b16 %v2007
    %v3067 = vunpack.c.h.b16 %v2007
    %v3068 = vunpack.c.l.b16 %v2008
    %v3069 = vunpack.c.h.b16 %v2008
    %v3070 = vunpack.c.l.b16 %v2009
    %v3071 = vunpack.c.h.b16 %v2009
    %v3072 = vunpack.c.l.b16 %v2010
    %v3073 = vunpack.c.h.b16 %v2010
    %v3074 = vunpack.c.l.b16 %v2011
    %v3075 = vunpack.c.h.b16 %v2011
    %v3076 = vunpack.c.l.b16 %v2012
    %v3077 = vunpack.c.h.b16 %v2012
    %v3078 = vunpack.c.l.b16 %v2013
    %v3079 = vunpack.c.h.b16 %v2013
    %v3080 = vunpack.c.l.b16 %v2014
    %v3081 = vunpack.c.h.b16 %v2014
    %v3082 = vunpack.c.l.b16 %v2015
    %v3083 = vunpack.c.h.b16 %v2015
    %v3084 = vunpack.c.l.b16 %v2016
    %v3085 = vunpack.c.h.b16 %v2016
    %v3086 = vunpack.c.l.b16 %v2017
    %v3087 = vunpack.c.h.b16 %v2017
    %v3088 = vunpack.c.l.b16 %v2018
    %v3089 = vunpack.c.h.b16 %v2018
    %v3090 = vunpack.c.l.b16 %v2019
    %v3091 = vunpack.c.h.b16 %v2019
    %v3092 = vunpack.c.l.b16 %v2020
    %v3093 = vunpack.c.h.b16 %v2020
    %v3094 = vunpack.c.l.b16 %v2021
    %v3095 = vunpack.c.h.b16 %v2021
    %v3096 = vunpack.c.l.b16 %v2022
    %v3097 = vunpack.c.h.b16 %v2022
    %v3098 = vunpack.c.l.b16 %v2023
    %v3099 = vunpack.c.h.b16 %v2023
    %v3100 = vunpack.c.l.b16 %v2024
    %v3101 = vunpack.c.h.b16 %v2024
    %v3102 = vunpack.c.l.b16 %v2025
    %v3103 = vunpack.c.h.b16 %v2025
    %v3104 = vunpack.c.l.b16 %v2026
    %v3105 = vunpack.c.h.b16 %v2026
    %v3106 = vunpack.c.l.b16 %v2027
    %v3107 = vunpack.c.h.b16 %v2027
    %v3108 = vunpack.c.l.b16 %v2028
    %v3109 = vunpack.c.h.b16 %v2028
    %v3110 = vunpack.c.l.b16 %v2029
    %v3111 = vunpack.c.h.b16 %v2029
    %v3112 = vunpack.c.l.b16 %v2030
    %v3113 = vunpack.c.h.b16 %v2030
    %v3114 = vunpack.c.l.b16 %v2031
    %v3115 = vunpack.c.h.b16 %v2031
    %v3116 = vunpack.c.l.b16 %v2032
    %v3117 = vunpack.c.h.b16 %v2032
    %v3118 = vunpack.c.l.b16 %v2033
    %v3119 = vunpack.c.h.b16 %v2033
    %v3120 = vunpack.c.l.b16 %v2034
    %v3121 = vunpack.c.h.b16 %v2034
    %v3122 = vunpack.c.l.b16 %v2035
    %v3123 = vunpack.c.h.b16 %v2035
    %v3124 = vunpack.c.l.b16 %v2036
    %v3125 = vunpack.c.h.b16 %v2036
    %v3126 = vunpack.c.l.b16 %v2037
    %v3127 = vunpack.c.h.b16 %v2037
    %v3128 = vunpack.c.l.b16 %v2038
    %v3129 = vunpack.c.h.b16 %v2038
    %v3130 = vunpack.c.l.b16 %v2039
    %v3131 = vunpack.c.h.b16 %v2039
    %v3132 = vunpack.c.l.b16 %v2040
    %v3133 = vunpack.c.h.b16 %v2040
    %v3134 = vunpack.c.l.b16 %v2041
    %v3135 = vunpack.c.h.b16 %v2041
    %v3136 = vunpack.c.l.b16 %v2042
    %v3137 = vunpack.c.h.b16 %v2042
    %v3138 = vunpack.c.l.b16 %v2043
    %v3139 = vunpack.c.h.b16 %v2043
    %v3140 = vunpack.c.l.b16 %v2044
    %v3141 = vunpack.c.h.b16 %v2044
    %v3142 = vunpack.c.l.b16 %v2045
    %v3143 = vunpack.c.h.b16 %v2045
    %v3144 = vunpack.c.l.b16 %v2046
    %v3145 = vunpack.c.h.b16 %v2046
    %v3146 = vunpack.c.l.b16 %v2047
    %v3147 = vunpack.c.h.b16 %v2047
    %v3148 = vunpack.c.l.b16 %v2048
    %v3149 = vunpack.c.h.b16 %v2048
    %v3150 = vunpack.c.l.b16 %v2049
    %v3151 = vunpack.c.h.b16 %v2049
    %v3152 = vunpack.c.l.b16 %v2050
    %v3153 = vunpack.c.h.b16 %v2050
    %v3154 = vunpack.c.l.b16 %v2051
    %v3155 = vunpack.c.h.b16 %v2051
    %v3156 = vunpack.c.l.b16 %v2052
    %v3157 = vunpack.c.h.b16 %v2052
    %v3158 = vunpack.c.l.b16 %v2053
    %v3159 = vunpack.c.h.b16 %v2053
    %v3160 = vunpack.c.l.b16 %v2054
    %v3161 = vunpack.c.h.b16 %v2054
    %v3162 = vunpack.c.l.b16 %v2055
    %v3163 = vunpack.c.h.b16 %v2055
    %v3164 = vunpack.c.l.b16 %v2056
    %v3165 = vunpack.c.h.b16 %v2056
    %v3166 = vunpack.c.l.b16 %v2057
    %v3167 = vunpack.c.h.b16 %v2057
    %v3168 = vunpack.c.l.b16 %v2058
    %v3169 = vunpack.c.h.b16 %v2058
    %v3170 = vunpack.c.l.b16 %v2059
    %v3171 = vunpack.c.h.b16 %v2059
    %v3172 = vunpack.c.l.b16 %v2060
    %v3173 = vunpack.c.h.b16 %v2060
    %v3174 = vunpack.c.l.b16 %v2061
    %v3175 = vunpack.c.h.b16 %v2061
    %v3176 = vunpack.c.l.b16 %v2062
    %v3177 = vunpack.c.h.b16 %v2062
    %v3178 = vunpack.c.l.b16 %v2063
    %v3179 = vunpack.c.h.b16 %v2063
    %v3180 = vunpack.c.l.b16 %v2064
    %v3181 = vunpack.c.h.b16 %v2064
    %v3182 = vunpack.c.l.b16 %v2065
    %v3183 = vunpack.c.h.b16 %v2065
    %v3184 = vunpack.c.l.b16 %v2066
    %v3185 = vunpack.c.h.b16 %v2066
    %v3186 = vunpack.c.l.b16 %v2067
    %v3187 = vunpack.c.h.b16 %v2067
    %v3188 = vunpack.c.l.b16 %v2068
    %v3189 = vunpack.c.h.b16 %v2068
    %v3190 = vunpack.c.l.b16 %v2069
    %v3191 = vunpack.c.h.b16 %v2069
    %v3192 = vunpack.c.l.b16 %v2070
    %v3193 = vunpack.c.h.b16 %v2070
    %v3194 = vunpack.c.l.b16 %v2071
    %v3195 = vunpack.c.h.b16 %v2071
    %v3196 = vunpack.c.l.b16 %v2072
    %v3197 = vunpack.c.h.b16 %v2072
    %v3198 = vunpack.c.l.b16 %v2073
    %v3199 = vunpack.c.h.b16 %v2073
    %v3200 = vunpack.c.l.b16 %v2074
    %v3201 = vunpack.c.h.b16 %v2074
    %v3202 = vunpack.c.l.b16 %v2075
    %v3203 = vunpack.c.h.b16 %v2075
    %v3204 = vunpack.c.l.b16 %v2076
    %v3205 = vunpack.c.h.b16 %v2076
    %v3206 = vunpack.c.l.b16 %v2077
    %v3207 = vunpack.c.h.b16 %v2077
    %v3208 = vunpack.c.l.b16 %v2078
    %v3209 = vunpack.c.h.b16 %v2078
    %v3210 = vunpack.c.l.b16 %v2079
    %v3211 = vunpack.c.h.b16 %v2079
    %v3212 = vunpack.c.l.b16 %v2080
    %v3213 = vunpack.c.h.b16 %v2080
    %v3214 = vunpack.c.l.b16 %v2081
    %v3215 = vunpack.c.h.b16 %v2081
    %v3216 = vunpack.c.l.b16 %v2082
    %v3217 = vunpack.c.h.b16 %v2082
    %v3218 = vunpack.c.l.b16 %v2083
    %v3219 = vunpack.c.h.b16 %v2083
    %v3220 = vunpack.c.l.b16 %v2084
    %v3221 = vunpack.c.h.b16 %v2084
    %v3222 = vunpack.c.l.b16 %v2085
    %v3223 = vunpack.c.h.b16 %v2085
    %v3224 = vunpack.c.l.b16 %v2086
    %v3225 = vunpack.c.h.b16 %v2086
    %v3226 = vunpack.c.l.b16 %v2087
    %v3227 = vunpack.c.h.b16 %v2087
    %v3228 = vunpack.c.l.b16 %v2088
    %v3229 = vunpack.c.h.b16 %v2088
    %v3230 = vunpack.c.l.b16 %v2089
    %v3231 = vunpack.c.h.b16 %v2089
    %v3232 = vunpack.c.l.b16 %v2090
    %v3233 = vunpack.c.h.b16 %v2090
    %v3234 = vunpack.c.l.b16 %v2091
    %v3235 = vunpack.c.h.b16 %v2091
    %v3236 = vunpack.c.l.b16 %v2092
    %v3237 = vunpack.c.h.b16 %v2092
    %v3238 = vunpack.c.l.b16 %v2093
    %v3239 = vunpack.c.h.b16 %v2093
    %v3240 = vunpack.c.l.b16 %v2094
    %v3241 = vunpack.c.h.b16 %v2094
    %v3242 = vunpack.c.l.b16 %v2095
    %v3243 = vunpack.c.h.b16 %v2095
    %v3244 = vunpack.c.l.b16 %v2096
    %v3245 = vunpack.c.h.b16 %v2096
    %v3246 = vunpack.c.l.b16 %v2097
    %v3247 = vunpack.c.h.b16 %v2097
    %v3248 = vunpack.c.l.b16 %v2098
    %v3249 = vunpack.c.h.b16 %v2098
    %v3250 = vunpack.c.l.b16 %v2099
    %v3251 = vunpack.c.h.b16 %v2099
    %v3252 = vunpack.c.l.b16 %v2100
    %v3253 = vunpack.c.h.b16 %v2100
    %v3254 = vunpack.c.l.b16 %v2101
    %v3255 = vunpack.c.h.b16 %v2101
    %v3256 = vunpack.c.l.b16 %v2102
    %v3257 = vunpack.c.h.b16 %v2102
    %v3258 = vunpack.c.l.b16 %v2103
    %v3259 = vunpack.c.h.b16 %v2103
    %v3260 = vunpack.c.l.b16 %v2104
    %v3261 = vunpack.c.h.b16 %v2104
    %v3262 = vunpack.c.l.b16 %v2105
    %v3263 = vunpack.c.h.b16 %v2105
    %v3264 = vunpack.c.l.b16 %v2106
    %v3265 = vunpack.c.h.b16 %v2106
    %v3266 = vunpack.c.l.b16 %v2107
    %v3267 = vunpack.c.h.b16 %v2107
    %v3268 = vunpack.c.l.b16 %v2108
    %v3269 = vunpack.c.h.b16 %v2108
    %v3270 = vunpack.c.l.b16 %v2109
    %v3271 = vunpack.c.h.b16 %v2109
    %v3272 = vunpack.c.l.b16 %v2110
    %v3273 = vunpack.c.h.b16 %v2110
    %v3274 = vunpack.c.l.b16 %v2111
    %v3275 = vunpack.c.h.b16 %v2111
    %v3276 = vunpack.c.l.b16 %v2112
    %v3277 = vunpack.c.h.b16 %v2112
    %v3278 = vunpack.c.l.b16 %v2113
    %v3279 = vunpack.c.h.b16 %v2113
    %v3280 = vunpack.c.l.b16 %v2114
    %v3281 = vunpack.c.h.b16 %v2114
    %v3282 = vunpack.c.l.b16 %v2115
    %v3283 = vunpack.c.h.b16 %v2115
    %v3284 = vunpack.c.l.b16 %v2116
    %v3285 = vunpack.c.h.b16 %v2116
    %v3286 = vunpack.c.l.b16 %v2117
    %v3287 = vunpack.c.h.b16 %v2117
    %v3288 = vunpack.c.l.b16 %v2118
    %v3289 = vunpack.c.h.b16 %v2118
    %v3290 = vunpack.c.l.b16 %v2119
    %v3291 = vunpack.c.h.b16 %v2119
    %v3292 = vunpack.c.l.b16 %v2120
    %v3293 = vunpack.c.h.b16 %v2120
    %v3294 = vunpack.c.l.b16 %v2121
    %v3295 = vunpack.c.h.b16 %v2121
    %v3296 = vunpack.c.l.b16 %v2122
    %v3297 = vunpack.c.h.b16 %v2122
    %v3298 = vunpack.c.l.b16 %v2123
    %v3299 = vunpack.c.h.b16 %v2123
    %v3300 = vunpack.c.l.b16 %v2124
    %v3301 = vunpack.c.h.b16 %v2124
    %v3302 = vunpack.c.l.b16 %v2125
    %v3303 = vunpack.c.h.b16 %v2125
    %v3304 = vunpack.c.l.b16 %v2126
    %v3305 = vunpack.c.h.b16 %v2126
    %v3306 = vunpack.c.l.b16 %v2127
    %v3307 = vunpack.c.h.b16 %v2127
    %v3308 = vunpack.c.l.b16 %v2128
    %v3309 = vunpack.c.h.b16 %v2128
    %v3310 = vunpack.c.l.b16 %v2129
    %v3311 = vunpack.c.h.b16 %v2129
    %v3312 = vunpack.c.l.b16 %v2130
    %v3313 = vunpack.c.h.b16 %v2130
    %v3314 = vunpack.c.l.b16 %v2131
    %v3315 = vunpack.c.h.b16 %v2131
    %v3316 = vunpack.c.l.b16 %v2132
    %v3317 = vunpack.c.h.b16 %v2132
    %v3318 = vunpack.c.l.b16 %v2133
    %v3319 = vunpack.c.h.b16 %v2133
    %v3320 = vunpack.c.l.b16 %v2134
    %v3321 = vunpack.c.h.b16 %v2134
    %v3322 = vunpack.c.l.b16 %v2135
    %v3323 = vunpack.c.h.b16 %v2135
    %v3324 = vunpack.c.l.b16 %v2136
    %v3325 = vunpack.c.h.b16 %v2136
    %v3326 = vunpack.c.l.b16 %v2137
    %v3327 = vunpack.c.h.b16 %v2137
    %v3328 = vunpack.c.l.b16 %v2138
    %v3329 = vunpack.c.h.b16 %v2138
    %v3330 = vunpack.c.l.b16 %v2139
    %v3331 = vunpack.c.h.b16 %v2139
    %v3332 = vunpack.c.l.b16 %v2140
    %v3333 = vunpack.c.h.b16 %v2140
    %v3334 = vunpack.c.l.b16 %v2141
    %v3335 = vunpack.c.h.b16 %v2141
    %v3336 = vunpack.c.l.b16 %v2142
    %v3337 = vunpack.c.h.b16 %v2142
    %v3338 = vunpack.c.l.b16 %v2143
    %v3339 = vunpack.c.h.b16 %v2143
    %v3340 = vunpack.c.l.b16 %v2144
    %v3341 = vunpack.c.h.b16 %v2144
    %v3342 = vunpack.c.l.b16 %v2145
    %v3343 = vunpack.c.h.b16 %v2145
    %v3344 = vunpack.c.l.b16 %v2146
    %v3345 = vunpack.c.h.b16 %v2146
    %v3346 = vunpack.c.l.b16 %v2147
    %v3347 = vunpack.c.h.b16 %v2147
    %v3348 = vunpack.c.l.b16 %v2148
    %v3349 = vunpack.c.h.b16 %v2148
    %v3350 = vunpack.c.l.b16 %v2149
    %v3351 = vunpack.c.h.b16 %v2149
    %v3352 = vunpack.c.l.b16 %v2150
    %v3353 = vunpack.c.h.b16 %v2150
    %v3354 = vunpack.c.l.b16 %v2151
    %v3355 = vunpack.c.h.b16 %v2151
    %v3356 = vunpack.c.l.b16 %v2152
    %v3357 = vunpack.c.h.b16 %v2152
    %v3358 = vunpack.c.l.b16 %v2153
    %v3359 = vunpack.c.h.b16 %v2153
    %v3360 = vunpack.c.l.b16 %v2154
    %v3361 = vunpack.c.h.b16 %v2154
    %v3362 = vunpack.c.l.b16 %v2155
    %v3363 = vunpack.c.h.b16 %v2155
    %v3364 = vunpack.c.l.b16 %v2156
    %v3365 = vunpack.c.h.b16 %v2156
    %v3366 = vunpack.c.l.b16 %v2157
    %v3367 = vunpack.c.h.b16 %v2157
    %v3368 = vunpack.c.l.b16 %v2158
    %v3369 = vunpack.c.h.b16 %v2158
    %v3370 = vunpack.c.l.b16 %v2159
    %v3371 = vunpack.c.h.b16 %v2159
    %v3372 = vunpack.c.l.b16 %v2160
    %v3373 = vunpack.c.h.b16 %v2160
    %v3374 = vunpack.c.l.b16 %v2161
    %v3375 = vunpack.c.h.b16 %v2161
    %v3376 = vunpack.c.l.b16 %v2162
    %v3377 = vunpack.c.h.b16 %v2162
    %v3378 = vunpack.c.l.b16 %v2163
    %v3379 = vunpack.c.h.b16 %v2163
    %v3380 = vunpack.c.l.b16 %v2164
    %v3381 = vunpack.c.h.b16 %v2164
    %v3382 = vunpack.c.l.b16 %v2165
    %v3383 = vunpack.c.h.b16 %v2165
    %v3384 = vunpack.c.l.b16 %v2166
    %v3385 = vunpack.c.h.b16 %v2166
    %v3386 = vunpack.c.l.b16 %v2167
    %v3387 = vunpack.c.h.b16 %v2167
    %v3388 = vunpack.c.l.b16 %v2168
    %v3389 = vunpack.c.h.b16 %v2168
    %v3390 = vunpack.c.l.b16 %v2169
    %v3391 = vunpack.c.h.b16 %v2169
    %v3392 = vunpack.c.l.b16 %v2170
    %v3393 = vunpack.c.h.b16 %v2170
    %v3394 = vunpack.c.l.b16 %v2171
    %v3395 = vunpack.c.h.b16 %v2171
    %v3396 = vunpack.c.l.b16 %v2172
    %v3397 = vunpack.c.h.b16 %v2172
    %v3398 = vunpack.c.l.b16 %v2173
    %v3399 = vunpack.c.h.b16 %v2173
    %v3400 = vunpack.c.l.b16 %v2174
    %v3401 = vunpack.c.h.b16 %v2174
    %v3402 = vunpack.c.l.b16 %v2175
    %v3403 = vunpack.c.h.b16 %v2175
    %v3404 = vunpack.c.l.b16 %v2176
    %v3405 = vunpack.c.h.b16 %v2176
    %v3406 = vunpack.c.l.b16 %v2177
    %v3407 = vunpack.c.h.b16 %v2177
    %v3408 = vunpack.c.l.b16 %v2178
    %v3409 = vunpack.c.h.b16 %v2178
    %v3410 = vunpack.c.l.b16 %v2179
    %v3411 = vunpack.c.h.b16 %v2179
    %v3412 = vunpack.c.l.b16 %v2180
    %v3413 = vunpack.c.h.b16 %v2180
    %v3414 = vunpack.c.l.b16 %v2181
    %v3415 = vunpack.c.h.b16 %v2181
    %v3416 = vunpack.c.l.b16 %v2182
    %v3417 = vunpack.c.h.b16 %v2182
    %v3418 = vunpack.c.l.b16 %v2183
    %v3419 = vunpack.c.h.b16 %v2183
    %v3420 = vunpack.c.l.b16 %v2184
    %v3421 = vunpack.c.h.b16 %v2184
    %v3422 = vunpack.c.l.b16 %v2185
    %v3423 = vunpack.c.h.b16 %v2185
    %v3424 = vunpack.c.l.b16 %v2186
    %v3425 = vunpack.c.h.b16 %v2186
    %v3426 = vunpack.c.l.b16 %v2187
    %v3427 = vunpack.c.h.b16 %v2187
    %v3428 = vunpack.c.l.b16 %v2188
    %v3429 = vunpack.c.h.b16 %v2188
    %v3430 = vunpack.c.l.b16 %v2189
    %v3431 = vunpack.c.h.b16 %v2189
    %v3432 = vunpack.c.l.b16 %v2190
    %v3433 = vunpack.c.h.b16 %v2190
    %v3434 = vunpack.c.l.b16 %v2191
    %v3435 = vunpack.c.h.b16 %v2191
    %v3436 = vunpack.c.l.b16 %v2192
    %v3437 = vunpack.c.h.b16 %v2192
    %v3438 = vunpack.c.l.b16 %v2193
    %v3439 = vunpack.c.h.b16 %v2193
    %v3440 = vunpack.c.l.b16 %v2194
    %v3441 = vunpack.c.h.b16 %v2194
    %v3442 = vunpack.c.l.b16 %v2195
    %v3443 = vunpack.c.h.b16 %v2195
    %v3444 = vunpack.c.l.b16 %v2196
    %v3445 = vunpack.c.h.b16 %v2196
    %v3446 = vunpack.c.l.b16 %v2197
    %v3447 = vunpack.c.h.b16 %v2197
    %v3448 = vunpack.c.l.b16 %v2198
    %v3449 = vunpack.c.h.b16 %v2198
    %v3450 = vunpack.c.l.b16 %v2199
    %v3451 = vunpack.c.h.b16 %v2199
    %v3452 = vunpack.c.l.b16 %v2200
    %v3453 = vunpack.c.h.b16 %v2200
    %v3454 = vunpack.c.l.b16 %v2201
    %v3455 = vunpack.c.h.b16 %v2201
    %v3456 = vunpack.c.l.b16 %v2202
    %v3457 = vunpack.c.h.b16 %v2202
    %v3458 = vunpack.c.l.b16 %v2203
    %v3459 = vunpack.c.h.b16 %v2203
    %v3460 = vunpack.c.l.b16 %v2204
    %v3461 = vunpack.c.h.b16 %v2204
    %v3462 = vunpack.c.l.b16 %v2205
    %v3463 = vunpack.c.h.b16 %v2205
    %v3464 = vunpack.c.l.b16 %v2206
    %v3465 = vunpack.c.h.b16 %v2206
    %v3466 = vunpack.c.l.b16 %v2207
    %v3467 = vunpack.c.h.b16 %v2207
    %v3468 = vunpack.c.l.b16 %v2208
    %v3469 = vunpack.c.h.b16 %v2208
    %v3470 = vunpack.c.l.b16 %v2209
    %v3471 = vunpack.c.h.b16 %v2209
    %v3472 = vunpack.c.l.b16 %v2210
    %v3473 = vunpack.c.h.b16 %v2210
    %v3474 = vunpack.c.l.b16 %v2211
    %v3475 = vunpack.c.h.b16 %v2211
    %v3476 = vunpack.c.l.b16 %v2212
    %v3477 = vunpack.c.h.b16 %v2212
    %v3478 = vunpack.c.l.b16 %v2213
    %v3479 = vunpack.c.h.b16 %v2213
    %v3480 = vunpack.c.l.b16 %v2214
    %v3481 = vunpack.c.h.b16 %v2214
    %v3482 = vunpack.c.l.b16 %v2215
    %v3483 = vunpack.c.h.b16 %v2215
    %v3484 = vunpack.c.l.b16 %v2216
    %v3485 = vunpack.c.h.b16 %v2216
    %v3486 = vunpack.c.l.b16 %v2217
    %v3487 = vunpack.c.h.b16 %v2217
    %v3488 = vunpack.c.l.b16 %v2218
    %v3489 = vunpack.c.h.b16 %v2218
    %v3490 = vunpack.c.l.b16 %v2219
    %v3491 = vunpack.c.h.b16 %v2219
    %v3492 = vunpack.c.l.b16 %v2220
    %v3493 = vunpack.c.h.b16 %v2220
    %v3494 = vunpack.c.l.b16 %v2221
    %v3495 = vunpack.c.h.b16 %v2221
    %v3496 = vunpack.c.l.b16 %v2222
    %v3497 = vunpack.c.h.b16 %v2222
    %v3498 = vunpack.c.l.b16 %v2223
    %v3499 = vunpack.c.h.b16 %v2223
    %v3500 = vunpack.c.l.b16 %v2224
    %v3501 = vunpack.c.h.b16 %v2224
    %v3502 = vunpack.c.l.b16 %v2225
    %v3503 = vunpack.c.h.b16 %v2225
    %v3504 = vunpack.c.l.b16 %v2226
    %v3505 = vunpack.c.h.b16 %v2226
    %v3506 = vunpack.c.l.b16 %v2227
    %v3507 = vunpack.c.h.b16 %v2227
    %v3508 = vunpack.c.l.b16 %v2228
    %v3509 = vunpack.c.h.b16 %v2228
    %v3510 = vunpack.c.l.b16 %v2229
    %v3511 = vunpack.c.h.b16 %v2229
    %v3512 = vunpack.c.l.b16 %v2230
    %v3513 = vunpack.c.h.b16 %v2230
    %v3514 = vunpack.c.l.b16 %v2231
    %v3515 = vunpack.c.h.b16 %v2231
    %v3516 = vunpack.c.l.b16 %v2232
    %v3517 = vunpack.c.h.b16 %v2232
    %v3518 = vunpack.c.l.b16 %v2233
    %v3519 = vunpack.c.h.b16 %v2233
    %v3520 = vunpack.c.l.b16 %v2234
    %v3521 = vunpack.c.h.b16 %v2234
    %v3522 = vunpack.c.l.b16 %v2235
    %v3523 = vunpack.c.h.b16 %v2235
    %v3524 = vunpack.c.l.b16 %v2236
    %v3525 = vunpack.c.h.b16 %v2236
    %v3526 = vunpack.c.l.b16 %v2237
    %v3527 = vunpack.c.h.b16 %v2237
    %v3528 = vunpack.c.l.b16 %v2238
    %v3529 = vunpack.c.h.b16 %v2238
    %v3530 = vunpack.c.l.b16 %v2239
    %v3531 = vunpack.c.h.b16 %v2239
    %v3532 = vunpack.c.l.b16 %v2240
    %v3533 = vunpack.c.h.b16 %v2240
    %v3534 = vunpack.c.l.b16 %v2241
    %v3535 = vunpack.c.h.b16 %v2241
    %v3536 = vunpack.c.l.b16 %v2242
    %v3537 = vunpack.c.h.b16 %v2242
    %v3538 = vunpack.c.l.b16 %v2243
    %v3539 = vunpack.c.h.b16 %v2243
    %v3540 = vunpack.c.l.b16 %v2244
    %v3541 = vunpack.c.h.b16 %v2244
    %v3542 = vunpack.c.l.b16 %v2245
    %v3543 = vunpack.c.h.b16 %v2245
    %v3544 = vunpack.c.l.b16 %v2246
    %v3545 = vunpack.c.h.b16 %v2246
    %v3546 = vunpack.c.l.b16 %v2247
    %v3547 = vunpack.c.h.b16 %v2247
    %v3548 = vunpack.c.l.b16 %v2248
    %v3549 = vunpack.c.h.b16 %v2248
    %v3550 = vunpack.c.l.b16 %v2249
    %v3551 = vunpack.c.h.b16 %v2249
    %v3552 = vunpack.c.l.b16 %v2250
    %v3553 = vunpack.c.h.b16 %v2250
    %v3554 = vunpack.c.l.b16 %v2251
    %v3555 = vunpack.c.h.b16 %v2251
    %v3556 = vunpack.c.l.b16 %v2252
    %v3557 = vunpack.c.h.b16 %v2252
    %v3558 = vunpack.c.l.b16 %v2253
    %v3559 = vunpack.c.h.b16 %v2253
    %v3560 = vunpack.c.l.b16 %v2254
    %v3561 = vunpack.c.h.b16 %v2254
    %v3562 = vunpack.c.l.b16 %v2255
    %v3563 = vunpack.c.h.b16 %v2255
    %v3564 = vunpack.c.l.b16 %v2256
    %v3565 = vunpack.c.h.b16 %v2256
    %v3566 = vunpack.c.l.b16 %v2257
    %v3567 = vunpack.c.h.b16 %v2257
    %v3568 = vunpack.c.l.b16 %v2258
    %v3569 = vunpack.c.h.b16 %v2258
    %v3570 = vunpack.c.l.b16 %v2259
    %v3571 = vunpack.c.h.b16 %v2259
    %v3572 = vunpack.c.l.b16 %v2260
    %v3573 = vunpack.c.h.b16 %v2260
    %v3574 = vunpack.c.l.b16 %v2261
    %v3575 = vunpack.c.h.b16 %v2261
    %v3576 = vunpack.c.l.b16 %v2262
    %v3577 = vunpack.c.h.b16 %v2262
    %v3578 = vunpack.c.l.b16 %v2263
    %v3579 = vunpack.c.h.b16 %v2263
    %v3580 = vunpack.c.l.b16 %v2264
    %v3581 = vunpack.c.h.b16 %v2264
    %v3582 = vunpack.c.l.b16 %v2265
    %v3583 = vunpack.c.h.b16 %v2265
    %v3584 = vunpack.c.l.b16 %v2266
    %v3585 = vunpack.c.h.b16 %v2266
    %v3586 = vunpack.c.l.b16 %v2267
    %v3587 = vunpack.c.h.b16 %v2267
    %v3588 = vunpack.c.l.b16 %v2268
    %v3589 = vunpack.c.h.b16 %v2268
    %v3590 = vunpack.c.l.b16 %v2269
    %v3591 = vunpack.c.h.b16 %v2269
    %v3592 = vunpack.c.l.b16 %v2270
    %v3593 = vunpack.c.h.b16 %v2270
    %v3594 = vunpack.c.l.b16 %v2271
    %v3595 = vunpack.c.h.b16 %v2271
    %v3596 = vunpack.c.l.b16 %v2272
    %v3597 = vunpack.c.h.b16 %v2272
    %v3598 = vunpack.c.l.b16 %v2273
    %v3599 = vunpack.c.h.b16 %v2273
    %v3600 = vunpack.c.l.b16 %v2274
    %v3601 = vunpack.c.h.b16 %v2274
    %v3602 = vunpack.c.l.b16 %v2275
    %v3603 = vunpack.c.h.b16 %v2275
    %v3604 = vunpack.c.l.b16 %v2276
    %v3605 = vunpack.c.h.b16 %v2276
    %v3606 = vunpack.c.l.b16 %v2277
    %v3607 = vunpack.c.h.b16 %v2277
    %v3608 = vunpack.c.l.b16 %v2278
    %v3609 = vunpack.c.h.b16 %v2278
    %v3610 = vunpack.c.l.b16 %v2279
    %v3611 = vunpack.c.h.b16 %v2279
    %v3612 = vunpack.c.l.b16 %v2280
    %v3613 = vunpack.c.h.b16 %v2280
    %v3614 = vunpack.c.l.b16 %v2281
    %v3615 = vunpack.c.h.b16 %v2281
    %v3616 = vunpack.c.l.b16 %v2282
    %v3617 = vunpack.c.h.b16 %v2282
    %v3618 = vunpack.c.l.b16 %v2283
    %v3619 = vunpack.c.h.b16 %v2283
    %v3620 = vunpack.c.l.b16 %v2284
    %v3621 = vunpack.c.h.b16 %v2284
    %v3622 = vunpack.c.l.b16 %v2285
    %v3623 = vunpack.c.h.b16 %v2285
    %v3624 = vunpack.c.l.b16 %v2286
    %v3625 = vunpack.c.h.b16 %v2286
    %v3626 = vunpack.c.l.b16 %v2287
    %v3627 = vunpack.c.h.b16 %v2287
    %v3628 = vunpack.c.l.b16 %v2288
    %v3629 = vunpack.c.h.b16 %v2288
    %v3630 = vunpack.c.l.b16 %v2289
    %v3631 = vunpack.c.h.b16 %v2289
    %v3632 = vunpack.c.l.b16 %v2290
    %v3633 = vunpack.c.h.b16 %v2290
    %v3634 = vunpack.c.l.b16 %v2291
    %v3635 = vunpack.c.h.b16 %v2291
    %v3636 = vunpack.c.l.b16 %v2292
    %v3637 = vunpack.c.h.b16 %v2292
    %v3638 = vunpack.c.l.b16 %v2293
    %v3639 = vunpack.c.h.b16 %v2293
    %v3640 = vunpack.c.l.b16 %v2294
    %v3641 = vunpack.c.h.b16 %v2294
    %v3642 = vunpack.c.l.b16 %v2295
    %v3643 = vunpack.c.h.b16 %v2295
    %v3644 = vunpack.c.l.b16 %v2296
    %v3645 = vunpack.c.h.b16 %v2296
    %v3646 = vunpack.c.l.b16 %v2297
    %v3647 = vunpack.c.h.b16 %v2297
    %v3648 = vunpack.c.l.b16 %v2298
    %v3649 = vunpack.c.h.b16 %v2298
    %v3650 = vunpack.c.l.b16 %v2299
    %v3651 = vunpack.c.h.b16 %v2299
    %v3652 = vunpack.c.l.b16 %v2300
    %v3653 = vunpack.c.h.b16 %v2300
    %v3654 = vunpack.c.l.b16 %v2301
    %v3655 = vunpack.c.h.b16 %v2301
    %v3656 = vunpack.c.l.b16 %v2302
    %v3657 = vunpack.c.h.b16 %v2302
    %v3658 = vunpack.c.l.b16 %v2303
    %v3659 = vunpack.c.h.b16 %v2303
    %v3660 = vunpack.c.l.b16 %v2304
    %v3661 = vunpack.c.h.b16 %v2304
    %v3662 = vunpack.c.l.b16 %v2305
    %v3663 = vunpack.c.h.b16 %v2305
    %v3664 = vunpack.c.l.b16 %v2306
    %v3665 = vunpack.c.h.b16 %v2306
    %v3666 = vunpack.c.l.b16 %v2307
    %v3667 = vunpack.c.h.b16 %v2307
    %v3668 = vunpack.c.l.b16 %v2308
    %v3669 = vunpack.c.h.b16 %v2308
    %v3670 = vunpack.c.l.b16 %v2309
    %v3671 = vunpack.c.h.b16 %v2309
    %v3672 = vunpack.c.l.b16 %v2310
    %v3673 = vunpack.c.h.b16 %v2310
    %v3674 = vunpack.c.l.b16 %v2311
    %v3675 = vunpack.c.h.b16 %v2311
    %v3676 = vunpack.c.l.b16 %v2312
    %v3677 = vunpack.c.h.b16 %v2312
    %v3678 = vunpack.c.l.b16 %v2313
    %v3679 = vunpack.c.h.b16 %v2313
    %v3680 = vunpack.c.l.b16 %v2314
    %v3681 = vunpack.c.h.b16 %v2314
    %v3682 = vunpack.c.l.b16 %v2315
    %v3683 = vunpack.c.h.b16 %v2315
    %v3684 = vunpack.c.l.b16 %v2316
    %v3685 = vunpack.c.h.b16 %v2316
    %v3686 = vunpack.c.l.b16 %v2317
    %v3687 = vunpack.c.h.b16 %v2317
    %v3688 = vunpack.c.l.b16 %v2318
    %v3689 = vunpack.c.h.b16 %v2318
    %v3690 = vunpack.c.l.b16 %v2319
    %v3691 = vunpack.c.h.b16 %v2319
    %v3692 = vunpack.c.l.b16 %v2320
    %v3693 = vunpack.c.h.b16 %v2320
    %v3694 = vunpack.c.l.b16 %v2321
    %v3695 = vunpack.c.h.b16 %v2321
    %v3696 = vunpack.c.l.b16 %v2322
    %v3697 = vunpack.c.h.b16 %v2322
    %v3698 = vunpack.c.l.b16 %v2323
    %v3699 = vunpack.c.h.b16 %v2323
    %v3700 = vunpack.c.l.b16 %v2324
    %v3701 = vunpack.c.h.b16 %v2324
    %v3702 = vunpack.c.l.b16 %v2325
    %v3703 = vunpack.c.h.b16 %v2325
    %v3704 = vunpack.c.l.b16 %v2326
    %v3705 = vunpack.c.h.b16 %v2326
    %v3706 = vunpack.c.l.b16 %v2327
    %v3707 = vunpack.c.h.b16 %v2327
    %v3708 = vunpack.c.l.b16 %v2328
    %v3709 = vunpack.c.h.b16 %v2328
    %v3710 = vunpack.c.l.b16 %v2329
    %v3711 = vunpack.c.h.b16 %v2329
    %v3712 = vunpack.c.l.b16 %v2330
    %v3713 = vunpack.c.h.b16 %v2330
    %v3714 = vunpack.c.l.b16 %v2331
    %v3715 = vunpack.c.h.b16 %v2331
    %v3716 = vunpack.c.l.b16 %v2332
    %v3717 = vunpack.c.h.b16 %v2332
    %v3718 = vunpack.c.l.b16 %v2333
    %v3719 = vunpack.c.h.b16 %v2333
    %v3720 = vunpack.c.l.b16 %v2334
    %v3721 = vunpack.c.h.b16 %v2334
    %v3722 = vunpack.c.l.b16 %v2335
    %v3723 = vunpack.c.h.b16 %v2335
    %v3724 = vunpack.c.l.b16 %v2336
    %v3725 = vunpack.c.h.b16 %v2336
    %v3726 = vunpack.c.l.b16 %v2337
    %v3727 = vunpack.c.h.b16 %v2337
    %v3728 = vunpack.c.l.b16 %v2338
    %v3729 = vunpack.c.h.b16 %v2338
    %v3730 = vunpack.c.l.b16 %v2339
    %v3731 = vunpack.c.h.b16 %v2339
    %v3732 = vunpack.c.l.b16 %v2340
    %v3733 = vunpack.c.h.b16 %v2340
    %v3734 = vunpack.c.l.b16 %v2341
    %v3735 = vunpack.c.h.b16 %v2341
    %v3736 = vunpack.c.l.b16 %v2342
    %v3737 = vunpack.c.h.b16 %v2342
    %v3738 = vunpack.c.l.b16 %v2343
    %v3739 = vunpack.c.h.b16 %v2343
    %v3740 = vunpack.c.l.b16 %v2344
    %v3741 = vunpack.c.h.b16 %v2344
    %v3742 = vunpack.c.l.b16 %v2345
    %v3743 = vunpack.c.h.b16 %v2345
    %v3744 = vunpack.c.l.b16 %v2346
    %v3745 = vunpack.c.h.b16 %v2346
    %v3746 = vunpack.c.l.b16 %v2347
    %v3747 = vunpack.c.h.b16 %v2347
    %v3748 = vunpack.c.l.b16 %v2348
    %v3749 = vunpack.c.h.b16 %v2348
    %v3750 = vunpack.c.l.b16 %v2349
    %v3751 = vunpack.c.h.b16 %v2349
    %v3752 = vunpack.c.l.b16 %v2350
    %v3753 = vunpack.c.h.b16 %v2350
    %v3754 = vunpack.c.l.b16 %v2351
    %v3755 = vunpack.c.h.b16 %v2351
    %v3756 = vunpack.c.l.b16 %v2352
    %v3757 = vunpack.c.h.b16 %v2352
    %v3758 = vunpack.c.l.b16 %v2353
    %v3759 = vunpack.c.h.b16 %v2353
    %v3760 = vunpack.c.l.b16 %v2354
    %v3761 = vunpack.c.h.b16 %v2354
    %v3762 = vunpack.c.l.b16 %v2355
    %v3763 = vunpack.c.h.b16 %v2355
    %v3764 = vunpack.c.l.b16 %v2356
    %v3765 = vunpack.c.h.b16 %v2356
    %v3766 = vunpack.c.l.b16 %v2357
    %v3767 = vunpack.c.h.b16 %v2357
    %v3768 = vunpack.c.l.b16 %v2358
    %v3769 = vunpack.c.h.b16 %v2358
    %v3770 = vunpack.c.l.b16 %v2359
    %v3771 = vunpack.c.h.b16 %v2359
    %v3772 = vunpack.c.l.b16 %v2360
    %v3773 = vunpack.c.h.b16 %v2360
    %v3774 = vunpack.c.l.b16 %v2361
    %v3775 = vunpack.c.h.b16 %v2361
    %v3776 = vunpack.c.l.b16 %v2362
    %v3777 = vunpack.c.h.b16 %v2362
    %v3778 = vunpack.c.l.b16 %v2363
    %v3779 = vunpack.c.h.b16 %v2363
    %v3780 = vunpack.c.l.b16 %v2364
    %v3781 = vunpack.c.h.b16 %v2364
    %v3782 = vunpack.c.l.b16 %v2365
    %v3783 = vunpack.c.h.b16 %v2365
    %v3784 = vunpack.c.l.b16 %v2366
    %v3785 = vunpack.c.h.b16 %v2366
    %v3786 = vunpack.c.l.b16 %v2367
    %v3787 = vunpack.c.h.b16 %v2367
    %v3788 = vunpack.c.l.b16 %v2368
    %v3789 = vunpack.c.h.b16 %v2368
    %v3790 = vunpack.c.l.b16 %v2369
    %v3791 = vunpack.c.h.b16 %v2369
    %v3792 = vunpack.c.l.b16 %v2370
    %v3793 = vunpack.c.h.b16 %v2370
    %v3794 = vunpack.c.l.b16 %v2371
    %v3795 = vunpack.c.h.b16 %v2371
    %v3796 = vunpack.c.l.b16 %v2372
    %v3797 = vunpack.c.h.b16 %v2372
    %v3798 = vunpack.c.l.b16 %v2373
    %v3799 = vunpack.c.h.b16 %v2373
    %v3800 = vunpack.c.l.b16 %v2374
    %v3801 = vunpack.c.h.b16 %v2374
    %v3802 = vunpack.c.l.b16 %v2375
    %v3803 = vunpack.c.h.b16 %v2375
    %v3804 = vunpack.c.l.b16 %v2376
    %v3805 = vunpack.c.h.b16 %v2376
    %v3806 = vunpack.c.l.b16 %v2377
    %v3807 = vunpack.c.h.b16 %v2377
    %v3808 = vunpack.c.l.b16 %v2378
    %v3809 = vunpack.c.h.b16 %v2378
    %v3810 = vunpack.c.l.b16 %v2379
    %v3811 = vunpack.c.h.b16 %v2379
    %v3812 = vunpack.c.l.b16 %v2380
    %v3813 = vunpack.c.h.b16 %v2380
    %v3814 = vunpack.c.l.b16 %v2381
    %v3815 = vunpack.c.h.b16 %v2381
    %v3816 = vunpack.c.l.b16 %v2382
    %v3817 = vunpack.c.h.b16 %v2382
    %v3818 = vunpack.c.l.b16 %v2383
    %v3819 = vunpack.c.h.b16 %v2383
    %v3820 = vunpack.c.l.b16 %v2384
    %v3821 = vunpack.c.h.b16 %v2384
    %v3822 = vunpack.c.l.b16 %v2385
    %v3823 = vunpack.c.h.b16 %v2385
    %v3824 = vunpack.c.l.b16 %v2386
    %v3825 = vunpack.c.h.b16 %v2386
    %v3826 = vunpack.c.l.b16 %v2387
    %v3827 = vunpack.c.h.b16 %v2387
    %v3828 = vunpack.c.l.b16 %v2388
    %v3829 = vunpack.c.h.b16 %v2388
    %v3830 = vunpack.c.l.b16 %v2389
    %v3831 = vunpack.c.h.b16 %v2389
    %v3832 = vunpack.c.l.b16 %v2390
    %v3833 = vunpack.c.h.b16 %v2390
    %v3834 = vunpack.c.l.b16 %v2391
    %v3835 = vunpack.c.h.b16 %v2391
    %v3836 = vunpack.c.l.b16 %v2392
    %v3837 = vunpack.c.h.b16 %v2392
    %v3838 = vunpack.c.l.b16 %v2393
    %v3839 = vunpack.c.h.b16 %v2393
    %v3840 = vunpack.c.l.b16 %v2394
    %v3841 = vunpack.c.h.b16 %v2394
    %v3842 = vunpack.c.l.b16 %v2395
    %v3843 = vunpack.c.h.b16 %v2395
    %v3844 = vunpack.c.l.b16 %v2396
    %v3845 = vunpack.c.h.b16 %v2396
    %v3846 = vunpack.c.l.b16 %v2397
    %v3847 = vunpack.c.h.b16 %v2397
    %v3848 = vunpack.c.l.b16 %v2398
    %v3849 = vunpack.c.h.b16 %v2398
    %v3850 = vunpack.c.l.b16 %v2399
    %v3851 = vunpack.c.h.b16 %v2399
    %v3852 = vunpack.c.l.b16 %v2400
    %v3853 = vunpack.c.h.b16 %v2400
    %v3854 = vunpack.c.l.b16 %v2401
    %v3855 = vunpack.c.h.b16 %v2401
    %v3856 = vunpack.c.l.b16 %v2402
    %v3857 = vunpack.c.h.b16 %v2402
    %v3858 = vunpack.c.l.b16 %v2403
    %v3859 = vunpack.c.h.b16 %v2403
    %v3860 = vunpack.c.l.b16 %v2404
    %v3861 = vunpack.c.h.b16 %v2404
    %v3862 = vunpack.c.l.b16 %v2405
    %v3863 = vunpack.c.h.b16 %v2405
    %v3864 = vunpack.c.l.b16 %v2406
    %v3865 = vunpack.c.h.b16 %v2406
    %v3866 = vunpack.c.l.b16 %v2407
    %v3867 = vunpack.c.h.b16 %v2407
    %v3868 = vunpack.c.l.b16 %v2408
    %v3869 = vunpack.c.h.b16 %v2408
    %v3870 = vunpack.c.l.b16 %v2409
    %v3871 = vunpack.c.h.b16 %v2409
    %v3872 = vunpack.c.l.b16 %v2410
    %v3873 = vunpack.c.h.b16 %v2410
    %v3874 = vunpack.c.l.b16 %v2411
    %v3875 = vunpack.c.h.b16 %v2411
    %v3876 = vunpack.c.l.b16 %v2412
    %v3877 = vunpack.c.h.b16 %v2412
    %v3878 = vunpack.c.l.b16 %v2413
    %v3879 = vunpack.c.h.b16 %v2413
    %v3880 = vunpack.c.l.b16 %v2414
    %v3881 = vunpack.c.h.b16 %v2414
    %v3882 = vunpack.c.l.b16 %v2415
    %v3883 = vunpack.c.h.b16 %v2415
    %v3884 = vunpack.c.l.b16 %v2416
    %v3885 = vunpack.c.h.b16 %v2416
    %v3886 = vunpack.c.l.b16 %v2417
    %v3887 = vunpack.c.h.b16 %v2417
    %v3888 = vunpack.c.l.b16 %v2418
    %v3889 = vunpack.c.h.b16 %v2418
    %v3890 = vunpack.c.l.b16 %v2419
    %v3891 = vunpack.c.h.b16 %v2419
    %v3892 = vunpack.c.l.b16 %v2420
    %v3893 = vunpack.c.h.b16 %v2420
    %v3894 = vunpack.c.l.b16 %v2421
    %v3895 = vunpack.c.h.b16 %v2421
    %v3896 = vunpack.c.l.b16 %v2422
    %v3897 = vunpack.c.h.b16 %v2422
    %v3898 = vunpack.c.l.b16 %v2423
    %v3899 = vunpack.c.h.b16 %v2423
    %v3900 = vunpack.c.l.b16 %v2424
    %v3901 = vunpack.c.h.b16 %v2424
    %v3902 = vunpack.c.l.b16 %v2425
    %v3903 = vunpack.c.h.b16 %v2425
    %v3904 = vunpack.c.l.b16 %v2426
    %v3905 = vunpack.c.h.b16 %v2426
    %v3906 = vunpack.c.l.b16 %v2427
    %v3907 = vunpack.c.h.b16 %v2427
    %v3908 = vunpack.c.l.b16 %v2428
    %v3909 = vunpack.c.h.b16 %v2428
    %v3910 = vunpack.c.l.b16 %v2429
    %v3911 = vunpack.c.h.b16 %v2429
    %v3912 = vunpack.c.l.b16 %v2430
    %v3913 = vunpack.c.h.b16 %v2430
    %v3914 = vunpack.c.l.b16 %v2431
    %v3915 = vunpack.c.h.b16 %v2431
    %v3916 = vunpack.c.l.b16 %v2432
    %v3917 = vunpack.c.h.b16 %v2432
    %v3918 = vunpack.c.l.b16 %v2433
    %v3919 = vunpack.c.h.b16 %v2433
    %v3920 = vunpack.c.l.b16 %v2434
    %v3921 = vunpack.c.h.b16 %v2434
    %v3922 = vunpack.c.l.b16 %v2435
    %v3923 = vunpack.c.h.b16 %v2435
    %v3924 = vunpack.c.l.b16 %v2436
    %v3925 = vunpack.c.h.b16 %v2436
    %v3926 = vunpack.c.l.b16 %v2437
    %v3927 = vunpack.c.h.b16 %v2437
    %v3928 = vunpack.c.l.b16 %v2438
    %v3929 = vunpack.c.h.b16 %v2438
    %v3930 = vunpack.c.l.b16 %v2439
    %v3931 = vunpack.c.h.b16 %v2439
    %v3932 = vunpack.c.l.b16 %v2440
    %v3933 = vunpack.c.h.b16 %v2440
    %v3934 = vunpack.c.l.b16 %v2441
    %v3935 = vunpack.c.h.b16 %v2441
    %v3936 = vunpack.c.l.b16 %v2442
    %v3937 = vunpack.c.h.b16 %v2442
    %v3938 = vunpack.c.l.b16 %v2443
    %v3939 = vunpack.c.h.b16 %v2443
    %v3940 = vunpack.c.l.b16 %v2444
    %v3941 = vunpack.c.h.b16 %v2444
    %v3942 = vunpack.c.l.b16 %v2445
    %v3943 = vunpack.c.h.b16 %v2445
    %v3944 = vunpack.c.l.b16 %v2446
    %v3945 = vunpack.c.h.b16 %v2446
    %v3946 = vunpack.c.l.b16 %v2447
    %v3947 = vunpack.c.h.b16 %v2447
    %v3948 = vunpack.c.l.b16 %v2448
    %v3949 = vunpack.c.h.b16 %v2448
    %v3950 = vunpack.c.l.b16 %v2449
    %v3951 = vunpack.c.h.b16 %v2449
    %v3952 = vunpack.c.l.b16 %v2450
    %v3953 = vunpack.c.h.b16 %v2450
    %v3954 = vunpack.c.l.b16 %v2451
    %v3955 = vunpack.c.h.b16 %v2451
    %v3956 = vunpack.c.l.b16 %v2452
    %v3957 = vunpack.c.h.b16 %v2452
    %v3958 = vunpack.c.l.b16 %v2453
    %v3959 = vunpack.c.h.b16 %v2453
    %v3960 = vunpack.c.l.b16 %v2454
    %v3961 = vunpack.c.h.b16 %v2454
    %v3962 = vunpack.c.l.b16 %v2455
    %v3963 = vunpack.c.h.b16 %v2455
    %v3964 = vunpack.c.l.b16 %v2456
    %v3965 = vunpack.c.h.b16 %v2456
    %v3966 = vunpack.c.l.b16 %v2457
    %v3967 = vunpack.c.h.b16 %v2457
    %v3968 = vunpack.c.l.b16 %v2458
    %v3969 = vunpack.c.h.b16 %v2458
    %v3970 = vunpack.c.l.b16 %v2459
    %v3971 = vunpack.c.h.b16 %v2459
    %v3972 = vunpack.c.l.b16 %v2460
    %v3973 = vunpack.c.h.b16 %v2460
    %v3974 = vunpack.c.l.b16 %v2461
    %v3975 = vunpack.c.h.b16 %v2461
    %v3976 = vunpack.c.l.b16 %v2462
    %v3977 = vunpack.c.h.b16 %v2462
    %v3978 = vunpack.c.l.b16 %v2463
    %v3979 = vunpack.c.h.b16 %v2463
    %v3980 = vunpack.c.l.b16 %v2464
    %v3981 = vunpack.c.h.b16 %v2464
    %v3982 = vunpack.c.l.b16 %v2465
    %v3983 = vunpack.c.h.b16 %v2465
    %v3984 = vunpack.c.l.b16 %v2466
    %v3985 = vunpack.c.h.b16 %v2466
    %v3986 = vunpack.c.l.b16 %v2467
    %v3987 = vunpack.c.h.b16 %v2467
    %v3988 = vunpack.c.l.b16 %v2468
    %v3989 = vunpack.c.h.b16 %v2468
    %v3990 = vunpack.c.l.b16 %v2469
    %v3991 = vunpack.c.h.b16 %v2469
    %v3992 = vunpack.c.l.b16 %v2470
    %v3993 = vunpack.c.h.b16 %v2470
    %v3994 = vunpack.c.l.b16 %v2471
    %v3995 = vunpack.c.h.b16 %v2471
    %v3996 = vunpack.c.l.b16 %v2472
    %v3997 = vunpack.c.h.b16 %v2472
    %v3998 = vunpack.c.l.b16 %v2473
    %v3999 = vunpack.c.h.b16 %v2473
    %v4000 = vunpack.c.l.b16 %v2474
    %v4001 = vunpack.c.h.b16 %v2474
    %v4002 = vunpack.c.l.b16 %v2475
    %v4003 = vunpack.c.h.b16 %v2475
    %v4004 = vunpack.c.l.b16 %v2476
    %v4005 = vunpack.c.h.b16 %v2476
    %v4006 = vunpack.c.l.b16 %v2477
    %v4007 = vunpack.c.h.b16 %v2477
    %v4008 = vunpack.c.l.b16 %v2478
    %v4009 = vunpack.c.h.b16 %v2478
    %v4010 = vunpack.c.l.b16 %v2479
    %v4011 = vunpack.c.h.b16 %v2479
    %v4012 = vunpack.c.l.b16 %v2480
    %v4013 = vunpack.c.h.b16 %v2480
    %v4014 = vunpack.c.l.b16 %v2481
    %v4015 = vunpack.c.h.b16 %v2481
    %v4016 = vunpack.c.l.b16 %v2482
    %v4017 = vunpack.c.h.b16 %v2482
    %v4018 = vunpack.c.l.b16 %v2483
    %v4019 = vunpack.c.h.b16 %v2483
    %v4020 = vunpack.c.l.b16 %v2484
    %v4021 = vunpack.c.h.b16 %v2484
    %v4022 = vunpack.c.l.b16 %v2485
    %v4023 = vunpack.c.h.b16 %v2485
    %v4024 = vunpack.c.l.b16 %v2486
    %v4025 = vunpack.c.h.b16 %v2486
    %v4026 = vunpack.c.l.b16 %v2487
    %v4027 = vunpack.c.h.b16 %v2487
    %v4028 = vunpack.c.l.b16 %v2488
    %v4029 = vunpack.c.h.b16 %v2488
    %v4030 = vunpack.c.l.b16 %v2489
    %v4031 = vunpack.c.h.b16 %v2489
    %v4032 = vunpack.c.l.b16 %v2490
    %v4033 = vunpack.c.h.b16 %v2490
    %v4034 = vunpack.c.l.b16 %v2491
    %v4035 = vunpack.c.h.b16 %v2491
    %v4036 = vunpack.c.l.b16 %v2492
    %v4037 = vunpack.c.h.b16 %v2492
    %v4038 = vunpack.c.l.b16 %v2493
    %v4039 = vunpack.c.h.b16 %v2493
    %v4040 = vunpack.c.l.b16 %v2494
    %v4041 = vunpack.c.h.b16 %v2494
    %v4042 = vunpack.c.l.b16 %v2495
    %v4043 = vunpack.c.h.b16 %v2495
    %v4044 = vunpack.c.l.b16 %v2496
    %v4045 = vunpack.c.h.b16 %v2496
    %v4046 = vunpack.c.l.b16 %v2497
    %v4047 = vunpack.c.h.b16 %v2497
    %v4048 = vunpack.c.l.b16 %v2498
    %v4049 = vunpack.c.h.b16 %v2498
    %v4050 = vunpack.c.l.b16 %v2499
    %v4051 = vunpack.c.h.b16 %v2499
    %v4052 = vunpack.c.l.b16 %v2500
    %v4053 = vunpack.c.h.b16 %v2500
    %v4054 = vunpack.c.l.b16 %v2501
    %v4055 = vunpack.c.h.b16 %v2501
    %v4056 = vpack.c.b16 %v3040, %v3032
    %v4057 = vpack.c.b16 %v3041, %v3033
    %v4058 = vpack.c.b16 %v3042, %v3034
    %v4059 = vpack.c.b16 %v3043, %v3035
    %v4060 = vpack.c.b16 %v3044, %v3036
    %v4061 = vpack.c.b16 %v3045, %v3037
    %v4062 = vpack.c.b16 %v3046, %v3038
    %v4063 = vpack.c.b16 %v3047, %v3039
    %v4064 = vpack.c.b16 %v3056, %v3048
    %v4065 = vpack.c.b16 %v3057, %v3049
    %v4066 = vpack.c.b16 %v3058, %v3050
    %v4067 = vpack.c.b16 %v3059, %v3051
    %v4068 = vpack.c.b16 %v3060, %v3052
    %v4069 = vpack.c.b16 %v3061, %v3053
    %v4070 = vpack.c.b16 %v3062, %v3054
    %v4071 = vpack.c.b16 %v3063, %v3055
    %v4072 = vpack.c.b16 %v3072, %v3064
    %v4073 = vpack.c.b16 %v3073, %v3065
    %v4074 = vpack.c.b16 %v3074, %v3066
    %v4075 = vpack.c.b16 %v3075, %v3067
    %v4076 = vpack.c.b16 %v3076, %v3068
    %v4077 = vpack.c.b16 %v3077, %v3069
    %v4078 = vpack.c.b16 %v3078, %v3070
    %v4079 = vpack.c.b16 %v3079, %v3071
    %v4080 = vpack.c.b16 %v3088, %v3080
    %v4081 = vpack.c.b16 %v3089, %v3081
    %v4082 = vpack.c.b16 %v3090, %v3082
    %v4083 = vpack.c.b16 %v3091, %v3083
    %v4084 = vpack.c.b16 %v3092, %v3084
    %v4085 = vpack.c.b16 %v3093, %v3085
    %v4086 = vpack.c.b16 %v3094, %v3086
    %v4087 = vpack.c.b16 %v3095, %v3087
    %v4088 = vpack.c.b16 %v3104, %v3096
    %v4089 = vpack.c.b16 %v3105, %v3097
    %v4090 = vpack.c.b16 %v3106, %v3098
    %v4091 = vpack.c.b16 %v3107, %v3099
    %v4092 = vpack.c.b16 %v3108, %v3100
    %v4093 = vpack.c.b16 %v3109, %v3101
    %v4094 = vpack.c.b16 %v3110, %v3102
    %v4095 = vpack.c.b16 %v3111, %v3103
    %v4096 = vpack.c.b16 %v3120, %v3112
    %v4097 = vpack.c.b16 %v3121, %v3113
    %v4098 = vpack.c.b16 %v3122, %v3114
    %v4099 = vpack.c.b16 %v3123, %v3115
    %v4100 = vpack.c.b16 %v3124, %v3116
    %v4101 = vpack.c.b16 %v3125, %v3117
    %v4102 = vpack.c.b16 %v3126, %v3118
    %v4103 = vpack.c.b16 %v3127, %v3119
    %v4104 = vpack.c.b16 %v3136, %v3128
    %v4105 = vpack.c.b16 %v3137, %v3129
    %v4106 = vpack.c.b16 %v3138, %v3130
    %v4107 = vpack.c.b16 %v3139, %v3131
    %v4108 = vpack.c.b16 %v3140, %v3132
    %v4109 = vpack.c.b16 %v3141, %v3133
    %v4110 = vpack.c.b16 %v3142, %v3134
    %v4111 = vpack.c.b16 %v3143, %v3135
    %v4112 = vpack.c.b16 %v3152, %v3144
    %v4113 = vpack.c.b16 %v3153, %v3145
    %v4114 = vpack.c.b16 %v3154, %v3146
    %v4115 = vpack.c.b16 %v3155, %v3147
    %v4116 = vpack.c.b16 %v3156, %v3148
    %v4117 = vpack.c.b16 %v3157, %v3149
    %v4118 = vpack.c.b16 %v3158, %v3150
    %v4119 = vpack.c.b16 %v3159, %v3151
    %v4120 = vpack.c.b16 %v3168, %v3160
    %v4121 = vpack.c.b16 %v3169, %v3161
    %v4122 = vpack.c.b16 %v3170, %v3162
    %v4123 = vpack.c.b16 %v3171, %v3163
    %v4124 = vpack.c.b16 %v3172, %v3164
    %v4125 = vpack.c.b16 %v3173, %v3165
    %v4126 = vpack.c.b16 %v3174, %v3166
    %v4127 = vpack.c.b16 %v3175, %v3167
    %v4128 = vpack.c.b16 %v3184, %v3176
    %v4129 = vpack.c.b16 %v3185, %v3177
    %v4130 = vpack.c.b16 %v3186, %v3178
    %v4131 = vpack.c.b16 %v3187, %v3179
    %v4132 = vpack.c.b16 %v3188, %v3180
    %v4133 = vpack.c.b16 %v3189, %v3181
    %v4134 = vpack.c.b16 %v3190, %v3182
    %v4135 = vpack.c.b16 %v3191, %v3183
    %v4136 = vpack.c.b16 %v3200, %v3192
    %v4137 = vpack.c.b16 %v3201, %v3193
    %v4138 = vpack.c.b16 %v3202, %v3194
    %v4139 = vpack.c.b16 %v3203, %v3195
    %v4140 = vpack.c.b16 %v3204, %v3196
    %v4141 = vpack.c.b16 %v3205, %v3197
    %v4142 = vpack.c.b16 %v3206, %v3198
    %v4143 = vpack.c.b16 %v3207, %v3199
    %v4144 = vpack.c.b16 %v3216, %v3208
    %v4145 = vpack.c.b16 %v3217, %v3209
    %v4146 = vpack.c.b16 %v3218, %v3210
    %v4147 = vpack.c.b16 %v3219, %v3211
    %v4148 = vpack.c.b16 %v3220, %v3212
    %v4149 = vpack.c.b16 %v3221, %v3213
    %v4150 = vpack.c.b16 %v3222, %v3214
    %v4151 = vpack.c.b16 %v3223, %v3215
    %v4152 = vpack.c.b16 %v3232, %v3224
    %v4153 = vpack.c.b16 %v3233, %v3225
    %v4154 = vpack.c.b16 %v3234, %v3226
    %v4155 = vpack.c.b16 %v3235, %v3227
    %v4156 = vpack.c.b16 %v3236, %v3228
    %v4157 = vpack.c.b16 %v3237, %v3229
    %v4158 = vpack.c.b16 %v3238, %v3230
    %v4159 = vpack.c.b16 %v3239, %v3231
    %v4160 = vpack.c.b16 %v3248, %v3240
    %v4161 = vpack.c.b16 %v3249, %v3241
    %v4162 = vpack.c.b16 %v3250, %v3242
    %v4163 = vpack.c.b16 %v3251, %v3243
    %v4164 = vpack.c.b16 %v3252, %v3244
    %v4165 = vpack.c.b16 %v3253, %v3245
    %v4166 = vpack.c.b16 %v3254, %v3246
    %v4167 = vpack.c.b16 %v3255, %v3247
    %v4168 = vpack.c.b16 %v3264, %v3256
    %v4169 = vpack.c.b16 %v3265, %v3257
    %v4170 = vpack.c.b16 %v3266, %v3258
    %v4171 = vpack.c.b16 %v3267, %v3259
    %v4172 = vpack.c.b16 %v3268, %v3260
    %v4173 = vpack.c.b16 %v3269, %v3261
    %v4174 = vpack.c.b16 %v3270, %v3262
    %v4175 = vpack.c.b16 %v3271, %v3263
    %v4176 = vpack.c.b16 %v3280, %v3272
    %v4177 = vpack.c.b16 %v3281, %v3273
    %v4178 = vpack.c.b16 %v3282, %v3274
    %v4179 = vpack.c.b16 %v3283, %v3275
    %v4180 = vpack.c.b16 %v3284, %v3276
    %v4181 = vpack.c.b16 %v3285, %v3277
    %v4182 = vpack.c.b16 %v3286, %v3278
    %v4183 = vpack.c.b16 %v3287, %v3279
    %v4184 = vpack.c.b16 %v3296, %v3288
    %v4185 = vpack.c.b16 %v3297, %v3289
    %v4186 = vpack.c.b16 %v3298, %v3290
    %v4187 = vpack.c.b16 %v3299, %v3291
    %v4188 = vpack.c.b16 %v3300, %v3292
    %v4189 = vpack.c.b16 %v3301, %v3293
    %v4190 = vpack.c.b16 %v3302, %v3294
    %v4191 = vpack.c.b16 %v3303, %v3295
    %v4192 = vpack.c.b16 %v3312, %v3304
    %v4193 = vpack.c.b16 %v3313, %v3305
    %v4194 = vpack.c.b16 %v3314, %v3306
    %v4195 = vpack.c.b16 %v3315, %v3307
    %v4196 = vpack.c.b16 %v3316, %v3308
    %v4197 = vpack.c.b16 %v3317, %v3309
    %v4198 = vpack.c.b16 %v3318, %v3310
    %v4199 = vpack.c.b16 %v3319, %v3311
    %v4200 = vpack.c.b16 %v3328, %v3320
    %v4201 = vpack.c.b16 %v3329, %v3321
    %v4202 = vpack.c.b16 %v3330, %v3322
    %v4203 = vpack.c.b16 %v3331, %v3323
    %v4204 = vpack.c.b16 %v3332, %v3324
    %v4205 = vpack.c.b16 %v3333, %v3325
    %v4206 = vpack.c.b16 %v3334, %v3326
    %v4207 = vpack.c.b16 %v3335, %v3327
    %v4208 = vpack.c.b16 %v3344, %v3336
    %v4209 = vpack.c.b16 %v3345, %v3337
    %v4210 = vpack.c.b16 %v3346, %v3338
    %v4211 = vpack.c.b16 %v3347, %v3339
    %v4212 = vpack.c.b16 %v3348, %v3340
    %v4213 = vpack.c.b16 %v3349, %v3341
    %v4214 = vpack.c.b16 %v3350, %v3342
    %v4215 = vpack.c.b16 %v3351, %v3343
    %v4216 = vpack.c.b16 %v3360, %v3352
    %v4217 = vpack.c.b16 %v3361, %v3353
    %v4218 = vpack.c.b16 %v3362, %v3354
    %v4219 = vpack.c.b16 %v3363, %v3355
    %v4220 = vpack.c.b16 %v3364, %v3356
    %v4221 = vpack.c.b16 %v3365, %v3357
    %v4222 = vpack.c.b16 %v3366, %v3358
    %v4223 = vpack.c.b16 %v3367, %v3359
    %v4224 = vpack.c.b16 %v3376, %v3368
    %v4225 = vpack.c.b16 %v3377, %v3369
    %v4226 = vpack.c.b16 %v3378, %v3370
    %v4227 = vpack.c.b16 %v3379, %v3371
    %v4228 = vpack.c.b16 %v3380, %v3372
    %v4229 = vpack.c.b16 %v3381, %v3373
    %v4230 = vpack.c.b16 %v3382, %v3374
    %v4231 = vpack.c.b16 %v3383, %v3375
    %v4232 = vpack.c.b16 %v3392, %v3384
    %v4233 = vpack.c.b16 %v3393, %v3385
    %v4234 = vpack.c.b16 %v3394, %v3386
    %v4235 = vpack.c.b16 %v3395, %v3387
    %v4236 = vpack.c.b16 %v3396, %v3388
    %v4237 = vpack.c.b16 %v3397, %v3389
    %v4238 = vpack.c.b16 %v3398, %v3390
    %v4239 = vpack.c.b16 %v3399, %v3391
    %v4240 = vpack.c.b16 %v3408, %v3400
    %v4241 = vpack.c.b16 %v3409, %v3401
    %v4242 = vpack.c.b16 %v3410, %v3402
    %v4243 = vpack.c.b16 %v3411, %v3403
    %v4244 = vpack.c.b16 %v3412, %v3404
    %v4245 = vpack.c.b16 %v3413, %v3405
    %v4246 = vpack.c.b16 %v3414, %v3406
    %v4247 = vpack.c.b16 %v3415, %v3407
    %v4248 = vpack.c.b16 %v3424, %v3416
    %v4249 = vpack.c.b16 %v3425, %v3417
    %v4250 = vpack.c.b16 %v3426, %v3418
    %v4251 = vpack.c.b16 %v3427, %v3419
    %v4252 = vpack.c.b16 %v3428, %v3420
    %v4253 = vpack.c.b16 %v3429, %v3421
    %v4254 = vpack.c.b16 %v3430, %v3422
    %v4255 = vpack.c.b16 %v3431, %v3423
    %v4256 = vpack.c.b16 %v3440, %v3432
    %v4257 = vpack.c.b16 %v3441, %v3433
    %v4258 = vpack.c.b16 %v3442, %v3434
    %v4259 = vpack.c.b16 %v3443, %v3435
    %v4260 = vpack.c.b16 %v3444, %v3436
    %v4261 = vpack.c.b16 %v3445, %v3437
    %v4262 = vpack.c.b16 %v3446, %v3438
    %v4263 = vpack.c.b16 %v3447, %v3439
    %v4264 = vpack.c.b16 %v3456, %v3448
    %v4265 = vpack.c.b16 %v3457, %v3449
    %v4266 = vpack.c.b16 %v3458, %v3450
    %v4267 = vpack.c.b16 %v3459, %v3451
    %v4268 = vpack.c.b16 %v3460, %v3452
    %v4269 = vpack.c.b16 %v3461, %v3453
    %v4270 = vpack.c.b16 %v3462, %v3454
    %v4271 = vpack.c.b16 %v3463, %v3455
    %v4272 = vpack.c.b16 %v3472, %v3464
    %v4273 = vpack.c.b16 %v3473, %v3465
    %v4274 = vpack.c.b16 %v3474, %v3466
    %v4275 = vpack.c.b16 %v3475, %v3467
    %v4276 = vpack.c.b16 %v3476, %v3468
    %v4277 = vpack.c.b16 %v3477, %v3469
    %v4278 = vpack.c.b16 %v3478, %v3470
    %v4279 = vpack.c.b16 %v3479, %v3471
    %v4280 = vpack.c.b16 %v3488, %v3480
    %v4281 = vpack.c.b16 %v3489, %v3481
    %v4282 = vpack.c.b16 %v3490, %v3482
    %v4283 = vpack.c.b16 %v3491, %v3483
    %v4284 = vpack.c.b16 %v3492, %v3484
    %v4285 = vpack.c.b16 %v3493, %v3485
    %v4286 = vpack.c.b16 %v3494, %v3486
    %v4287 = vpack.c.b16 %v3495, %v3487
    %v4288 = vpack.c.b16 %v3504, %v3496
    %v4289 = vpack.c.b16 %v3505, %v3497
    %v4290 = vpack.c.b16 %v3506, %v3498
    %v4291 = vpack.c.b16 %v3507, %v3499
    %v4292 = vpack.c.b16 %v3508, %v3500
    %v4293 = vpack.c.b16 %v3509, %v3501
    %v4294 = vpack.c.b16 %v3510, %v3502
    %v4295 = vpack.c.b16 %v3511, %v3503
    %v4296 = vpack.c.b16 %v3520, %v3512
    %v4297 = vpack.c.b16 %v3521, %v3513
    %v4298 = vpack.c.b16 %v3522, %v3514
    %v4299 = vpack.c.b16 %v3523, %v3515
    %v4300 = vpack.c.b16 %v3524, %v3516
    %v4301 = vpack.c.b16 %v3525, %v3517
    %v4302 = vpack.c.b16 %v3526, %v3518
    %v4303 = vpack.c.b16 %v3527, %v3519
    %v4304 = vpack.c.b16 %v3536, %v3528
    %v4305 = vpack.c.b16 %v3537, %v3529
    %v4306 = vpack.c.b16 %v3538, %v3530
    %v4307 = vpack.c.b16 %v3539, %v3531
    %v4308 = vpack.c.b16 %v3540, %v3532
    %v4309 = vpack.c.b16 %v3541, %v3533
    %v4310 = vpack.c.b16 %v3542, %v3534
    %v4311 = vpack.c.b16 %v3543, %v3535
    %v4312 = vpack.c.b16 %v3552, %v3544
    %v4313 = vpack.c.b16 %v3553, %v3545
    %v4314 = vpack.c.b16 %v3554, %v3546
    %v4315 = vpack.c.b16 %v3555, %v3547
    %v4316 = vpack.c.b16 %v3556, %v3548
    %v4317 = vpack.c.b16 %v3557, %v3549
    %v4318 = vpack.c.b16 %v3558, %v3550
    %v4319 = vpack.c.b16 %v3559, %v3551
    %v4320 = vpack.c.b16 %v3568, %v3560
    %v4321 = vpack.c.b16 %v3569, %v3561
    %v4322 = vpack.c.b16 %v3570, %v3562
    %v4323 = vpack.c.b16 %v3571, %v3563
    %v4324 = vpack.c.b16 %v3572, %v3564
    %v4325 = vpack.c.b16 %v3573, %v3565
    %v4326 = vpack.c.b16 %v3574, %v3566
    %v4327 = vpack.c.b16 %v3575, %v3567
    %v4328 = vpack.c.b16 %v3584, %v3576
    %v4329 = vpack.c.b16 %v3585, %v3577
    %v4330 = vpack.c.b16 %v3586, %v3578
    %v4331 = vpack.c.b16 %v3587, %v3579
    %v4332 = vpack.c.b16 %v3588, %v3580
    %v4333 = vpack.c.b16 %v3589, %v3581
    %v4334 = vpack.c.b16 %v3590, %v3582
    %v4335 = vpack.c.b16 %v3591, %v3583
    %v4336 = vpack.c.b16 %v3600, %v3592
    %v4337 = vpack.c.b16 %v3601, %v3593
    %v4338 = vpack.c.b16 %v3602, %v3594
    %v4339 = vpack.c.b16 %v3603, %v3595
    %v4340 = vpack.c.b16 %v3604, %v3596
    %v4341 = vpack.c.b16 %v3605, %v3597
    %v4342 = vpack.c.b16 %v3606, %v3598
    %v4343 = vpack.c.b16 %v3607, %v3599
    %v4344 = vpack.c.b16 %v3616, %v3608
    %v4345 = vpack.c.b16 %v3617, %v3609
    %v4346 = vpack.c.b16 %v3618, %v3610
    %v4347 = vpack.c.b16 %v3619, %v3611
    %v4348 = vpack.c.b16 %v3620, %v3612
    %v4349 = vpack.c.b16 %v3621, %v3613
    %v4350 = vpack.c.b16 %v3622, %v3614
    %v4351 = vpack.c.b16 %v3623, %v3615
    %v4352 = vpack.c.b16 %v3632, %v3624
    %v4353 = vpack.c.b16 %v3633, %v3625
    %v4354 = vpack.c.b16 %v3634, %v3626
    %v4355 = vpack.c.b16 %v3635, %v3627
    %v4356 = vpack.c.b16 %v3636, %v3628
    %v4357 = vpack.c.b16 %v3637, %v3629
    %v4358 = vpack.c.b16 %v3638, %v3630
    %v4359 = vpack.c.b16 %v3639, %v3631
    %v4360 = vpack.c.b16 %v3648, %v3640
    %v4361 = vpack.c.b16 %v3649, %v3641
    %v4362 = vpack.c.b16 %v3650, %v3642
    %v4363 = vpack.c.b16 %v3651, %v3643
    %v4364 = vpack.c.b16 %v3652, %v3644
    %v4365 = vpack.c.b16 %v3653, %v3645
    %v4366 = vpack.c.b16 %v3654, %v3646
    %v4367 = vpack.c.b16 %v3655, %v3647
    %v4368 = vpack.c.b16 %v3664, %v3656
    %v4369 = vpack.c.b16 %v3665, %v3657
    %v4370 = vpack.c.b16 %v3666, %v3658
    %v4371 = vpack.c.b16 %v3667, %v3659
    %v4372 = vpack.c.b16 %v3668, %v3660
    %v4373 = vpack.c.b16 %v3669, %v3661
    %v4374 = vpack.c.b16 %v3670, %v3662
    %v4375 = vpack.c.b16 %v3671, %v3663
    %v4376 = vpack.c.b16 %v3680, %v3672
    %v4377 = vpack.c.b16 %v3681, %v3673
    %v4378 = vpack.c.b16 %v3682, %v3674
    %v4379 = vpack.c.b16 %v3683, %v3675
    %v4380 = vpack.c.b16 %v3684, %v3676
    %v4381 = vpack.c.b16 %v3685, %v3677
    %v4382 = vpack.c.b16 %v3686, %v3678
    %v4383 = vpack.c.b16 %v3687, %v3679
    %v4384 = vpack.c.b16 %v3696, %v3688
    %v4385 = vpack.c.b16 %v3697, %v3689
    %v4386 = vpack.c.b16 %v3698, %v3690
    %v4387 = vpack.c.b16 %v3699, %v3691
    %v4388 = vpack.c.b16 %v3700, %v3692
    %v4389 = vpack.c.b16 %v3701, %v3693
    %v4390 = vpack.c.b16 %v3702, %v3694
    %v4391 = vpack.c.b16 %v3703, %v3695
    %v4392 = vpack.c.b16 %v3712, %v3704
    %v4393 = vpack.c.b16 %v3713, %v3705
    %v4394 = vpack.c.b16 %v3714, %v3706
    %v4395 = vpack.c.b16 %v3715, %v3707
    %v4396 = vpack.c.b16 %v3716, %v3708
    %v4397 = vpack.c.b16 %v3717, %v3709
    %v4398 = vpack.c.b16 %v3718, %v3710
    %v4399 = vpack.c.b16 %v3719, %v3711
    %v4400 = vpack.c.b16 %v3728, %v3720
    %v4401 = vpack.c.b16 %v3729, %v3721
    %v4402 = vpack.c.b16 %v3730, %v3722
    %v4403 = vpack.c.b16 %v3731, %v3723
    %v4404 = vpack.c.b16 %v3732, %v3724
    %v4405 = vpack.c.b16 %v3733, %v3725
    %v4406 = vpack.c.b16 %v3734, %v3726
    %v4407 = vpack.c.b16 %v3735, %v3727
    %v4408 = vpack.c.b16 %v3744, %v3736
    %v4409 = vpack.c.b16 %v3745, %v3737
    %v4410 = vpack.c.b16 %v3746, %v3738
    %v4411 = vpack.c.b16 %v3747, %v3739
    %v4412 = vpack.c.b16 %v3748, %v3740
    %v4413 = vpack.c.b16 %v3749, %v3741
    %v4414 = vpack.c.b16 %v3750, %v3742
    %v4415 = vpack.c.b16 %v3751, %v3743
    %v4416 = vpack.c.b16 %v3760, %v3752
    %v4417 = vpack.c.b16 %v3761, %v3753
    %v4418 = vpack.c.b16 %v3762, %v3754
    %v4419 = vpack.c.b16 %v3763, %v3755
    %v4420 = vpack.c.b16 %v3764, %v3756
    %v4421 = vpack.c.b16 %v3765, %v3757
    %v4422 = vpack.c.b16 %v3766, %v3758
    %v4423 = vpack.c.b16 %v3767, %v3759
    %v4424 = vpack.c.b16 %v3776, %v3768
    %v4425 = vpack.c.b16 %v3777, %v3769
    %v4426 = vpack.c.b16 %v3778, %v3770
    %v4427 = vpack.c.b16 %v3779, %v3771
    %v4428 = vpack.c.b16 %v3780, %v3772
    %v4429 = vpack.c.b16 %v3781, %v3773
    %v4430 = vpack.c.b16 %v3782, %v3774
    %v4431 = vpack.c.b16 %v3783, %v3775
    %v4432 = vpack.c.b16 %v3792, %v3784
    %v4433 = vpack.c.b16 %v3793, %v3785
    %v4434 = vpack.c.b16 %v3794, %v3786
    %v4435 = vpack.c.b16 %v3795, %v3787
    %v4436 = vpack.c.b16 %v3796, %v3788
    %v4437 = vpack.c.b16 %v3797, %v3789
    %v4438 = vpack.c.b16 %v3798, %v3790
    %v4439 = vpack.c.b16 %v3799, %v3791
    %v4440 = vpack.c.b16 %v3808, %v3800
    %v4441 = vpack.c.b16 %v3809, %v3801
    %v4442 = vpack.c.b16 %v3810, %v3802
    %v4443 = vpack.c.b16 %v3811, %v3803
    %v4444 = vpack.c.b16 %v3812, %v3804
    %v4445 = vpack.c.b16 %v3813, %v3805
    %v4446 = vpack.c.b16 %v3814, %v3806
    %v4447 = vpack.c.b16 %v3815, %v3807
    %v4448 = vpack.c.b16 %v3824, %v3816
    %v4449 = vpack.c.b16 %v3825, %v3817
    %v4450 = vpack.c.b16 %v3826, %v3818
    %v4451 = vpack.c.b16 %v3827, %v3819
    %v4452 = vpack.c.b16 %v3828, %v3820
    %v4453 = vpack.c.b16 %v3829, %v3821
    %v4454 = vpack.c.b16 %v3830, %v3822
    %v4455 = vpack.c.b16 %v3831, %v3823
    %v4456 = vpack.c.b16 %v3840, %v3832
    %v4457 = vpack.c.b16 %v3841, %v3833
    %v4458 = vpack.c.b16 %v3842, %v3834
    %v4459 = vpack.c.b16 %v3843, %v3835
    %v4460 = vpack.c.b16 %v3844, %v3836
    %v4461 = vpack.c.b16 %v3845, %v3837
    %v4462 = vpack.c.b16 %v3846, %v3838
    %v4463 = vpack.c.b16 %v3847, %v3839
    %v4464 = vpack.c.b16 %v3856, %v3848
    %v4465 = vpack.c.b16 %v3857, %v3849
    %v4466 = vpack.c.b16 %v3858, %v3850
    %v4467 = vpack.c.b16 %v3859, %v3851
    %v4468 = vpack.c.b16 %v3860, %v3852
    %v4469 = vpack.c.b16 %v3861, %v3853
    %v4470 = vpack.c.b16 %v3862, %v3854
    %v4471 = vpack.c.b16 %v3863, %v3855
    %v4472 = vpack.c.b16 %v3872, %v3864
    %v4473 = vpack.c.b16 %v3873, %v3865
    %v4474 = vpack.c.b16 %v3874, %v3866
    %v4475 = vpack.c.b16 %v3875, %v3867
    %v4476 = vpack.c.b16 %v3876, %v3868
    %v4477 = vpack.c.b16 %v3877, %v3869
    %v4478 = vpack.c.b16 %v3878, %v3870
    %v4479 = vpack.c.b16 %v3879, %v3871
    %v4480 = vpack.c.b16 %v3888, %v3880
    %v4481 = vpack.c.b16 %v3889, %v3881
    %v4482 = vpack.c.b16 %v3890, %v3882
    %v4483 = vpack.c.b16 %v3891, %v3883
    %v4484 = vpack.c.b16 %v3892, %v3884
    %v4485 = vpack.c.b16 %v3893, %v3885
    %v4486 = vpack.c.b16 %v3894, %v3886
    %v4487 = vpack.c.b16 %v3895, %v3887
    %v4488 = vpack.c.b16 %v3904, %v3896
    %v4489 = vpack.c.b16 %v3905, %v3897
    %v4490 = vpack.c.b16 %v3906, %v3898
    %v4491 = vpack.c.b16 %v3907, %v3899
    %v4492 = vpack.c.b16 %v3908, %v3900
    %v4493 = vpack.c.b16 %v3909, %v3901
    %v4494 = vpack.c.b16 %v3910, %v3902
    %v4495 = vpack.c.b16 %v3911, %v3903
    %v4496 = vpack.c.b16 %v3920, %v3912
    %v4497 = vpack.c.b16 %v3921, %v3913
    %v4498 = vpack.c.b16 %v3922, %v3914
    %v4499 = vpack.c.b16 %v3923, %v3915
    %v4500 = vpack.c.b16 %v3924, %v3916
    %v4501 = vpack.c.b16 %v3925, %v3917
    %v4502 = vpack.c.b16 %v3926, %v3918
    %v4503 = vpack.c.b16 %v3927, %v3919
    %v4504 = vpack.c.b16 %v3936, %v3928
    %v4505 = vpack.c.b16 %v3937, %v3929
    %v4506 = vpack.c.b16 %v3938, %v3930
    %v4507 = vpack.c.b16 %v3939, %v3931
    %v4508 = vpack.c.b16 %v3940, %v3932
    %v4509 = vpack.c.b16 %v3941, %v3933
    %v4510 = vpack.c.b16 %v3942, %v3934
    %v4511 = vpack.c.b16 %v3943, %v3935
    %v4512 = vpack.c.b16 %v3952, %v3944
    %v4513 = vpack.c.b16 %v3953, %v3945
    %v4514 = vpack.c.b16 %v3954, %v3946
    %v4515 = vpack.c.b16 %v3955, %v3947
    %v4516 = vpack.c.b16 %v3956, %v3948
    %v4517 = vpack.c.b16 %v3957, %v3949
    %v4518 = vpack.c.b16 %v3958, %v3950
    %v4519 = vpack.c.b16 %v3959, %v3951
    %v4520 = vpack.c.b16 %v3968, %v3960
    %v4521 = vpack.c.b16 %v3969, %v3961
    %v4522 = vpack.c.b16 %v3970, %v3962
    %v4523 = vpack.c.b16 %v3971, %v3963
    %v4524 = vpack.c.b16 %v3972, %v3964
    %v4525 = vpack.c.b16 %v3973, %v3965
    %v4526 = vpack.c.b16 %v3974, %v3966
    %v4527 = vpack.c.b16 %v3975, %v3967
    %v4528 = vpack.c.b16 %v3984, %v3976
    %v4529 = vpack.c.b16 %v3985, %v3977
    %v4530 = vpack.c.b16 %v3986, %v3978
    %v4531 = vpack.c.b16 %v3987, %v3979
    %v4532 = vpack.c.b16 %v3988, %v3980
    %v4533 = vpack.c.b16 %v3989, %v3981
    %v4534 = vpack.c.b16 %v3990, %v3982
    %v4535 = vpack.c.b16 %v3991, %v3983
    %v4536 = vpack.c.b16 %v4000, %v3992
    %v4537 = vpack.c.b16 %v4001, %v3993
    %v4538 = vpack.c.b16 %v4002, %v3994
    %v4539 = vpack.c.b16 %v4003, %v3995
    %v4540 = vpack.c.b16 %v4004, %v3996
    %v4541 = vpack.c.b16 %v4005, %v3997
    %v4542 = vpack.c.b16 %v4006, %v3998
    %v4543 = vpack.c.b16 %v4007, %v3999
    %v4544 = vpack.c.b16 %v4016, %v4008
    %v4545 = vpack.c.b16 %v4017, %v4009
    %v4546 = vpack.c.b16 %v4018, %v4010
    %v4547 = vpack.c.b16 %v4019, %v4011
    %v4548 = vpack.c.b16 %v4020, %v4012
    %v4549 = vpack.c.b16 %v4021, %v4013
    %v4550 = vpack.c.b16 %v4022, %v4014
    %v4551 = vpack.c.b16 %v4023, %v4015
    %v4552 = vpack.c.b16 %v4032, %v4024
    %v4553 = vpack.c.b16 %v4033, %v4025
    %v4554 = vpack.c.b16 %v4034, %v4026
    %v4555 = vpack.c.b16 %v4035, %v4027
    %v4556 = vpack.c.b16 %v4036, %v4028
    %v4557 = vpack.c.b16 %v4037, %v4029
    %v4558 = vpack.c.b16 %v4038, %v4030
    %v4559 = vpack.c.b16 %v4039, %v4031
    %v4560 = vpack.c.b16 %v4048, %v4040
    %v4561 = vpack.c.b16 %v4049, %v4041
    %v4562 = vpack.c.b16 %v4050, %v4042
    %v4563 = vpack.c.b16 %v4051, %v4043
    %v4564 = vpack.c.b16 %v4052, %v4044
    %v4565 = vpack.c.b16 %v4053, %v4045
    %v4566 = vpack.c.b16 %v4054, %v4046
    %v4567 = vpack.c.b16 %v4055, %v4047
    %5080 = vmatpush.bf16.msra.mxu0 %v4112
    %5081 = vmatpush.bf16.msra.mxu0 %v4104
    %5082 = vmatpush.bf16.msra.mxu0 %v4096
    %5083 = vmatpush.bf16.msra.mxu0 %v4088
    %5084 = vmatpush.bf16.msra.mxu0 %v4080
    %5085 = vmatpush.bf16.msra.mxu0 %v4072
    %5086 = vmatpush.bf16.msra.mxu0 %v4064
    %5087 = vmatpush.bf16.msra.mxu0 %v4056
    %5088 = vmatmul.bf16.gmra.mxu0 %v1982
    %v5089 = vpop.f32.mrf.mxu0
    %v5090 = vadd.f32 %v2504, %v5089
    %v5091 = vpop.f32.mrf.mxu0
    %5092 = vdwg.mxu0
    %5093 = vmatpush.bf16.msra.mxu0 %v4176
    %5094 = vmatpush.bf16.msra.mxu0 %v4168
    %5095 = vmatpush.bf16.msra.mxu0 %v4160
    %5096 = vmatpush.bf16.msra.mxu0 %v4152
    %5097 = vmatpush.bf16.msra.mxu0 %v4144
    %5098 = vmatpush.bf16.msra.mxu0 %v4136
    %5099 = vmatpush.bf16.msra.mxu0 %v4128
    %5100 = vmatpush.bf16.msra.mxu0 %v4120
    %5101 = vmatmul.bf16.gmra.mxu0 %v1983
    %v5102 = vpop.f32.mrf.mxu0
    %v5103 = vadd.f32 %v5090, %v5102
    %v5104 = vpop.f32.mrf.mxu0
    %5105 = vdwg.mxu0
    %5106 = vmatpush.bf16.msra.mxu0 %v4240
    %5107 = vmatpush.bf16.msra.mxu0 %v4232
    %5108 = vmatpush.bf16.msra.mxu0 %v4224
    %5109 = vmatpush.bf16.msra.mxu0 %v4216
    %5110 = vmatpush.bf16.msra.mxu0 %v4208
    %5111 = vmatpush.bf16.msra.mxu0 %v4200
    %5112 = vmatpush.bf16.msra.mxu0 %v4192
    %5113 = vmatpush.bf16.msra.mxu0 %v4184
    %5114 = vmatmul.bf16.gmra.mxu0 %v1984
    %v5115 = vpop.f32.mrf.mxu0
    %v5116 = vadd.f32 %v5103, %v5115
    %v5117 = vpop.f32.mrf.mxu0
    %5118 = vdwg.mxu0
    %5119 = vmatpush.bf16.msra.mxu0 %v4304
    %5120 = vmatpush.bf16.msra.mxu0 %v4296
    %5121 = vmatpush.bf16.msra.mxu0 %v4288
    %5122 = vmatpush.bf16.msra.mxu0 %v4280
    %5123 = vmatpush.bf16.msra.mxu0 %v4272
    %5124 = vmatpush.bf16.msra.mxu0 %v4264
    %5125 = vmatpush.bf16.msra.mxu0 %v4256
    %5126 = vmatpush.bf16.msra.mxu0 %v4248
    %5127 = vmatmul.bf16.gmra.mxu0 %v1985
    %v5128 = vpop.f32.mrf.mxu0
    %v5129 = vadd.f32 %v5116, %v5128
    %v5130 = vpop.f32.mrf.mxu0
    %5131 = vdwg.mxu0
    %5132 = vmatpush.bf16.msra.mxu0 %v4368
    %5133 = vmatpush.bf16.msra.mxu0 %v4360
    %5134 = vmatpush.bf16.msra.mxu0 %v4352
    %5135 = vmatpush.bf16.msra.mxu0 %v4344
    %5136 = vmatpush.bf16.msra.mxu0 %v4336
    %5137 = vmatpush.bf16.msra.mxu0 %v4328
    %5138 = vmatpush.bf16.msra.mxu0 %v4320
    %5139 = vmatpush.bf16.msra.mxu0 %v4312
    %5140 = vmatmul.bf16.gmra.mxu0 %v1986
    %v5141 = vpop.f32.mrf.mxu0
    %v5142 = vadd.f32 %v5129, %v5141
    %v5143 = vpop.f32.mrf.mxu0
    %5144 = vdwg.mxu0
    %5145 = vmatpush.bf16.msra.mxu0 %v4432
    %5146 = vmatpush.bf16.msra.mxu0 %v4424
    %5147 = vmatpush.bf16.msra.mxu0 %v4416
    %5148 = vmatpush.bf16.msra.mxu0 %v4408
    %5149 = vmatpush.bf16.msra.mxu0 %v4400
    %5150 = vmatpush.bf16.msra.mxu0 %v4392
    %5151 = vmatpush.bf16.msra.mxu0 %v4384
    %5152 = vmatpush.bf16.msra.mxu0 %v4376
    %5153 = vmatmul.bf16.gmra.mxu0 %v1987
    %v5154 = vpop.f32.mrf.mxu0
    %v5155 = vadd.f32 %v5142, %v5154
    %v5156 = vpop.f32.mrf.mxu0
    %5157 = vdwg.mxu0
    %5158 = vmatpush.bf16.msra.mxu0 %v4496
    %5159 = vmatpush.bf16.msra.mxu0 %v4488
    %5160 = vmatpush.bf16.msra.mxu0 %v4480
    %5161 = vmatpush.bf16.msra.mxu0 %v4472
    %5162 = vmatpush.bf16.msra.mxu0 %v4464
    %5163 = vmatpush.bf16.msra.mxu0 %v4456
    %5164 = vmatpush.bf16.msra.mxu0 %v4448
    %5165 = vmatpush.bf16.msra.mxu0 %v4440
    %5166 = vmatmul.bf16.gmra.mxu0 %v1988
    %v5167 = vpop.f32.mrf.mxu0
    %v5168 = vadd.f32 %v5155, %v5167
    %v5169 = vpop.f32.mrf.mxu0
    %5170 = vdwg.mxu0
    %5171 = vmatpush.bf16.msra.mxu0 %v4560
    %5172 = vmatpush.bf16.msra.mxu0 %v4552
    %5173 = vmatpush.bf16.msra.mxu0 %v4544
    %5174 = vmatpush.bf16.msra.mxu0 %v4536
    %5175 = vmatpush.bf16.msra.mxu0 %v4528
    %5176 = vmatpush.bf16.msra.mxu0 %v4520
    %5177 = vmatpush.bf16.msra.mxu0 %v4512
    %5178 = vmatpush.bf16.msra.mxu0 %v4504
    %5179 = vmatmul.bf16.gmra.mxu0 %v1989
    %v5180 = vpop.f32.mrf.mxu0
    %v5181 = vadd.f32 %v5168, %v5180
    %v5182 = vpop.f32.mrf.mxu0
    %5183 = vdwg.mxu0
    %5184 = vmatpush.bf16.msra.mxu0 %v4113
    %5185 = vmatpush.bf16.msra.mxu0 %v4105
    %5186 = vmatpush.bf16.msra.mxu0 %v4097
    %5187 = vmatpush.bf16.msra.mxu0 %v4089
    %5188 = vmatpush.bf16.msra.mxu0 %v4081
    %5189 = vmatpush.bf16.msra.mxu0 %v4073
    %5190 = vmatpush.bf16.msra.mxu0 %v4065
    %5191 = vmatpush.bf16.msra.mxu0 %v4057
    %5192 = vmatmul.bf16.gmra.mxu0 %v1982
    %v5193 = vpop.f32.mrf.mxu0
    %v5194 = vadd.f32 %v2505, %v5193
    %v5195 = vpop.f32.mrf.mxu0
    %5196 = vdwg.mxu0
    %5197 = vmatpush.bf16.msra.mxu0 %v4177
    %5198 = vmatpush.bf16.msra.mxu0 %v4169
    %5199 = vmatpush.bf16.msra.mxu0 %v4161
    %5200 = vmatpush.bf16.msra.mxu0 %v4153
    %5201 = vmatpush.bf16.msra.mxu0 %v4145
    %5202 = vmatpush.bf16.msra.mxu0 %v4137
    %5203 = vmatpush.bf16.msra.mxu0 %v4129
    %5204 = vmatpush.bf16.msra.mxu0 %v4121
    %5205 = vmatmul.bf16.gmra.mxu0 %v1983
    %v5206 = vpop.f32.mrf.mxu0
    %v5207 = vadd.f32 %v5194, %v5206
    %v5208 = vpop.f32.mrf.mxu0
    %5209 = vdwg.mxu0
    %5210 = vmatpush.bf16.msra.mxu0 %v4241
    %5211 = vmatpush.bf16.msra.mxu0 %v4233
    %5212 = vmatpush.bf16.msra.mxu0 %v4225
    %5213 = vmatpush.bf16.msra.mxu0 %v4217
    %5214 = vmatpush.bf16.msra.mxu0 %v4209
    %5215 = vmatpush.bf16.msra.mxu0 %v4201
    %5216 = vmatpush.bf16.msra.mxu0 %v4193
    %5217 = vmatpush.bf16.msra.mxu0 %v4185
    %5218 = vmatmul.bf16.gmra.mxu0 %v1984
    %v5219 = vpop.f32.mrf.mxu0
    %v5220 = vadd.f32 %v5207, %v5219
    %v5221 = vpop.f32.mrf.mxu0
    %5222 = vdwg.mxu0
    %5223 = vmatpush.bf16.msra.mxu0 %v4305
    %5224 = vmatpush.bf16.msra.mxu0 %v4297
    %5225 = vmatpush.bf16.msra.mxu0 %v4289
    %5226 = vmatpush.bf16.msra.mxu0 %v4281
    %5227 = vmatpush.bf16.msra.mxu0 %v4273
    %5228 = vmatpush.bf16.msra.mxu0 %v4265
    %5229 = vmatpush.bf16.msra.mxu0 %v4257
    %5230 = vmatpush.bf16.msra.mxu0 %v4249
    %5231 = vmatmul.bf16.gmra.mxu0 %v1985
    %v5232 = vpop.f32.mrf.mxu0
    %v5233 = vadd.f32 %v5220, %v5232
    %v5234 = vpop.f32.mrf.mxu0
    %5235 = vdwg.mxu0
    %5236 = vmatpush.bf16.msra.mxu0 %v4369
    %5237 = vmatpush.bf16.msra.mxu0 %v4361
    %5238 = vmatpush.bf16.msra.mxu0 %v4353
    %5239 = vmatpush.bf16.msra.mxu0 %v4345
    %5240 = vmatpush.bf16.msra.mxu0 %v4337
    %5241 = vmatpush.bf16.msra.mxu0 %v4329
    %5242 = vmatpush.bf16.msra.mxu0 %v4321
    %5243 = vmatpush.bf16.msra.mxu0 %v4313
    %5244 = vmatmul.bf16.gmra.mxu0 %v1986
    %v5245 = vpop.f32.mrf.mxu0
    %v5246 = vadd.f32 %v5233, %v5245
    %v5247 = vpop.f32.mrf.mxu0
    %5248 = vdwg.mxu0
    %5249 = vmatpush.bf16.msra.mxu0 %v4433
    %5250 = vmatpush.bf16.msra.mxu0 %v4425
    %5251 = vmatpush.bf16.msra.mxu0 %v4417
    %5252 = vmatpush.bf16.msra.mxu0 %v4409
    %5253 = vmatpush.bf16.msra.mxu0 %v4401
    %5254 = vmatpush.bf16.msra.mxu0 %v4393
    %5255 = vmatpush.bf16.msra.mxu0 %v4385
    %5256 = vmatpush.bf16.msra.mxu0 %v4377
    %5257 = vmatmul.bf16.gmra.mxu0 %v1987
    %v5258 = vpop.f32.mrf.mxu0
    %v5259 = vadd.f32 %v5246, %v5258
    %v5260 = vpop.f32.mrf.mxu0
    %5261 = vdwg.mxu0
    %5262 = vmatpush.bf16.msra.mxu0 %v4497
    %5263 = vmatpush.bf16.msra.mxu0 %v4489
    %5264 = vmatpush.bf16.msra.mxu0 %v4481
    %5265 = vmatpush.bf16.msra.mxu0 %v4473
    %5266 = vmatpush.bf16.msra.mxu0 %v4465
    %5267 = vmatpush.bf16.msra.mxu0 %v4457
    %5268 = vmatpush.bf16.msra.mxu0 %v4449
    %5269 = vmatpush.bf16.msra.mxu0 %v4441
    %5270 = vmatmul.bf16.gmra.mxu0 %v1988
    %v5271 = vpop.f32.mrf.mxu0
    %v5272 = vadd.f32 %v5259, %v5271
    %v5273 = vpop.f32.mrf.mxu0
    %5274 = vdwg.mxu0
    %5275 = vmatpush.bf16.msra.mxu0 %v4561
    %5276 = vmatpush.bf16.msra.mxu0 %v4553
    %5277 = vmatpush.bf16.msra.mxu0 %v4545
    %5278 = vmatpush.bf16.msra.mxu0 %v4537
    %5279 = vmatpush.bf16.msra.mxu0 %v4529
    %5280 = vmatpush.bf16.msra.mxu0 %v4521
    %5281 = vmatpush.bf16.msra.mxu0 %v4513
    %5282 = vmatpush.bf16.msra.mxu0 %v4505
    %5283 = vmatmul.bf16.gmra.mxu0 %v1989
    %v5284 = vpop.f32.mrf.mxu0
    %v5285 = vadd.f32 %v5272, %v5284
    %v5286 = vpop.f32.mrf.mxu0
    %5287 = vdwg.mxu0
    %5288 = vmatpush.bf16.msra.mxu0 %v4114
    %5289 = vmatpush.bf16.msra.mxu0 %v4106
    %5290 = vmatpush.bf16.msra.mxu0 %v4098
    %5291 = vmatpush.bf16.msra.mxu0 %v4090
    %5292 = vmatpush.bf16.msra.mxu0 %v4082
    %5293 = vmatpush.bf16.msra.mxu0 %v4074
    %5294 = vmatpush.bf16.msra.mxu0 %v4066
    %5295 = vmatpush.bf16.msra.mxu0 %v4058
    %5296 = vmatmul.bf16.gmra.mxu0 %v1982
    %v5297 = vpop.f32.mrf.mxu0
    %v5298 = vadd.f32 %v2506, %v5297
    %v5299 = vpop.f32.mrf.mxu0
    %5300 = vdwg.mxu0
    %5301 = vmatpush.bf16.msra.mxu0 %v4178
    %5302 = vmatpush.bf16.msra.mxu0 %v4170
    %5303 = vmatpush.bf16.msra.mxu0 %v4162
    %5304 = vmatpush.bf16.msra.mxu0 %v4154
    %5305 = vmatpush.bf16.msra.mxu0 %v4146
    %5306 = vmatpush.bf16.msra.mxu0 %v4138
    %5307 = vmatpush.bf16.msra.mxu0 %v4130
    %5308 = vmatpush.bf16.msra.mxu0 %v4122
    %5309 = vmatmul.bf16.gmra.mxu0 %v1983
    %v5310 = vpop.f32.mrf.mxu0
    %v5311 = vadd.f32 %v5298, %v5310
    %v5312 = vpop.f32.mrf.mxu0
    %5313 = vdwg.mxu0
    %5314 = vmatpush.bf16.msra.mxu0 %v4242
    %5315 = vmatpush.bf16.msra.mxu0 %v4234
    %5316 = vmatpush.bf16.msra.mxu0 %v4226
    %5317 = vmatpush.bf16.msra.mxu0 %v4218
    %5318 = vmatpush.bf16.msra.mxu0 %v4210
    %5319 = vmatpush.bf16.msra.mxu0 %v4202
    %5320 = vmatpush.bf16.msra.mxu0 %v4194
    %5321 = vmatpush.bf16.msra.mxu0 %v4186
    %5322 = vmatmul.bf16.gmra.mxu0 %v1984
    %v5323 = vpop.f32.mrf.mxu0
    %v5324 = vadd.f32 %v5311, %v5323
    %v5325 = vpop.f32.mrf.mxu0
    %5326 = vdwg.mxu0
    %5327 = vmatpush.bf16.msra.mxu0 %v4306
    %5328 = vmatpush.bf16.msra.mxu0 %v4298
    %5329 = vmatpush.bf16.msra.mxu0 %v4290
    %5330 = vmatpush.bf16.msra.mxu0 %v4282
    %5331 = vmatpush.bf16.msra.mxu0 %v4274
    %5332 = vmatpush.bf16.msra.mxu0 %v4266
    %5333 = vmatpush.bf16.msra.mxu0 %v4258
    %5334 = vmatpush.bf16.msra.mxu0 %v4250
    %5335 = vmatmul.bf16.gmra.mxu0 %v1985
    %v5336 = vpop.f32.mrf.mxu0
    %v5337 = vadd.f32 %v5324, %v5336
    %v5338 = vpop.f32.mrf.mxu0
    %5339 = vdwg.mxu0
    %5340 = vmatpush.bf16.msra.mxu0 %v4370
    %5341 = vmatpush.bf16.msra.mxu0 %v4362
    %5342 = vmatpush.bf16.msra.mxu0 %v4354
    %5343 = vmatpush.bf16.msra.mxu0 %v4346
    %5344 = vmatpush.bf16.msra.mxu0 %v4338
    %5345 = vmatpush.bf16.msra.mxu0 %v4330
    %5346 = vmatpush.bf16.msra.mxu0 %v4322
    %5347 = vmatpush.bf16.msra.mxu0 %v4314
    %5348 = vmatmul.bf16.gmra.mxu0 %v1986
    %v5349 = vpop.f32.mrf.mxu0
    %v5350 = vadd.f32 %v5337, %v5349
    %v5351 = vpop.f32.mrf.mxu0
    %5352 = vdwg.mxu0
    %5353 = vmatpush.bf16.msra.mxu0 %v4434
    %5354 = vmatpush.bf16.msra.mxu0 %v4426
    %5355 = vmatpush.bf16.msra.mxu0 %v4418
    %5356 = vmatpush.bf16.msra.mxu0 %v4410
    %5357 = vmatpush.bf16.msra.mxu0 %v4402
    %5358 = vmatpush.bf16.msra.mxu0 %v4394
    %5359 = vmatpush.bf16.msra.mxu0 %v4386
    %5360 = vmatpush.bf16.msra.mxu0 %v4378
    %5361 = vmatmul.bf16.gmra.mxu0 %v1987
    %v5362 = vpop.f32.mrf.mxu0
    %v5363 = vadd.f32 %v5350, %v5362
    %v5364 = vpop.f32.mrf.mxu0
    %5365 = vdwg.mxu0
    %5366 = vmatpush.bf16.msra.mxu0 %v4498
    %5367 = vmatpush.bf16.msra.mxu0 %v4490
    %5368 = vmatpush.bf16.msra.mxu0 %v4482
    %5369 = vmatpush.bf16.msra.mxu0 %v4474
    %5370 = vmatpush.bf16.msra.mxu0 %v4466
    %5371 = vmatpush.bf16.msra.mxu0 %v4458
    %5372 = vmatpush.bf16.msra.mxu0 %v4450
    %5373 = vmatpush.bf16.msra.mxu0 %v4442
    %5374 = vmatmul.bf16.gmra.mxu0 %v1988
    %v5375 = vpop.f32.mrf.mxu0
    %v5376 = vadd.f32 %v5363, %v5375
    %v5377 = vpop.f32.mrf.mxu0
    %5378 = vdwg.mxu0
    %5379 = vmatpush.bf16.msra.mxu0 %v4562
    %5380 = vmatpush.bf16.msra.mxu0 %v4554
    %5381 = vmatpush.bf16.msra.mxu0 %v4546
    %5382 = vmatpush.bf16.msra.mxu0 %v4538
    %5383 = vmatpush.bf16.msra.mxu0 %v4530
    %5384 = vmatpush.bf16.msra.mxu0 %v4522
    %5385 = vmatpush.bf16.msra.mxu0 %v4514
    %5386 = vmatpush.bf16.msra.mxu0 %v4506
    %5387 = vmatmul.bf16.gmra.mxu0 %v1989
    %v5388 = vpop.f32.mrf.mxu0
    %v5389 = vadd.f32 %v5376, %v5388
    %v5390 = vpop.f32.mrf.mxu0
    %5391 = vdwg.mxu0
    %5392 = vmatpush.bf16.msra.mxu0 %v4115
    %5393 = vmatpush.bf16.msra.mxu0 %v4107
    %5394 = vmatpush.bf16.msra.mxu0 %v4099
    %5395 = vmatpush.bf16.msra.mxu0 %v4091
    %5396 = vmatpush.bf16.msra.mxu0 %v4083
    %5397 = vmatpush.bf16.msra.mxu0 %v4075
    %5398 = vmatpush.bf16.msra.mxu0 %v4067
    %5399 = vmatpush.bf16.msra.mxu0 %v4059
    %5400 = vmatmul.bf16.gmra.mxu0 %v1982
    %v5401 = vpop.f32.mrf.mxu0
    %v5402 = vadd.f32 %v2507, %v5401
    %v5403 = vpop.f32.mrf.mxu0
    %5404 = vdwg.mxu0
    %5405 = vmatpush.bf16.msra.mxu0 %v4179
    %5406 = vmatpush.bf16.msra.mxu0 %v4171
    %5407 = vmatpush.bf16.msra.mxu0 %v4163
    %5408 = vmatpush.bf16.msra.mxu0 %v4155
    %5409 = vmatpush.bf16.msra.mxu0 %v4147
    %5410 = vmatpush.bf16.msra.mxu0 %v4139
    %5411 = vmatpush.bf16.msra.mxu0 %v4131
    %5412 = vmatpush.bf16.msra.mxu0 %v4123
    %5413 = vmatmul.bf16.gmra.mxu0 %v1983
    %v5414 = vpop.f32.mrf.mxu0
    %v5415 = vadd.f32 %v5402, %v5414
    %v5416 = vpop.f32.mrf.mxu0
    %5417 = vdwg.mxu0
    %5418 = vmatpush.bf16.msra.mxu0 %v4243
    %5419 = vmatpush.bf16.msra.mxu0 %v4235
    %5420 = vmatpush.bf16.msra.mxu0 %v4227
    %5421 = vmatpush.bf16.msra.mxu0 %v4219
    %5422 = vmatpush.bf16.msra.mxu0 %v4211
    %5423 = vmatpush.bf16.msra.mxu0 %v4203
    %5424 = vmatpush.bf16.msra.mxu0 %v4195
    %5425 = vmatpush.bf16.msra.mxu0 %v4187
    %5426 = vmatmul.bf16.gmra.mxu0 %v1984
    %v5427 = vpop.f32.mrf.mxu0
    %v5428 = vadd.f32 %v5415, %v5427
    %v5429 = vpop.f32.mrf.mxu0
    %5430 = vdwg.mxu0
    %5431 = vmatpush.bf16.msra.mxu0 %v4307
    %5432 = vmatpush.bf16.msra.mxu0 %v4299
    %5433 = vmatpush.bf16.msra.mxu0 %v4291
    %5434 = vmatpush.bf16.msra.mxu0 %v4283
    %5435 = vmatpush.bf16.msra.mxu0 %v4275
    %5436 = vmatpush.bf16.msra.mxu0 %v4267
    %5437 = vmatpush.bf16.msra.mxu0 %v4259
    %5438 = vmatpush.bf16.msra.mxu0 %v4251
    %5439 = vmatmul.bf16.gmra.mxu0 %v1985
    %v5440 = vpop.f32.mrf.mxu0
    %v5441 = vadd.f32 %v5428, %v5440
    %v5442 = vpop.f32.mrf.mxu0
    %5443 = vdwg.mxu0
    %5444 = vmatpush.bf16.msra.mxu0 %v4371
    %5445 = vmatpush.bf16.msra.mxu0 %v4363
    %5446 = vmatpush.bf16.msra.mxu0 %v4355
    %5447 = vmatpush.bf16.msra.mxu0 %v4347
    %5448 = vmatpush.bf16.msra.mxu0 %v4339
    %5449 = vmatpush.bf16.msra.mxu0 %v4331
    %5450 = vmatpush.bf16.msra.mxu0 %v4323
    %5451 = vmatpush.bf16.msra.mxu0 %v4315
    %5452 = vmatmul.bf16.gmra.mxu0 %v1986
    %v5453 = vpop.f32.mrf.mxu0
    %v5454 = vadd.f32 %v5441, %v5453
    %v5455 = vpop.f32.mrf.mxu0
    %5456 = vdwg.mxu0
    %5457 = vmatpush.bf16.msra.mxu0 %v4435
    %5458 = vmatpush.bf16.msra.mxu0 %v4427
    %5459 = vmatpush.bf16.msra.mxu0 %v4419
    %5460 = vmatpush.bf16.msra.mxu0 %v4411
    %5461 = vmatpush.bf16.msra.mxu0 %v4403
    %5462 = vmatpush.bf16.msra.mxu0 %v4395
    %5463 = vmatpush.bf16.msra.mxu0 %v4387
    %5464 = vmatpush.bf16.msra.mxu0 %v4379
    %5465 = vmatmul.bf16.gmra.mxu0 %v1987
    %v5466 = vpop.f32.mrf.mxu0
    %v5467 = vadd.f32 %v5454, %v5466
    %v5468 = vpop.f32.mrf.mxu0
    %5469 = vdwg.mxu0
    %5470 = vmatpush.bf16.msra.mxu0 %v4499
    %5471 = vmatpush.bf16.msra.mxu0 %v4491
    %5472 = vmatpush.bf16.msra.mxu0 %v4483
    %5473 = vmatpush.bf16.msra.mxu0 %v4475
    %5474 = vmatpush.bf16.msra.mxu0 %v4467
    %5475 = vmatpush.bf16.msra.mxu0 %v4459
    %5476 = vmatpush.bf16.msra.mxu0 %v4451
    %5477 = vmatpush.bf16.msra.mxu0 %v4443
    %5478 = vmatmul.bf16.gmra.mxu0 %v1988
    %v5479 = vpop.f32.mrf.mxu0
    %v5480 = vadd.f32 %v5467, %v5479
    %v5481 = vpop.f32.mrf.mxu0
    %5482 = vdwg.mxu0
    %5483 = vmatpush.bf16.msra.mxu0 %v4563
    %5484 = vmatpush.bf16.msra.mxu0 %v4555
    %5485 = vmatpush.bf16.msra.mxu0 %v4547
    %5486 = vmatpush.bf16.msra.mxu0 %v4539
    %5487 = vmatpush.bf16.msra.mxu0 %v4531
    %5488 = vmatpush.bf16.msra.mxu0 %v4523
    %5489 = vmatpush.bf16.msra.mxu0 %v4515
    %5490 = vmatpush.bf16.msra.mxu0 %v4507
    %5491 = vmatmul.bf16.gmra.mxu0 %v1989
    %v5492 = vpop.f32.mrf.mxu0
    %v5493 = vadd.f32 %v5480, %v5492
    %v5494 = vpop.f32.mrf.mxu0
    %5495 = vdwg.mxu0
    %5496 = vmatpush.bf16.msra.mxu0 %v4116
    %5497 = vmatpush.bf16.msra.mxu0 %v4108
    %5498 = vmatpush.bf16.msra.mxu0 %v4100
    %5499 = vmatpush.bf16.msra.mxu0 %v4092
    %5500 = vmatpush.bf16.msra.mxu0 %v4084
    %5501 = vmatpush.bf16.msra.mxu0 %v4076
    %5502 = vmatpush.bf16.msra.mxu0 %v4068
    %5503 = vmatpush.bf16.msra.mxu0 %v4060
    %5504 = vmatmul.bf16.gmra.mxu0 %v1982
    %v5505 = vpop.f32.mrf.mxu0
    %v5506 = vadd.f32 %v2508, %v5505
    %v5507 = vpop.f32.mrf.mxu0
    %5508 = vdwg.mxu0
    %5509 = vmatpush.bf16.msra.mxu0 %v4180
    %5510 = vmatpush.bf16.msra.mxu0 %v4172
    %5511 = vmatpush.bf16.msra.mxu0 %v4164
    %5512 = vmatpush.bf16.msra.mxu0 %v4156
    %5513 = vmatpush.bf16.msra.mxu0 %v4148
    %5514 = vmatpush.bf16.msra.mxu0 %v4140
    %5515 = vmatpush.bf16.msra.mxu0 %v4132
    %5516 = vmatpush.bf16.msra.mxu0 %v4124
    %5517 = vmatmul.bf16.gmra.mxu0 %v1983
    %v5518 = vpop.f32.mrf.mxu0
    %v5519 = vadd.f32 %v5506, %v5518
    %v5520 = vpop.f32.mrf.mxu0
    %5521 = vdwg.mxu0
    %5522 = vmatpush.bf16.msra.mxu0 %v4244
    %5523 = vmatpush.bf16.msra.mxu0 %v4236
    %5524 = vmatpush.bf16.msra.mxu0 %v4228
    %5525 = vmatpush.bf16.msra.mxu0 %v4220
    %5526 = vmatpush.bf16.msra.mxu0 %v4212
    %5527 = vmatpush.bf16.msra.mxu0 %v4204
    %5528 = vmatpush.bf16.msra.mxu0 %v4196
    %5529 = vmatpush.bf16.msra.mxu0 %v4188
    %5530 = vmatmul.bf16.gmra.mxu0 %v1984
    %v5531 = vpop.f32.mrf.mxu0
    %v5532 = vadd.f32 %v5519, %v5531
    %v5533 = vpop.f32.mrf.mxu0
    %5534 = vdwg.mxu0
    %5535 = vmatpush.bf16.msra.mxu0 %v4308
    %5536 = vmatpush.bf16.msra.mxu0 %v4300
    %5537 = vmatpush.bf16.msra.mxu0 %v4292
    %5538 = vmatpush.bf16.msra.mxu0 %v4284
    %5539 = vmatpush.bf16.msra.mxu0 %v4276
    %5540 = vmatpush.bf16.msra.mxu0 %v4268
    %5541 = vmatpush.bf16.msra.mxu0 %v4260
    %5542 = vmatpush.bf16.msra.mxu0 %v4252
    %5543 = vmatmul.bf16.gmra.mxu0 %v1985
    %v5544 = vpop.f32.mrf.mxu0
    %v5545 = vadd.f32 %v5532, %v5544
    %v5546 = vpop.f32.mrf.mxu0
    %5547 = vdwg.mxu0
    %5548 = vmatpush.bf16.msra.mxu0 %v4372
    %5549 = vmatpush.bf16.msra.mxu0 %v4364
    %5550 = vmatpush.bf16.msra.mxu0 %v4356
    %5551 = vmatpush.bf16.msra.mxu0 %v4348
    %5552 = vmatpush.bf16.msra.mxu0 %v4340
    %5553 = vmatpush.bf16.msra.mxu0 %v4332
    %5554 = vmatpush.bf16.msra.mxu0 %v4324
    %5555 = vmatpush.bf16.msra.mxu0 %v4316
    %5556 = vmatmul.bf16.gmra.mxu0 %v1986
    %v5557 = vpop.f32.mrf.mxu0
    %v5558 = vadd.f32 %v5545, %v5557
    %v5559 = vpop.f32.mrf.mxu0
    %5560 = vdwg.mxu0
    %5561 = vmatpush.bf16.msra.mxu0 %v4436
    %5562 = vmatpush.bf16.msra.mxu0 %v4428
    %5563 = vmatpush.bf16.msra.mxu0 %v4420
    %5564 = vmatpush.bf16.msra.mxu0 %v4412
    %5565 = vmatpush.bf16.msra.mxu0 %v4404
    %5566 = vmatpush.bf16.msra.mxu0 %v4396
    %5567 = vmatpush.bf16.msra.mxu0 %v4388
    %5568 = vmatpush.bf16.msra.mxu0 %v4380
    %5569 = vmatmul.bf16.gmra.mxu0 %v1987
    %v5570 = vpop.f32.mrf.mxu0
    %v5571 = vadd.f32 %v5558, %v5570
    %v5572 = vpop.f32.mrf.mxu0
    %5573 = vdwg.mxu0
    %5574 = vmatpush.bf16.msra.mxu0 %v4500
    %5575 = vmatpush.bf16.msra.mxu0 %v4492
    %5576 = vmatpush.bf16.msra.mxu0 %v4484
    %5577 = vmatpush.bf16.msra.mxu0 %v4476
    %5578 = vmatpush.bf16.msra.mxu0 %v4468
    %5579 = vmatpush.bf16.msra.mxu0 %v4460
    %5580 = vmatpush.bf16.msra.mxu0 %v4452
    %5581 = vmatpush.bf16.msra.mxu0 %v4444
    %5582 = vmatmul.bf16.gmra.mxu0 %v1988
    %v5583 = vpop.f32.mrf.mxu0
    %v5584 = vadd.f32 %v5571, %v5583
    %v5585 = vpop.f32.mrf.mxu0
    %5586 = vdwg.mxu0
    %5587 = vmatpush.bf16.msra.mxu0 %v4564
    %5588 = vmatpush.bf16.msra.mxu0 %v4556
    %5589 = vmatpush.bf16.msra.mxu0 %v4548
    %5590 = vmatpush.bf16.msra.mxu0 %v4540
    %5591 = vmatpush.bf16.msra.mxu0 %v4532
    %5592 = vmatpush.bf16.msra.mxu0 %v4524
    %5593 = vmatpush.bf16.msra.mxu0 %v4516
    %5594 = vmatpush.bf16.msra.mxu0 %v4508
    %5595 = vmatmul.bf16.gmra.mxu0 %v1989
    %v5596 = vpop.f32.mrf.mxu0
    %v5597 = vadd.f32 %v5584, %v5596
    %v5598 = vpop.f32.mrf.mxu0
    %5599 = vdwg.mxu0
    %5600 = vmatpush.bf16.msra.mxu0 %v4117
    %5601 = vmatpush.bf16.msra.mxu0 %v4109
    %5602 = vmatpush.bf16.msra.mxu0 %v4101
    %5603 = vmatpush.bf16.msra.mxu0 %v4093
    %5604 = vmatpush.bf16.msra.mxu0 %v4085
    %5605 = vmatpush.bf16.msra.mxu0 %v4077
    %5606 = vmatpush.bf16.msra.mxu0 %v4069
    %5607 = vmatpush.bf16.msra.mxu0 %v4061
    %5608 = vmatmul.bf16.gmra.mxu0 %v1982
    %v5609 = vpop.f32.mrf.mxu0
    %v5610 = vadd.f32 %v2509, %v5609
    %v5611 = vpop.f32.mrf.mxu0
    %5612 = vdwg.mxu0
    %5613 = vmatpush.bf16.msra.mxu0 %v4181
    %5614 = vmatpush.bf16.msra.mxu0 %v4173
    %5615 = vmatpush.bf16.msra.mxu0 %v4165
    %5616 = vmatpush.bf16.msra.mxu0 %v4157
    %5617 = vmatpush.bf16.msra.mxu0 %v4149
    %5618 = vmatpush.bf16.msra.mxu0 %v4141
    %5619 = vmatpush.bf16.msra.mxu0 %v4133
    %5620 = vmatpush.bf16.msra.mxu0 %v4125
    %5621 = vmatmul.bf16.gmra.mxu0 %v1983
    %v5622 = vpop.f32.mrf.mxu0
    %v5623 = vadd.f32 %v5610, %v5622
    %v5624 = vpop.f32.mrf.mxu0
    %5625 = vdwg.mxu0
    %5626 = vmatpush.bf16.msra.mxu0 %v4245
    %5627 = vmatpush.bf16.msra.mxu0 %v4237
    %5628 = vmatpush.bf16.msra.mxu0 %v4229
    %5629 = vmatpush.bf16.msra.mxu0 %v4221
    %5630 = vmatpush.bf16.msra.mxu0 %v4213
    %5631 = vmatpush.bf16.msra.mxu0 %v4205
    %5632 = vmatpush.bf16.msra.mxu0 %v4197
    %5633 = vmatpush.bf16.msra.mxu0 %v4189
    %5634 = vmatmul.bf16.gmra.mxu0 %v1984
    %v5635 = vpop.f32.mrf.mxu0
    %v5636 = vadd.f32 %v5623, %v5635
    %v5637 = vpop.f32.mrf.mxu0
    %5638 = vdwg.mxu0
    %5639 = vmatpush.bf16.msra.mxu0 %v4309
    %5640 = vmatpush.bf16.msra.mxu0 %v4301
    %5641 = vmatpush.bf16.msra.mxu0 %v4293
    %5642 = vmatpush.bf16.msra.mxu0 %v4285
    %5643 = vmatpush.bf16.msra.mxu0 %v4277
    %5644 = vmatpush.bf16.msra.mxu0 %v4269
    %5645 = vmatpush.bf16.msra.mxu0 %v4261
    %5646 = vmatpush.bf16.msra.mxu0 %v4253
    %5647 = vmatmul.bf16.gmra.mxu0 %v1985
    %v5648 = vpop.f32.mrf.mxu0
    %v5649 = vadd.f32 %v5636, %v5648
    %v5650 = vpop.f32.mrf.mxu0
    %5651 = vdwg.mxu0
    %5652 = vmatpush.bf16.msra.mxu0 %v4373
    %5653 = vmatpush.bf16.msra.mxu0 %v4365
    %5654 = vmatpush.bf16.msra.mxu0 %v4357
    %5655 = vmatpush.bf16.msra.mxu0 %v4349
    %5656 = vmatpush.bf16.msra.mxu0 %v4341
    %5657 = vmatpush.bf16.msra.mxu0 %v4333
    %5658 = vmatpush.bf16.msra.mxu0 %v4325
    %5659 = vmatpush.bf16.msra.mxu0 %v4317
    %5660 = vmatmul.bf16.gmra.mxu0 %v1986
    %v5661 = vpop.f32.mrf.mxu0
    %v5662 = vadd.f32 %v5649, %v5661
    %v5663 = vpop.f32.mrf.mxu0
    %5664 = vdwg.mxu0
    %5665 = vmatpush.bf16.msra.mxu0 %v4437
    %5666 = vmatpush.bf16.msra.mxu0 %v4429
    %5667 = vmatpush.bf16.msra.mxu0 %v4421
    %5668 = vmatpush.bf16.msra.mxu0 %v4413
    %5669 = vmatpush.bf16.msra.mxu0 %v4405
    %5670 = vmatpush.bf16.msra.mxu0 %v4397
    %5671 = vmatpush.bf16.msra.mxu0 %v4389
    %5672 = vmatpush.bf16.msra.mxu0 %v4381
    %5673 = vmatmul.bf16.gmra.mxu0 %v1987
    %v5674 = vpop.f32.mrf.mxu0
    %v5675 = vadd.f32 %v5662, %v5674
    %v5676 = vpop.f32.mrf.mxu0
    %5677 = vdwg.mxu0
    %5678 = vmatpush.bf16.msra.mxu0 %v4501
    %5679 = vmatpush.bf16.msra.mxu0 %v4493
    %5680 = vmatpush.bf16.msra.mxu0 %v4485
    %5681 = vmatpush.bf16.msra.mxu0 %v4477
    %5682 = vmatpush.bf16.msra.mxu0 %v4469
    %5683 = vmatpush.bf16.msra.mxu0 %v4461
    %5684 = vmatpush.bf16.msra.mxu0 %v4453
    %5685 = vmatpush.bf16.msra.mxu0 %v4445
    %5686 = vmatmul.bf16.gmra.mxu0 %v1988
    %v5687 = vpop.f32.mrf.mxu0
    %v5688 = vadd.f32 %v5675, %v5687
    %v5689 = vpop.f32.mrf.mxu0
    %5690 = vdwg.mxu0
    %5691 = vmatpush.bf16.msra.mxu0 %v4565
    %5692 = vmatpush.bf16.msra.mxu0 %v4557
    %5693 = vmatpush.bf16.msra.mxu0 %v4549
    %5694 = vmatpush.bf16.msra.mxu0 %v4541
    %5695 = vmatpush.bf16.msra.mxu0 %v4533
    %5696 = vmatpush.bf16.msra.mxu0 %v4525
    %5697 = vmatpush.bf16.msra.mxu0 %v4517
    %5698 = vmatpush.bf16.msra.mxu0 %v4509
    %5699 = vmatmul.bf16.gmra.mxu0 %v1989
    %v5700 = vpop.f32.mrf.mxu0
    %v5701 = vadd.f32 %v5688, %v5700
    %v5702 = vpop.f32.mrf.mxu0
    %5703 = vdwg.mxu0
    %5704 = vmatpush.bf16.msra.mxu0 %v4118
    %5705 = vmatpush.bf16.msra.mxu0 %v4110
    %5706 = vmatpush.bf16.msra.mxu0 %v4102
    %5707 = vmatpush.bf16.msra.mxu0 %v4094
    %5708 = vmatpush.bf16.msra.mxu0 %v4086
    %5709 = vmatpush.bf16.msra.mxu0 %v4078
    %5710 = vmatpush.bf16.msra.mxu0 %v4070
    %5711 = vmatpush.bf16.msra.mxu0 %v4062
    %5712 = vmatmul.bf16.gmra.mxu0 %v1982
    %v5713 = vpop.f32.mrf.mxu0
    %v5714 = vadd.f32 %v2510, %v5713
    %v5715 = vpop.f32.mrf.mxu0
    %5716 = vdwg.mxu0
    %5717 = vmatpush.bf16.msra.mxu0 %v4182
    %5718 = vmatpush.bf16.msra.mxu0 %v4174
    %5719 = vmatpush.bf16.msra.mxu0 %v4166
    %5720 = vmatpush.bf16.msra.mxu0 %v4158
    %5721 = vmatpush.bf16.msra.mxu0 %v4150
    %5722 = vmatpush.bf16.msra.mxu0 %v4142
    %5723 = vmatpush.bf16.msra.mxu0 %v4134
    %5724 = vmatpush.bf16.msra.mxu0 %v4126
    %5725 = vmatmul.bf16.gmra.mxu0 %v1983
    %v5726 = vpop.f32.mrf.mxu0
    %v5727 = vadd.f32 %v5714, %v5726
    %v5728 = vpop.f32.mrf.mxu0
    %5729 = vdwg.mxu0
    %5730 = vmatpush.bf16.msra.mxu0 %v4246
    %5731 = vmatpush.bf16.msra.mxu0 %v4238
    %5732 = vmatpush.bf16.msra.mxu0 %v4230
    %5733 = vmatpush.bf16.msra.mxu0 %v4222
    %5734 = vmatpush.bf16.msra.mxu0 %v4214
    %5735 = vmatpush.bf16.msra.mxu0 %v4206
    %5736 = vmatpush.bf16.msra.mxu0 %v4198
    %5737 = vmatpush.bf16.msra.mxu0 %v4190
    %5738 = vmatmul.bf16.gmra.mxu0 %v1984
    %v5739 = vpop.f32.mrf.mxu0
    %v5740 = vadd.f32 %v5727, %v5739
    %v5741 = vpop.f32.mrf.mxu0
    %5742 = vdwg.mxu0
    %5743 = vmatpush.bf16.msra.mxu0 %v4310
    %5744 = vmatpush.bf16.msra.mxu0 %v4302
    %5745 = vmatpush.bf16.msra.mxu0 %v4294
    %5746 = vmatpush.bf16.msra.mxu0 %v4286
    %5747 = vmatpush.bf16.msra.mxu0 %v4278
    %5748 = vmatpush.bf16.msra.mxu0 %v4270
    %5749 = vmatpush.bf16.msra.mxu0 %v4262
    %5750 = vmatpush.bf16.msra.mxu0 %v4254
    %5751 = vmatmul.bf16.gmra.mxu0 %v1985
    %v5752 = vpop.f32.mrf.mxu0
    %v5753 = vadd.f32 %v5740, %v5752
    %v5754 = vpop.f32.mrf.mxu0
    %5755 = vdwg.mxu0
    %5756 = vmatpush.bf16.msra.mxu0 %v4374
    %5757 = vmatpush.bf16.msra.mxu0 %v4366
    %5758 = vmatpush.bf16.msra.mxu0 %v4358
    %5759 = vmatpush.bf16.msra.mxu0 %v4350
    %5760 = vmatpush.bf16.msra.mxu0 %v4342
    %5761 = vmatpush.bf16.msra.mxu0 %v4334
    %5762 = vmatpush.bf16.msra.mxu0 %v4326
    %5763 = vmatpush.bf16.msra.mxu0 %v4318
    %5764 = vmatmul.bf16.gmra.mxu0 %v1986
    %v5765 = vpop.f32.mrf.mxu0
    %v5766 = vadd.f32 %v5753, %v5765
    %v5767 = vpop.f32.mrf.mxu0
    %5768 = vdwg.mxu0
    %5769 = vmatpush.bf16.msra.mxu0 %v4438
    %5770 = vmatpush.bf16.msra.mxu0 %v4430
    %5771 = vmatpush.bf16.msra.mxu0 %v4422
    %5772 = vmatpush.bf16.msra.mxu0 %v4414
    %5773 = vmatpush.bf16.msra.mxu0 %v4406
    %5774 = vmatpush.bf16.msra.mxu0 %v4398
    %5775 = vmatpush.bf16.msra.mxu0 %v4390
    %5776 = vmatpush.bf16.msra.mxu0 %v4382
    %5777 = vmatmul.bf16.gmra.mxu0 %v1987
    %v5778 = vpop.f32.mrf.mxu0
    %v5779 = vadd.f32 %v5766, %v5778
    %v5780 = vpop.f32.mrf.mxu0
    %5781 = vdwg.mxu0
    %5782 = vmatpush.bf16.msra.mxu0 %v4502
    %5783 = vmatpush.bf16.msra.mxu0 %v4494
    %5784 = vmatpush.bf16.msra.mxu0 %v4486
    %5785 = vmatpush.bf16.msra.mxu0 %v4478
    %5786 = vmatpush.bf16.msra.mxu0 %v4470
    %5787 = vmatpush.bf16.msra.mxu0 %v4462
    %5788 = vmatpush.bf16.msra.mxu0 %v4454
    %5789 = vmatpush.bf16.msra.mxu0 %v4446
    %5790 = vmatmul.bf16.gmra.mxu0 %v1988
    %v5791 = vpop.f32.mrf.mxu0
    %v5792 = vadd.f32 %v5779, %v5791
    %v5793 = vpop.f32.mrf.mxu0
    %5794 = vdwg.mxu0
    %5795 = vmatpush.bf16.msra.mxu0 %v4566
    %5796 = vmatpush.bf16.msra.mxu0 %v4558
    %5797 = vmatpush.bf16.msra.mxu0 %v4550
    %5798 = vmatpush.bf16.msra.mxu0 %v4542
    %5799 = vmatpush.bf16.msra.mxu0 %v4534
    %5800 = vmatpush.bf16.msra.mxu0 %v4526
    %5801 = vmatpush.bf16.msra.mxu0 %v4518
    %5802 = vmatpush.bf16.msra.mxu0 %v4510
    %5803 = vmatmul.bf16.gmra.mxu0 %v1989
    %v5804 = vpop.f32.mrf.mxu0
    %v5805 = vadd.f32 %v5792, %v5804
    %v5806 = vpop.f32.mrf.mxu0
    %5807 = vdwg.mxu0
    %5808 = vmatpush.bf16.msra.mxu0 %v4119
    %5809 = vmatpush.bf16.msra.mxu0 %v4111
    %5810 = vmatpush.bf16.msra.mxu0 %v4103
    %5811 = vmatpush.bf16.msra.mxu0 %v4095
    %5812 = vmatpush.bf16.msra.mxu0 %v4087
    %5813 = vmatpush.bf16.msra.mxu0 %v4079
    %5814 = vmatpush.bf16.msra.mxu0 %v4071
    %5815 = vmatpush.bf16.msra.mxu0 %v4063
    %5816 = vmatmul.bf16.gmra.mxu0 %v1982
    %v5817 = vpop.f32.mrf.mxu0
    %v5818 = vadd.f32 %v2511, %v5817
    %v5819 = vpop.f32.mrf.mxu0
    %5820 = vdwg.mxu0
    %5821 = vmatpush.bf16.msra.mxu0 %v4183
    %5822 = vmatpush.bf16.msra.mxu0 %v4175
    %5823 = vmatpush.bf16.msra.mxu0 %v4167
    %5824 = vmatpush.bf16.msra.mxu0 %v4159
    %5825 = vmatpush.bf16.msra.mxu0 %v4151
    %5826 = vmatpush.bf16.msra.mxu0 %v4143
    %5827 = vmatpush.bf16.msra.mxu0 %v4135
    %5828 = vmatpush.bf16.msra.mxu0 %v4127
    %5829 = vmatmul.bf16.gmra.mxu0 %v1983
    %v5830 = vpop.f32.mrf.mxu0
    %v5831 = vadd.f32 %v5818, %v5830
    %v5832 = vpop.f32.mrf.mxu0
    %5833 = vdwg.mxu0
    %5834 = vmatpush.bf16.msra.mxu0 %v4247
    %5835 = vmatpush.bf16.msra.mxu0 %v4239
    %5836 = vmatpush.bf16.msra.mxu0 %v4231
    %5837 = vmatpush.bf16.msra.mxu0 %v4223
    %5838 = vmatpush.bf16.msra.mxu0 %v4215
    %5839 = vmatpush.bf16.msra.mxu0 %v4207
    %5840 = vmatpush.bf16.msra.mxu0 %v4199
    %5841 = vmatpush.bf16.msra.mxu0 %v4191
    %5842 = vmatmul.bf16.gmra.mxu0 %v1984
    %v5843 = vpop.f32.mrf.mxu0
    %v5844 = vadd.f32 %v5831, %v5843
    %v5845 = vpop.f32.mrf.mxu0
    %5846 = vdwg.mxu0
    %5847 = vmatpush.bf16.msra.mxu0 %v4311
    %5848 = vmatpush.bf16.msra.mxu0 %v4303
    %5849 = vmatpush.bf16.msra.mxu0 %v4295
    %5850 = vmatpush.bf16.msra.mxu0 %v4287
    %5851 = vmatpush.bf16.msra.mxu0 %v4279
    %5852 = vmatpush.bf16.msra.mxu0 %v4271
    %5853 = vmatpush.bf16.msra.mxu0 %v4263
    %5854 = vmatpush.bf16.msra.mxu0 %v4255
    %5855 = vmatmul.bf16.gmra.mxu0 %v1985
    %v5856 = vpop.f32.mrf.mxu0
    %v5857 = vadd.f32 %v5844, %v5856
    %v5858 = vpop.f32.mrf.mxu0
    %5859 = vdwg.mxu0
    %5860 = vmatpush.bf16.msra.mxu0 %v4375
    %5861 = vmatpush.bf16.msra.mxu0 %v4367
    %5862 = vmatpush.bf16.msra.mxu0 %v4359
    %5863 = vmatpush.bf16.msra.mxu0 %v4351
    %5864 = vmatpush.bf16.msra.mxu0 %v4343
    %5865 = vmatpush.bf16.msra.mxu0 %v4335
    %5866 = vmatpush.bf16.msra.mxu0 %v4327
    %5867 = vmatpush.bf16.msra.mxu0 %v4319
    %5868 = vmatmul.bf16.gmra.mxu0 %v1986
    %v5869 = vpop.f32.mrf.mxu0
    %v5870 = vadd.f32 %v5857, %v5869
    %v5871 = vpop.f32.mrf.mxu0
    %5872 = vdwg.mxu0
    %5873 = vmatpush.bf16.msra.mxu0 %v4439
    %5874 = vmatpush.bf16.msra.mxu0 %v4431
    %5875 = vmatpush.bf16.msra.mxu0 %v4423
    %5876 = vmatpush.bf16.msra.mxu0 %v4415
    %5877 = vmatpush.bf16.msra.mxu0 %v4407
    %5878 = vmatpush.bf16.msra.mxu0 %v4399
    %5879 = vmatpush.bf16.msra.mxu0 %v4391
    %5880 = vmatpush.bf16.msra.mxu0 %v4383
    %5881 = vmatmul.bf16.gmra.mxu0 %v1987
    %v5882 = vpop.f32.mrf.mxu0
    %v5883 = vadd.f32 %v5870, %v5882
    %v5884 = vpop.f32.mrf.mxu0
    %5885 = vdwg.mxu0
    %5886 = vmatpush.bf16.msra.mxu0 %v4503
    %5887 = vmatpush.bf16.msra.mxu0 %v4495
    %5888 = vmatpush.bf16.msra.mxu0 %v4487
    %5889 = vmatpush.bf16.msra.mxu0 %v4479
    %5890 = vmatpush.bf16.msra.mxu0 %v4471
    %5891 = vmatpush.bf16.msra.mxu0 %v4463
    %5892 = vmatpush.bf16.msra.mxu0 %v4455
    %5893 = vmatpush.bf16.msra.mxu0 %v4447
    %5894 = vmatmul.bf16.gmra.mxu0 %v1988
    %v5895 = vpop.f32.mrf.mxu0
    %v5896 = vadd.f32 %v5883, %v5895
    %v5897 = vpop.f32.mrf.mxu0
    %5898 = vdwg.mxu0
    %5899 = vmatpush.bf16.msra.mxu0 %v4567
    %5900 = vmatpush.bf16.msra.mxu0 %v4559
    %5901 = vmatpush.bf16.msra.mxu0 %v4551
    %5902 = vmatpush.bf16.msra.mxu0 %v4543
    %5903 = vmatpush.bf16.msra.mxu0 %v4535
    %5904 = vmatpush.bf16.msra.mxu0 %v4527
    %5905 = vmatpush.bf16.msra.mxu0 %v4519
    %5906 = vmatpush.bf16.msra.mxu0 %v4511
    %5907 = vmatmul.bf16.gmra.mxu0 %v1989
    %v5908 = vpop.f32.mrf.mxu0
    %v5909 = vadd.f32 %v5896, %v5908
    %v5910 = vpop.f32.mrf.mxu0
    %5911 = vdwg.mxu0
    %v5912 = vmax.f32 %v5181, 0.0
    %v5913 = vmax.f32 %v5285, 0.0
    %v5914 = vmax.f32 %v5389, 0.0
    %v5915 = vmax.f32 %v5493, 0.0
    %v5916 = vpack.c.bf16 %v5912, %v5912
    %v5917 = vpack.c.bf16 %v5913, %v5913
    %v5918 = vpack.c.bf16 %v5914, %v5914
    %v5919 = vpack.c.bf16 %v5915, %v5915
    %v5920 = vld [vmem:[#allocation23] sm:$0xff]
    %v5921 = vld [vmem:[#allocation23 + $0x8] sm:$0xff]
    %v5922 = vld [vmem:[#allocation23 + $0x10] sm:$0xff]
    %v5923 = vld [vmem:[#allocation23 + $0x18] sm:$0xff]
    %v5924 = vld [vmem:[#allocation23 + $0x20] sm:$0xff]
    %v5925 = vld [vmem:[#allocation23 + $0x28] sm:$0xff]
    %v5926 = vld [vmem:[#allocation23 + $0x30] sm:$0xff]
    %v5927 = vld [vmem:[#allocation23 + $0x38] sm:$0xff]
    %v5928 = vld [vmem:[#allocation23 + $0x40] sm:$0xff]
    %v5929 = vld [vmem:[#allocation23 + $0x48] sm:$0xff]
    %v5930 = vld [vmem:[#allocation23 + $0x50] sm:$0xff]
    %v5931 = vld [vmem:[#allocation23 + $0x58] sm:$0xff]
    %v5932 = vld [vmem:[#allocation23 + $0x60] sm:$0xff]
    %v5933 = vld [vmem:[#allocation23 + $0x68] sm:$0xff]
    %v5934 = vld [vmem:[#allocation23 + $0x70] sm:$0xff]
    %v5935 = vld [vmem:[#allocation23 + $0x78] sm:$0xff]
    %v5936 = vld [vmem:[#allocation23 + $0x80] sm:$0xff]
    %v5937 = vld [vmem:[#allocation23 + $0x88] sm:$0xff]
    %v5938 = vld [vmem:[#allocation23 + $0x90] sm:$0xff]
    %v5939 = vld [vmem:[#allocation23 + $0x98] sm:$0xff]
    %v5940 = vld [vmem:[#allocation23 + $0xa0] sm:$0xff]
    %v5941 = vld [vmem:[#allocation23 + $0xa8] sm:$0xff]
    %v5942 = vld [vmem:[#allocation23 + $0xb0] sm:$0xff]
    %v5943 = vld [vmem:[#allocation23 + $0xb8] sm:$0xff]
    %v5944 = vld [vmem:[#allocation23 + $0xc0] sm:$0xff]
    %v5945 = vld [vmem:[#allocation23 + $0xc8] sm:$0xff]
    %v5946 = vld [vmem:[#allocation23 + $0xd0] sm:$0xff]
    %v5947 = vld [vmem:[#allocation23 + $0xd8] sm:$0xff]
    %v5948 = vld [vmem:[#allocation23 + $0xe0] sm:$0xff]
    %v5949 = vld [vmem:[#allocation23 + $0xe8] sm:$0xff]
    %v5950 = vld [vmem:[#allocation23 + $0xf0] sm:$0xff]
    %v5951 = vld [vmem:[#allocation23 + $0xf8] sm:$0xff]
    %v5952 = vld [vmem:[#allocation23 + $0x100] sm:$0xff]
    %v5953 = vld [vmem:[#allocation23 + $0x108] sm:$0xff]
    %v5954 = vld [vmem:[#allocation23 + $0x110] sm:$0xff]
    %v5955 = vld [vmem:[#allocation23 + $0x118] sm:$0xff]
    %v5956 = vld [vmem:[#allocation23 + $0x120] sm:$0xff]
    %v5957 = vld [vmem:[#allocation23 + $0x128] sm:$0xff]
    %v5958 = vld [vmem:[#allocation23 + $0x130] sm:$0xff]
    %v5959 = vld [vmem:[#allocation23 + $0x138] sm:$0xff]
    %v5960 = vld [vmem:[#allocation23 + $0x140] sm:$0xff]
    %v5961 = vld [vmem:[#allocation23 + $0x148] sm:$0xff]
    %v5962 = vld [vmem:[#allocation23 + $0x150] sm:$0xff]
    %v5963 = vld [vmem:[#allocation23 + $0x158] sm:$0xff]
    %v5964 = vld [vmem:[#allocation23 + $0x160] sm:$0xff]
    %v5965 = vld [vmem:[#allocation23 + $0x168] sm:$0xff]
    %v5966 = vld [vmem:[#allocation23 + $0x170] sm:$0xff]
    %v5967 = vld [vmem:[#allocation23 + $0x178] sm:$0xff]
    %v5968 = vld [vmem:[#allocation23 + $0x180] sm:$0xff]
    %v5969 = vld [vmem:[#allocation23 + $0x188] sm:$0xff]
    %v5970 = vld [vmem:[#allocation23 + $0x190] sm:$0xff]
    %v5971 = vld [vmem:[#allocation23 + $0x198] sm:$0xff]
    %v5972 = vld [vmem:[#allocation23 + $0x1a0] sm:$0xff]
    %v5973 = vld [vmem:[#allocation23 + $0x1a8] sm:$0xff]
    %v5974 = vld [vmem:[#allocation23 + $0x1b0] sm:$0xff]
    %v5975 = vld [vmem:[#allocation23 + $0x1b8] sm:$0xff]
    %v5976 = vld [vmem:[#allocation23 + $0x1c0] sm:$0xff]
    %v5977 = vld [vmem:[#allocation23 + $0x1c8] sm:$0xff]
    %v5978 = vld [vmem:[#allocation23 + $0x1d0] sm:$0xff]
    %v5979 = vld [vmem:[#allocation23 + $0x1d8] sm:$0xff]
    %v5980 = vld [vmem:[#allocation23 + $0x1e0] sm:$0xff]
    %v5981 = vld [vmem:[#allocation23 + $0x1e8] sm:$0xff]
    %v5982 = vld [vmem:[#allocation23 + $0x1f0] sm:$0xff]
    %v5983 = vld [vmem:[#allocation23 + $0x1f8] sm:$0xff]
    %v5984 = vld [vmem:[#allocation23 + $0x200] sm:$0xff]
    %v5985 = vld [vmem:[#allocation23 + $0x208] sm:$0xff]
    %v5986 = vld [vmem:[#allocation23 + $0x210] sm:$0xff]
    %v5987 = vld [vmem:[#allocation23 + $0x218] sm:$0xff]
    %v5988 = vld [vmem:[#allocation23 + $0x220] sm:$0xff]
    %v5989 = vld [vmem:[#allocation23 + $0x228] sm:$0xff]
    %v5990 = vld [vmem:[#allocation23 + $0x230] sm:$0xff]
    %v5991 = vld [vmem:[#allocation23 + $0x238] sm:$0xff]
    %v5992 = vld [vmem:[#allocation23 + $0x240] sm:$0xff]
    %v5993 = vld [vmem:[#allocation23 + $0x248] sm:$0xff]
    %v5994 = vld [vmem:[#allocation23 + $0x250] sm:$0xff]
    %v5995 = vld [vmem:[#allocation23 + $0x258] sm:$0xff]
    %v5996 = vld [vmem:[#allocation23 + $0x260] sm:$0xff]
    %v5997 = vld [vmem:[#allocation23 + $0x268] sm:$0xff]
    %v5998 = vld [vmem:[#allocation23 + $0x270] sm:$0xff]
    %v5999 = vld [vmem:[#allocation23 + $0x278] sm:$0xff]
    %v6000 = vld [vmem:[#allocation23 + $0x280] sm:$0xff]
    %v6001 = vld [vmem:[#allocation23 + $0x288] sm:$0xff]
    %v6002 = vld [vmem:[#allocation23 + $0x290] sm:$0xff]
    %v6003 = vld [vmem:[#allocation23 + $0x298] sm:$0xff]
    %v6004 = vld [vmem:[#allocation23 + $0x2a0] sm:$0xff]
    %v6005 = vld [vmem:[#allocation23 + $0x2a8] sm:$0xff]
    %v6006 = vld [vmem:[#allocation23 + $0x2b0] sm:$0xff]
    %v6007 = vld [vmem:[#allocation23 + $0x2b8] sm:$0xff]
    %v6008 = vld [vmem:[#allocation23 + $0x2c0] sm:$0xff]
    %v6009 = vld [vmem:[#allocation23 + $0x2c8] sm:$0xff]
    %v6010 = vld [vmem:[#allocation23 + $0x2d0] sm:$0xff]
    %v6011 = vld [vmem:[#allocation23 + $0x2d8] sm:$0xff]
    %v6012 = vld [vmem:[#allocation23 + $0x2e0] sm:$0xff]
    %v6013 = vld [vmem:[#allocation23 + $0x2e8] sm:$0xff]
    %v6014 = vld [vmem:[#allocation23 + $0x2f0] sm:$0xff]
    %v6015 = vld [vmem:[#allocation23 + $0x2f8] sm:$0xff]
    %v6016 = vld [vmem:[#allocation23 + $0x300] sm:$0xff]
    %v6017 = vld [vmem:[#allocation23 + $0x308] sm:$0xff]
    %v6018 = vld [vmem:[#allocation23 + $0x310] sm:$0xff]
    %v6019 = vld [vmem:[#allocation23 + $0x318] sm:$0xff]
    %v6020 = vld [vmem:[#allocation23 + $0x320] sm:$0xff]
    %v6021 = vld [vmem:[#allocation23 + $0x328] sm:$0xff]
    %v6022 = vld [vmem:[#allocation23 + $0x330] sm:$0xff]
    %v6023 = vld [vmem:[#allocation23 + $0x338] sm:$0xff]
    %v6024 = vld [vmem:[#allocation23 + $0x340] sm:$0xff]
    %v6025 = vld [vmem:[#allocation23 + $0x348] sm:$0xff]
    %v6026 = vld [vmem:[#allocation23 + $0x350] sm:$0xff]
    %v6027 = vld [vmem:[#allocation23 + $0x358] sm:$0xff]
    %v6028 = vld [vmem:[#allocation23 + $0x360] sm:$0xff]
    %v6029 = vld [vmem:[#allocation23 + $0x368] sm:$0xff]
    %v6030 = vld [vmem:[#allocation23 + $0x370] sm:$0xff]
    %v6031 = vld [vmem:[#allocation23 + $0x378] sm:$0xff]
    %v6032 = vld [vmem:[#allocation23 + $0x380] sm:$0xff]
    %v6033 = vld [vmem:[#allocation23 + $0x388] sm:$0xff]
    %v6034 = vld [vmem:[#allocation23 + $0x390] sm:$0xff]
    %v6035 = vld [vmem:[#allocation23 + $0x398] sm:$0xff]
    %v6036 = vld [vmem:[#allocation23 + $0x3a0] sm:$0xff]
    %v6037 = vld [vmem:[#allocation23 + $0x3a8] sm:$0xff]
    %v6038 = vld [vmem:[#allocation23 + $0x3b0] sm:$0xff]
    %v6039 = vld [vmem:[#allocation23 + $0x3b8] sm:$0xff]
    %v6040 = vld [vmem:[#allocation23 + $0x3c0] sm:$0xff]
    %v6041 = vld [vmem:[#allocation23 + $0x3c8] sm:$0xff]
    %v6042 = vld [vmem:[#allocation23 + $0x3d0] sm:$0xff]
    %v6043 = vld [vmem:[#allocation23 + $0x3d8] sm:$0xff]
    %v6044 = vld [vmem:[#allocation23 + $0x3e0] sm:$0xff]
    %v6045 = vld [vmem:[#allocation23 + $0x3e8] sm:$0xff]
    %v6046 = vld [vmem:[#allocation23 + $0x3f0] sm:$0xff]
    %v6047 = vld [vmem:[#allocation23 + $0x3f8] sm:$0xff]
    %v6048 = vld [vmem:[#allocation24] sm:$0xf]
    %v6050 = vperm.slane %v6048, 0
    %v6051 = vperm.slane %v6048, 1
    %v6052 = vperm.slane %v6048, 2
    %v6053 = vperm.slane %v6048, 3
    %v6186 = vunpack.c.l.b16 %v5920
    %v6187 = vunpack.c.h.b16 %v5920
    %v6188 = vunpack.c.l.b16 %v5921
    %v6189 = vunpack.c.h.b16 %v5921
    %v6190 = vunpack.c.l.b16 %v5922
    %v6191 = vunpack.c.h.b16 %v5922
    %v6192 = vunpack.c.l.b16 %v5923
    %v6193 = vunpack.c.h.b16 %v5923
    %v6194 = vunpack.c.l.b16 %v5924
    %v6195 = vunpack.c.h.b16 %v5924
    %v6196 = vunpack.c.l.b16 %v5925
    %v6197 = vunpack.c.h.b16 %v5925
    %v6198 = vunpack.c.l.b16 %v5926
    %v6199 = vunpack.c.h.b16 %v5926
    %v6200 = vunpack.c.l.b16 %v5927
    %v6201 = vunpack.c.h.b16 %v5927
    %v6202 = vunpack.c.l.b16 %v5928
    %v6203 = vunpack.c.h.b16 %v5928
    %v6204 = vunpack.c.l.b16 %v5929
    %v6205 = vunpack.c.h.b16 %v5929
    %v6206 = vunpack.c.l.b16 %v5930
    %v6207 = vunpack.c.h.b16 %v5930
    %v6208 = vunpack.c.l.b16 %v5931
    %v6209 = vunpack.c.h.b16 %v5931
    %v6210 = vunpack.c.l.b16 %v5932
    %v6211 = vunpack.c.h.b16 %v5932
    %v6212 = vunpack.c.l.b16 %v5933
    %v6213 = vunpack.c.h.b16 %v5933
    %v6214 = vunpack.c.l.b16 %v5934
    %v6215 = vunpack.c.h.b16 %v5934
    %v6216 = vunpack.c.l.b16 %v5935
    %v6217 = vunpack.c.h.b16 %v5935
    %v6218 = vunpack.c.l.b16 %v5936
    %v6219 = vunpack.c.h.b16 %v5936
    %v6220 = vunpack.c.l.b16 %v5937
    %v6221 = vunpack.c.h.b16 %v5937
    %v6222 = vunpack.c.l.b16 %v5938
    %v6223 = vunpack.c.h.b16 %v5938
    %v6224 = vunpack.c.l.b16 %v5939
    %v6225 = vunpack.c.h.b16 %v5939
    %v6226 = vunpack.c.l.b16 %v5940
    %v6227 = vunpack.c.h.b16 %v5940
    %v6228 = vunpack.c.l.b16 %v5941
    %v6229 = vunpack.c.h.b16 %v5941
    %v6230 = vunpack.c.l.b16 %v5942
    %v6231 = vunpack.c.h.b16 %v5942
    %v6232 = vunpack.c.l.b16 %v5943
    %v6233 = vunpack.c.h.b16 %v5943
    %v6234 = vunpack.c.l.b16 %v5944
    %v6235 = vunpack.c.h.b16 %v5944
    %v6236 = vunpack.c.l.b16 %v5945
    %v6237 = vunpack.c.h.b16 %v5945
    %v6238 = vunpack.c.l.b16 %v5946
    %v6239 = vunpack.c.h.b16 %v5946
    %v6240 = vunpack.c.l.b16 %v5947
    %v6241 = vunpack.c.h.b16 %v5947
    %v6242 = vunpack.c.l.b16 %v5948
    %v6243 = vunpack.c.h.b16 %v5948
    %v6244 = vunpack.c.l.b16 %v5949
    %v6245 = vunpack.c.h.b16 %v5949
    %v6246 = vunpack.c.l.b16 %v5950
    %v6247 = vunpack.c.h.b16 %v5950
    %v6248 = vunpack.c.l.b16 %v5951
    %v6249 = vunpack.c.h.b16 %v5951
    %v6250 = vunpack.c.l.b16 %v5952
    %v6251 = vunpack.c.h.b16 %v5952
    %v6252 = vunpack.c.l.b16 %v5953
    %v6253 = vunpack.c.h.b16 %v5953
    %v6254 = vunpack.c.l.b16 %v5954
    %v6255 = vunpack.c.h.b16 %v5954
    %v6256 = vunpack.c.l.b16 %v5955
    %v6257 = vunpack.c.h.b16 %v5955
    %v6258 = vunpack.c.l.b16 %v5956
    %v6259 = vunpack.c.h.b16 %v5956
    %v6260 = vunpack.c.l.b16 %v5957
    %v6261 = vunpack.c.h.b16 %v5957
    %v6262 = vunpack.c.l.b16 %v5958
    %v6263 = vunpack.c.h.b16 %v5958
    %v6264 = vunpack.c.l.b16 %v5959
    %v6265 = vunpack.c.h.b16 %v5959
    %v6266 = vunpack.c.l.b16 %v5960
    %v6267 = vunpack.c.h.b16 %v5960
    %v6268 = vunpack.c.l.b16 %v5961
    %v6269 = vunpack.c.h.b16 %v5961
    %v6270 = vunpack.c.l.b16 %v5962
    %v6271 = vunpack.c.h.b16 %v5962
    %v6272 = vunpack.c.l.b16 %v5963
    %v6273 = vunpack.c.h.b16 %v5963
    %v6274 = vunpack.c.l.b16 %v5964
    %v6275 = vunpack.c.h.b16 %v5964
    %v6276 = vunpack.c.l.b16 %v5965
    %v6277 = vunpack.c.h.b16 %v5965
    %v6278 = vunpack.c.l.b16 %v5966
    %v6279 = vunpack.c.h.b16 %v5966
    %v6280 = vunpack.c.l.b16 %v5967
    %v6281 = vunpack.c.h.b16 %v5967
    %v6282 = vunpack.c.l.b16 %v5968
    %v6283 = vunpack.c.h.b16 %v5968
    %v6284 = vunpack.c.l.b16 %v5969
    %v6285 = vunpack.c.h.b16 %v5969
    %v6286 = vunpack.c.l.b16 %v5970
    %v6287 = vunpack.c.h.b16 %v5970
    %v6288 = vunpack.c.l.b16 %v5971
    %v6289 = vunpack.c.h.b16 %v5971
    %v6290 = vunpack.c.l.b16 %v5972
    %v6291 = vunpack.c.h.b16 %v5972
    %v6292 = vunpack.c.l.b16 %v5973
    %v6293 = vunpack.c.h.b16 %v5973
    %v6294 = vunpack.c.l.b16 %v5974
    %v6295 = vunpack.c.h.b16 %v5974
    %v6296 = vunpack.c.l.b16 %v5975
    %v6297 = vunpack.c.h.b16 %v5975
    %v6298 = vunpack.c.l.b16 %v5976
    %v6299 = vunpack.c.h.b16 %v5976
    %v6300 = vunpack.c.l.b16 %v5977
    %v6301 = vunpack.c.h.b16 %v5977
    %v6302 = vunpack.c.l.b16 %v5978
    %v6303 = vunpack.c.h.b16 %v5978
    %v6304 = vunpack.c.l.b16 %v5979
    %v6305 = vunpack.c.h.b16 %v5979
    %v6306 = vunpack.c.l.b16 %v5980
    %v6307 = vunpack.c.h.b16 %v5980
    %v6308 = vunpack.c.l.b16 %v5981
    %v6309 = vunpack.c.h.b16 %v5981
    %v6310 = vunpack.c.l.b16 %v5982
    %v6311 = vunpack.c.h.b16 %v5982
    %v6312 = vunpack.c.l.b16 %v5983
    %v6313 = vunpack.c.h.b16 %v5983
    %v6314 = vunpack.c.l.b16 %v5984
    %v6315 = vunpack.c.h.b16 %v5984
    %v6316 = vunpack.c.l.b16 %v5985
    %v6317 = vunpack.c.h.b16 %v5985
    %v6318 = vunpack.c.l.b16 %v5986
    %v6319 = vunpack.c.h.b16 %v5986
    %v6320 = vunpack.c.l.b16 %v5987
    %v6321 = vunpack.c.h.b16 %v5987
    %v6322 = vunpack.c.l.b16 %v5988
    %v6323 = vunpack.c.h.b16 %v5988
    %v6324 = vunpack.c.l.b16 %v5989
    %v6325 = vunpack.c.h.b16 %v5989
    %v6326 = vunpack.c.l.b16 %v5990
    %v6327 = vunpack.c.h.b16 %v5990
    %v6328 = vunpack.c.l.b16 %v5991
    %v6329 = vunpack.c.h.b16 %v5991
    %v6330 = vunpack.c.l.b16 %v5992
    %v6331 = vunpack.c.h.b16 %v5992
    %v6332 = vunpack.c.l.b16 %v5993
    %v6333 = vunpack.c.h.b16 %v5993
    %v6334 = vunpack.c.l.b16 %v5994
    %v6335 = vunpack.c.h.b16 %v5994
    %v6336 = vunpack.c.l.b16 %v5995
    %v6337 = vunpack.c.h.b16 %v5995
    %v6338 = vunpack.c.l.b16 %v5996
    %v6339 = vunpack.c.h.b16 %v5996
    %v6340 = vunpack.c.l.b16 %v5997
    %v6341 = vunpack.c.h.b16 %v5997
    %v6342 = vunpack.c.l.b16 %v5998
    %v6343 = vunpack.c.h.b16 %v5998
    %v6344 = vunpack.c.l.b16 %v5999
    %v6345 = vunpack.c.h.b16 %v5999
    %v6346 = vunpack.c.l.b16 %v6000
    %v6347 = vunpack.c.h.b16 %v6000
    %v6348 = vunpack.c.l.b16 %v6001
    %v6349 = vunpack.c.h.b16 %v6001
    %v6350 = vunpack.c.l.b16 %v6002
    %v6351 = vunpack.c.h.b16 %v6002
    %v6352 = vunpack.c.l.b16 %v6003
    %v6353 = vunpack.c.h.b16 %v6003
    %v6354 = vunpack.c.l.b16 %v6004
    %v6355 = vunpack.c.h.b16 %v6004
    %v6356 = vunpack.c.l.b16 %v6005
    %v6357 = vunpack.c.h.b16 %v6005
    %v6358 = vunpack.c.l.b16 %v6006
    %v6359 = vunpack.c.h.b16 %v6006
    %v6360 = vunpack.c.l.b16 %v6007
    %v6361 = vunpack.c.h.b16 %v6007
    %v6362 = vunpack.c.l.b16 %v6008
    %v6363 = vunpack.c.h.b16 %v6008
    %v6364 = vunpack.c.l.b16 %v6009
    %v6365 = vunpack.c.h.b16 %v6009
    %v6366 = vunpack.c.l.b16 %v6010
    %v6367 = vunpack.c.h.b16 %v6010
    %v6368 = vunpack.c.l.b16 %v6011
    %v6369 = vunpack.c.h.b16 %v6011
    %v6370 = vunpack.c.l.b16 %v6012
    %v6371 = vunpack.c.h.b16 %v6012
    %v6372 = vunpack.c.l.b16 %v6013
    %v6373 = vunpack.c.h.b16 %v6013
    %v6374 = vunpack.c.l.b16 %v6014
    %v6375 = vunpack.c.h.b16 %v6014
    %v6376 = vunpack.c.l.b16 %v6015
    %v6377 = vunpack.c.h.b16 %v6015
    %v6378 = vunpack.c.l.b16 %v6016
    %v6379 = vunpack.c.h.b16 %v6016
    %v6380 = vunpack.c.l.b16 %v6017
    %v6381 = vunpack.c.h.b16 %v6017
    %v6382 = vunpack.c.l.b16 %v6018
    %v6383 = vunpack.c.h.b16 %v6018
    %v6384 = vunpack.c.l.b16 %v6019
    %v6385 = vunpack.c.h.b16 %v6019
    %v6386 = vunpack.c.l.b16 %v6020
    %v6387 = vunpack.c.h.b16 %v6020
    %v6388 = vunpack.c.l.b16 %v6021
    %v6389 = vunpack.c.h.b16 %v6021
    %v6390 = vunpack.c.l.b16 %v6022
    %v6391 = vunpack.c.h.b16 %v6022
    %v6392 = vunpack.c.l.b16 %v6023
    %v6393 = vunpack.c.h.b16 %v6023
    %v6394 = vunpack.c.l.b16 %v6024
    %v6395 = vunpack.c.h.b16 %v6024
    %v6396 = vunpack.c.l.b16 %v6025
    %v6397 = vunpack.c.h.b16 %v6025
    %v6398 = vunpack.c.l.b16 %v6026
    %v6399 = vunpack.c.h.b16 %v6026
    %v6400 = vunpack.c.l.b16 %v6027
    %v6401 = vunpack.c.h.b16 %v6027
    %v6402 = vunpack.c.l.b16 %v6028
    %v6403 = vunpack.c.h.b16 %v6028
    %v6404 = vunpack.c.l.b16 %v6029
    %v6405 = vunpack.c.h.b16 %v6029
    %v6406 = vunpack.c.l.b16 %v6030
    %v6407 = vunpack.c.h.b16 %v6030
    %v6408 = vunpack.c.l.b16 %v6031
    %v6409 = vunpack.c.h.b16 %v6031
    %v6410 = vunpack.c.l.b16 %v6032
    %v6411 = vunpack.c.h.b16 %v6032
    %v6412 = vunpack.c.l.b16 %v6033
    %v6413 = vunpack.c.h.b16 %v6033
    %v6414 = vunpack.c.l.b16 %v6034
    %v6415 = vunpack.c.h.b16 %v6034
    %v6416 = vunpack.c.l.b16 %v6035
    %v6417 = vunpack.c.h.b16 %v6035
    %v6418 = vunpack.c.l.b16 %v6036
    %v6419 = vunpack.c.h.b16 %v6036
    %v6420 = vunpack.c.l.b16 %v6037
    %v6421 = vunpack.c.h.b16 %v6037
    %v6422 = vunpack.c.l.b16 %v6038
    %v6423 = vunpack.c.h.b16 %v6038
    %v6424 = vunpack.c.l.b16 %v6039
    %v6425 = vunpack.c.h.b16 %v6039
    %v6426 = vunpack.c.l.b16 %v6040
    %v6427 = vunpack.c.h.b16 %v6040
    %v6428 = vunpack.c.l.b16 %v6041
    %v6429 = vunpack.c.h.b16 %v6041
    %v6430 = vunpack.c.l.b16 %v6042
    %v6431 = vunpack.c.h.b16 %v6042
    %v6432 = vunpack.c.l.b16 %v6043
    %v6433 = vunpack.c.h.b16 %v6043
    %v6434 = vunpack.c.l.b16 %v6044
    %v6435 = vunpack.c.h.b16 %v6044
    %v6436 = vunpack.c.l.b16 %v6045
    %v6437 = vunpack.c.h.b16 %v6045
    %v6438 = vunpack.c.l.b16 %v6046
    %v6439 = vunpack.c.h.b16 %v6046
    %v6440 = vunpack.c.l.b16 %v6047
    %v6441 = vunpack.c.h.b16 %v6047
    %v6442 = vpack.c.b16 %v6190, %v6186
    %v6443 = vpack.c.b16 %v6191, %v6187
    %v6444 = vpack.c.b16 %v6192, %v6188
    %v6445 = vpack.c.b16 %v6193, %v6189
    %v6446 = vpack.c.b16 %v6198, %v6194
    %v6447 = vpack.c.b16 %v6199, %v6195
    %v6448 = vpack.c.b16 %v6200, %v6196
    %v6449 = vpack.c.b16 %v6201, %v6197
    %v6450 = vpack.c.b16 %v6206, %v6202
    %v6451 = vpack.c.b16 %v6207, %v6203
    %v6452 = vpack.c.b16 %v6208, %v6204
    %v6453 = vpack.c.b16 %v6209, %v6205
    %v6454 = vpack.c.b16 %v6214, %v6210
    %v6455 = vpack.c.b16 %v6215, %v6211
    %v6456 = vpack.c.b16 %v6216, %v6212
    %v6457 = vpack.c.b16 %v6217, %v6213
    %v6458 = vpack.c.b16 %v6222, %v6218
    %v6459 = vpack.c.b16 %v6223, %v6219
    %v6460 = vpack.c.b16 %v6224, %v6220
    %v6461 = vpack.c.b16 %v6225, %v6221
    %v6462 = vpack.c.b16 %v6230, %v6226
    %v6463 = vpack.c.b16 %v6231, %v6227
    %v6464 = vpack.c.b16 %v6232, %v6228
    %v6465 = vpack.c.b16 %v6233, %v6229
    %v6466 = vpack.c.b16 %v6238, %v6234
    %v6467 = vpack.c.b16 %v6239, %v6235
    %v6468 = vpack.c.b16 %v6240, %v6236
    %v6469 = vpack.c.b16 %v6241, %v6237
    %v6470 = vpack.c.b16 %v6246, %v6242
    %v6471 = vpack.c.b16 %v6247, %v6243
    %v6472 = vpack.c.b16 %v6248, %v6244
    %v6473 = vpack.c.b16 %v6249, %v6245
    %v6474 = vpack.c.b16 %v6254, %v6250
    %v6475 = vpack.c.b16 %v6255, %v6251
    %v6476 = vpack.c.b16 %v6256, %v6252
    %v6477 = vpack.c.b16 %v6257, %v6253
    %v6478 = vpack.c.b16 %v6262, %v6258
    %v6479 = vpack.c.b16 %v6263, %v6259
    %v6480 = vpack.c.b16 %v6264, %v6260
    %v6481 = vpack.c.b16 %v6265, %v6261
    %v6482 = vpack.c.b16 %v6270, %v6266
    %v6483 = vpack.c.b16 %v6271, %v6267
    %v6484 = vpack.c.b16 %v6272, %v6268
    %v6485 = vpack.c.b16 %v6273, %v6269
    %v6486 = vpack.c.b16 %v6278, %v6274
    %v6487 = vpack.c.b16 %v6279, %v6275
    %v6488 = vpack.c.b16 %v6280, %v6276
    %v6489 = vpack.c.b16 %v6281, %v6277
    %v6490 = vpack.c.b16 %v6286, %v6282
    %v6491 = vpack.c.b16 %v6287, %v6283
    %v6492 = vpack.c.b16 %v6288, %v6284
    %v6493 = vpack.c.b16 %v6289, %v6285
    %v6494 = vpack.c.b16 %v6294, %v6290
    %v6495 = vpack.c.b16 %v6295, %v6291
    %v6496 = vpack.c.b16 %v6296, %v6292
    %v6497 = vpack.c.b16 %v6297, %v6293
    %v6498 = vpack.c.b16 %v6302, %v6298
    %v6499 = vpack.c.b16 %v6303, %v6299
    %v6500 = vpack.c.b16 %v6304, %v6300
    %v6501 = vpack.c.b16 %v6305, %v6301
    %v6502 = vpack.c.b16 %v6310, %v6306
    %v6503 = vpack.c.b16 %v6311, %v6307
    %v6504 = vpack.c.b16 %v6312, %v6308
    %v6505 = vpack.c.b16 %v6313, %v6309
    %v6506 = vpack.c.b16 %v6318, %v6314
    %v6507 = vpack.c.b16 %v6319, %v6315
    %v6508 = vpack.c.b16 %v6320, %v6316
    %v6509 = vpack.c.b16 %v6321, %v6317
    %v6510 = vpack.c.b16 %v6326, %v6322
    %v6511 = vpack.c.b16 %v6327, %v6323
    %v6512 = vpack.c.b16 %v6328, %v6324
    %v6513 = vpack.c.b16 %v6329, %v6325
    %v6514 = vpack.c.b16 %v6334, %v6330
    %v6515 = vpack.c.b16 %v6335, %v6331
    %v6516 = vpack.c.b16 %v6336, %v6332
    %v6517 = vpack.c.b16 %v6337, %v6333
    %v6518 = vpack.c.b16 %v6342, %v6338
    %v6519 = vpack.c.b16 %v6343, %v6339
    %v6520 = vpack.c.b16 %v6344, %v6340
    %v6521 = vpack.c.b16 %v6345, %v6341
    %v6522 = vpack.c.b16 %v6350, %v6346
    %v6523 = vpack.c.b16 %v6351, %v6347
    %v6524 = vpack.c.b16 %v6352, %v6348
    %v6525 = vpack.c.b16 %v6353, %v6349
    %v6526 = vpack.c.b16 %v6358, %v6354
    %v6527 = vpack.c.b16 %v6359, %v6355
    %v6528 = vpack.c.b16 %v6360, %v6356
    %v6529 = vpack.c.b16 %v6361, %v6357
    %v6530 = vpack.c.b16 %v6366, %v6362
    %v6531 = vpack.c.b16 %v6367, %v6363
    %v6532 = vpack.c.b16 %v6368, %v6364
    %v6533 = vpack.c.b16 %v6369, %v6365
    %v6534 = vpack.c.b16 %v6374, %v6370
    %v6535 = vpack.c.b16 %v6375, %v6371
    %v6536 = vpack.c.b16 %v6376, %v6372
    %v6537 = vpack.c.b16 %v6377, %v6373
    %v6538 = vpack.c.b16 %v6382, %v6378
    %v6539 = vpack.c.b16 %v6383, %v6379
    %v6540 = vpack.c.b16 %v6384, %v6380
    %v6541 = vpack.c.b16 %v6385, %v6381
    %v6542 = vpack.c.b16 %v6390, %v6386
    %v6543 = vpack.c.b16 %v6391, %v6387
    %v6544 = vpack.c.b16 %v6392, %v6388
    %v6545 = vpack.c.b16 %v6393, %v6389
    %v6546 = vpack.c.b16 %v6398, %v6394
    %v6547 = vpack.c.b16 %v6399, %v6395
    %v6548 = vpack.c.b16 %v6400, %v6396
    %v6549 = vpack.c.b16 %v6401, %v6397
    %v6550 = vpack.c.b16 %v6406, %v6402
    %v6551 = vpack.c.b16 %v6407, %v6403
    %v6552 = vpack.c.b16 %v6408, %v6404
    %v6553 = vpack.c.b16 %v6409, %v6405
    %v6554 = vpack.c.b16 %v6414, %v6410
    %v6555 = vpack.c.b16 %v6415, %v6411
    %v6556 = vpack.c.b16 %v6416, %v6412
    %v6557 = vpack.c.b16 %v6417, %v6413
    %v6558 = vpack.c.b16 %v6422, %v6418
    %v6559 = vpack.c.b16 %v6423, %v6419
    %v6560 = vpack.c.b16 %v6424, %v6420
    %v6561 = vpack.c.b16 %v6425, %v6421
    %v6562 = vpack.c.b16 %v6430, %v6426
    %v6563 = vpack.c.b16 %v6431, %v6427
    %v6564 = vpack.c.b16 %v6432, %v6428
    %v6565 = vpack.c.b16 %v6433, %v6429
    %v6566 = vpack.c.b16 %v6438, %v6434
    %v6567 = vpack.c.b16 %v6439, %v6435
    %v6568 = vpack.c.b16 %v6440, %v6436
    %v6569 = vpack.c.b16 %v6441, %v6437
    %6698 = vmatpush.bf16.msra.mxu0 %v6470
    %6699 = vmatpush.bf16.msra.mxu0 %v6466
    %6700 = vmatpush.bf16.msra.mxu0 %v6462
    %6701 = vmatpush.bf16.msra.mxu0 %v6458
    %6702 = vmatpush.bf16.msra.mxu0 %v6454
    %6703 = vmatpush.bf16.msra.mxu0 %v6450
    %6704 = vmatpush.bf16.msra.mxu0 %v6446
    %6705 = vmatpush.bf16.msra.mxu0 %v6442
    %6706 = vmatmul.bf16.gmra.mxu0 %v5916
    %v6707 = vpop.f32.mrf.mxu0
    %v6708 = vadd.f32 %v6050, %v6707
    %v6709 = vpop.f32.mrf.mxu0
    %6710 = vdwg.mxu0
    %6711 = vmatpush.bf16.msra.mxu0 %v6502
    %6712 = vmatpush.bf16.msra.mxu0 %v6498
    %6713 = vmatpush.bf16.msra.mxu0 %v6494
    %6714 = vmatpush.bf16.msra.mxu0 %v6490
    %6715 = vmatpush.bf16.msra.mxu0 %v6486
    %6716 = vmatpush.bf16.msra.mxu0 %v6482
    %6717 = vmatpush.bf16.msra.mxu0 %v6478
    %6718 = vmatpush.bf16.msra.mxu0 %v6474
    %6719 = vmatmul.bf16.gmra.mxu0 %v5917
    %v6720 = vpop.f32.mrf.mxu0
    %v6721 = vadd.f32 %v6708, %v6720
    %v6722 = vpop.f32.mrf.mxu0
    %6723 = vdwg.mxu0
    %6724 = vmatpush.bf16.msra.mxu0 %v6534
    %6725 = vmatpush.bf16.msra.mxu0 %v6530
    %6726 = vmatpush.bf16.msra.mxu0 %v6526
    %6727 = vmatpush.bf16.msra.mxu0 %v6522
    %6728 = vmatpush.bf16.msra.mxu0 %v6518
    %6729 = vmatpush.bf16.msra.mxu0 %v6514
    %6730 = vmatpush.bf16.msra.mxu0 %v6510
    %6731 = vmatpush.bf16.msra.mxu0 %v6506
    %6732 = vmatmul.bf16.gmra.mxu0 %v5918
    %v6733 = vpop.f32.mrf.mxu0
    %v6734 = vadd.f32 %v6721, %v6733
    %v6735 = vpop.f32.mrf.mxu0
    %6736 = vdwg.mxu0
    %6737 = vmatpush.bf16.msra.mxu0 %v6566
    %6738 = vmatpush.bf16.msra.mxu0 %v6562
    %6739 = vmatpush.bf16.msra.mxu0 %v6558
    %6740 = vmatpush.bf16.msra.mxu0 %v6554
    %6741 = vmatpush.bf16.msra.mxu0 %v6550
    %6742 = vmatpush.bf16.msra.mxu0 %v6546
    %6743 = vmatpush.bf16.msra.mxu0 %v6542
    %6744 = vmatpush.bf16.msra.mxu0 %v6538
    %6745 = vmatmul.bf16.gmra.mxu0 %v5919
    %v6746 = vpop.f32.mrf.mxu0
    %v6747 = vadd.f32 %v6734, %v6746
    %v6748 = vpop.f32.mrf.mxu0
    %6749 = vdwg.mxu0
    %6750 = vmatpush.bf16.msra.mxu0 %v6471
    %6751 = vmatpush.bf16.msra.mxu0 %v6467
    %6752 = vmatpush.bf16.msra.mxu0 %v6463
    %6753 = vmatpush.bf16.msra.mxu0 %v6459
    %6754 = vmatpush.bf16.msra.mxu0 %v6455
    %6755 = vmatpush.bf16.msra.mxu0 %v6451
    %6756 = vmatpush.bf16.msra.mxu0 %v6447
    %6757 = vmatpush.bf16.msra.mxu0 %v6443
    %6758 = vmatmul.bf16.gmra.mxu0 %v5916
    %v6759 = vpop.f32.mrf.mxu0
    %v6760 = vadd.f32 %v6051, %v6759
    %v6761 = vpop.f32.mrf.mxu0
    %6762 = vdwg.mxu0
    %6763 = vmatpush.bf16.msra.mxu0 %v6503
    %6764 = vmatpush.bf16.msra.mxu0 %v6499
    %6765 = vmatpush.bf16.msra.mxu0 %v6495
    %6766 = vmatpush.bf16.msra.mxu0 %v6491
    %6767 = vmatpush.bf16.msra.mxu0 %v6487
    %6768 = vmatpush.bf16.msra.mxu0 %v6483
    %6769 = vmatpush.bf16.msra.mxu0 %v6479
    %6770 = vmatpush.bf16.msra.mxu0 %v6475
    %6771 = vmatmul.bf16.gmra.mxu0 %v5917
    %v6772 = vpop.f32.mrf.mxu0
    %v6773 = vadd.f32 %v6760, %v6772
    %v6774 = vpop.f32.mrf.mxu0
    %6775 = vdwg.mxu0
    %6776 = vmatpush.bf16.msra.mxu0 %v6535
    %6777 = vmatpush.bf16.msra.mxu0 %v6531
    %6778 = vmatpush.bf16.msra.mxu0 %v6527
    %6779 = vmatpush.bf16.msra.mxu0 %v6523
    %6780 = vmatpush.bf16.msra.mxu0 %v6519
    %6781 = vmatpush.bf16.msra.mxu0 %v6515
    %6782 = vmatpush.bf16.msra.mxu0 %v6511
    %6783 = vmatpush.bf16.msra.mxu0 %v6507
    %6784 = vmatmul.bf16.gmra.mxu0 %v5918
    %v6785 = vpop.f32.mrf.mxu0
    %v6786 = vadd.f32 %v6773, %v6785
    %v6787 = vpop.f32.mrf.mxu0
    %6788 = vdwg.mxu0
    %6789 = vmatpush.bf16.msra.mxu0 %v6567
    %6790 = vmatpush.bf16.msra.mxu0 %v6563
    %6791 = vmatpush.bf16.msra.mxu0 %v6559
    %6792 = vmatpush.bf16.msra.mxu0 %v6555
    %6793 = vmatpush.bf16.msra.mxu0 %v6551
    %6794 = vmatpush.bf16.msra.mxu0 %v6547
    %6795 = vmatpush.bf16.msra.mxu0 %v6543
    %6796 = vmatpush.bf16.msra.mxu0 %v6539
    %6797 = vmatmul.bf16.gmra.mxu0 %v5919
    %v6798 = vpop.f32.mrf.mxu0
    %v6799 = vadd.f32 %v6786, %v6798
    %v6800 = vpop.f32.mrf.mxu0
    %6801 = vdwg.mxu0
    %6802 = vmatpush.bf16.msra.mxu0 %v6472
    %6803 = vmatpush.bf16.msra.mxu0 %v6468
    %6804 = vmatpush.bf16.msra.mxu0 %v6464
    %6805 = vmatpush.bf16.msra.mxu0 %v6460
    %6806 = vmatpush.bf16.msra.mxu0 %v6456
    %6807 = vmatpush.bf16.msra.mxu0 %v6452
    %6808 = vmatpush.bf16.msra.mxu0 %v6448
    %6809 = vmatpush.bf16.msra.mxu0 %v6444
    %6810 = vmatmul.bf16.gmra.mxu0 %v5916
    %v6811 = vpop.f32.mrf.mxu0
    %v6812 = vadd.f32 %v6052, %v6811
    %v6813 = vpop.f32.mrf.mxu0
    %6814 = vdwg.mxu0
    %6815 = vmatpush.bf16.msra.mxu0 %v6504
    %6816 = vmatpush.bf16.msra.mxu0 %v6500
    %6817 = vmatpush.bf16.msra.mxu0 %v6496
    %6818 = vmatpush.bf16.msra.mxu0 %v6492
    %6819 = vmatpush.bf16.msra.mxu0 %v6488
    %6820 = vmatpush.bf16.msra.mxu0 %v6484
    %6821 = vmatpush.bf16.msra.mxu0 %v6480
    %6822 = vmatpush.bf16.msra.mxu0 %v6476
    %6823 = vmatmul.bf16.gmra.mxu0 %v5917
    %v6824 = vpop.f32.mrf.mxu0
    %v6825 = vadd.f32 %v6812, %v6824
    %v6826 = vpop.f32.mrf.mxu0
    %6827 = vdwg.mxu0
    %6828 = vmatpush.bf16.msra.mxu0 %v6536
    %6829 = vmatpush.bf16.msra.mxu0 %v6532
    %6830 = vmatpush.bf16.msra.mxu0 %v6528
    %6831 = vmatpush.bf16.msra.mxu0 %v6524
    %6832 = vmatpush.bf16.msra.mxu0 %v6520
    %6833 = vmatpush.bf16.msra.mxu0 %v6516
    %6834 = vmatpush.bf16.msra.mxu0 %v6512
    %6835 = vmatpush.bf16.msra.mxu0 %v6508
    %6836 = vmatmul.bf16.gmra.mxu0 %v5918
    %v6837 = vpop.f32.mrf.mxu0
    %v6838 = vadd.f32 %v6825, %v6837
    %v6839 = vpop.f32.mrf.mxu0
    %6840 = vdwg.mxu0
    %6841 = vmatpush.bf16.msra.mxu0 %v6568
    %6842 = vmatpush.bf16.msra.mxu0 %v6564
    %6843 = vmatpush.bf16.msra.mxu0 %v6560
    %6844 = vmatpush.bf16.msra.mxu0 %v6556
    %6845 = vmatpush.bf16.msra.mxu0 %v6552
    %6846 = vmatpush.bf16.msra.mxu0 %v6548
    %6847 = vmatpush.bf16.msra.mxu0 %v6544
    %6848 = vmatpush.bf16.msra.mxu0 %v6540
    %6849 = vmatmul.bf16.gmra.mxu0 %v5919
    %v6850 = vpop.f32.mrf.mxu0
    %v6851 = vadd.f32 %v6838, %v6850
    %v6852 = vpop.f32.mrf.mxu0
    %6853 = vdwg.mxu0
    %6854 = vmatpush.bf16.msra.mxu0 %v6473
    %6855 = vmatpush.bf16.msra.mxu0 %v6469
    %6856 = vmatpush.bf16.msra.mxu0 %v6465
    %6857 = vmatpush.bf16.msra.mxu0 %v6461
    %6858 = vmatpush.bf16.msra.mxu0 %v6457
    %6859 = vmatpush.bf16.msra.mxu0 %v6453
    %6860 = vmatpush.bf16.msra.mxu0 %v6449
    %6861 = vmatpush.bf16.msra.mxu0 %v6445
    %6862 = vmatmul.bf16.gmra.mxu0 %v5916
    %v6863 = vpop.f32.mrf.mxu0
    %v6864 = vadd.f32 %v6053, %v6863
    %v6865 = vpop.f32.mrf.mxu0
    %6866 = vdwg.mxu0
    %6867 = vmatpush.bf16.msra.mxu0 %v6505
    %6868 = vmatpush.bf16.msra.mxu0 %v6501
    %6869 = vmatpush.bf16.msra.mxu0 %v6497
    %6870 = vmatpush.bf16.msra.mxu0 %v6493
    %6871 = vmatpush.bf16.msra.mxu0 %v6489
    %6872 = vmatpush.bf16.msra.mxu0 %v6485
    %6873 = vmatpush.bf16.msra.mxu0 %v6481
    %6874 = vmatpush.bf16.msra.mxu0 %v6477
    %6875 = vmatmul.bf16.gmra.mxu0 %v5917
    %v6876 = vpop.f32.mrf.mxu0
    %v6877 = vadd.f32 %v6864, %v6876
    %v6878 = vpop.f32.mrf.mxu0
    %6879 = vdwg.mxu0
    %6880 = vmatpush.bf16.msra.mxu0 %v6537
    %6881 = vmatpush.bf16.msra.mxu0 %v6533
    %6882 = vmatpush.bf16.msra.mxu0 %v6529
    %6883 = vmatpush.bf16.msra.mxu0 %v6525
    %6884 = vmatpush.bf16.msra.mxu0 %v6521
    %6885 = vmatpush.bf16.msra.mxu0 %v6517
    %6886 = vmatpush.bf16.msra.mxu0 %v6513
    %6887 = vmatpush.bf16.msra.mxu0 %v6509
    %6888 = vmatmul.bf16.gmra.mxu0 %v5918
    %v6889 = vpop.f32.mrf.mxu0
    %v6890 = vadd.f32 %v6877, %v6889
    %v6891 = vpop.f32.mrf.mxu0
    %6892 = vdwg.mxu0
    %6893 = vmatpush.bf16.msra.mxu0 %v6569
    %6894 = vmatpush.bf16.msra.mxu0 %v6565
    %6895 = vmatpush.bf16.msra.mxu0 %v6561
    %6896 = vmatpush.bf16.msra.mxu0 %v6557
    %6897 = vmatpush.bf16.msra.mxu0 %v6553
    %6898 = vmatpush.bf16.msra.mxu0 %v6549
    %6899 = vmatpush.bf16.msra.mxu0 %v6545
    %6900 = vmatpush.bf16.msra.mxu0 %v6541
    %6901 = vmatmul.bf16.gmra.mxu0 %v5919
    %v6902 = vpop.f32.mrf.mxu0
    %v6903 = vadd.f32 %v6890, %v6902
    %v6904 = vpop.f32.mrf.mxu0
    %6905 = vdwg.mxu0
    %v6906 = vadd.f32 %v5597, %v6747
    %v6907 = vadd.f32 %v5701, %v6799
    %v6908 = vadd.f32 %v5805, %v6851
    %v6909 = vadd.f32 %v5909, %v6903
    %v6910 = vmax.f32 %v6906, 0.0
    %v6911 = vmax.f32 %v6907, 0.0
    %v6912 = vmax.f32 %v6908, 0.0
    %v6913 = vmax.f32 %v6909, 0.0
    %6914 = vst [vmem:[#allocation6] sm:$0xff] %v6910
    %6915 = vst [vmem:[#allocation6 + $0x8] sm:$0xff] %v6911
    %6916 = vst [vmem:[#allocation6 + $0x10] sm:$0xff] %v6912
    %6917 = vst [vmem:[#allocation6 + $0x18] sm:$0xff] %v6913
    %v6918 = vld [vmem:[#allocation6] ss:$8 sm:$0xf]
    %v6919 = vlaneseq
    %vm6920 = vcmp.ge.s32.totalorder %v6919, 0
    %vm6921 = vcmp.lt.s32.totalorder %v6919, 512
    %vm6922 = vmand %vm6920, %vm6921
    %6923 = vst.msk [vmem:[#allocation7] ss:$2 sm:$0xf] %vm6922, %v6918
    %s6924 = scalar_lea.vmem [#allocation6], 1
    %v6925 = vld [vmem:[%s6924] ss:$8 sm:$0xf]
    %s6926 = scalar_lea.vmem [#allocation7], 8
    %6927 = vst.msk [vmem:[%s6926] ss:$2 sm:$0xf] %vm6922, %v6925
    %s6928 = scalar_lea.vmem [#allocation6], 2
    %v6929 = vld [vmem:[%s6928] ss:$8 sm:$0xf]
    %s6930 = scalar_lea.vmem [#allocation7], 16
    %6931 = vst.msk [vmem:[%s6930] ss:$2 sm:$0xf] %vm6922, %v6929
    %s6932 = scalar_lea.vmem [#allocation6], 3
    %v6933 = vld [vmem:[%s6932] ss:$8 sm:$0xf]
    %s6934 = scalar_lea.vmem [#allocation7], 24
    %6935 = vst.msk [vmem:[%s6934] ss:$2 sm:$0xf] %vm6922, %v6933
    %s6936 = scalar_lea.vmem [#allocation6], 4
    %v6937 = vld [vmem:[%s6936] ss:$8 sm:$0xf]
    %s6938 = scalar_lea.vmem [#allocation7], 1
    %6939 = vst.msk [vmem:[%s6938] ss:$2 sm:$0xf] %vm6922, %v6937
    %s6940 = scalar_lea.vmem [#allocation6], 5
    %v6941 = vld [vmem:[%s6940] ss:$8 sm:$0xf]
    %s6942 = scalar_lea.vmem [#allocation7], 9
    %6943 = vst.msk [vmem:[%s6942] ss:$2 sm:$0xf] %vm6922, %v6941
    %s6944 = scalar_lea.vmem [#allocation6], 6
    %v6945 = vld [vmem:[%s6944] ss:$8 sm:$0xf]
    %s6946 = scalar_lea.vmem [#allocation7], 17
    %6947 = vst.msk [vmem:[%s6946] ss:$2 sm:$0xf] %vm6922, %v6945
    %s6948 = scalar_lea.vmem [#allocation6], 7
    %v6949 = vld [vmem:[%s6948] ss:$8 sm:$0xf]
    %s6950 = scalar_lea.vmem [#allocation7], 25
    %6951 = vst.msk [vmem:[%s6950] ss:$2 sm:$0xf] %vm6922, %v6949
    %v6952 = vld [vmem:[#allocation7] sm:$0xff]
    %v6953 = vld [vmem:[#allocation7 + $0x8] sm:$0xff]
    %v6954 = vld [vmem:[#allocation7 + $0x10] sm:$0xff]
    %v6955 = vld [vmem:[#allocation7 + $0x18] sm:$0xff]
    %6960 = vst [vmem:[#allocation1] ss:$4 sm:$0xff] %v6952
    %s6961 = scalar_lea.vmem [#allocation1], 32
    %6962 = vst [vmem:[%s6961] ss:$4 sm:$0xff] %v6953
    %v6963 = vld.sshfl [vmem:[#allocation1] sm:$0xff pattern:$0x73625140]
    %v6964 = vld.sshfl [vmem:[#allocation1 + $0x8] sm:$0xff pattern:$0x73625140]
    %v6965 = vld.sshfl [vmem:[#allocation1 + $0x10] sm:$0xff pattern:$0x73625140]
    %v6966 = vld.sshfl [vmem:[#allocation1 + $0x18] sm:$0xff pattern:$0x73625140]
    %v6967 = vld.sshfl [vmem:[#allocation1 + $0x20] sm:$0xff pattern:$0x73625140]
    %v6968 = vld.sshfl [vmem:[#allocation1 + $0x28] sm:$0xff pattern:$0x73625140]
    %v6969 = vld.sshfl [vmem:[#allocation1 + $0x30] sm:$0xff pattern:$0x73625140]
    %v6970 = vld.sshfl [vmem:[#allocation1 + $0x38] sm:$0xff pattern:$0x73625140]
    %6971 = vst [vmem:[#allocation1] ss:$4 sm:$0xff] %v6954
    %6972 = vst [vmem:[%s6961] ss:$4 sm:$0xff] %v6955
    %v6973 = vld.sshfl [vmem:[#allocation1] sm:$0xff pattern:$0x73625140]
    %v6974 = vld.sshfl [vmem:[#allocation1 + $0x8] sm:$0xff pattern:$0x73625140]
    %v6975 = vld.sshfl [vmem:[#allocation1 + $0x10] sm:$0xff pattern:$0x73625140]
    %v6976 = vld.sshfl [vmem:[#allocation1 + $0x18] sm:$0xff pattern:$0x73625140]
    %v6977 = vld.sshfl [vmem:[#allocation1 + $0x20] sm:$0xff pattern:$0x73625140]
    %v6978 = vld.sshfl [vmem:[#allocation1 + $0x28] sm:$0xff pattern:$0x73625140]
    %v6979 = vld.sshfl [vmem:[#allocation1 + $0x30] sm:$0xff pattern:$0x73625140]
    %v6980 = vld.sshfl [vmem:[#allocation1 + $0x38] sm:$0xff pattern:$0x73625140]
    %v6997 = vpack.c.bf16 %v6963, %v6963
    %v6998 = vpack.c.bf16 %v6964, %v6964
    %v6999 = vpack.c.bf16 %v6965, %v6965
    %v7000 = vpack.c.bf16 %v6966, %v6966
    %v7001 = vpack.c.bf16 %v6967, %v6967
    %v7002 = vpack.c.bf16 %v6968, %v6968
    %v7003 = vpack.c.bf16 %v6969, %v6969
    %v7004 = vpack.c.bf16 %v6970, %v6970
    %v7005 = vpack.c.bf16 %v6973, %v6973
    %v7006 = vpack.c.bf16 %v6974, %v6974
    %v7007 = vpack.c.bf16 %v6975, %v6975
    %v7008 = vpack.c.bf16 %v6976, %v6976
    %v7009 = vpack.c.bf16 %v6977, %v6977
    %v7010 = vpack.c.bf16 %v6978, %v6978
    %v7011 = vpack.c.bf16 %v6979, %v6979
    %v7012 = vpack.c.bf16 %v6980, %v6980
    %v7013 = vld [vmem:[#allocation26] sm:$0xff]
    %v7014 = vld [vmem:[#allocation26 + $0x8] sm:$0xff]
    %v7015 = vld [vmem:[#allocation26 + $0x10] sm:$0xff]
    %v7016 = vld [vmem:[#allocation26 + $0x18] sm:$0xff]
    %v7017 = vld [vmem:[#allocation26 + $0x20] sm:$0xff]
    %v7018 = vld [vmem:[#allocation26 + $0x28] sm:$0xff]
    %v7019 = vld [vmem:[#allocation26 + $0x30] sm:$0xff]
    %v7020 = vld [vmem:[#allocation26 + $0x38] sm:$0xff]
    %v7021 = vld [vmem:[#allocation26 + $0x40] sm:$0xff]
    %v7022 = vld [vmem:[#allocation26 + $0x48] sm:$0xff]
    %v7023 = vld [vmem:[#allocation26 + $0x50] sm:$0xff]
    %v7024 = vld [vmem:[#allocation26 + $0x58] sm:$0xff]
    %v7025 = vld [vmem:[#allocation26 + $0x60] sm:$0xff]
    %v7026 = vld [vmem:[#allocation26 + $0x68] sm:$0xff]
    %v7027 = vld [vmem:[#allocation26 + $0x70] sm:$0xff]
    %v7028 = vld [vmem:[#allocation26 + $0x78] sm:$0xff]
    %v7029 = vld [vmem:[#allocation26 + $0x80] sm:$0xff]
    %v7030 = vld [vmem:[#allocation26 + $0x88] sm:$0xff]
    %v7031 = vld [vmem:[#allocation26 + $0x90] sm:$0xff]
    %v7032 = vld [vmem:[#allocation26 + $0x98] sm:$0xff]
    %v7033 = vld [vmem:[#allocation26 + $0xa0] sm:$0xff]
    %v7034 = vld [vmem:[#allocation26 + $0xa8] sm:$0xff]
    %v7035 = vld [vmem:[#allocation26 + $0xb0] sm:$0xff]
    %v7036 = vld [vmem:[#allocation26 + $0xb8] sm:$0xff]
    %v7037 = vld [vmem:[#allocation26 + $0xc0] sm:$0xff]
    %v7038 = vld [vmem:[#allocation26 + $0xc8] sm:$0xff]
    %v7039 = vld [vmem:[#allocation26 + $0xd0] sm:$0xff]
    %v7040 = vld [vmem:[#allocation26 + $0xd8] sm:$0xff]
    %v7041 = vld [vmem:[#allocation26 + $0xe0] sm:$0xff]
    %v7042 = vld [vmem:[#allocation26 + $0xe8] sm:$0xff]
    %v7043 = vld [vmem:[#allocation26 + $0xf0] sm:$0xff]
    %v7044 = vld [vmem:[#allocation26 + $0xf8] sm:$0xff]
    %v7045 = vld [vmem:[#allocation26 + $0x100] sm:$0xff]
    %v7046 = vld [vmem:[#allocation26 + $0x108] sm:$0xff]
    %v7047 = vld [vmem:[#allocation26 + $0x110] sm:$0xff]
    %v7048 = vld [vmem:[#allocation26 + $0x118] sm:$0xff]
    %v7049 = vld [vmem:[#allocation26 + $0x120] sm:$0xff]
    %v7050 = vld [vmem:[#allocation26 + $0x128] sm:$0xff]
    %v7051 = vld [vmem:[#allocation26 + $0x130] sm:$0xff]
    %v7052 = vld [vmem:[#allocation26 + $0x138] sm:$0xff]
    %v7053 = vld [vmem:[#allocation26 + $0x140] sm:$0xff]
    %v7054 = vld [vmem:[#allocation26 + $0x148] sm:$0xff]
    %v7055 = vld [vmem:[#allocation26 + $0x150] sm:$0xff]
    %v7056 = vld [vmem:[#allocation26 + $0x158] sm:$0xff]
    %v7057 = vld [vmem:[#allocation26 + $0x160] sm:$0xff]
    %v7058 = vld [vmem:[#allocation26 + $0x168] sm:$0xff]
    %v7059 = vld [vmem:[#allocation26 + $0x170] sm:$0xff]
    %v7060 = vld [vmem:[#allocation26 + $0x178] sm:$0xff]
    %v7061 = vld [vmem:[#allocation26 + $0x180] sm:$0xff]
    %v7062 = vld [vmem:[#allocation26 + $0x188] sm:$0xff]
    %v7063 = vld [vmem:[#allocation26 + $0x190] sm:$0xff]
    %v7064 = vld [vmem:[#allocation26 + $0x198] sm:$0xff]
    %v7065 = vld [vmem:[#allocation26 + $0x1a0] sm:$0xff]
    %v7066 = vld [vmem:[#allocation26 + $0x1a8] sm:$0xff]
    %v7067 = vld [vmem:[#allocation26 + $0x1b0] sm:$0xff]
    %v7068 = vld [vmem:[#allocation26 + $0x1b8] sm:$0xff]
    %v7069 = vld [vmem:[#allocation26 + $0x1c0] sm:$0xff]
    %v7070 = vld [vmem:[#allocation26 + $0x1c8] sm:$0xff]
    %v7071 = vld [vmem:[#allocation26 + $0x1d0] sm:$0xff]
    %v7072 = vld [vmem:[#allocation26 + $0x1d8] sm:$0xff]
    %v7073 = vld [vmem:[#allocation26 + $0x1e0] sm:$0xff]
    %v7074 = vld [vmem:[#allocation26 + $0x1e8] sm:$0xff]
    %v7075 = vld [vmem:[#allocation26 + $0x1f0] sm:$0xff]
    %v7076 = vld [vmem:[#allocation26 + $0x1f8] sm:$0xff]
    %v7077 = vld [vmem:[#allocation26 + $0x200] sm:$0xff]
    %v7078 = vld [vmem:[#allocation26 + $0x208] sm:$0xff]
    %v7079 = vld [vmem:[#allocation26 + $0x210] sm:$0xff]
    %v7080 = vld [vmem:[#allocation26 + $0x218] sm:$0xff]
    %v7081 = vld [vmem:[#allocation26 + $0x220] sm:$0xff]
    %v7082 = vld [vmem:[#allocation26 + $0x228] sm:$0xff]
    %v7083 = vld [vmem:[#allocation26 + $0x230] sm:$0xff]
    %v7084 = vld [vmem:[#allocation26 + $0x238] sm:$0xff]
    %v7085 = vld [vmem:[#allocation26 + $0x240] sm:$0xff]
    %v7086 = vld [vmem:[#allocation26 + $0x248] sm:$0xff]
    %v7087 = vld [vmem:[#allocation26 + $0x250] sm:$0xff]
    %v7088 = vld [vmem:[#allocation26 + $0x258] sm:$0xff]
    %v7089 = vld [vmem:[#allocation26 + $0x260] sm:$0xff]
    %v7090 = vld [vmem:[#allocation26 + $0x268] sm:$0xff]
    %v7091 = vld [vmem:[#allocation26 + $0x270] sm:$0xff]
    %v7092 = vld [vmem:[#allocation26 + $0x278] sm:$0xff]
    %v7093 = vld [vmem:[#allocation26 + $0x280] sm:$0xff]
    %v7094 = vld [vmem:[#allocation26 + $0x288] sm:$0xff]
    %v7095 = vld [vmem:[#allocation26 + $0x290] sm:$0xff]
    %v7096 = vld [vmem:[#allocation26 + $0x298] sm:$0xff]
    %v7097 = vld [vmem:[#allocation26 + $0x2a0] sm:$0xff]
    %v7098 = vld [vmem:[#allocation26 + $0x2a8] sm:$0xff]
    %v7099 = vld [vmem:[#allocation26 + $0x2b0] sm:$0xff]
    %v7100 = vld [vmem:[#allocation26 + $0x2b8] sm:$0xff]
    %v7101 = vld [vmem:[#allocation26 + $0x2c0] sm:$0xff]
    %v7102 = vld [vmem:[#allocation26 + $0x2c8] sm:$0xff]
    %v7103 = vld [vmem:[#allocation26 + $0x2d0] sm:$0xff]
    %v7104 = vld [vmem:[#allocation26 + $0x2d8] sm:$0xff]
    %v7105 = vld [vmem:[#allocation26 + $0x2e0] sm:$0xff]
    %v7106 = vld [vmem:[#allocation26 + $0x2e8] sm:$0xff]
    %v7107 = vld [vmem:[#allocation26 + $0x2f0] sm:$0xff]
    %v7108 = vld [vmem:[#allocation26 + $0x2f8] sm:$0xff]
    %v7109 = vld [vmem:[#allocation26 + $0x300] sm:$0xff]
    %v7110 = vld [vmem:[#allocation26 + $0x308] sm:$0xff]
    %v7111 = vld [vmem:[#allocation26 + $0x310] sm:$0xff]
    %v7112 = vld [vmem:[#allocation26 + $0x318] sm:$0xff]
    %v7113 = vld [vmem:[#allocation26 + $0x320] sm:$0xff]
    %v7114 = vld [vmem:[#allocation26 + $0x328] sm:$0xff]
    %v7115 = vld [vmem:[#allocation26 + $0x330] sm:$0xff]
    %v7116 = vld [vmem:[#allocation26 + $0x338] sm:$0xff]
    %v7117 = vld [vmem:[#allocation26 + $0x340] sm:$0xff]
    %v7118 = vld [vmem:[#allocation26 + $0x348] sm:$0xff]
    %v7119 = vld [vmem:[#allocation26 + $0x350] sm:$0xff]
    %v7120 = vld [vmem:[#allocation26 + $0x358] sm:$0xff]
    %v7121 = vld [vmem:[#allocation26 + $0x360] sm:$0xff]
    %v7122 = vld [vmem:[#allocation26 + $0x368] sm:$0xff]
    %v7123 = vld [vmem:[#allocation26 + $0x370] sm:$0xff]
    %v7124 = vld [vmem:[#allocation26 + $0x378] sm:$0xff]
    %v7125 = vld [vmem:[#allocation26 + $0x380] sm:$0xff]
    %v7126 = vld [vmem:[#allocation26 + $0x388] sm:$0xff]
    %v7127 = vld [vmem:[#allocation26 + $0x390] sm:$0xff]
    %v7128 = vld [vmem:[#allocation26 + $0x398] sm:$0xff]
    %v7129 = vld [vmem:[#allocation26 + $0x3a0] sm:$0xff]
    %v7130 = vld [vmem:[#allocation26 + $0x3a8] sm:$0xff]
    %v7131 = vld [vmem:[#allocation26 + $0x3b0] sm:$0xff]
    %v7132 = vld [vmem:[#allocation26 + $0x3b8] sm:$0xff]
    %v7133 = vld [vmem:[#allocation26 + $0x3c0] sm:$0xff]
    %v7134 = vld [vmem:[#allocation26 + $0x3c8] sm:$0xff]
    %v7135 = vld [vmem:[#allocation26 + $0x3d0] sm:$0xff]
    %v7136 = vld [vmem:[#allocation26 + $0x3d8] sm:$0xff]
    %v7137 = vld [vmem:[#allocation26 + $0x3e0] sm:$0xff]
    %v7138 = vld [vmem:[#allocation26 + $0x3e8] sm:$0xff]
    %v7139 = vld [vmem:[#allocation26 + $0x3f0] sm:$0xff]
    %v7140 = vld [vmem:[#allocation26 + $0x3f8] sm:$0xff]
    %v7141 = vld [vmem:[#allocation26 + $0x400] sm:$0xff]
    %v7142 = vld [vmem:[#allocation26 + $0x408] sm:$0xff]
    %v7143 = vld [vmem:[#allocation26 + $0x410] sm:$0xff]
    %v7144 = vld [vmem:[#allocation26 + $0x418] sm:$0xff]
    %v7145 = vld [vmem:[#allocation26 + $0x420] sm:$0xff]
    %v7146 = vld [vmem:[#allocation26 + $0x428] sm:$0xff]
    %v7147 = vld [vmem:[#allocation26 + $0x430] sm:$0xff]
    %v7148 = vld [vmem:[#allocation26 + $0x438] sm:$0xff]
    %v7149 = vld [vmem:[#allocation26 + $0x440] sm:$0xff]
    %v7150 = vld [vmem:[#allocation26 + $0x448] sm:$0xff]
    %v7151 = vld [vmem:[#allocation26 + $0x450] sm:$0xff]
    %v7152 = vld [vmem:[#allocation26 + $0x458] sm:$0xff]
    %v7153 = vld [vmem:[#allocation26 + $0x460] sm:$0xff]
    %v7154 = vld [vmem:[#allocation26 + $0x468] sm:$0xff]
    %v7155 = vld [vmem:[#allocation26 + $0x470] sm:$0xff]
    %v7156 = vld [vmem:[#allocation26 + $0x478] sm:$0xff]
    %v7157 = vld [vmem:[#allocation26 + $0x480] sm:$0xff]
    %v7158 = vld [vmem:[#allocation26 + $0x488] sm:$0xff]
    %v7159 = vld [vmem:[#allocation26 + $0x490] sm:$0xff]
    %v7160 = vld [vmem:[#allocation26 + $0x498] sm:$0xff]
    %v7161 = vld [vmem:[#allocation26 + $0x4a0] sm:$0xff]
    %v7162 = vld [vmem:[#allocation26 + $0x4a8] sm:$0xff]
    %v7163 = vld [vmem:[#allocation26 + $0x4b0] sm:$0xff]
    %v7164 = vld [vmem:[#allocation26 + $0x4b8] sm:$0xff]
    %v7165 = vld [vmem:[#allocation26 + $0x4c0] sm:$0xff]
    %v7166 = vld [vmem:[#allocation26 + $0x4c8] sm:$0xff]
    %v7167 = vld [vmem:[#allocation26 + $0x4d0] sm:$0xff]
    %v7168 = vld [vmem:[#allocation26 + $0x4d8] sm:$0xff]
    %v7169 = vld [vmem:[#allocation26 + $0x4e0] sm:$0xff]
    %v7170 = vld [vmem:[#allocation26 + $0x4e8] sm:$0xff]
    %v7171 = vld [vmem:[#allocation26 + $0x4f0] sm:$0xff]
    %v7172 = vld [vmem:[#allocation26 + $0x4f8] sm:$0xff]
    %v7173 = vld [vmem:[#allocation26 + $0x500] sm:$0xff]
    %v7174 = vld [vmem:[#allocation26 + $0x508] sm:$0xff]
    %v7175 = vld [vmem:[#allocation26 + $0x510] sm:$0xff]
    %v7176 = vld [vmem:[#allocation26 + $0x518] sm:$0xff]
    %v7177 = vld [vmem:[#allocation26 + $0x520] sm:$0xff]
    %v7178 = vld [vmem:[#allocation26 + $0x528] sm:$0xff]
    %v7179 = vld [vmem:[#allocation26 + $0x530] sm:$0xff]
    %v7180 = vld [vmem:[#allocation26 + $0x538] sm:$0xff]
    %v7181 = vld [vmem:[#allocation26 + $0x540] sm:$0xff]
    %v7182 = vld [vmem:[#allocation26 + $0x548] sm:$0xff]
    %v7183 = vld [vmem:[#allocation26 + $0x550] sm:$0xff]
    %v7184 = vld [vmem:[#allocation26 + $0x558] sm:$0xff]
    %v7185 = vld [vmem:[#allocation26 + $0x560] sm:$0xff]
    %v7186 = vld [vmem:[#allocation26 + $0x568] sm:$0xff]
    %v7187 = vld [vmem:[#allocation26 + $0x570] sm:$0xff]
    %v7188 = vld [vmem:[#allocation26 + $0x578] sm:$0xff]
    %v7189 = vld [vmem:[#allocation26 + $0x580] sm:$0xff]
    %v7190 = vld [vmem:[#allocation26 + $0x588] sm:$0xff]
    %v7191 = vld [vmem:[#allocation26 + $0x590] sm:$0xff]
    %v7192 = vld [vmem:[#allocation26 + $0x598] sm:$0xff]
    %v7193 = vld [vmem:[#allocation26 + $0x5a0] sm:$0xff]
    %v7194 = vld [vmem:[#allocation26 + $0x5a8] sm:$0xff]
    %v7195 = vld [vmem:[#allocation26 + $0x5b0] sm:$0xff]
    %v7196 = vld [vmem:[#allocation26 + $0x5b8] sm:$0xff]
    %v7197 = vld [vmem:[#allocation26 + $0x5c0] sm:$0xff]
    %v7198 = vld [vmem:[#allocation26 + $0x5c8] sm:$0xff]
    %v7199 = vld [vmem:[#allocation26 + $0x5d0] sm:$0xff]
    %v7200 = vld [vmem:[#allocation26 + $0x5d8] sm:$0xff]
    %v7201 = vld [vmem:[#allocation26 + $0x5e0] sm:$0xff]
    %v7202 = vld [vmem:[#allocation26 + $0x5e8] sm:$0xff]
    %v7203 = vld [vmem:[#allocation26 + $0x5f0] sm:$0xff]
    %v7204 = vld [vmem:[#allocation26 + $0x5f8] sm:$0xff]
    %v7205 = vld [vmem:[#allocation26 + $0x600] sm:$0xff]
    %v7206 = vld [vmem:[#allocation26 + $0x608] sm:$0xff]
    %v7207 = vld [vmem:[#allocation26 + $0x610] sm:$0xff]
    %v7208 = vld [vmem:[#allocation26 + $0x618] sm:$0xff]
    %v7209 = vld [vmem:[#allocation26 + $0x620] sm:$0xff]
    %v7210 = vld [vmem:[#allocation26 + $0x628] sm:$0xff]
    %v7211 = vld [vmem:[#allocation26 + $0x630] sm:$0xff]
    %v7212 = vld [vmem:[#allocation26 + $0x638] sm:$0xff]
    %v7213 = vld [vmem:[#allocation26 + $0x640] sm:$0xff]
    %v7214 = vld [vmem:[#allocation26 + $0x648] sm:$0xff]
    %v7215 = vld [vmem:[#allocation26 + $0x650] sm:$0xff]
    %v7216 = vld [vmem:[#allocation26 + $0x658] sm:$0xff]
    %v7217 = vld [vmem:[#allocation26 + $0x660] sm:$0xff]
    %v7218 = vld [vmem:[#allocation26 + $0x668] sm:$0xff]
    %v7219 = vld [vmem:[#allocation26 + $0x670] sm:$0xff]
    %v7220 = vld [vmem:[#allocation26 + $0x678] sm:$0xff]
    %v7221 = vld [vmem:[#allocation26 + $0x680] sm:$0xff]
    %v7222 = vld [vmem:[#allocation26 + $0x688] sm:$0xff]
    %v7223 = vld [vmem:[#allocation26 + $0x690] sm:$0xff]
    %v7224 = vld [vmem:[#allocation26 + $0x698] sm:$0xff]
    %v7225 = vld [vmem:[#allocation26 + $0x6a0] sm:$0xff]
    %v7226 = vld [vmem:[#allocation26 + $0x6a8] sm:$0xff]
    %v7227 = vld [vmem:[#allocation26 + $0x6b0] sm:$0xff]
    %v7228 = vld [vmem:[#allocation26 + $0x6b8] sm:$0xff]
    %v7229 = vld [vmem:[#allocation26 + $0x6c0] sm:$0xff]
    %v7230 = vld [vmem:[#allocation26 + $0x6c8] sm:$0xff]
    %v7231 = vld [vmem:[#allocation26 + $0x6d0] sm:$0xff]
    %v7232 = vld [vmem:[#allocation26 + $0x6d8] sm:$0xff]
    %v7233 = vld [vmem:[#allocation26 + $0x6e0] sm:$0xff]
    %v7234 = vld [vmem:[#allocation26 + $0x6e8] sm:$0xff]
    %v7235 = vld [vmem:[#allocation26 + $0x6f0] sm:$0xff]
    %v7236 = vld [vmem:[#allocation26 + $0x6f8] sm:$0xff]
    %v7237 = vld [vmem:[#allocation26 + $0x700] sm:$0xff]
    %v7238 = vld [vmem:[#allocation26 + $0x708] sm:$0xff]
    %v7239 = vld [vmem:[#allocation26 + $0x710] sm:$0xff]
    %v7240 = vld [vmem:[#allocation26 + $0x718] sm:$0xff]
    %v7241 = vld [vmem:[#allocation26 + $0x720] sm:$0xff]
    %v7242 = vld [vmem:[#allocation26 + $0x728] sm:$0xff]
    %v7243 = vld [vmem:[#allocation26 + $0x730] sm:$0xff]
    %v7244 = vld [vmem:[#allocation26 + $0x738] sm:$0xff]
    %v7245 = vld [vmem:[#allocation26 + $0x740] sm:$0xff]
    %v7246 = vld [vmem:[#allocation26 + $0x748] sm:$0xff]
    %v7247 = vld [vmem:[#allocation26 + $0x750] sm:$0xff]
    %v7248 = vld [vmem:[#allocation26 + $0x758] sm:$0xff]
    %v7249 = vld [vmem:[#allocation26 + $0x760] sm:$0xff]
    %v7250 = vld [vmem:[#allocation26 + $0x768] sm:$0xff]
    %v7251 = vld [vmem:[#allocation26 + $0x770] sm:$0xff]
    %v7252 = vld [vmem:[#allocation26 + $0x778] sm:$0xff]
    %v7253 = vld [vmem:[#allocation26 + $0x780] sm:$0xff]
    %v7254 = vld [vmem:[#allocation26 + $0x788] sm:$0xff]
    %v7255 = vld [vmem:[#allocation26 + $0x790] sm:$0xff]
    %v7256 = vld [vmem:[#allocation26 + $0x798] sm:$0xff]
    %v7257 = vld [vmem:[#allocation26 + $0x7a0] sm:$0xff]
    %v7258 = vld [vmem:[#allocation26 + $0x7a8] sm:$0xff]
    %v7259 = vld [vmem:[#allocation26 + $0x7b0] sm:$0xff]
    %v7260 = vld [vmem:[#allocation26 + $0x7b8] sm:$0xff]
    %v7261 = vld [vmem:[#allocation26 + $0x7c0] sm:$0xff]
    %v7262 = vld [vmem:[#allocation26 + $0x7c8] sm:$0xff]
    %v7263 = vld [vmem:[#allocation26 + $0x7d0] sm:$0xff]
    %v7264 = vld [vmem:[#allocation26 + $0x7d8] sm:$0xff]
    %v7265 = vld [vmem:[#allocation26 + $0x7e0] sm:$0xff]
    %v7266 = vld [vmem:[#allocation26 + $0x7e8] sm:$0xff]
    %v7267 = vld [vmem:[#allocation26 + $0x7f0] sm:$0xff]
    %v7268 = vld [vmem:[#allocation26 + $0x7f8] sm:$0xff]
    %v7269 = vld [vmem:[#allocation26 + $0x800] sm:$0xff]
    %v7270 = vld [vmem:[#allocation26 + $0x808] sm:$0xff]
    %v7271 = vld [vmem:[#allocation26 + $0x810] sm:$0xff]
    %v7272 = vld [vmem:[#allocation26 + $0x818] sm:$0xff]
    %v7273 = vld [vmem:[#allocation26 + $0x820] sm:$0xff]
    %v7274 = vld [vmem:[#allocation26 + $0x828] sm:$0xff]
    %v7275 = vld [vmem:[#allocation26 + $0x830] sm:$0xff]
    %v7276 = vld [vmem:[#allocation26 + $0x838] sm:$0xff]
    %v7277 = vld [vmem:[#allocation26 + $0x840] sm:$0xff]
    %v7278 = vld [vmem:[#allocation26 + $0x848] sm:$0xff]
    %v7279 = vld [vmem:[#allocation26 + $0x850] sm:$0xff]
    %v7280 = vld [vmem:[#allocation26 + $0x858] sm:$0xff]
    %v7281 = vld [vmem:[#allocation26 + $0x860] sm:$0xff]
    %v7282 = vld [vmem:[#allocation26 + $0x868] sm:$0xff]
    %v7283 = vld [vmem:[#allocation26 + $0x870] sm:$0xff]
    %v7284 = vld [vmem:[#allocation26 + $0x878] sm:$0xff]
    %v7285 = vld [vmem:[#allocation26 + $0x880] sm:$0xff]
    %v7286 = vld [vmem:[#allocation26 + $0x888] sm:$0xff]
    %v7287 = vld [vmem:[#allocation26 + $0x890] sm:$0xff]
    %v7288 = vld [vmem:[#allocation26 + $0x898] sm:$0xff]
    %v7289 = vld [vmem:[#allocation26 + $0x8a0] sm:$0xff]
    %v7290 = vld [vmem:[#allocation26 + $0x8a8] sm:$0xff]
    %v7291 = vld [vmem:[#allocation26 + $0x8b0] sm:$0xff]
    %v7292 = vld [vmem:[#allocation26 + $0x8b8] sm:$0xff]
    %v7293 = vld [vmem:[#allocation26 + $0x8c0] sm:$0xff]
    %v7294 = vld [vmem:[#allocation26 + $0x8c8] sm:$0xff]
    %v7295 = vld [vmem:[#allocation26 + $0x8d0] sm:$0xff]
    %v7296 = vld [vmem:[#allocation26 + $0x8d8] sm:$0xff]
    %v7297 = vld [vmem:[#allocation26 + $0x8e0] sm:$0xff]
    %v7298 = vld [vmem:[#allocation26 + $0x8e8] sm:$0xff]
    %v7299 = vld [vmem:[#allocation26 + $0x8f0] sm:$0xff]
    %v7300 = vld [vmem:[#allocation26 + $0x8f8] sm:$0xff]
    %v7301 = vld [vmem:[#allocation26 + $0x900] sm:$0xff]
    %v7302 = vld [vmem:[#allocation26 + $0x908] sm:$0xff]
    %v7303 = vld [vmem:[#allocation26 + $0x910] sm:$0xff]
    %v7304 = vld [vmem:[#allocation26 + $0x918] sm:$0xff]
    %v7305 = vld [vmem:[#allocation26 + $0x920] sm:$0xff]
    %v7306 = vld [vmem:[#allocation26 + $0x928] sm:$0xff]
    %v7307 = vld [vmem:[#allocation26 + $0x930] sm:$0xff]
    %v7308 = vld [vmem:[#allocation26 + $0x938] sm:$0xff]
    %v7309 = vld [vmem:[#allocation26 + $0x940] sm:$0xff]
    %v7310 = vld [vmem:[#allocation26 + $0x948] sm:$0xff]
    %v7311 = vld [vmem:[#allocation26 + $0x950] sm:$0xff]
    %v7312 = vld [vmem:[#allocation26 + $0x958] sm:$0xff]
    %v7313 = vld [vmem:[#allocation26 + $0x960] sm:$0xff]
    %v7314 = vld [vmem:[#allocation26 + $0x968] sm:$0xff]
    %v7315 = vld [vmem:[#allocation26 + $0x970] sm:$0xff]
    %v7316 = vld [vmem:[#allocation26 + $0x978] sm:$0xff]
    %v7317 = vld [vmem:[#allocation26 + $0x980] sm:$0xff]
    %v7318 = vld [vmem:[#allocation26 + $0x988] sm:$0xff]
    %v7319 = vld [vmem:[#allocation26 + $0x990] sm:$0xff]
    %v7320 = vld [vmem:[#allocation26 + $0x998] sm:$0xff]
    %v7321 = vld [vmem:[#allocation26 + $0x9a0] sm:$0xff]
    %v7322 = vld [vmem:[#allocation26 + $0x9a8] sm:$0xff]
    %v7323 = vld [vmem:[#allocation26 + $0x9b0] sm:$0xff]
    %v7324 = vld [vmem:[#allocation26 + $0x9b8] sm:$0xff]
    %v7325 = vld [vmem:[#allocation26 + $0x9c0] sm:$0xff]
    %v7326 = vld [vmem:[#allocation26 + $0x9c8] sm:$0xff]
    %v7327 = vld [vmem:[#allocation26 + $0x9d0] sm:$0xff]
    %v7328 = vld [vmem:[#allocation26 + $0x9d8] sm:$0xff]
    %v7329 = vld [vmem:[#allocation26 + $0x9e0] sm:$0xff]
    %v7330 = vld [vmem:[#allocation26 + $0x9e8] sm:$0xff]
    %v7331 = vld [vmem:[#allocation26 + $0x9f0] sm:$0xff]
    %v7332 = vld [vmem:[#allocation26 + $0x9f8] sm:$0xff]
    %v7333 = vld [vmem:[#allocation26 + $0xa00] sm:$0xff]
    %v7334 = vld [vmem:[#allocation26 + $0xa08] sm:$0xff]
    %v7335 = vld [vmem:[#allocation26 + $0xa10] sm:$0xff]
    %v7336 = vld [vmem:[#allocation26 + $0xa18] sm:$0xff]
    %v7337 = vld [vmem:[#allocation26 + $0xa20] sm:$0xff]
    %v7338 = vld [vmem:[#allocation26 + $0xa28] sm:$0xff]
    %v7339 = vld [vmem:[#allocation26 + $0xa30] sm:$0xff]
    %v7340 = vld [vmem:[#allocation26 + $0xa38] sm:$0xff]
    %v7341 = vld [vmem:[#allocation26 + $0xa40] sm:$0xff]
    %v7342 = vld [vmem:[#allocation26 + $0xa48] sm:$0xff]
    %v7343 = vld [vmem:[#allocation26 + $0xa50] sm:$0xff]
    %v7344 = vld [vmem:[#allocation26 + $0xa58] sm:$0xff]
    %v7345 = vld [vmem:[#allocation26 + $0xa60] sm:$0xff]
    %v7346 = vld [vmem:[#allocation26 + $0xa68] sm:$0xff]
    %v7347 = vld [vmem:[#allocation26 + $0xa70] sm:$0xff]
    %v7348 = vld [vmem:[#allocation26 + $0xa78] sm:$0xff]
    %v7349 = vld [vmem:[#allocation26 + $0xa80] sm:$0xff]
    %v7350 = vld [vmem:[#allocation26 + $0xa88] sm:$0xff]
    %v7351 = vld [vmem:[#allocation26 + $0xa90] sm:$0xff]
    %v7352 = vld [vmem:[#allocation26 + $0xa98] sm:$0xff]
    %v7353 = vld [vmem:[#allocation26 + $0xaa0] sm:$0xff]
    %v7354 = vld [vmem:[#allocation26 + $0xaa8] sm:$0xff]
    %v7355 = vld [vmem:[#allocation26 + $0xab0] sm:$0xff]
    %v7356 = vld [vmem:[#allocation26 + $0xab8] sm:$0xff]
    %v7357 = vld [vmem:[#allocation26 + $0xac0] sm:$0xff]
    %v7358 = vld [vmem:[#allocation26 + $0xac8] sm:$0xff]
    %v7359 = vld [vmem:[#allocation26 + $0xad0] sm:$0xff]
    %v7360 = vld [vmem:[#allocation26 + $0xad8] sm:$0xff]
    %v7361 = vld [vmem:[#allocation26 + $0xae0] sm:$0xff]
    %v7362 = vld [vmem:[#allocation26 + $0xae8] sm:$0xff]
    %v7363 = vld [vmem:[#allocation26 + $0xaf0] sm:$0xff]
    %v7364 = vld [vmem:[#allocation26 + $0xaf8] sm:$0xff]
    %v7365 = vld [vmem:[#allocation26 + $0xb00] sm:$0xff]
    %v7366 = vld [vmem:[#allocation26 + $0xb08] sm:$0xff]
    %v7367 = vld [vmem:[#allocation26 + $0xb10] sm:$0xff]
    %v7368 = vld [vmem:[#allocation26 + $0xb18] sm:$0xff]
    %v7369 = vld [vmem:[#allocation26 + $0xb20] sm:$0xff]
    %v7370 = vld [vmem:[#allocation26 + $0xb28] sm:$0xff]
    %v7371 = vld [vmem:[#allocation26 + $0xb30] sm:$0xff]
    %v7372 = vld [vmem:[#allocation26 + $0xb38] sm:$0xff]
    %v7373 = vld [vmem:[#allocation26 + $0xb40] sm:$0xff]
    %v7374 = vld [vmem:[#allocation26 + $0xb48] sm:$0xff]
    %v7375 = vld [vmem:[#allocation26 + $0xb50] sm:$0xff]
    %v7376 = vld [vmem:[#allocation26 + $0xb58] sm:$0xff]
    %v7377 = vld [vmem:[#allocation26 + $0xb60] sm:$0xff]
    %v7378 = vld [vmem:[#allocation26 + $0xb68] sm:$0xff]
    %v7379 = vld [vmem:[#allocation26 + $0xb70] sm:$0xff]
    %v7380 = vld [vmem:[#allocation26 + $0xb78] sm:$0xff]
    %v7381 = vld [vmem:[#allocation26 + $0xb80] sm:$0xff]
    %v7382 = vld [vmem:[#allocation26 + $0xb88] sm:$0xff]
    %v7383 = vld [vmem:[#allocation26 + $0xb90] sm:$0xff]
    %v7384 = vld [vmem:[#allocation26 + $0xb98] sm:$0xff]
    %v7385 = vld [vmem:[#allocation26 + $0xba0] sm:$0xff]
    %v7386 = vld [vmem:[#allocation26 + $0xba8] sm:$0xff]
    %v7387 = vld [vmem:[#allocation26 + $0xbb0] sm:$0xff]
    %v7388 = vld [vmem:[#allocation26 + $0xbb8] sm:$0xff]
    %v7389 = vld [vmem:[#allocation26 + $0xbc0] sm:$0xff]
    %v7390 = vld [vmem:[#allocation26 + $0xbc8] sm:$0xff]
    %v7391 = vld [vmem:[#allocation26 + $0xbd0] sm:$0xff]
    %v7392 = vld [vmem:[#allocation26 + $0xbd8] sm:$0xff]
    %v7393 = vld [vmem:[#allocation26 + $0xbe0] sm:$0xff]
    %v7394 = vld [vmem:[#allocation26 + $0xbe8] sm:$0xff]
    %v7395 = vld [vmem:[#allocation26 + $0xbf0] sm:$0xff]
    %v7396 = vld [vmem:[#allocation26 + $0xbf8] sm:$0xff]
    %v7397 = vld [vmem:[#allocation26 + $0xc00] sm:$0xff]
    %v7398 = vld [vmem:[#allocation26 + $0xc08] sm:$0xff]
    %v7399 = vld [vmem:[#allocation26 + $0xc10] sm:$0xff]
    %v7400 = vld [vmem:[#allocation26 + $0xc18] sm:$0xff]
    %v7401 = vld [vmem:[#allocation26 + $0xc20] sm:$0xff]
    %v7402 = vld [vmem:[#allocation26 + $0xc28] sm:$0xff]
    %v7403 = vld [vmem:[#allocation26 + $0xc30] sm:$0xff]
    %v7404 = vld [vmem:[#allocation26 + $0xc38] sm:$0xff]
    %v7405 = vld [vmem:[#allocation26 + $0xc40] sm:$0xff]
    %v7406 = vld [vmem:[#allocation26 + $0xc48] sm:$0xff]
    %v7407 = vld [vmem:[#allocation26 + $0xc50] sm:$0xff]
    %v7408 = vld [vmem:[#allocation26 + $0xc58] sm:$0xff]
    %v7409 = vld [vmem:[#allocation26 + $0xc60] sm:$0xff]
    %v7410 = vld [vmem:[#allocation26 + $0xc68] sm:$0xff]
    %v7411 = vld [vmem:[#allocation26 + $0xc70] sm:$0xff]
    %v7412 = vld [vmem:[#allocation26 + $0xc78] sm:$0xff]
    %v7413 = vld [vmem:[#allocation26 + $0xc80] sm:$0xff]
    %v7414 = vld [vmem:[#allocation26 + $0xc88] sm:$0xff]
    %v7415 = vld [vmem:[#allocation26 + $0xc90] sm:$0xff]
    %v7416 = vld [vmem:[#allocation26 + $0xc98] sm:$0xff]
    %v7417 = vld [vmem:[#allocation26 + $0xca0] sm:$0xff]
    %v7418 = vld [vmem:[#allocation26 + $0xca8] sm:$0xff]
    %v7419 = vld [vmem:[#allocation26 + $0xcb0] sm:$0xff]
    %v7420 = vld [vmem:[#allocation26 + $0xcb8] sm:$0xff]
    %v7421 = vld [vmem:[#allocation26 + $0xcc0] sm:$0xff]
    %v7422 = vld [vmem:[#allocation26 + $0xcc8] sm:$0xff]
    %v7423 = vld [vmem:[#allocation26 + $0xcd0] sm:$0xff]
    %v7424 = vld [vmem:[#allocation26 + $0xcd8] sm:$0xff]
    %v7425 = vld [vmem:[#allocation26 + $0xce0] sm:$0xff]
    %v7426 = vld [vmem:[#allocation26 + $0xce8] sm:$0xff]
    %v7427 = vld [vmem:[#allocation26 + $0xcf0] sm:$0xff]
    %v7428 = vld [vmem:[#allocation26 + $0xcf8] sm:$0xff]
    %v7429 = vld [vmem:[#allocation26 + $0xd00] sm:$0xff]
    %v7430 = vld [vmem:[#allocation26 + $0xd08] sm:$0xff]
    %v7431 = vld [vmem:[#allocation26 + $0xd10] sm:$0xff]
    %v7432 = vld [vmem:[#allocation26 + $0xd18] sm:$0xff]
    %v7433 = vld [vmem:[#allocation26 + $0xd20] sm:$0xff]
    %v7434 = vld [vmem:[#allocation26 + $0xd28] sm:$0xff]
    %v7435 = vld [vmem:[#allocation26 + $0xd30] sm:$0xff]
    %v7436 = vld [vmem:[#allocation26 + $0xd38] sm:$0xff]
    %v7437 = vld [vmem:[#allocation26 + $0xd40] sm:$0xff]
    %v7438 = vld [vmem:[#allocation26 + $0xd48] sm:$0xff]
    %v7439 = vld [vmem:[#allocation26 + $0xd50] sm:$0xff]
    %v7440 = vld [vmem:[#allocation26 + $0xd58] sm:$0xff]
    %v7441 = vld [vmem:[#allocation26 + $0xd60] sm:$0xff]
    %v7442 = vld [vmem:[#allocation26 + $0xd68] sm:$0xff]
    %v7443 = vld [vmem:[#allocation26 + $0xd70] sm:$0xff]
    %v7444 = vld [vmem:[#allocation26 + $0xd78] sm:$0xff]
    %v7445 = vld [vmem:[#allocation26 + $0xd80] sm:$0xff]
    %v7446 = vld [vmem:[#allocation26 + $0xd88] sm:$0xff]
    %v7447 = vld [vmem:[#allocation26 + $0xd90] sm:$0xff]
    %v7448 = vld [vmem:[#allocation26 + $0xd98] sm:$0xff]
    %v7449 = vld [vmem:[#allocation26 + $0xda0] sm:$0xff]
    %v7450 = vld [vmem:[#allocation26 + $0xda8] sm:$0xff]
    %v7451 = vld [vmem:[#allocation26 + $0xdb0] sm:$0xff]
    %v7452 = vld [vmem:[#allocation26 + $0xdb8] sm:$0xff]
    %v7453 = vld [vmem:[#allocation26 + $0xdc0] sm:$0xff]
    %v7454 = vld [vmem:[#allocation26 + $0xdc8] sm:$0xff]
    %v7455 = vld [vmem:[#allocation26 + $0xdd0] sm:$0xff]
    %v7456 = vld [vmem:[#allocation26 + $0xdd8] sm:$0xff]
    %v7457 = vld [vmem:[#allocation26 + $0xde0] sm:$0xff]
    %v7458 = vld [vmem:[#allocation26 + $0xde8] sm:$0xff]
    %v7459 = vld [vmem:[#allocation26 + $0xdf0] sm:$0xff]
    %v7460 = vld [vmem:[#allocation26 + $0xdf8] sm:$0xff]
    %v7461 = vld [vmem:[#allocation26 + $0xe00] sm:$0xff]
    %v7462 = vld [vmem:[#allocation26 + $0xe08] sm:$0xff]
    %v7463 = vld [vmem:[#allocation26 + $0xe10] sm:$0xff]
    %v7464 = vld [vmem:[#allocation26 + $0xe18] sm:$0xff]
    %v7465 = vld [vmem:[#allocation26 + $0xe20] sm:$0xff]
    %v7466 = vld [vmem:[#allocation26 + $0xe28] sm:$0xff]
    %v7467 = vld [vmem:[#allocation26 + $0xe30] sm:$0xff]
    %v7468 = vld [vmem:[#allocation26 + $0xe38] sm:$0xff]
    %v7469 = vld [vmem:[#allocation26 + $0xe40] sm:$0xff]
    %v7470 = vld [vmem:[#allocation26 + $0xe48] sm:$0xff]
    %v7471 = vld [vmem:[#allocation26 + $0xe50] sm:$0xff]
    %v7472 = vld [vmem:[#allocation26 + $0xe58] sm:$0xff]
    %v7473 = vld [vmem:[#allocation26 + $0xe60] sm:$0xff]
    %v7474 = vld [vmem:[#allocation26 + $0xe68] sm:$0xff]
    %v7475 = vld [vmem:[#allocation26 + $0xe70] sm:$0xff]
    %v7476 = vld [vmem:[#allocation26 + $0xe78] sm:$0xff]
    %v7477 = vld [vmem:[#allocation26 + $0xe80] sm:$0xff]
    %v7478 = vld [vmem:[#allocation26 + $0xe88] sm:$0xff]
    %v7479 = vld [vmem:[#allocation26 + $0xe90] sm:$0xff]
    %v7480 = vld [vmem:[#allocation26 + $0xe98] sm:$0xff]
    %v7481 = vld [vmem:[#allocation26 + $0xea0] sm:$0xff]
    %v7482 = vld [vmem:[#allocation26 + $0xea8] sm:$0xff]
    %v7483 = vld [vmem:[#allocation26 + $0xeb0] sm:$0xff]
    %v7484 = vld [vmem:[#allocation26 + $0xeb8] sm:$0xff]
    %v7485 = vld [vmem:[#allocation26 + $0xec0] sm:$0xff]
    %v7486 = vld [vmem:[#allocation26 + $0xec8] sm:$0xff]
    %v7487 = vld [vmem:[#allocation26 + $0xed0] sm:$0xff]
    %v7488 = vld [vmem:[#allocation26 + $0xed8] sm:$0xff]
    %v7489 = vld [vmem:[#allocation26 + $0xee0] sm:$0xff]
    %v7490 = vld [vmem:[#allocation26 + $0xee8] sm:$0xff]
    %v7491 = vld [vmem:[#allocation26 + $0xef0] sm:$0xff]
    %v7492 = vld [vmem:[#allocation26 + $0xef8] sm:$0xff]
    %v7493 = vld [vmem:[#allocation26 + $0xf00] sm:$0xff]
    %v7494 = vld [vmem:[#allocation26 + $0xf08] sm:$0xff]
    %v7495 = vld [vmem:[#allocation26 + $0xf10] sm:$0xff]
    %v7496 = vld [vmem:[#allocation26 + $0xf18] sm:$0xff]
    %v7497 = vld [vmem:[#allocation26 + $0xf20] sm:$0xff]
    %v7498 = vld [vmem:[#allocation26 + $0xf28] sm:$0xff]
    %v7499 = vld [vmem:[#allocation26 + $0xf30] sm:$0xff]
    %v7500 = vld [vmem:[#allocation26 + $0xf38] sm:$0xff]
    %v7501 = vld [vmem:[#allocation26 + $0xf40] sm:$0xff]
    %v7502 = vld [vmem:[#allocation26 + $0xf48] sm:$0xff]
    %v7503 = vld [vmem:[#allocation26 + $0xf50] sm:$0xff]
    %v7504 = vld [vmem:[#allocation26 + $0xf58] sm:$0xff]
    %v7505 = vld [vmem:[#allocation26 + $0xf60] sm:$0xff]
    %v7506 = vld [vmem:[#allocation26 + $0xf68] sm:$0xff]
    %v7507 = vld [vmem:[#allocation26 + $0xf70] sm:$0xff]
    %v7508 = vld [vmem:[#allocation26 + $0xf78] sm:$0xff]
    %v7509 = vld [vmem:[#allocation26 + $0xf80] sm:$0xff]
    %v7510 = vld [vmem:[#allocation26 + $0xf88] sm:$0xff]
    %v7511 = vld [vmem:[#allocation26 + $0xf90] sm:$0xff]
    %v7512 = vld [vmem:[#allocation26 + $0xf98] sm:$0xff]
    %v7513 = vld [vmem:[#allocation26 + $0xfa0] sm:$0xff]
    %v7514 = vld [vmem:[#allocation26 + $0xfa8] sm:$0xff]
    %v7515 = vld [vmem:[#allocation26 + $0xfb0] sm:$0xff]
    %v7516 = vld [vmem:[#allocation26 + $0xfb8] sm:$0xff]
    %v7517 = vld [vmem:[#allocation26 + $0xfc0] sm:$0xff]
    %v7518 = vld [vmem:[#allocation26 + $0xfc8] sm:$0xff]
    %v7519 = vld [vmem:[#allocation26 + $0xfd0] sm:$0xff]
    %v7520 = vld [vmem:[#allocation26 + $0xfd8] sm:$0xff]
    %v7521 = vld [vmem:[#allocation26 + $0xfe0] sm:$0xff]
    %v7522 = vld [vmem:[#allocation26 + $0xfe8] sm:$0xff]
    %v7523 = vld [vmem:[#allocation26 + $0xff0] sm:$0xff]
    %v7524 = vld [vmem:[#allocation26 + $0xff8] sm:$0xff]
    %v7525 = vld [vmem:[#allocation27] sm:$0xf]
    %v7527 = vperm.slane %v7525, 0
    %v7528 = vperm.slane %v7525, 1
    %v7529 = vperm.slane %v7525, 2
    %v7530 = vperm.slane %v7525, 3
    %v8047 = vunpack.c.l.b16 %v7013
    %v8048 = vunpack.c.h.b16 %v7013
    %v8049 = vunpack.c.l.b16 %v7014
    %v8050 = vunpack.c.h.b16 %v7014
    %v8051 = vunpack.c.l.b16 %v7015
    %v8052 = vunpack.c.h.b16 %v7015
    %v8053 = vunpack.c.l.b16 %v7016
    %v8054 = vunpack.c.h.b16 %v7016
    %v8055 = vunpack.c.l.b16 %v7017
    %v8056 = vunpack.c.h.b16 %v7017
    %v8057 = vunpack.c.l.b16 %v7018
    %v8058 = vunpack.c.h.b16 %v7018
    %v8059 = vunpack.c.l.b16 %v7019
    %v8060 = vunpack.c.h.b16 %v7019
    %v8061 = vunpack.c.l.b16 %v7020
    %v8062 = vunpack.c.h.b16 %v7020
    %v8063 = vunpack.c.l.b16 %v7021
    %v8064 = vunpack.c.h.b16 %v7021
    %v8065 = vunpack.c.l.b16 %v7022
    %v8066 = vunpack.c.h.b16 %v7022
    %v8067 = vunpack.c.l.b16 %v7023
    %v8068 = vunpack.c.h.b16 %v7023
    %v8069 = vunpack.c.l.b16 %v7024
    %v8070 = vunpack.c.h.b16 %v7024
    %v8071 = vunpack.c.l.b16 %v7025
    %v8072 = vunpack.c.h.b16 %v7025
    %v8073 = vunpack.c.l.b16 %v7026
    %v8074 = vunpack.c.h.b16 %v7026
    %v8075 = vunpack.c.l.b16 %v7027
    %v8076 = vunpack.c.h.b16 %v7027
    %v8077 = vunpack.c.l.b16 %v7028
    %v8078 = vunpack.c.h.b16 %v7028
    %v8079 = vunpack.c.l.b16 %v7029
    %v8080 = vunpack.c.h.b16 %v7029
    %v8081 = vunpack.c.l.b16 %v7030
    %v8082 = vunpack.c.h.b16 %v7030
    %v8083 = vunpack.c.l.b16 %v7031
    %v8084 = vunpack.c.h.b16 %v7031
    %v8085 = vunpack.c.l.b16 %v7032
    %v8086 = vunpack.c.h.b16 %v7032
    %v8087 = vunpack.c.l.b16 %v7033
    %v8088 = vunpack.c.h.b16 %v7033
    %v8089 = vunpack.c.l.b16 %v7034
    %v8090 = vunpack.c.h.b16 %v7034
    %v8091 = vunpack.c.l.b16 %v7035
    %v8092 = vunpack.c.h.b16 %v7035
    %v8093 = vunpack.c.l.b16 %v7036
    %v8094 = vunpack.c.h.b16 %v7036
    %v8095 = vunpack.c.l.b16 %v7037
    %v8096 = vunpack.c.h.b16 %v7037
    %v8097 = vunpack.c.l.b16 %v7038
    %v8098 = vunpack.c.h.b16 %v7038
    %v8099 = vunpack.c.l.b16 %v7039
    %v8100 = vunpack.c.h.b16 %v7039
    %v8101 = vunpack.c.l.b16 %v7040
    %v8102 = vunpack.c.h.b16 %v7040
    %v8103 = vunpack.c.l.b16 %v7041
    %v8104 = vunpack.c.h.b16 %v7041
    %v8105 = vunpack.c.l.b16 %v7042
    %v8106 = vunpack.c.h.b16 %v7042
    %v8107 = vunpack.c.l.b16 %v7043
    %v8108 = vunpack.c.h.b16 %v7043
    %v8109 = vunpack.c.l.b16 %v7044
    %v8110 = vunpack.c.h.b16 %v7044
    %v8111 = vunpack.c.l.b16 %v7045
    %v8112 = vunpack.c.h.b16 %v7045
    %v8113 = vunpack.c.l.b16 %v7046
    %v8114 = vunpack.c.h.b16 %v7046
    %v8115 = vunpack.c.l.b16 %v7047
    %v8116 = vunpack.c.h.b16 %v7047
    %v8117 = vunpack.c.l.b16 %v7048
    %v8118 = vunpack.c.h.b16 %v7048
    %v8119 = vunpack.c.l.b16 %v7049
    %v8120 = vunpack.c.h.b16 %v7049
    %v8121 = vunpack.c.l.b16 %v7050
    %v8122 = vunpack.c.h.b16 %v7050
    %v8123 = vunpack.c.l.b16 %v7051
    %v8124 = vunpack.c.h.b16 %v7051
    %v8125 = vunpack.c.l.b16 %v7052
    %v8126 = vunpack.c.h.b16 %v7052
    %v8127 = vunpack.c.l.b16 %v7053
    %v8128 = vunpack.c.h.b16 %v7053
    %v8129 = vunpack.c.l.b16 %v7054
    %v8130 = vunpack.c.h.b16 %v7054
    %v8131 = vunpack.c.l.b16 %v7055
    %v8132 = vunpack.c.h.b16 %v7055
    %v8133 = vunpack.c.l.b16 %v7056
    %v8134 = vunpack.c.h.b16 %v7056
    %v8135 = vunpack.c.l.b16 %v7057
    %v8136 = vunpack.c.h.b16 %v7057
    %v8137 = vunpack.c.l.b16 %v7058
    %v8138 = vunpack.c.h.b16 %v7058
    %v8139 = vunpack.c.l.b16 %v7059
    %v8140 = vunpack.c.h.b16 %v7059
    %v8141 = vunpack.c.l.b16 %v7060
    %v8142 = vunpack.c.h.b16 %v7060
    %v8143 = vunpack.c.l.b16 %v7061
    %v8144 = vunpack.c.h.b16 %v7061
    %v8145 = vunpack.c.l.b16 %v7062
    %v8146 = vunpack.c.h.b16 %v7062
    %v8147 = vunpack.c.l.b16 %v7063
    %v8148 = vunpack.c.h.b16 %v7063
    %v8149 = vunpack.c.l.b16 %v7064
    %v8150 = vunpack.c.h.b16 %v7064
    %v8151 = vunpack.c.l.b16 %v7065
    %v8152 = vunpack.c.h.b16 %v7065
    %v8153 = vunpack.c.l.b16 %v7066
    %v8154 = vunpack.c.h.b16 %v7066
    %v8155 = vunpack.c.l.b16 %v7067
    %v8156 = vunpack.c.h.b16 %v7067
    %v8157 = vunpack.c.l.b16 %v7068
    %v8158 = vunpack.c.h.b16 %v7068
    %v8159 = vunpack.c.l.b16 %v7069
    %v8160 = vunpack.c.h.b16 %v7069
    %v8161 = vunpack.c.l.b16 %v7070
    %v8162 = vunpack.c.h.b16 %v7070
    %v8163 = vunpack.c.l.b16 %v7071
    %v8164 = vunpack.c.h.b16 %v7071
    %v8165 = vunpack.c.l.b16 %v7072
    %v8166 = vunpack.c.h.b16 %v7072
    %v8167 = vunpack.c.l.b16 %v7073
    %v8168 = vunpack.c.h.b16 %v7073
    %v8169 = vunpack.c.l.b16 %v7074
    %v8170 = vunpack.c.h.b16 %v7074
    %v8171 = vunpack.c.l.b16 %v7075
    %v8172 = vunpack.c.h.b16 %v7075
    %v8173 = vunpack.c.l.b16 %v7076
    %v8174 = vunpack.c.h.b16 %v7076
    %v8175 = vunpack.c.l.b16 %v7077
    %v8176 = vunpack.c.h.b16 %v7077
    %v8177 = vunpack.c.l.b16 %v7078
    %v8178 = vunpack.c.h.b16 %v7078
    %v8179 = vunpack.c.l.b16 %v7079
    %v8180 = vunpack.c.h.b16 %v7079
    %v8181 = vunpack.c.l.b16 %v7080
    %v8182 = vunpack.c.h.b16 %v7080
    %v8183 = vunpack.c.l.b16 %v7081
    %v8184 = vunpack.c.h.b16 %v7081
    %v8185 = vunpack.c.l.b16 %v7082
    %v8186 = vunpack.c.h.b16 %v7082
    %v8187 = vunpack.c.l.b16 %v7083
    %v8188 = vunpack.c.h.b16 %v7083
    %v8189 = vunpack.c.l.b16 %v7084
    %v8190 = vunpack.c.h.b16 %v7084
    %v8191 = vunpack.c.l.b16 %v7085
    %v8192 = vunpack.c.h.b16 %v7085
    %v8193 = vunpack.c.l.b16 %v7086
    %v8194 = vunpack.c.h.b16 %v7086
    %v8195 = vunpack.c.l.b16 %v7087
    %v8196 = vunpack.c.h.b16 %v7087
    %v8197 = vunpack.c.l.b16 %v7088
    %v8198 = vunpack.c.h.b16 %v7088
    %v8199 = vunpack.c.l.b16 %v7089
    %v8200 = vunpack.c.h.b16 %v7089
    %v8201 = vunpack.c.l.b16 %v7090
    %v8202 = vunpack.c.h.b16 %v7090
    %v8203 = vunpack.c.l.b16 %v7091
    %v8204 = vunpack.c.h.b16 %v7091
    %v8205 = vunpack.c.l.b16 %v7092
    %v8206 = vunpack.c.h.b16 %v7092
    %v8207 = vunpack.c.l.b16 %v7093
    %v8208 = vunpack.c.h.b16 %v7093
    %v8209 = vunpack.c.l.b16 %v7094
    %v8210 = vunpack.c.h.b16 %v7094
    %v8211 = vunpack.c.l.b16 %v7095
    %v8212 = vunpack.c.h.b16 %v7095
    %v8213 = vunpack.c.l.b16 %v7096
    %v8214 = vunpack.c.h.b16 %v7096
    %v8215 = vunpack.c.l.b16 %v7097
    %v8216 = vunpack.c.h.b16 %v7097
    %v8217 = vunpack.c.l.b16 %v7098
    %v8218 = vunpack.c.h.b16 %v7098
    %v8219 = vunpack.c.l.b16 %v7099
    %v8220 = vunpack.c.h.b16 %v7099
    %v8221 = vunpack.c.l.b16 %v7100
    %v8222 = vunpack.c.h.b16 %v7100
    %v8223 = vunpack.c.l.b16 %v7101
    %v8224 = vunpack.c.h.b16 %v7101
    %v8225 = vunpack.c.l.b16 %v7102
    %v8226 = vunpack.c.h.b16 %v7102
    %v8227 = vunpack.c.l.b16 %v7103
    %v8228 = vunpack.c.h.b16 %v7103
    %v8229 = vunpack.c.l.b16 %v7104
    %v8230 = vunpack.c.h.b16 %v7104
    %v8231 = vunpack.c.l.b16 %v7105
    %v8232 = vunpack.c.h.b16 %v7105
    %v8233 = vunpack.c.l.b16 %v7106
    %v8234 = vunpack.c.h.b16 %v7106
    %v8235 = vunpack.c.l.b16 %v7107
    %v8236 = vunpack.c.h.b16 %v7107
    %v8237 = vunpack.c.l.b16 %v7108
    %v8238 = vunpack.c.h.b16 %v7108
    %v8239 = vunpack.c.l.b16 %v7109
    %v8240 = vunpack.c.h.b16 %v7109
    %v8241 = vunpack.c.l.b16 %v7110
    %v8242 = vunpack.c.h.b16 %v7110
    %v8243 = vunpack.c.l.b16 %v7111
    %v8244 = vunpack.c.h.b16 %v7111
    %v8245 = vunpack.c.l.b16 %v7112
    %v8246 = vunpack.c.h.b16 %v7112
    %v8247 = vunpack.c.l.b16 %v7113
    %v8248 = vunpack.c.h.b16 %v7113
    %v8249 = vunpack.c.l.b16 %v7114
    %v8250 = vunpack.c.h.b16 %v7114
    %v8251 = vunpack.c.l.b16 %v7115
    %v8252 = vunpack.c.h.b16 %v7115
    %v8253 = vunpack.c.l.b16 %v7116
    %v8254 = vunpack.c.h.b16 %v7116
    %v8255 = vunpack.c.l.b16 %v7117
    %v8256 = vunpack.c.h.b16 %v7117
    %v8257 = vunpack.c.l.b16 %v7118
    %v8258 = vunpack.c.h.b16 %v7118
    %v8259 = vunpack.c.l.b16 %v7119
    %v8260 = vunpack.c.h.b16 %v7119
    %v8261 = vunpack.c.l.b16 %v7120
    %v8262 = vunpack.c.h.b16 %v7120
    %v8263 = vunpack.c.l.b16 %v7121
    %v8264 = vunpack.c.h.b16 %v7121
    %v8265 = vunpack.c.l.b16 %v7122
    %v8266 = vunpack.c.h.b16 %v7122
    %v8267 = vunpack.c.l.b16 %v7123
    %v8268 = vunpack.c.h.b16 %v7123
    %v8269 = vunpack.c.l.b16 %v7124
    %v8270 = vunpack.c.h.b16 %v7124
    %v8271 = vunpack.c.l.b16 %v7125
    %v8272 = vunpack.c.h.b16 %v7125
    %v8273 = vunpack.c.l.b16 %v7126
    %v8274 = vunpack.c.h.b16 %v7126
    %v8275 = vunpack.c.l.b16 %v7127
    %v8276 = vunpack.c.h.b16 %v7127
    %v8277 = vunpack.c.l.b16 %v7128
    %v8278 = vunpack.c.h.b16 %v7128
    %v8279 = vunpack.c.l.b16 %v7129
    %v8280 = vunpack.c.h.b16 %v7129
    %v8281 = vunpack.c.l.b16 %v7130
    %v8282 = vunpack.c.h.b16 %v7130
    %v8283 = vunpack.c.l.b16 %v7131
    %v8284 = vunpack.c.h.b16 %v7131
    %v8285 = vunpack.c.l.b16 %v7132
    %v8286 = vunpack.c.h.b16 %v7132
    %v8287 = vunpack.c.l.b16 %v7133
    %v8288 = vunpack.c.h.b16 %v7133
    %v8289 = vunpack.c.l.b16 %v7134
    %v8290 = vunpack.c.h.b16 %v7134
    %v8291 = vunpack.c.l.b16 %v7135
    %v8292 = vunpack.c.h.b16 %v7135
    %v8293 = vunpack.c.l.b16 %v7136
    %v8294 = vunpack.c.h.b16 %v7136
    %v8295 = vunpack.c.l.b16 %v7137
    %v8296 = vunpack.c.h.b16 %v7137
    %v8297 = vunpack.c.l.b16 %v7138
    %v8298 = vunpack.c.h.b16 %v7138
    %v8299 = vunpack.c.l.b16 %v7139
    %v8300 = vunpack.c.h.b16 %v7139
    %v8301 = vunpack.c.l.b16 %v7140
    %v8302 = vunpack.c.h.b16 %v7140
    %v8303 = vunpack.c.l.b16 %v7141
    %v8304 = vunpack.c.h.b16 %v7141
    %v8305 = vunpack.c.l.b16 %v7142
    %v8306 = vunpack.c.h.b16 %v7142
    %v8307 = vunpack.c.l.b16 %v7143
    %v8308 = vunpack.c.h.b16 %v7143
    %v8309 = vunpack.c.l.b16 %v7144
    %v8310 = vunpack.c.h.b16 %v7144
    %v8311 = vunpack.c.l.b16 %v7145
    %v8312 = vunpack.c.h.b16 %v7145
    %v8313 = vunpack.c.l.b16 %v7146
    %v8314 = vunpack.c.h.b16 %v7146
    %v8315 = vunpack.c.l.b16 %v7147
    %v8316 = vunpack.c.h.b16 %v7147
    %v8317 = vunpack.c.l.b16 %v7148
    %v8318 = vunpack.c.h.b16 %v7148
    %v8319 = vunpack.c.l.b16 %v7149
    %v8320 = vunpack.c.h.b16 %v7149
    %v8321 = vunpack.c.l.b16 %v7150
    %v8322 = vunpack.c.h.b16 %v7150
    %v8323 = vunpack.c.l.b16 %v7151
    %v8324 = vunpack.c.h.b16 %v7151
    %v8325 = vunpack.c.l.b16 %v7152
    %v8326 = vunpack.c.h.b16 %v7152
    %v8327 = vunpack.c.l.b16 %v7153
    %v8328 = vunpack.c.h.b16 %v7153
    %v8329 = vunpack.c.l.b16 %v7154
    %v8330 = vunpack.c.h.b16 %v7154
    %v8331 = vunpack.c.l.b16 %v7155
    %v8332 = vunpack.c.h.b16 %v7155
    %v8333 = vunpack.c.l.b16 %v7156
    %v8334 = vunpack.c.h.b16 %v7156
    %v8335 = vunpack.c.l.b16 %v7157
    %v8336 = vunpack.c.h.b16 %v7157
    %v8337 = vunpack.c.l.b16 %v7158
    %v8338 = vunpack.c.h.b16 %v7158
    %v8339 = vunpack.c.l.b16 %v7159
    %v8340 = vunpack.c.h.b16 %v7159
    %v8341 = vunpack.c.l.b16 %v7160
    %v8342 = vunpack.c.h.b16 %v7160
    %v8343 = vunpack.c.l.b16 %v7161
    %v8344 = vunpack.c.h.b16 %v7161
    %v8345 = vunpack.c.l.b16 %v7162
    %v8346 = vunpack.c.h.b16 %v7162
    %v8347 = vunpack.c.l.b16 %v7163
    %v8348 = vunpack.c.h.b16 %v7163
    %v8349 = vunpack.c.l.b16 %v7164
    %v8350 = vunpack.c.h.b16 %v7164
    %v8351 = vunpack.c.l.b16 %v7165
    %v8352 = vunpack.c.h.b16 %v7165
    %v8353 = vunpack.c.l.b16 %v7166
    %v8354 = vunpack.c.h.b16 %v7166
    %v8355 = vunpack.c.l.b16 %v7167
    %v8356 = vunpack.c.h.b16 %v7167
    %v8357 = vunpack.c.l.b16 %v7168
    %v8358 = vunpack.c.h.b16 %v7168
    %v8359 = vunpack.c.l.b16 %v7169
    %v8360 = vunpack.c.h.b16 %v7169
    %v8361 = vunpack.c.l.b16 %v7170
    %v8362 = vunpack.c.h.b16 %v7170
    %v8363 = vunpack.c.l.b16 %v7171
    %v8364 = vunpack.c.h.b16 %v7171
    %v8365 = vunpack.c.l.b16 %v7172
    %v8366 = vunpack.c.h.b16 %v7172
    %v8367 = vunpack.c.l.b16 %v7173
    %v8368 = vunpack.c.h.b16 %v7173
    %v8369 = vunpack.c.l.b16 %v7174
    %v8370 = vunpack.c.h.b16 %v7174
    %v8371 = vunpack.c.l.b16 %v7175
    %v8372 = vunpack.c.h.b16 %v7175
    %v8373 = vunpack.c.l.b16 %v7176
    %v8374 = vunpack.c.h.b16 %v7176
    %v8375 = vunpack.c.l.b16 %v7177
    %v8376 = vunpack.c.h.b16 %v7177
    %v8377 = vunpack.c.l.b16 %v7178
    %v8378 = vunpack.c.h.b16 %v7178
    %v8379 = vunpack.c.l.b16 %v7179
    %v8380 = vunpack.c.h.b16 %v7179
    %v8381 = vunpack.c.l.b16 %v7180
    %v8382 = vunpack.c.h.b16 %v7180
    %v8383 = vunpack.c.l.b16 %v7181
    %v8384 = vunpack.c.h.b16 %v7181
    %v8385 = vunpack.c.l.b16 %v7182
    %v8386 = vunpack.c.h.b16 %v7182
    %v8387 = vunpack.c.l.b16 %v7183
    %v8388 = vunpack.c.h.b16 %v7183
    %v8389 = vunpack.c.l.b16 %v7184
    %v8390 = vunpack.c.h.b16 %v7184
    %v8391 = vunpack.c.l.b16 %v7185
    %v8392 = vunpack.c.h.b16 %v7185
    %v8393 = vunpack.c.l.b16 %v7186
    %v8394 = vunpack.c.h.b16 %v7186
    %v8395 = vunpack.c.l.b16 %v7187
    %v8396 = vunpack.c.h.b16 %v7187
    %v8397 = vunpack.c.l.b16 %v7188
    %v8398 = vunpack.c.h.b16 %v7188
    %v8399 = vunpack.c.l.b16 %v7189
    %v8400 = vunpack.c.h.b16 %v7189
    %v8401 = vunpack.c.l.b16 %v7190
    %v8402 = vunpack.c.h.b16 %v7190
    %v8403 = vunpack.c.l.b16 %v7191
    %v8404 = vunpack.c.h.b16 %v7191
    %v8405 = vunpack.c.l.b16 %v7192
    %v8406 = vunpack.c.h.b16 %v7192
    %v8407 = vunpack.c.l.b16 %v7193
    %v8408 = vunpack.c.h.b16 %v7193
    %v8409 = vunpack.c.l.b16 %v7194
    %v8410 = vunpack.c.h.b16 %v7194
    %v8411 = vunpack.c.l.b16 %v7195
    %v8412 = vunpack.c.h.b16 %v7195
    %v8413 = vunpack.c.l.b16 %v7196
    %v8414 = vunpack.c.h.b16 %v7196
    %v8415 = vunpack.c.l.b16 %v7197
    %v8416 = vunpack.c.h.b16 %v7197
    %v8417 = vunpack.c.l.b16 %v7198
    %v8418 = vunpack.c.h.b16 %v7198
    %v8419 = vunpack.c.l.b16 %v7199
    %v8420 = vunpack.c.h.b16 %v7199
    %v8421 = vunpack.c.l.b16 %v7200
    %v8422 = vunpack.c.h.b16 %v7200
    %v8423 = vunpack.c.l.b16 %v7201
    %v8424 = vunpack.c.h.b16 %v7201
    %v8425 = vunpack.c.l.b16 %v7202
    %v8426 = vunpack.c.h.b16 %v7202
    %v8427 = vunpack.c.l.b16 %v7203
    %v8428 = vunpack.c.h.b16 %v7203
    %v8429 = vunpack.c.l.b16 %v7204
    %v8430 = vunpack.c.h.b16 %v7204
    %v8431 = vunpack.c.l.b16 %v7205
    %v8432 = vunpack.c.h.b16 %v7205
    %v8433 = vunpack.c.l.b16 %v7206
    %v8434 = vunpack.c.h.b16 %v7206
    %v8435 = vunpack.c.l.b16 %v7207
    %v8436 = vunpack.c.h.b16 %v7207
    %v8437 = vunpack.c.l.b16 %v7208
    %v8438 = vunpack.c.h.b16 %v7208
    %v8439 = vunpack.c.l.b16 %v7209
    %v8440 = vunpack.c.h.b16 %v7209
    %v8441 = vunpack.c.l.b16 %v7210
    %v8442 = vunpack.c.h.b16 %v7210
    %v8443 = vunpack.c.l.b16 %v7211
    %v8444 = vunpack.c.h.b16 %v7211
    %v8445 = vunpack.c.l.b16 %v7212
    %v8446 = vunpack.c.h.b16 %v7212
    %v8447 = vunpack.c.l.b16 %v7213
    %v8448 = vunpack.c.h.b16 %v7213
    %v8449 = vunpack.c.l.b16 %v7214
    %v8450 = vunpack.c.h.b16 %v7214
    %v8451 = vunpack.c.l.b16 %v7215
    %v8452 = vunpack.c.h.b16 %v7215
    %v8453 = vunpack.c.l.b16 %v7216
    %v8454 = vunpack.c.h.b16 %v7216
    %v8455 = vunpack.c.l.b16 %v7217
    %v8456 = vunpack.c.h.b16 %v7217
    %v8457 = vunpack.c.l.b16 %v7218
    %v8458 = vunpack.c.h.b16 %v7218
    %v8459 = vunpack.c.l.b16 %v7219
    %v8460 = vunpack.c.h.b16 %v7219
    %v8461 = vunpack.c.l.b16 %v7220
    %v8462 = vunpack.c.h.b16 %v7220
    %v8463 = vunpack.c.l.b16 %v7221
    %v8464 = vunpack.c.h.b16 %v7221
    %v8465 = vunpack.c.l.b16 %v7222
    %v8466 = vunpack.c.h.b16 %v7222
    %v8467 = vunpack.c.l.b16 %v7223
    %v8468 = vunpack.c.h.b16 %v7223
    %v8469 = vunpack.c.l.b16 %v7224
    %v8470 = vunpack.c.h.b16 %v7224
    %v8471 = vunpack.c.l.b16 %v7225
    %v8472 = vunpack.c.h.b16 %v7225
    %v8473 = vunpack.c.l.b16 %v7226
    %v8474 = vunpack.c.h.b16 %v7226
    %v8475 = vunpack.c.l.b16 %v7227
    %v8476 = vunpack.c.h.b16 %v7227
    %v8477 = vunpack.c.l.b16 %v7228
    %v8478 = vunpack.c.h.b16 %v7228
    %v8479 = vunpack.c.l.b16 %v7229
    %v8480 = vunpack.c.h.b16 %v7229
    %v8481 = vunpack.c.l.b16 %v7230
    %v8482 = vunpack.c.h.b16 %v7230
    %v8483 = vunpack.c.l.b16 %v7231
    %v8484 = vunpack.c.h.b16 %v7231
    %v8485 = vunpack.c.l.b16 %v7232
    %v8486 = vunpack.c.h.b16 %v7232
    %v8487 = vunpack.c.l.b16 %v7233
    %v8488 = vunpack.c.h.b16 %v7233
    %v8489 = vunpack.c.l.b16 %v7234
    %v8490 = vunpack.c.h.b16 %v7234
    %v8491 = vunpack.c.l.b16 %v7235
    %v8492 = vunpack.c.h.b16 %v7235
    %v8493 = vunpack.c.l.b16 %v7236
    %v8494 = vunpack.c.h.b16 %v7236
    %v8495 = vunpack.c.l.b16 %v7237
    %v8496 = vunpack.c.h.b16 %v7237
    %v8497 = vunpack.c.l.b16 %v7238
    %v8498 = vunpack.c.h.b16 %v7238
    %v8499 = vunpack.c.l.b16 %v7239
    %v8500 = vunpack.c.h.b16 %v7239
    %v8501 = vunpack.c.l.b16 %v7240
    %v8502 = vunpack.c.h.b16 %v7240
    %v8503 = vunpack.c.l.b16 %v7241
    %v8504 = vunpack.c.h.b16 %v7241
    %v8505 = vunpack.c.l.b16 %v7242
    %v8506 = vunpack.c.h.b16 %v7242
    %v8507 = vunpack.c.l.b16 %v7243
    %v8508 = vunpack.c.h.b16 %v7243
    %v8509 = vunpack.c.l.b16 %v7244
    %v8510 = vunpack.c.h.b16 %v7244
    %v8511 = vunpack.c.l.b16 %v7245
    %v8512 = vunpack.c.h.b16 %v7245
    %v8513 = vunpack.c.l.b16 %v7246
    %v8514 = vunpack.c.h.b16 %v7246
    %v8515 = vunpack.c.l.b16 %v7247
    %v8516 = vunpack.c.h.b16 %v7247
    %v8517 = vunpack.c.l.b16 %v7248
    %v8518 = vunpack.c.h.b16 %v7248
    %v8519 = vunpack.c.l.b16 %v7249
    %v8520 = vunpack.c.h.b16 %v7249
    %v8521 = vunpack.c.l.b16 %v7250
    %v8522 = vunpack.c.h.b16 %v7250
    %v8523 = vunpack.c.l.b16 %v7251
    %v8524 = vunpack.c.h.b16 %v7251
    %v8525 = vunpack.c.l.b16 %v7252
    %v8526 = vunpack.c.h.b16 %v7252
    %v8527 = vunpack.c.l.b16 %v7253
    %v8528 = vunpack.c.h.b16 %v7253
    %v8529 = vunpack.c.l.b16 %v7254
    %v8530 = vunpack.c.h.b16 %v7254
    %v8531 = vunpack.c.l.b16 %v7255
    %v8532 = vunpack.c.h.b16 %v7255
    %v8533 = vunpack.c.l.b16 %v7256
    %v8534 = vunpack.c.h.b16 %v7256
    %v8535 = vunpack.c.l.b16 %v7257
    %v8536 = vunpack.c.h.b16 %v7257
    %v8537 = vunpack.c.l.b16 %v7258
    %v8538 = vunpack.c.h.b16 %v7258
    %v8539 = vunpack.c.l.b16 %v7259
    %v8540 = vunpack.c.h.b16 %v7259
    %v8541 = vunpack.c.l.b16 %v7260
    %v8542 = vunpack.c.h.b16 %v7260
    %v8543 = vunpack.c.l.b16 %v7261
    %v8544 = vunpack.c.h.b16 %v7261
    %v8545 = vunpack.c.l.b16 %v7262
    %v8546 = vunpack.c.h.b16 %v7262
    %v8547 = vunpack.c.l.b16 %v7263
    %v8548 = vunpack.c.h.b16 %v7263
    %v8549 = vunpack.c.l.b16 %v7264
    %v8550 = vunpack.c.h.b16 %v7264
    %v8551 = vunpack.c.l.b16 %v7265
    %v8552 = vunpack.c.h.b16 %v7265
    %v8553 = vunpack.c.l.b16 %v7266
    %v8554 = vunpack.c.h.b16 %v7266
    %v8555 = vunpack.c.l.b16 %v7267
    %v8556 = vunpack.c.h.b16 %v7267
    %v8557 = vunpack.c.l.b16 %v7268
    %v8558 = vunpack.c.h.b16 %v7268
    %v8559 = vunpack.c.l.b16 %v7269
    %v8560 = vunpack.c.h.b16 %v7269
    %v8561 = vunpack.c.l.b16 %v7270
    %v8562 = vunpack.c.h.b16 %v7270
    %v8563 = vunpack.c.l.b16 %v7271
    %v8564 = vunpack.c.h.b16 %v7271
    %v8565 = vunpack.c.l.b16 %v7272
    %v8566 = vunpack.c.h.b16 %v7272
    %v8567 = vunpack.c.l.b16 %v7273
    %v8568 = vunpack.c.h.b16 %v7273
    %v8569 = vunpack.c.l.b16 %v7274
    %v8570 = vunpack.c.h.b16 %v7274
    %v8571 = vunpack.c.l.b16 %v7275
    %v8572 = vunpack.c.h.b16 %v7275
    %v8573 = vunpack.c.l.b16 %v7276
    %v8574 = vunpack.c.h.b16 %v7276
    %v8575 = vunpack.c.l.b16 %v7277
    %v8576 = vunpack.c.h.b16 %v7277
    %v8577 = vunpack.c.l.b16 %v7278
    %v8578 = vunpack.c.h.b16 %v7278
    %v8579 = vunpack.c.l.b16 %v7279
    %v8580 = vunpack.c.h.b16 %v7279
    %v8581 = vunpack.c.l.b16 %v7280
    %v8582 = vunpack.c.h.b16 %v7280
    %v8583 = vunpack.c.l.b16 %v7281
    %v8584 = vunpack.c.h.b16 %v7281
    %v8585 = vunpack.c.l.b16 %v7282
    %v8586 = vunpack.c.h.b16 %v7282
    %v8587 = vunpack.c.l.b16 %v7283
    %v8588 = vunpack.c.h.b16 %v7283
    %v8589 = vunpack.c.l.b16 %v7284
    %v8590 = vunpack.c.h.b16 %v7284
    %v8591 = vunpack.c.l.b16 %v7285
    %v8592 = vunpack.c.h.b16 %v7285
    %v8593 = vunpack.c.l.b16 %v7286
    %v8594 = vunpack.c.h.b16 %v7286
    %v8595 = vunpack.c.l.b16 %v7287
    %v8596 = vunpack.c.h.b16 %v7287
    %v8597 = vunpack.c.l.b16 %v7288
    %v8598 = vunpack.c.h.b16 %v7288
    %v8599 = vunpack.c.l.b16 %v7289
    %v8600 = vunpack.c.h.b16 %v7289
    %v8601 = vunpack.c.l.b16 %v7290
    %v8602 = vunpack.c.h.b16 %v7290
    %v8603 = vunpack.c.l.b16 %v7291
    %v8604 = vunpack.c.h.b16 %v7291
    %v8605 = vunpack.c.l.b16 %v7292
    %v8606 = vunpack.c.h.b16 %v7292
    %v8607 = vunpack.c.l.b16 %v7293
    %v8608 = vunpack.c.h.b16 %v7293
    %v8609 = vunpack.c.l.b16 %v7294
    %v8610 = vunpack.c.h.b16 %v7294
    %v8611 = vunpack.c.l.b16 %v7295
    %v8612 = vunpack.c.h.b16 %v7295
    %v8613 = vunpack.c.l.b16 %v7296
    %v8614 = vunpack.c.h.b16 %v7296
    %v8615 = vunpack.c.l.b16 %v7297
    %v8616 = vunpack.c.h.b16 %v7297
    %v8617 = vunpack.c.l.b16 %v7298
    %v8618 = vunpack.c.h.b16 %v7298
    %v8619 = vunpack.c.l.b16 %v7299
    %v8620 = vunpack.c.h.b16 %v7299
    %v8621 = vunpack.c.l.b16 %v7300
    %v8622 = vunpack.c.h.b16 %v7300
    %v8623 = vunpack.c.l.b16 %v7301
    %v8624 = vunpack.c.h.b16 %v7301
    %v8625 = vunpack.c.l.b16 %v7302
    %v8626 = vunpack.c.h.b16 %v7302
    %v8627 = vunpack.c.l.b16 %v7303
    %v8628 = vunpack.c.h.b16 %v7303
    %v8629 = vunpack.c.l.b16 %v7304
    %v8630 = vunpack.c.h.b16 %v7304
    %v8631 = vunpack.c.l.b16 %v7305
    %v8632 = vunpack.c.h.b16 %v7305
    %v8633 = vunpack.c.l.b16 %v7306
    %v8634 = vunpack.c.h.b16 %v7306
    %v8635 = vunpack.c.l.b16 %v7307
    %v8636 = vunpack.c.h.b16 %v7307
    %v8637 = vunpack.c.l.b16 %v7308
    %v8638 = vunpack.c.h.b16 %v7308
    %v8639 = vunpack.c.l.b16 %v7309
    %v8640 = vunpack.c.h.b16 %v7309
    %v8641 = vunpack.c.l.b16 %v7310
    %v8642 = vunpack.c.h.b16 %v7310
    %v8643 = vunpack.c.l.b16 %v7311
    %v8644 = vunpack.c.h.b16 %v7311
    %v8645 = vunpack.c.l.b16 %v7312
    %v8646 = vunpack.c.h.b16 %v7312
    %v8647 = vunpack.c.l.b16 %v7313
    %v8648 = vunpack.c.h.b16 %v7313
    %v8649 = vunpack.c.l.b16 %v7314
    %v8650 = vunpack.c.h.b16 %v7314
    %v8651 = vunpack.c.l.b16 %v7315
    %v8652 = vunpack.c.h.b16 %v7315
    %v8653 = vunpack.c.l.b16 %v7316
    %v8654 = vunpack.c.h.b16 %v7316
    %v8655 = vunpack.c.l.b16 %v7317
    %v8656 = vunpack.c.h.b16 %v7317
    %v8657 = vunpack.c.l.b16 %v7318
    %v8658 = vunpack.c.h.b16 %v7318
    %v8659 = vunpack.c.l.b16 %v7319
    %v8660 = vunpack.c.h.b16 %v7319
    %v8661 = vunpack.c.l.b16 %v7320
    %v8662 = vunpack.c.h.b16 %v7320
    %v8663 = vunpack.c.l.b16 %v7321
    %v8664 = vunpack.c.h.b16 %v7321
    %v8665 = vunpack.c.l.b16 %v7322
    %v8666 = vunpack.c.h.b16 %v7322
    %v8667 = vunpack.c.l.b16 %v7323
    %v8668 = vunpack.c.h.b16 %v7323
    %v8669 = vunpack.c.l.b16 %v7324
    %v8670 = vunpack.c.h.b16 %v7324
    %v8671 = vunpack.c.l.b16 %v7325
    %v8672 = vunpack.c.h.b16 %v7325
    %v8673 = vunpack.c.l.b16 %v7326
    %v8674 = vunpack.c.h.b16 %v7326
    %v8675 = vunpack.c.l.b16 %v7327
    %v8676 = vunpack.c.h.b16 %v7327
    %v8677 = vunpack.c.l.b16 %v7328
    %v8678 = vunpack.c.h.b16 %v7328
    %v8679 = vunpack.c.l.b16 %v7329
    %v8680 = vunpack.c.h.b16 %v7329
    %v8681 = vunpack.c.l.b16 %v7330
    %v8682 = vunpack.c.h.b16 %v7330
    %v8683 = vunpack.c.l.b16 %v7331
    %v8684 = vunpack.c.h.b16 %v7331
    %v8685 = vunpack.c.l.b16 %v7332
    %v8686 = vunpack.c.h.b16 %v7332
    %v8687 = vunpack.c.l.b16 %v7333
    %v8688 = vunpack.c.h.b16 %v7333
    %v8689 = vunpack.c.l.b16 %v7334
    %v8690 = vunpack.c.h.b16 %v7334
    %v8691 = vunpack.c.l.b16 %v7335
    %v8692 = vunpack.c.h.b16 %v7335
    %v8693 = vunpack.c.l.b16 %v7336
    %v8694 = vunpack.c.h.b16 %v7336
    %v8695 = vunpack.c.l.b16 %v7337
    %v8696 = vunpack.c.h.b16 %v7337
    %v8697 = vunpack.c.l.b16 %v7338
    %v8698 = vunpack.c.h.b16 %v7338
    %v8699 = vunpack.c.l.b16 %v7339
    %v8700 = vunpack.c.h.b16 %v7339
    %v8701 = vunpack.c.l.b16 %v7340
    %v8702 = vunpack.c.h.b16 %v7340
    %v8703 = vunpack.c.l.b16 %v7341
    %v8704 = vunpack.c.h.b16 %v7341
    %v8705 = vunpack.c.l.b16 %v7342
    %v8706 = vunpack.c.h.b16 %v7342
    %v8707 = vunpack.c.l.b16 %v7343
    %v8708 = vunpack.c.h.b16 %v7343
    %v8709 = vunpack.c.l.b16 %v7344
    %v8710 = vunpack.c.h.b16 %v7344
    %v8711 = vunpack.c.l.b16 %v7345
    %v8712 = vunpack.c.h.b16 %v7345
    %v8713 = vunpack.c.l.b16 %v7346
    %v8714 = vunpack.c.h.b16 %v7346
    %v8715 = vunpack.c.l.b16 %v7347
    %v8716 = vunpack.c.h.b16 %v7347
    %v8717 = vunpack.c.l.b16 %v7348
    %v8718 = vunpack.c.h.b16 %v7348
    %v8719 = vunpack.c.l.b16 %v7349
    %v8720 = vunpack.c.h.b16 %v7349
    %v8721 = vunpack.c.l.b16 %v7350
    %v8722 = vunpack.c.h.b16 %v7350
    %v8723 = vunpack.c.l.b16 %v7351
    %v8724 = vunpack.c.h.b16 %v7351
    %v8725 = vunpack.c.l.b16 %v7352
    %v8726 = vunpack.c.h.b16 %v7352
    %v8727 = vunpack.c.l.b16 %v7353
    %v8728 = vunpack.c.h.b16 %v7353
    %v8729 = vunpack.c.l.b16 %v7354
    %v8730 = vunpack.c.h.b16 %v7354
    %v8731 = vunpack.c.l.b16 %v7355
    %v8732 = vunpack.c.h.b16 %v7355
    %v8733 = vunpack.c.l.b16 %v7356
    %v8734 = vunpack.c.h.b16 %v7356
    %v8735 = vunpack.c.l.b16 %v7357
    %v8736 = vunpack.c.h.b16 %v7357
    %v8737 = vunpack.c.l.b16 %v7358
    %v8738 = vunpack.c.h.b16 %v7358
    %v8739 = vunpack.c.l.b16 %v7359
    %v8740 = vunpack.c.h.b16 %v7359
    %v8741 = vunpack.c.l.b16 %v7360
    %v8742 = vunpack.c.h.b16 %v7360
    %v8743 = vunpack.c.l.b16 %v7361
    %v8744 = vunpack.c.h.b16 %v7361
    %v8745 = vunpack.c.l.b16 %v7362
    %v8746 = vunpack.c.h.b16 %v7362
    %v8747 = vunpack.c.l.b16 %v7363
    %v8748 = vunpack.c.h.b16 %v7363
    %v8749 = vunpack.c.l.b16 %v7364
    %v8750 = vunpack.c.h.b16 %v7364
    %v8751 = vunpack.c.l.b16 %v7365
    %v8752 = vunpack.c.h.b16 %v7365
    %v8753 = vunpack.c.l.b16 %v7366
    %v8754 = vunpack.c.h.b16 %v7366
    %v8755 = vunpack.c.l.b16 %v7367
    %v8756 = vunpack.c.h.b16 %v7367
    %v8757 = vunpack.c.l.b16 %v7368
    %v8758 = vunpack.c.h.b16 %v7368
    %v8759 = vunpack.c.l.b16 %v7369
    %v8760 = vunpack.c.h.b16 %v7369
    %v8761 = vunpack.c.l.b16 %v7370
    %v8762 = vunpack.c.h.b16 %v7370
    %v8763 = vunpack.c.l.b16 %v7371
    %v8764 = vunpack.c.h.b16 %v7371
    %v8765 = vunpack.c.l.b16 %v7372
    %v8766 = vunpack.c.h.b16 %v7372
    %v8767 = vunpack.c.l.b16 %v7373
    %v8768 = vunpack.c.h.b16 %v7373
    %v8769 = vunpack.c.l.b16 %v7374
    %v8770 = vunpack.c.h.b16 %v7374
    %v8771 = vunpack.c.l.b16 %v7375
    %v8772 = vunpack.c.h.b16 %v7375
    %v8773 = vunpack.c.l.b16 %v7376
    %v8774 = vunpack.c.h.b16 %v7376
    %v8775 = vunpack.c.l.b16 %v7377
    %v8776 = vunpack.c.h.b16 %v7377
    %v8777 = vunpack.c.l.b16 %v7378
    %v8778 = vunpack.c.h.b16 %v7378
    %v8779 = vunpack.c.l.b16 %v7379
    %v8780 = vunpack.c.h.b16 %v7379
    %v8781 = vunpack.c.l.b16 %v7380
    %v8782 = vunpack.c.h.b16 %v7380
    %v8783 = vunpack.c.l.b16 %v7381
    %v8784 = vunpack.c.h.b16 %v7381
    %v8785 = vunpack.c.l.b16 %v7382
    %v8786 = vunpack.c.h.b16 %v7382
    %v8787 = vunpack.c.l.b16 %v7383
    %v8788 = vunpack.c.h.b16 %v7383
    %v8789 = vunpack.c.l.b16 %v7384
    %v8790 = vunpack.c.h.b16 %v7384
    %v8791 = vunpack.c.l.b16 %v7385
    %v8792 = vunpack.c.h.b16 %v7385
    %v8793 = vunpack.c.l.b16 %v7386
    %v8794 = vunpack.c.h.b16 %v7386
    %v8795 = vunpack.c.l.b16 %v7387
    %v8796 = vunpack.c.h.b16 %v7387
    %v8797 = vunpack.c.l.b16 %v7388
    %v8798 = vunpack.c.h.b16 %v7388
    %v8799 = vunpack.c.l.b16 %v7389
    %v8800 = vunpack.c.h.b16 %v7389
    %v8801 = vunpack.c.l.b16 %v7390
    %v8802 = vunpack.c.h.b16 %v7390
    %v8803 = vunpack.c.l.b16 %v7391
    %v8804 = vunpack.c.h.b16 %v7391
    %v8805 = vunpack.c.l.b16 %v7392
    %v8806 = vunpack.c.h.b16 %v7392
    %v8807 = vunpack.c.l.b16 %v7393
    %v8808 = vunpack.c.h.b16 %v7393
    %v8809 = vunpack.c.l.b16 %v7394
    %v8810 = vunpack.c.h.b16 %v7394
    %v8811 = vunpack.c.l.b16 %v7395
    %v8812 = vunpack.c.h.b16 %v7395
    %v8813 = vunpack.c.l.b16 %v7396
    %v8814 = vunpack.c.h.b16 %v7396
    %v8815 = vunpack.c.l.b16 %v7397
    %v8816 = vunpack.c.h.b16 %v7397
    %v8817 = vunpack.c.l.b16 %v7398
    %v8818 = vunpack.c.h.b16 %v7398
    %v8819 = vunpack.c.l.b16 %v7399
    %v8820 = vunpack.c.h.b16 %v7399
    %v8821 = vunpack.c.l.b16 %v7400
    %v8822 = vunpack.c.h.b16 %v7400
    %v8823 = vunpack.c.l.b16 %v7401
    %v8824 = vunpack.c.h.b16 %v7401
    %v8825 = vunpack.c.l.b16 %v7402
    %v8826 = vunpack.c.h.b16 %v7402
    %v8827 = vunpack.c.l.b16 %v7403
    %v8828 = vunpack.c.h.b16 %v7403
    %v8829 = vunpack.c.l.b16 %v7404
    %v8830 = vunpack.c.h.b16 %v7404
    %v8831 = vunpack.c.l.b16 %v7405
    %v8832 = vunpack.c.h.b16 %v7405
    %v8833 = vunpack.c.l.b16 %v7406
    %v8834 = vunpack.c.h.b16 %v7406
    %v8835 = vunpack.c.l.b16 %v7407
    %v8836 = vunpack.c.h.b16 %v7407
    %v8837 = vunpack.c.l.b16 %v7408
    %v8838 = vunpack.c.h.b16 %v7408
    %v8839 = vunpack.c.l.b16 %v7409
    %v8840 = vunpack.c.h.b16 %v7409
    %v8841 = vunpack.c.l.b16 %v7410
    %v8842 = vunpack.c.h.b16 %v7410
    %v8843 = vunpack.c.l.b16 %v7411
    %v8844 = vunpack.c.h.b16 %v7411
    %v8845 = vunpack.c.l.b16 %v7412
    %v8846 = vunpack.c.h.b16 %v7412
    %v8847 = vunpack.c.l.b16 %v7413
    %v8848 = vunpack.c.h.b16 %v7413
    %v8849 = vunpack.c.l.b16 %v7414
    %v8850 = vunpack.c.h.b16 %v7414
    %v8851 = vunpack.c.l.b16 %v7415
    %v8852 = vunpack.c.h.b16 %v7415
    %v8853 = vunpack.c.l.b16 %v7416
    %v8854 = vunpack.c.h.b16 %v7416
    %v8855 = vunpack.c.l.b16 %v7417
    %v8856 = vunpack.c.h.b16 %v7417
    %v8857 = vunpack.c.l.b16 %v7418
    %v8858 = vunpack.c.h.b16 %v7418
    %v8859 = vunpack.c.l.b16 %v7419
    %v8860 = vunpack.c.h.b16 %v7419
    %v8861 = vunpack.c.l.b16 %v7420
    %v8862 = vunpack.c.h.b16 %v7420
    %v8863 = vunpack.c.l.b16 %v7421
    %v8864 = vunpack.c.h.b16 %v7421
    %v8865 = vunpack.c.l.b16 %v7422
    %v8866 = vunpack.c.h.b16 %v7422
    %v8867 = vunpack.c.l.b16 %v7423
    %v8868 = vunpack.c.h.b16 %v7423
    %v8869 = vunpack.c.l.b16 %v7424
    %v8870 = vunpack.c.h.b16 %v7424
    %v8871 = vunpack.c.l.b16 %v7425
    %v8872 = vunpack.c.h.b16 %v7425
    %v8873 = vunpack.c.l.b16 %v7426
    %v8874 = vunpack.c.h.b16 %v7426
    %v8875 = vunpack.c.l.b16 %v7427
    %v8876 = vunpack.c.h.b16 %v7427
    %v8877 = vunpack.c.l.b16 %v7428
    %v8878 = vunpack.c.h.b16 %v7428
    %v8879 = vunpack.c.l.b16 %v7429
    %v8880 = vunpack.c.h.b16 %v7429
    %v8881 = vunpack.c.l.b16 %v7430
    %v8882 = vunpack.c.h.b16 %v7430
    %v8883 = vunpack.c.l.b16 %v7431
    %v8884 = vunpack.c.h.b16 %v7431
    %v8885 = vunpack.c.l.b16 %v7432
    %v8886 = vunpack.c.h.b16 %v7432
    %v8887 = vunpack.c.l.b16 %v7433
    %v8888 = vunpack.c.h.b16 %v7433
    %v8889 = vunpack.c.l.b16 %v7434
    %v8890 = vunpack.c.h.b16 %v7434
    %v8891 = vunpack.c.l.b16 %v7435
    %v8892 = vunpack.c.h.b16 %v7435
    %v8893 = vunpack.c.l.b16 %v7436
    %v8894 = vunpack.c.h.b16 %v7436
    %v8895 = vunpack.c.l.b16 %v7437
    %v8896 = vunpack.c.h.b16 %v7437
    %v8897 = vunpack.c.l.b16 %v7438
    %v8898 = vunpack.c.h.b16 %v7438
    %v8899 = vunpack.c.l.b16 %v7439
    %v8900 = vunpack.c.h.b16 %v7439
    %v8901 = vunpack.c.l.b16 %v7440
    %v8902 = vunpack.c.h.b16 %v7440
    %v8903 = vunpack.c.l.b16 %v7441
    %v8904 = vunpack.c.h.b16 %v7441
    %v8905 = vunpack.c.l.b16 %v7442
    %v8906 = vunpack.c.h.b16 %v7442
    %v8907 = vunpack.c.l.b16 %v7443
    %v8908 = vunpack.c.h.b16 %v7443
    %v8909 = vunpack.c.l.b16 %v7444
    %v8910 = vunpack.c.h.b16 %v7444
    %v8911 = vunpack.c.l.b16 %v7445
    %v8912 = vunpack.c.h.b16 %v7445
    %v8913 = vunpack.c.l.b16 %v7446
    %v8914 = vunpack.c.h.b16 %v7446
    %v8915 = vunpack.c.l.b16 %v7447
    %v8916 = vunpack.c.h.b16 %v7447
    %v8917 = vunpack.c.l.b16 %v7448
    %v8918 = vunpack.c.h.b16 %v7448
    %v8919 = vunpack.c.l.b16 %v7449
    %v8920 = vunpack.c.h.b16 %v7449
    %v8921 = vunpack.c.l.b16 %v7450
    %v8922 = vunpack.c.h.b16 %v7450
    %v8923 = vunpack.c.l.b16 %v7451
    %v8924 = vunpack.c.h.b16 %v7451
    %v8925 = vunpack.c.l.b16 %v7452
    %v8926 = vunpack.c.h.b16 %v7452
    %v8927 = vunpack.c.l.b16 %v7453
    %v8928 = vunpack.c.h.b16 %v7453
    %v8929 = vunpack.c.l.b16 %v7454
    %v8930 = vunpack.c.h.b16 %v7454
    %v8931 = vunpack.c.l.b16 %v7455
    %v8932 = vunpack.c.h.b16 %v7455
    %v8933 = vunpack.c.l.b16 %v7456
    %v8934 = vunpack.c.h.b16 %v7456
    %v8935 = vunpack.c.l.b16 %v7457
    %v8936 = vunpack.c.h.b16 %v7457
    %v8937 = vunpack.c.l.b16 %v7458
    %v8938 = vunpack.c.h.b16 %v7458
    %v8939 = vunpack.c.l.b16 %v7459
    %v8940 = vunpack.c.h.b16 %v7459
    %v8941 = vunpack.c.l.b16 %v7460
    %v8942 = vunpack.c.h.b16 %v7460
    %v8943 = vunpack.c.l.b16 %v7461
    %v8944 = vunpack.c.h.b16 %v7461
    %v8945 = vunpack.c.l.b16 %v7462
    %v8946 = vunpack.c.h.b16 %v7462
    %v8947 = vunpack.c.l.b16 %v7463
    %v8948 = vunpack.c.h.b16 %v7463
    %v8949 = vunpack.c.l.b16 %v7464
    %v8950 = vunpack.c.h.b16 %v7464
    %v8951 = vunpack.c.l.b16 %v7465
    %v8952 = vunpack.c.h.b16 %v7465
    %v8953 = vunpack.c.l.b16 %v7466
    %v8954 = vunpack.c.h.b16 %v7466
    %v8955 = vunpack.c.l.b16 %v7467
    %v8956 = vunpack.c.h.b16 %v7467
    %v8957 = vunpack.c.l.b16 %v7468
    %v8958 = vunpack.c.h.b16 %v7468
    %v8959 = vunpack.c.l.b16 %v7469
    %v8960 = vunpack.c.h.b16 %v7469
    %v8961 = vunpack.c.l.b16 %v7470
    %v8962 = vunpack.c.h.b16 %v7470
    %v8963 = vunpack.c.l.b16 %v7471
    %v8964 = vunpack.c.h.b16 %v7471
    %v8965 = vunpack.c.l.b16 %v7472
    %v8966 = vunpack.c.h.b16 %v7472
    %v8967 = vunpack.c.l.b16 %v7473
    %v8968 = vunpack.c.h.b16 %v7473
    %v8969 = vunpack.c.l.b16 %v7474
    %v8970 = vunpack.c.h.b16 %v7474
    %v8971 = vunpack.c.l.b16 %v7475
    %v8972 = vunpack.c.h.b16 %v7475
    %v8973 = vunpack.c.l.b16 %v7476
    %v8974 = vunpack.c.h.b16 %v7476
    %v8975 = vunpack.c.l.b16 %v7477
    %v8976 = vunpack.c.h.b16 %v7477
    %v8977 = vunpack.c.l.b16 %v7478
    %v8978 = vunpack.c.h.b16 %v7478
    %v8979 = vunpack.c.l.b16 %v7479
    %v8980 = vunpack.c.h.b16 %v7479
    %v8981 = vunpack.c.l.b16 %v7480
    %v8982 = vunpack.c.h.b16 %v7480
    %v8983 = vunpack.c.l.b16 %v7481
    %v8984 = vunpack.c.h.b16 %v7481
    %v8985 = vunpack.c.l.b16 %v7482
    %v8986 = vunpack.c.h.b16 %v7482
    %v8987 = vunpack.c.l.b16 %v7483
    %v8988 = vunpack.c.h.b16 %v7483
    %v8989 = vunpack.c.l.b16 %v7484
    %v8990 = vunpack.c.h.b16 %v7484
    %v8991 = vunpack.c.l.b16 %v7485
    %v8992 = vunpack.c.h.b16 %v7485
    %v8993 = vunpack.c.l.b16 %v7486
    %v8994 = vunpack.c.h.b16 %v7486
    %v8995 = vunpack.c.l.b16 %v7487
    %v8996 = vunpack.c.h.b16 %v7487
    %v8997 = vunpack.c.l.b16 %v7488
    %v8998 = vunpack.c.h.b16 %v7488
    %v8999 = vunpack.c.l.b16 %v7489
    %v9000 = vunpack.c.h.b16 %v7489
    %v9001 = vunpack.c.l.b16 %v7490
    %v9002 = vunpack.c.h.b16 %v7490
    %v9003 = vunpack.c.l.b16 %v7491
    %v9004 = vunpack.c.h.b16 %v7491
    %v9005 = vunpack.c.l.b16 %v7492
    %v9006 = vunpack.c.h.b16 %v7492
    %v9007 = vunpack.c.l.b16 %v7493
    %v9008 = vunpack.c.h.b16 %v7493
    %v9009 = vunpack.c.l.b16 %v7494
    %v9010 = vunpack.c.h.b16 %v7494
    %v9011 = vunpack.c.l.b16 %v7495
    %v9012 = vunpack.c.h.b16 %v7495
    %v9013 = vunpack.c.l.b16 %v7496
    %v9014 = vunpack.c.h.b16 %v7496
    %v9015 = vunpack.c.l.b16 %v7497
    %v9016 = vunpack.c.h.b16 %v7497
    %v9017 = vunpack.c.l.b16 %v7498
    %v9018 = vunpack.c.h.b16 %v7498
    %v9019 = vunpack.c.l.b16 %v7499
    %v9020 = vunpack.c.h.b16 %v7499
    %v9021 = vunpack.c.l.b16 %v7500
    %v9022 = vunpack.c.h.b16 %v7500
    %v9023 = vunpack.c.l.b16 %v7501
    %v9024 = vunpack.c.h.b16 %v7501
    %v9025 = vunpack.c.l.b16 %v7502
    %v9026 = vunpack.c.h.b16 %v7502
    %v9027 = vunpack.c.l.b16 %v7503
    %v9028 = vunpack.c.h.b16 %v7503
    %v9029 = vunpack.c.l.b16 %v7504
    %v9030 = vunpack.c.h.b16 %v7504
    %v9031 = vunpack.c.l.b16 %v7505
    %v9032 = vunpack.c.h.b16 %v7505
    %v9033 = vunpack.c.l.b16 %v7506
    %v9034 = vunpack.c.h.b16 %v7506
    %v9035 = vunpack.c.l.b16 %v7507
    %v9036 = vunpack.c.h.b16 %v7507
    %v9037 = vunpack.c.l.b16 %v7508
    %v9038 = vunpack.c.h.b16 %v7508
    %v9039 = vunpack.c.l.b16 %v7509
    %v9040 = vunpack.c.h.b16 %v7509
    %v9041 = vunpack.c.l.b16 %v7510
    %v9042 = vunpack.c.h.b16 %v7510
    %v9043 = vunpack.c.l.b16 %v7511
    %v9044 = vunpack.c.h.b16 %v7511
    %v9045 = vunpack.c.l.b16 %v7512
    %v9046 = vunpack.c.h.b16 %v7512
    %v9047 = vunpack.c.l.b16 %v7513
    %v9048 = vunpack.c.h.b16 %v7513
    %v9049 = vunpack.c.l.b16 %v7514
    %v9050 = vunpack.c.h.b16 %v7514
    %v9051 = vunpack.c.l.b16 %v7515
    %v9052 = vunpack.c.h.b16 %v7515
    %v9053 = vunpack.c.l.b16 %v7516
    %v9054 = vunpack.c.h.b16 %v7516
    %v9055 = vunpack.c.l.b16 %v7517
    %v9056 = vunpack.c.h.b16 %v7517
    %v9057 = vunpack.c.l.b16 %v7518
    %v9058 = vunpack.c.h.b16 %v7518
    %v9059 = vunpack.c.l.b16 %v7519
    %v9060 = vunpack.c.h.b16 %v7519
    %v9061 = vunpack.c.l.b16 %v7520
    %v9062 = vunpack.c.h.b16 %v7520
    %v9063 = vunpack.c.l.b16 %v7521
    %v9064 = vunpack.c.h.b16 %v7521
    %v9065 = vunpack.c.l.b16 %v7522
    %v9066 = vunpack.c.h.b16 %v7522
    %v9067 = vunpack.c.l.b16 %v7523
    %v9068 = vunpack.c.h.b16 %v7523
    %v9069 = vunpack.c.l.b16 %v7524
    %v9070 = vunpack.c.h.b16 %v7524
    %v9071 = vpack.c.b16 %v8051, %v8047
    %v9072 = vpack.c.b16 %v8052, %v8048
    %v9073 = vpack.c.b16 %v8053, %v8049
    %v9074 = vpack.c.b16 %v8054, %v8050
    %v9075 = vpack.c.b16 %v8059, %v8055
    %v9076 = vpack.c.b16 %v8060, %v8056
    %v9077 = vpack.c.b16 %v8061, %v8057
    %v9078 = vpack.c.b16 %v8062, %v8058
    %v9079 = vpack.c.b16 %v8067, %v8063
    %v9080 = vpack.c.b16 %v8068, %v8064
    %v9081 = vpack.c.b16 %v8069, %v8065
    %v9082 = vpack.c.b16 %v8070, %v8066
    %v9083 = vpack.c.b16 %v8075, %v8071
    %v9084 = vpack.c.b16 %v8076, %v8072
    %v9085 = vpack.c.b16 %v8077, %v8073
    %v9086 = vpack.c.b16 %v8078, %v8074
    %v9087 = vpack.c.b16 %v8083, %v8079
    %v9088 = vpack.c.b16 %v8084, %v8080
    %v9089 = vpack.c.b16 %v8085, %v8081
    %v9090 = vpack.c.b16 %v8086, %v8082
    %v9091 = vpack.c.b16 %v8091, %v8087
    %v9092 = vpack.c.b16 %v8092, %v8088
    %v9093 = vpack.c.b16 %v8093, %v8089
    %v9094 = vpack.c.b16 %v8094, %v8090
    %v9095 = vpack.c.b16 %v8099, %v8095
    %v9096 = vpack.c.b16 %v8100, %v8096
    %v9097 = vpack.c.b16 %v8101, %v8097
    %v9098 = vpack.c.b16 %v8102, %v8098
    %v9099 = vpack.c.b16 %v8107, %v8103
    %v9100 = vpack.c.b16 %v8108, %v8104
    %v9101 = vpack.c.b16 %v8109, %v8105
    %v9102 = vpack.c.b16 %v8110, %v8106
    %v9103 = vpack.c.b16 %v8115, %v8111
    %v9104 = vpack.c.b16 %v8116, %v8112
    %v9105 = vpack.c.b16 %v8117, %v8113
    %v9106 = vpack.c.b16 %v8118, %v8114
    %v9107 = vpack.c.b16 %v8123, %v8119
    %v9108 = vpack.c.b16 %v8124, %v8120
    %v9109 = vpack.c.b16 %v8125, %v8121
    %v9110 = vpack.c.b16 %v8126, %v8122
    %v9111 = vpack.c.b16 %v8131, %v8127
    %v9112 = vpack.c.b16 %v8132, %v8128
    %v9113 = vpack.c.b16 %v8133, %v8129
    %v9114 = vpack.c.b16 %v8134, %v8130
    %v9115 = vpack.c.b16 %v8139, %v8135
    %v9116 = vpack.c.b16 %v8140, %v8136
    %v9117 = vpack.c.b16 %v8141, %v8137
    %v9118 = vpack.c.b16 %v8142, %v8138
    %v9119 = vpack.c.b16 %v8147, %v8143
    %v9120 = vpack.c.b16 %v8148, %v8144
    %v9121 = vpack.c.b16 %v8149, %v8145
    %v9122 = vpack.c.b16 %v8150, %v8146
    %v9123 = vpack.c.b16 %v8155, %v8151
    %v9124 = vpack.c.b16 %v8156, %v8152
    %v9125 = vpack.c.b16 %v8157, %v8153
    %v9126 = vpack.c.b16 %v8158, %v8154
    %v9127 = vpack.c.b16 %v8163, %v8159
    %v9128 = vpack.c.b16 %v8164, %v8160
    %v9129 = vpack.c.b16 %v8165, %v8161
    %v9130 = vpack.c.b16 %v8166, %v8162
    %v9131 = vpack.c.b16 %v8171, %v8167
    %v9132 = vpack.c.b16 %v8172, %v8168
    %v9133 = vpack.c.b16 %v8173, %v8169
    %v9134 = vpack.c.b16 %v8174, %v8170
    %v9135 = vpack.c.b16 %v8179, %v8175
    %v9136 = vpack.c.b16 %v8180, %v8176
    %v9137 = vpack.c.b16 %v8181, %v8177
    %v9138 = vpack.c.b16 %v8182, %v8178
    %v9139 = vpack.c.b16 %v8187, %v8183
    %v9140 = vpack.c.b16 %v8188, %v8184
    %v9141 = vpack.c.b16 %v8189, %v8185
    %v9142 = vpack.c.b16 %v8190, %v8186
    %v9143 = vpack.c.b16 %v8195, %v8191
    %v9144 = vpack.c.b16 %v8196, %v8192
    %v9145 = vpack.c.b16 %v8197, %v8193
    %v9146 = vpack.c.b16 %v8198, %v8194
    %v9147 = vpack.c.b16 %v8203, %v8199
    %v9148 = vpack.c.b16 %v8204, %v8200
    %v9149 = vpack.c.b16 %v8205, %v8201
    %v9150 = vpack.c.b16 %v8206, %v8202
    %v9151 = vpack.c.b16 %v8211, %v8207
    %v9152 = vpack.c.b16 %v8212, %v8208
    %v9153 = vpack.c.b16 %v8213, %v8209
    %v9154 = vpack.c.b16 %v8214, %v8210
    %v9155 = vpack.c.b16 %v8219, %v8215
    %v9156 = vpack.c.b16 %v8220, %v8216
    %v9157 = vpack.c.b16 %v8221, %v8217
    %v9158 = vpack.c.b16 %v8222, %v8218
    %v9159 = vpack.c.b16 %v8227, %v8223
    %v9160 = vpack.c.b16 %v8228, %v8224
    %v9161 = vpack.c.b16 %v8229, %v8225
    %v9162 = vpack.c.b16 %v8230, %v8226
    %v9163 = vpack.c.b16 %v8235, %v8231
    %v9164 = vpack.c.b16 %v8236, %v8232
    %v9165 = vpack.c.b16 %v8237, %v8233
    %v9166 = vpack.c.b16 %v8238, %v8234
    %v9167 = vpack.c.b16 %v8243, %v8239
    %v9168 = vpack.c.b16 %v8244, %v8240
    %v9169 = vpack.c.b16 %v8245, %v8241
    %v9170 = vpack.c.b16 %v8246, %v8242
    %v9171 = vpack.c.b16 %v8251, %v8247
    %v9172 = vpack.c.b16 %v8252, %v8248
    %v9173 = vpack.c.b16 %v8253, %v8249
    %v9174 = vpack.c.b16 %v8254, %v8250
    %v9175 = vpack.c.b16 %v8259, %v8255
    %v9176 = vpack.c.b16 %v8260, %v8256
    %v9177 = vpack.c.b16 %v8261, %v8257
    %v9178 = vpack.c.b16 %v8262, %v8258
    %v9179 = vpack.c.b16 %v8267, %v8263
    %v9180 = vpack.c.b16 %v8268, %v8264
    %v9181 = vpack.c.b16 %v8269, %v8265
    %v9182 = vpack.c.b16 %v8270, %v8266
    %v9183 = vpack.c.b16 %v8275, %v8271
    %v9184 = vpack.c.b16 %v8276, %v8272
    %v9185 = vpack.c.b16 %v8277, %v8273
    %v9186 = vpack.c.b16 %v8278, %v8274
    %v9187 = vpack.c.b16 %v8283, %v8279
    %v9188 = vpack.c.b16 %v8284, %v8280
    %v9189 = vpack.c.b16 %v8285, %v8281
    %v9190 = vpack.c.b16 %v8286, %v8282
    %v9191 = vpack.c.b16 %v8291, %v8287
    %v9192 = vpack.c.b16 %v8292, %v8288
    %v9193 = vpack.c.b16 %v8293, %v8289
    %v9194 = vpack.c.b16 %v8294, %v8290
    %v9195 = vpack.c.b16 %v8299, %v8295
    %v9196 = vpack.c.b16 %v8300, %v8296
    %v9197 = vpack.c.b16 %v8301, %v8297
    %v9198 = vpack.c.b16 %v8302, %v8298
    %v9199 = vpack.c.b16 %v8307, %v8303
    %v9200 = vpack.c.b16 %v8308, %v8304
    %v9201 = vpack.c.b16 %v8309, %v8305
    %v9202 = vpack.c.b16 %v8310, %v8306
    %v9203 = vpack.c.b16 %v8315, %v8311
    %v9204 = vpack.c.b16 %v8316, %v8312
    %v9205 = vpack.c.b16 %v8317, %v8313
    %v9206 = vpack.c.b16 %v8318, %v8314
    %v9207 = vpack.c.b16 %v8323, %v8319
    %v9208 = vpack.c.b16 %v8324, %v8320
    %v9209 = vpack.c.b16 %v8325, %v8321
    %v9210 = vpack.c.b16 %v8326, %v8322
    %v9211 = vpack.c.b16 %v8331, %v8327
    %v9212 = vpack.c.b16 %v8332, %v8328
    %v9213 = vpack.c.b16 %v8333, %v8329
    %v9214 = vpack.c.b16 %v8334, %v8330
    %v9215 = vpack.c.b16 %v8339, %v8335
    %v9216 = vpack.c.b16 %v8340, %v8336
    %v9217 = vpack.c.b16 %v8341, %v8337
    %v9218 = vpack.c.b16 %v8342, %v8338
    %v9219 = vpack.c.b16 %v8347, %v8343
    %v9220 = vpack.c.b16 %v8348, %v8344
    %v9221 = vpack.c.b16 %v8349, %v8345
    %v9222 = vpack.c.b16 %v8350, %v8346
    %v9223 = vpack.c.b16 %v8355, %v8351
    %v9224 = vpack.c.b16 %v8356, %v8352
    %v9225 = vpack.c.b16 %v8357, %v8353
    %v9226 = vpack.c.b16 %v8358, %v8354
    %v9227 = vpack.c.b16 %v8363, %v8359
    %v9228 = vpack.c.b16 %v8364, %v8360
    %v9229 = vpack.c.b16 %v8365, %v8361
    %v9230 = vpack.c.b16 %v8366, %v8362
    %v9231 = vpack.c.b16 %v8371, %v8367
    %v9232 = vpack.c.b16 %v8372, %v8368
    %v9233 = vpack.c.b16 %v8373, %v8369
    %v9234 = vpack.c.b16 %v8374, %v8370
    %v9235 = vpack.c.b16 %v8379, %v8375
    %v9236 = vpack.c.b16 %v8380, %v8376
    %v9237 = vpack.c.b16 %v8381, %v8377
    %v9238 = vpack.c.b16 %v8382, %v8378
    %v9239 = vpack.c.b16 %v8387, %v8383
    %v9240 = vpack.c.b16 %v8388, %v8384
    %v9241 = vpack.c.b16 %v8389, %v8385
    %v9242 = vpack.c.b16 %v8390, %v8386
    %v9243 = vpack.c.b16 %v8395, %v8391
    %v9244 = vpack.c.b16 %v8396, %v8392
    %v9245 = vpack.c.b16 %v8397, %v8393
    %v9246 = vpack.c.b16 %v8398, %v8394
    %v9247 = vpack.c.b16 %v8403, %v8399
    %v9248 = vpack.c.b16 %v8404, %v8400
    %v9249 = vpack.c.b16 %v8405, %v8401
    %v9250 = vpack.c.b16 %v8406, %v8402
    %v9251 = vpack.c.b16 %v8411, %v8407
    %v9252 = vpack.c.b16 %v8412, %v8408
    %v9253 = vpack.c.b16 %v8413, %v8409
    %v9254 = vpack.c.b16 %v8414, %v8410
    %v9255 = vpack.c.b16 %v8419, %v8415
    %v9256 = vpack.c.b16 %v8420, %v8416
    %v9257 = vpack.c.b16 %v8421, %v8417
    %v9258 = vpack.c.b16 %v8422, %v8418
    %v9259 = vpack.c.b16 %v8427, %v8423
    %v9260 = vpack.c.b16 %v8428, %v8424
    %v9261 = vpack.c.b16 %v8429, %v8425
    %v9262 = vpack.c.b16 %v8430, %v8426
    %v9263 = vpack.c.b16 %v8435, %v8431
    %v9264 = vpack.c.b16 %v8436, %v8432
    %v9265 = vpack.c.b16 %v8437, %v8433
    %v9266 = vpack.c.b16 %v8438, %v8434
    %v9267 = vpack.c.b16 %v8443, %v8439
    %v9268 = vpack.c.b16 %v8444, %v8440
    %v9269 = vpack.c.b16 %v8445, %v8441
    %v9270 = vpack.c.b16 %v8446, %v8442
    %v9271 = vpack.c.b16 %v8451, %v8447
    %v9272 = vpack.c.b16 %v8452, %v8448
    %v9273 = vpack.c.b16 %v8453, %v8449
    %v9274 = vpack.c.b16 %v8454, %v8450
    %v9275 = vpack.c.b16 %v8459, %v8455
    %v9276 = vpack.c.b16 %v8460, %v8456
    %v9277 = vpack.c.b16 %v8461, %v8457
    %v9278 = vpack.c.b16 %v8462, %v8458
    %v9279 = vpack.c.b16 %v8467, %v8463
    %v9280 = vpack.c.b16 %v8468, %v8464
    %v9281 = vpack.c.b16 %v8469, %v8465
    %v9282 = vpack.c.b16 %v8470, %v8466
    %v9283 = vpack.c.b16 %v8475, %v8471
    %v9284 = vpack.c.b16 %v8476, %v8472
    %v9285 = vpack.c.b16 %v8477, %v8473
    %v9286 = vpack.c.b16 %v8478, %v8474
    %v9287 = vpack.c.b16 %v8483, %v8479
    %v9288 = vpack.c.b16 %v8484, %v8480
    %v9289 = vpack.c.b16 %v8485, %v8481
    %v9290 = vpack.c.b16 %v8486, %v8482
    %v9291 = vpack.c.b16 %v8491, %v8487
    %v9292 = vpack.c.b16 %v8492, %v8488
    %v9293 = vpack.c.b16 %v8493, %v8489
    %v9294 = vpack.c.b16 %v8494, %v8490
    %v9295 = vpack.c.b16 %v8499, %v8495
    %v9296 = vpack.c.b16 %v8500, %v8496
    %v9297 = vpack.c.b16 %v8501, %v8497
    %v9298 = vpack.c.b16 %v8502, %v8498
    %v9299 = vpack.c.b16 %v8507, %v8503
    %v9300 = vpack.c.b16 %v8508, %v8504
    %v9301 = vpack.c.b16 %v8509, %v8505
    %v9302 = vpack.c.b16 %v8510, %v8506
    %v9303 = vpack.c.b16 %v8515, %v8511
    %v9304 = vpack.c.b16 %v8516, %v8512
    %v9305 = vpack.c.b16 %v8517, %v8513
    %v9306 = vpack.c.b16 %v8518, %v8514
    %v9307 = vpack.c.b16 %v8523, %v8519
    %v9308 = vpack.c.b16 %v8524, %v8520
    %v9309 = vpack.c.b16 %v8525, %v8521
    %v9310 = vpack.c.b16 %v8526, %v8522
    %v9311 = vpack.c.b16 %v8531, %v8527
    %v9312 = vpack.c.b16 %v8532, %v8528
    %v9313 = vpack.c.b16 %v8533, %v8529
    %v9314 = vpack.c.b16 %v8534, %v8530
    %v9315 = vpack.c.b16 %v8539, %v8535
    %v9316 = vpack.c.b16 %v8540, %v8536
    %v9317 = vpack.c.b16 %v8541, %v8537
    %v9318 = vpack.c.b16 %v8542, %v8538
    %v9319 = vpack.c.b16 %v8547, %v8543
    %v9320 = vpack.c.b16 %v8548, %v8544
    %v9321 = vpack.c.b16 %v8549, %v8545
    %v9322 = vpack.c.b16 %v8550, %v8546
    %v9323 = vpack.c.b16 %v8555, %v8551
    %v9324 = vpack.c.b16 %v8556, %v8552
    %v9325 = vpack.c.b16 %v8557, %v8553
    %v9326 = vpack.c.b16 %v8558, %v8554
    %v9327 = vpack.c.b16 %v8563, %v8559
    %v9328 = vpack.c.b16 %v8564, %v8560
    %v9329 = vpack.c.b16 %v8565, %v8561
    %v9330 = vpack.c.b16 %v8566, %v8562
    %v9331 = vpack.c.b16 %v8571, %v8567
    %v9332 = vpack.c.b16 %v8572, %v8568
    %v9333 = vpack.c.b16 %v8573, %v8569
    %v9334 = vpack.c.b16 %v8574, %v8570
    %v9335 = vpack.c.b16 %v8579, %v8575
    %v9336 = vpack.c.b16 %v8580, %v8576
    %v9337 = vpack.c.b16 %v8581, %v8577
    %v9338 = vpack.c.b16 %v8582, %v8578
    %v9339 = vpack.c.b16 %v8587, %v8583
    %v9340 = vpack.c.b16 %v8588, %v8584
    %v9341 = vpack.c.b16 %v8589, %v8585
    %v9342 = vpack.c.b16 %v8590, %v8586
    %v9343 = vpack.c.b16 %v8595, %v8591
    %v9344 = vpack.c.b16 %v8596, %v8592
    %v9345 = vpack.c.b16 %v8597, %v8593
    %v9346 = vpack.c.b16 %v8598, %v8594
    %v9347 = vpack.c.b16 %v8603, %v8599
    %v9348 = vpack.c.b16 %v8604, %v8600
    %v9349 = vpack.c.b16 %v8605, %v8601
    %v9350 = vpack.c.b16 %v8606, %v8602
    %v9351 = vpack.c.b16 %v8611, %v8607
    %v9352 = vpack.c.b16 %v8612, %v8608
    %v9353 = vpack.c.b16 %v8613, %v8609
    %v9354 = vpack.c.b16 %v8614, %v8610
    %v9355 = vpack.c.b16 %v8619, %v8615
    %v9356 = vpack.c.b16 %v8620, %v8616
    %v9357 = vpack.c.b16 %v8621, %v8617
    %v9358 = vpack.c.b16 %v8622, %v8618
    %v9359 = vpack.c.b16 %v8627, %v8623
    %v9360 = vpack.c.b16 %v8628, %v8624
    %v9361 = vpack.c.b16 %v8629, %v8625
    %v9362 = vpack.c.b16 %v8630, %v8626
    %v9363 = vpack.c.b16 %v8635, %v8631
    %v9364 = vpack.c.b16 %v8636, %v8632
    %v9365 = vpack.c.b16 %v8637, %v8633
    %v9366 = vpack.c.b16 %v8638, %v8634
    %v9367 = vpack.c.b16 %v8643, %v8639
    %v9368 = vpack.c.b16 %v8644, %v8640
    %v9369 = vpack.c.b16 %v8645, %v8641
    %v9370 = vpack.c.b16 %v8646, %v8642
    %v9371 = vpack.c.b16 %v8651, %v8647
    %v9372 = vpack.c.b16 %v8652, %v8648
    %v9373 = vpack.c.b16 %v8653, %v8649
    %v9374 = vpack.c.b16 %v8654, %v8650
    %v9375 = vpack.c.b16 %v8659, %v8655
    %v9376 = vpack.c.b16 %v8660, %v8656
    %v9377 = vpack.c.b16 %v8661, %v8657
    %v9378 = vpack.c.b16 %v8662, %v8658
    %v9379 = vpack.c.b16 %v8667, %v8663
    %v9380 = vpack.c.b16 %v8668, %v8664
    %v9381 = vpack.c.b16 %v8669, %v8665
    %v9382 = vpack.c.b16 %v8670, %v8666
    %v9383 = vpack.c.b16 %v8675, %v8671
    %v9384 = vpack.c.b16 %v8676, %v8672
    %v9385 = vpack.c.b16 %v8677, %v8673
    %v9386 = vpack.c.b16 %v8678, %v8674
    %v9387 = vpack.c.b16 %v8683, %v8679
    %v9388 = vpack.c.b16 %v8684, %v8680
    %v9389 = vpack.c.b16 %v8685, %v8681
    %v9390 = vpack.c.b16 %v8686, %v8682
    %v9391 = vpack.c.b16 %v8691, %v8687
    %v9392 = vpack.c.b16 %v8692, %v8688
    %v9393 = vpack.c.b16 %v8693, %v8689
    %v9394 = vpack.c.b16 %v8694, %v8690
    %v9395 = vpack.c.b16 %v8699, %v8695
    %v9396 = vpack.c.b16 %v8700, %v8696
    %v9397 = vpack.c.b16 %v8701, %v8697
    %v9398 = vpack.c.b16 %v8702, %v8698
    %v9399 = vpack.c.b16 %v8707, %v8703
    %v9400 = vpack.c.b16 %v8708, %v8704
    %v9401 = vpack.c.b16 %v8709, %v8705
    %v9402 = vpack.c.b16 %v8710, %v8706
    %v9403 = vpack.c.b16 %v8715, %v8711
    %v9404 = vpack.c.b16 %v8716, %v8712
    %v9405 = vpack.c.b16 %v8717, %v8713
    %v9406 = vpack.c.b16 %v8718, %v8714
    %v9407 = vpack.c.b16 %v8723, %v8719
    %v9408 = vpack.c.b16 %v8724, %v8720
    %v9409 = vpack.c.b16 %v8725, %v8721
    %v9410 = vpack.c.b16 %v8726, %v8722
    %v9411 = vpack.c.b16 %v8731, %v8727
    %v9412 = vpack.c.b16 %v8732, %v8728
    %v9413 = vpack.c.b16 %v8733, %v8729
    %v9414 = vpack.c.b16 %v8734, %v8730
    %v9415 = vpack.c.b16 %v8739, %v8735
    %v9416 = vpack.c.b16 %v8740, %v8736
    %v9417 = vpack.c.b16 %v8741, %v8737
    %v9418 = vpack.c.b16 %v8742, %v8738
    %v9419 = vpack.c.b16 %v8747, %v8743
    %v9420 = vpack.c.b16 %v8748, %v8744
    %v9421 = vpack.c.b16 %v8749, %v8745
    %v9422 = vpack.c.b16 %v8750, %v8746
    %v9423 = vpack.c.b16 %v8755, %v8751
    %v9424 = vpack.c.b16 %v8756, %v8752
    %v9425 = vpack.c.b16 %v8757, %v8753
    %v9426 = vpack.c.b16 %v8758, %v8754
    %v9427 = vpack.c.b16 %v8763, %v8759
    %v9428 = vpack.c.b16 %v8764, %v8760
    %v9429 = vpack.c.b16 %v8765, %v8761
    %v9430 = vpack.c.b16 %v8766, %v8762
    %v9431 = vpack.c.b16 %v8771, %v8767
    %v9432 = vpack.c.b16 %v8772, %v8768
    %v9433 = vpack.c.b16 %v8773, %v8769
    %v9434 = vpack.c.b16 %v8774, %v8770
    %v9435 = vpack.c.b16 %v8779, %v8775
    %v9436 = vpack.c.b16 %v8780, %v8776
    %v9437 = vpack.c.b16 %v8781, %v8777
    %v9438 = vpack.c.b16 %v8782, %v8778
    %v9439 = vpack.c.b16 %v8787, %v8783
    %v9440 = vpack.c.b16 %v8788, %v8784
    %v9441 = vpack.c.b16 %v8789, %v8785
    %v9442 = vpack.c.b16 %v8790, %v8786
    %v9443 = vpack.c.b16 %v8795, %v8791
    %v9444 = vpack.c.b16 %v8796, %v8792
    %v9445 = vpack.c.b16 %v8797, %v8793
    %v9446 = vpack.c.b16 %v8798, %v8794
    %v9447 = vpack.c.b16 %v8803, %v8799
    %v9448 = vpack.c.b16 %v8804, %v8800
    %v9449 = vpack.c.b16 %v8805, %v8801
    %v9450 = vpack.c.b16 %v8806, %v8802
    %v9451 = vpack.c.b16 %v8811, %v8807
    %v9452 = vpack.c.b16 %v8812, %v8808
    %v9453 = vpack.c.b16 %v8813, %v8809
    %v9454 = vpack.c.b16 %v8814, %v8810
    %v9455 = vpack.c.b16 %v8819, %v8815
    %v9456 = vpack.c.b16 %v8820, %v8816
    %v9457 = vpack.c.b16 %v8821, %v8817
    %v9458 = vpack.c.b16 %v8822, %v8818
    %v9459 = vpack.c.b16 %v8827, %v8823
    %v9460 = vpack.c.b16 %v8828, %v8824
    %v9461 = vpack.c.b16 %v8829, %v8825
    %v9462 = vpack.c.b16 %v8830, %v8826
    %v9463 = vpack.c.b16 %v8835, %v8831
    %v9464 = vpack.c.b16 %v8836, %v8832
    %v9465 = vpack.c.b16 %v8837, %v8833
    %v9466 = vpack.c.b16 %v8838, %v8834
    %v9467 = vpack.c.b16 %v8843, %v8839
    %v9468 = vpack.c.b16 %v8844, %v8840
    %v9469 = vpack.c.b16 %v8845, %v8841
    %v9470 = vpack.c.b16 %v8846, %v8842
    %v9471 = vpack.c.b16 %v8851, %v8847
    %v9472 = vpack.c.b16 %v8852, %v8848
    %v9473 = vpack.c.b16 %v8853, %v8849
    %v9474 = vpack.c.b16 %v8854, %v8850
    %v9475 = vpack.c.b16 %v8859, %v8855
    %v9476 = vpack.c.b16 %v8860, %v8856
    %v9477 = vpack.c.b16 %v8861, %v8857
    %v9478 = vpack.c.b16 %v8862, %v8858
    %v9479 = vpack.c.b16 %v8867, %v8863
    %v9480 = vpack.c.b16 %v8868, %v8864
    %v9481 = vpack.c.b16 %v8869, %v8865
    %v9482 = vpack.c.b16 %v8870, %v8866
    %v9483 = vpack.c.b16 %v8875, %v8871
    %v9484 = vpack.c.b16 %v8876, %v8872
    %v9485 = vpack.c.b16 %v8877, %v8873
    %v9486 = vpack.c.b16 %v8878, %v8874
    %v9487 = vpack.c.b16 %v8883, %v8879
    %v9488 = vpack.c.b16 %v8884, %v8880
    %v9489 = vpack.c.b16 %v8885, %v8881
    %v9490 = vpack.c.b16 %v8886, %v8882
    %v9491 = vpack.c.b16 %v8891, %v8887
    %v9492 = vpack.c.b16 %v8892, %v8888
    %v9493 = vpack.c.b16 %v8893, %v8889
    %v9494 = vpack.c.b16 %v8894, %v8890
    %v9495 = vpack.c.b16 %v8899, %v8895
    %v9496 = vpack.c.b16 %v8900, %v8896
    %v9497 = vpack.c.b16 %v8901, %v8897
    %v9498 = vpack.c.b16 %v8902, %v8898
    %v9499 = vpack.c.b16 %v8907, %v8903
    %v9500 = vpack.c.b16 %v8908, %v8904
    %v9501 = vpack.c.b16 %v8909, %v8905
    %v9502 = vpack.c.b16 %v8910, %v8906
    %v9503 = vpack.c.b16 %v8915, %v8911
    %v9504 = vpack.c.b16 %v8916, %v8912
    %v9505 = vpack.c.b16 %v8917, %v8913
    %v9506 = vpack.c.b16 %v8918, %v8914
    %v9507 = vpack.c.b16 %v8923, %v8919
    %v9508 = vpack.c.b16 %v8924, %v8920
    %v9509 = vpack.c.b16 %v8925, %v8921
    %v9510 = vpack.c.b16 %v8926, %v8922
    %v9511 = vpack.c.b16 %v8931, %v8927
    %v9512 = vpack.c.b16 %v8932, %v8928
    %v9513 = vpack.c.b16 %v8933, %v8929
    %v9514 = vpack.c.b16 %v8934, %v8930
    %v9515 = vpack.c.b16 %v8939, %v8935
    %v9516 = vpack.c.b16 %v8940, %v8936
    %v9517 = vpack.c.b16 %v8941, %v8937
    %v9518 = vpack.c.b16 %v8942, %v8938
    %v9519 = vpack.c.b16 %v8947, %v8943
    %v9520 = vpack.c.b16 %v8948, %v8944
    %v9521 = vpack.c.b16 %v8949, %v8945
    %v9522 = vpack.c.b16 %v8950, %v8946
    %v9523 = vpack.c.b16 %v8955, %v8951
    %v9524 = vpack.c.b16 %v8956, %v8952
    %v9525 = vpack.c.b16 %v8957, %v8953
    %v9526 = vpack.c.b16 %v8958, %v8954
    %v9527 = vpack.c.b16 %v8963, %v8959
    %v9528 = vpack.c.b16 %v8964, %v8960
    %v9529 = vpack.c.b16 %v8965, %v8961
    %v9530 = vpack.c.b16 %v8966, %v8962
    %v9531 = vpack.c.b16 %v8971, %v8967
    %v9532 = vpack.c.b16 %v8972, %v8968
    %v9533 = vpack.c.b16 %v8973, %v8969
    %v9534 = vpack.c.b16 %v8974, %v8970
    %v9535 = vpack.c.b16 %v8979, %v8975
    %v9536 = vpack.c.b16 %v8980, %v8976
    %v9537 = vpack.c.b16 %v8981, %v8977
    %v9538 = vpack.c.b16 %v8982, %v8978
    %v9539 = vpack.c.b16 %v8987, %v8983
    %v9540 = vpack.c.b16 %v8988, %v8984
    %v9541 = vpack.c.b16 %v8989, %v8985
    %v9542 = vpack.c.b16 %v8990, %v8986
    %v9543 = vpack.c.b16 %v8995, %v8991
    %v9544 = vpack.c.b16 %v8996, %v8992
    %v9545 = vpack.c.b16 %v8997, %v8993
    %v9546 = vpack.c.b16 %v8998, %v8994
    %v9547 = vpack.c.b16 %v9003, %v8999
    %v9548 = vpack.c.b16 %v9004, %v9000
    %v9549 = vpack.c.b16 %v9005, %v9001
    %v9550 = vpack.c.b16 %v9006, %v9002
    %v9551 = vpack.c.b16 %v9011, %v9007
    %v9552 = vpack.c.b16 %v9012, %v9008
    %v9553 = vpack.c.b16 %v9013, %v9009
    %v9554 = vpack.c.b16 %v9014, %v9010
    %v9555 = vpack.c.b16 %v9019, %v9015
    %v9556 = vpack.c.b16 %v9020, %v9016
    %v9557 = vpack.c.b16 %v9021, %v9017
    %v9558 = vpack.c.b16 %v9022, %v9018
    %v9559 = vpack.c.b16 %v9027, %v9023
    %v9560 = vpack.c.b16 %v9028, %v9024
    %v9561 = vpack.c.b16 %v9029, %v9025
    %v9562 = vpack.c.b16 %v9030, %v9026
    %v9563 = vpack.c.b16 %v9035, %v9031
    %v9564 = vpack.c.b16 %v9036, %v9032
    %v9565 = vpack.c.b16 %v9037, %v9033
    %v9566 = vpack.c.b16 %v9038, %v9034
    %v9567 = vpack.c.b16 %v9043, %v9039
    %v9568 = vpack.c.b16 %v9044, %v9040
    %v9569 = vpack.c.b16 %v9045, %v9041
    %v9570 = vpack.c.b16 %v9046, %v9042
    %v9571 = vpack.c.b16 %v9051, %v9047
    %v9572 = vpack.c.b16 %v9052, %v9048
    %v9573 = vpack.c.b16 %v9053, %v9049
    %v9574 = vpack.c.b16 %v9054, %v9050
    %v9575 = vpack.c.b16 %v9059, %v9055
    %v9576 = vpack.c.b16 %v9060, %v9056
    %v9577 = vpack.c.b16 %v9061, %v9057
    %v9578 = vpack.c.b16 %v9062, %v9058
    %v9579 = vpack.c.b16 %v9067, %v9063
    %v9580 = vpack.c.b16 %v9068, %v9064
    %v9581 = vpack.c.b16 %v9069, %v9065
    %v9582 = vpack.c.b16 %v9070, %v9066
    %10095 = vmatpush.bf16.msra.mxu0 %v9099
    %10096 = vmatpush.bf16.msra.mxu0 %v9095
    %10097 = vmatpush.bf16.msra.mxu0 %v9091
    %10098 = vmatpush.bf16.msra.mxu0 %v9087
    %10099 = vmatpush.bf16.msra.mxu0 %v9083
    %10100 = vmatpush.bf16.msra.mxu0 %v9079
    %10101 = vmatpush.bf16.msra.mxu0 %v9075
    %10102 = vmatpush.bf16.msra.mxu0 %v9071
    %10103 = vmatmul.bf16.gmra.mxu0 %v6997
    %v10104 = vpop.f32.mrf.mxu0
    %v10105 = vadd.f32 %v7527, %v10104
    %v10106 = vpop.f32.mrf.mxu0
    %10107 = vdwg.mxu0
    %10108 = vmatpush.bf16.msra.mxu0 %v9131
    %10109 = vmatpush.bf16.msra.mxu0 %v9127
    %10110 = vmatpush.bf16.msra.mxu0 %v9123
    %10111 = vmatpush.bf16.msra.mxu0 %v9119
    %10112 = vmatpush.bf16.msra.mxu0 %v9115
    %10113 = vmatpush.bf16.msra.mxu0 %v9111
    %10114 = vmatpush.bf16.msra.mxu0 %v9107
    %10115 = vmatpush.bf16.msra.mxu0 %v9103
    %10116 = vmatmul.bf16.gmra.mxu0 %v6998
    %v10117 = vpop.f32.mrf.mxu0
    %v10118 = vadd.f32 %v10105, %v10117
    %v10119 = vpop.f32.mrf.mxu0
    %10120 = vdwg.mxu0
    %10121 = vmatpush.bf16.msra.mxu0 %v9163
    %10122 = vmatpush.bf16.msra.mxu0 %v9159
    %10123 = vmatpush.bf16.msra.mxu0 %v9155
    %10124 = vmatpush.bf16.msra.mxu0 %v9151
    %10125 = vmatpush.bf16.msra.mxu0 %v9147
    %10126 = vmatpush.bf16.msra.mxu0 %v9143
    %10127 = vmatpush.bf16.msra.mxu0 %v9139
    %10128 = vmatpush.bf16.msra.mxu0 %v9135
    %10129 = vmatmul.bf16.gmra.mxu0 %v6999
    %v10130 = vpop.f32.mrf.mxu0
    %v10131 = vadd.f32 %v10118, %v10130
    %v10132 = vpop.f32.mrf.mxu0
    %10133 = vdwg.mxu0
    %10134 = vmatpush.bf16.msra.mxu0 %v9195
    %10135 = vmatpush.bf16.msra.mxu0 %v9191
    %10136 = vmatpush.bf16.msra.mxu0 %v9187
    %10137 = vmatpush.bf16.msra.mxu0 %v9183
    %10138 = vmatpush.bf16.msra.mxu0 %v9179
    %10139 = vmatpush.bf16.msra.mxu0 %v9175
    %10140 = vmatpush.bf16.msra.mxu0 %v9171
    %10141 = vmatpush.bf16.msra.mxu0 %v9167
    %10142 = vmatmul.bf16.gmra.mxu0 %v7000
    %v10143 = vpop.f32.mrf.mxu0
    %v10144 = vadd.f32 %v10131, %v10143
    %v10145 = vpop.f32.mrf.mxu0
    %10146 = vdwg.mxu0
    %10147 = vmatpush.bf16.msra.mxu0 %v9227
    %10148 = vmatpush.bf16.msra.mxu0 %v9223
    %10149 = vmatpush.bf16.msra.mxu0 %v9219
    %10150 = vmatpush.bf16.msra.mxu0 %v9215
    %10151 = vmatpush.bf16.msra.mxu0 %v9211
    %10152 = vmatpush.bf16.msra.mxu0 %v9207
    %10153 = vmatpush.bf16.msra.mxu0 %v9203
    %10154 = vmatpush.bf16.msra.mxu0 %v9199
    %10155 = vmatmul.bf16.gmra.mxu0 %v7001
    %v10156 = vpop.f32.mrf.mxu0
    %v10157 = vadd.f32 %v10144, %v10156
    %v10158 = vpop.f32.mrf.mxu0
    %10159 = vdwg.mxu0
    %10160 = vmatpush.bf16.msra.mxu0 %v9259
    %10161 = vmatpush.bf16.msra.mxu0 %v9255
    %10162 = vmatpush.bf16.msra.mxu0 %v9251
    %10163 = vmatpush.bf16.msra.mxu0 %v9247
    %10164 = vmatpush.bf16.msra.mxu0 %v9243
    %10165 = vmatpush.bf16.msra.mxu0 %v9239
    %10166 = vmatpush.bf16.msra.mxu0 %v9235
    %10167 = vmatpush.bf16.msra.mxu0 %v9231
    %10168 = vmatmul.bf16.gmra.mxu0 %v7002
    %v10169 = vpop.f32.mrf.mxu0
    %v10170 = vadd.f32 %v10157, %v10169
    %v10171 = vpop.f32.mrf.mxu0
    %10172 = vdwg.mxu0
    %10173 = vmatpush.bf16.msra.mxu0 %v9291
    %10174 = vmatpush.bf16.msra.mxu0 %v9287
    %10175 = vmatpush.bf16.msra.mxu0 %v9283
    %10176 = vmatpush.bf16.msra.mxu0 %v9279
    %10177 = vmatpush.bf16.msra.mxu0 %v9275
    %10178 = vmatpush.bf16.msra.mxu0 %v9271
    %10179 = vmatpush.bf16.msra.mxu0 %v9267
    %10180 = vmatpush.bf16.msra.mxu0 %v9263
    %10181 = vmatmul.bf16.gmra.mxu0 %v7003
    %v10182 = vpop.f32.mrf.mxu0
    %v10183 = vadd.f32 %v10170, %v10182
    %v10184 = vpop.f32.mrf.mxu0
    %10185 = vdwg.mxu0
    %10186 = vmatpush.bf16.msra.mxu0 %v9323
    %10187 = vmatpush.bf16.msra.mxu0 %v9319
    %10188 = vmatpush.bf16.msra.mxu0 %v9315
    %10189 = vmatpush.bf16.msra.mxu0 %v9311
    %10190 = vmatpush.bf16.msra.mxu0 %v9307
    %10191 = vmatpush.bf16.msra.mxu0 %v9303
    %10192 = vmatpush.bf16.msra.mxu0 %v9299
    %10193 = vmatpush.bf16.msra.mxu0 %v9295
    %10194 = vmatmul.bf16.gmra.mxu0 %v7004
    %v10195 = vpop.f32.mrf.mxu0
    %v10196 = vadd.f32 %v10183, %v10195
    %v10197 = vpop.f32.mrf.mxu0
    %10198 = vdwg.mxu0
    %10199 = vmatpush.bf16.msra.mxu0 %v9355
    %10200 = vmatpush.bf16.msra.mxu0 %v9351
    %10201 = vmatpush.bf16.msra.mxu0 %v9347
    %10202 = vmatpush.bf16.msra.mxu0 %v9343
    %10203 = vmatpush.bf16.msra.mxu0 %v9339
    %10204 = vmatpush.bf16.msra.mxu0 %v9335
    %10205 = vmatpush.bf16.msra.mxu0 %v9331
    %10206 = vmatpush.bf16.msra.mxu0 %v9327
    %10207 = vmatmul.bf16.gmra.mxu0 %v7005
    %v10208 = vpop.f32.mrf.mxu0
    %v10209 = vadd.f32 %v10196, %v10208
    %v10210 = vpop.f32.mrf.mxu0
    %10211 = vdwg.mxu0
    %10212 = vmatpush.bf16.msra.mxu0 %v9387
    %10213 = vmatpush.bf16.msra.mxu0 %v9383
    %10214 = vmatpush.bf16.msra.mxu0 %v9379
    %10215 = vmatpush.bf16.msra.mxu0 %v9375
    %10216 = vmatpush.bf16.msra.mxu0 %v9371
    %10217 = vmatpush.bf16.msra.mxu0 %v9367
    %10218 = vmatpush.bf16.msra.mxu0 %v9363
    %10219 = vmatpush.bf16.msra.mxu0 %v9359
    %10220 = vmatmul.bf16.gmra.mxu0 %v7006
    %v10221 = vpop.f32.mrf.mxu0
    %v10222 = vadd.f32 %v10209, %v10221
    %v10223 = vpop.f32.mrf.mxu0
    %10224 = vdwg.mxu0
    %10225 = vmatpush.bf16.msra.mxu0 %v9419
    %10226 = vmatpush.bf16.msra.mxu0 %v9415
    %10227 = vmatpush.bf16.msra.mxu0 %v9411
    %10228 = vmatpush.bf16.msra.mxu0 %v9407
    %10229 = vmatpush.bf16.msra.mxu0 %v9403
    %10230 = vmatpush.bf16.msra.mxu0 %v9399
    %10231 = vmatpush.bf16.msra.mxu0 %v9395
    %10232 = vmatpush.bf16.msra.mxu0 %v9391
    %10233 = vmatmul.bf16.gmra.mxu0 %v7007
    %v10234 = vpop.f32.mrf.mxu0
    %v10235 = vadd.f32 %v10222, %v10234
    %v10236 = vpop.f32.mrf.mxu0
    %10237 = vdwg.mxu0
    %10238 = vmatpush.bf16.msra.mxu0 %v9451
    %10239 = vmatpush.bf16.msra.mxu0 %v9447
    %10240 = vmatpush.bf16.msra.mxu0 %v9443
    %10241 = vmatpush.bf16.msra.mxu0 %v9439
    %10242 = vmatpush.bf16.msra.mxu0 %v9435
    %10243 = vmatpush.bf16.msra.mxu0 %v9431
    %10244 = vmatpush.bf16.msra.mxu0 %v9427
    %10245 = vmatpush.bf16.msra.mxu0 %v9423
    %10246 = vmatmul.bf16.gmra.mxu0 %v7008
    %v10247 = vpop.f32.mrf.mxu0
    %v10248 = vadd.f32 %v10235, %v10247
    %v10249 = vpop.f32.mrf.mxu0
    %10250 = vdwg.mxu0
    %10251 = vmatpush.bf16.msra.mxu0 %v9483
    %10252 = vmatpush.bf16.msra.mxu0 %v9479
    %10253 = vmatpush.bf16.msra.mxu0 %v9475
    %10254 = vmatpush.bf16.msra.mxu0 %v9471
    %10255 = vmatpush.bf16.msra.mxu0 %v9467
    %10256 = vmatpush.bf16.msra.mxu0 %v9463
    %10257 = vmatpush.bf16.msra.mxu0 %v9459
    %10258 = vmatpush.bf16.msra.mxu0 %v9455
    %10259 = vmatmul.bf16.gmra.mxu0 %v7009
    %v10260 = vpop.f32.mrf.mxu0
    %v10261 = vadd.f32 %v10248, %v10260
    %v10262 = vpop.f32.mrf.mxu0
    %10263 = vdwg.mxu0
    %10264 = vmatpush.bf16.msra.mxu0 %v9515
    %10265 = vmatpush.bf16.msra.mxu0 %v9511
    %10266 = vmatpush.bf16.msra.mxu0 %v9507
    %10267 = vmatpush.bf16.msra.mxu0 %v9503
    %10268 = vmatpush.bf16.msra.mxu0 %v9499
    %10269 = vmatpush.bf16.msra.mxu0 %v9495
    %10270 = vmatpush.bf16.msra.mxu0 %v9491
    %10271 = vmatpush.bf16.msra.mxu0 %v9487
    %10272 = vmatmul.bf16.gmra.mxu0 %v7010
    %v10273 = vpop.f32.mrf.mxu0
    %v10274 = vadd.f32 %v10261, %v10273
    %v10275 = vpop.f32.mrf.mxu0
    %10276 = vdwg.mxu0
    %10277 = vmatpush.bf16.msra.mxu0 %v9547
    %10278 = vmatpush.bf16.msra.mxu0 %v9543
    %10279 = vmatpush.bf16.msra.mxu0 %v9539
    %10280 = vmatpush.bf16.msra.mxu0 %v9535
    %10281 = vmatpush.bf16.msra.mxu0 %v9531
    %10282 = vmatpush.bf16.msra.mxu0 %v9527
    %10283 = vmatpush.bf16.msra.mxu0 %v9523
    %10284 = vmatpush.bf16.msra.mxu0 %v9519
    %10285 = vmatmul.bf16.gmra.mxu0 %v7011
    %v10286 = vpop.f32.mrf.mxu0
    %v10287 = vadd.f32 %v10274, %v10286
    %v10288 = vpop.f32.mrf.mxu0
    %10289 = vdwg.mxu0
    %10290 = vmatpush.bf16.msra.mxu0 %v9579
    %10291 = vmatpush.bf16.msra.mxu0 %v9575
    %10292 = vmatpush.bf16.msra.mxu0 %v9571
    %10293 = vmatpush.bf16.msra.mxu0 %v9567
    %10294 = vmatpush.bf16.msra.mxu0 %v9563
    %10295 = vmatpush.bf16.msra.mxu0 %v9559
    %10296 = vmatpush.bf16.msra.mxu0 %v9555
    %10297 = vmatpush.bf16.msra.mxu0 %v9551
    %10298 = vmatmul.bf16.gmra.mxu0 %v7012
    %v10299 = vpop.f32.mrf.mxu0
    %v10300 = vadd.f32 %v10287, %v10299
    %v10301 = vpop.f32.mrf.mxu0
    %10302 = vdwg.mxu0
    %10303 = vmatpush.bf16.msra.mxu0 %v9100
    %10304 = vmatpush.bf16.msra.mxu0 %v9096
    %10305 = vmatpush.bf16.msra.mxu0 %v9092
    %10306 = vmatpush.bf16.msra.mxu0 %v9088
    %10307 = vmatpush.bf16.msra.mxu0 %v9084
    %10308 = vmatpush.bf16.msra.mxu0 %v9080
    %10309 = vmatpush.bf16.msra.mxu0 %v9076
    %10310 = vmatpush.bf16.msra.mxu0 %v9072
    %10311 = vmatmul.bf16.gmra.mxu0 %v6997
    %v10312 = vpop.f32.mrf.mxu0
    %v10313 = vadd.f32 %v7528, %v10312
    %v10314 = vpop.f32.mrf.mxu0
    %10315 = vdwg.mxu0
    %10316 = vmatpush.bf16.msra.mxu0 %v9132
    %10317 = vmatpush.bf16.msra.mxu0 %v9128
    %10318 = vmatpush.bf16.msra.mxu0 %v9124
    %10319 = vmatpush.bf16.msra.mxu0 %v9120
    %10320 = vmatpush.bf16.msra.mxu0 %v9116
    %10321 = vmatpush.bf16.msra.mxu0 %v9112
    %10322 = vmatpush.bf16.msra.mxu0 %v9108
    %10323 = vmatpush.bf16.msra.mxu0 %v9104
    %10324 = vmatmul.bf16.gmra.mxu0 %v6998
    %v10325 = vpop.f32.mrf.mxu0
    %v10326 = vadd.f32 %v10313, %v10325
    %v10327 = vpop.f32.mrf.mxu0
    %10328 = vdwg.mxu0
    %10329 = vmatpush.bf16.msra.mxu0 %v9164
    %10330 = vmatpush.bf16.msra.mxu0 %v9160
    %10331 = vmatpush.bf16.msra.mxu0 %v9156
    %10332 = vmatpush.bf16.msra.mxu0 %v9152
    %10333 = vmatpush.bf16.msra.mxu0 %v9148
    %10334 = vmatpush.bf16.msra.mxu0 %v9144
    %10335 = vmatpush.bf16.msra.mxu0 %v9140
    %10336 = vmatpush.bf16.msra.mxu0 %v9136
    %10337 = vmatmul.bf16.gmra.mxu0 %v6999
    %v10338 = vpop.f32.mrf.mxu0
    %v10339 = vadd.f32 %v10326, %v10338
    %v10340 = vpop.f32.mrf.mxu0
    %10341 = vdwg.mxu0
    %10342 = vmatpush.bf16.msra.mxu0 %v9196
    %10343 = vmatpush.bf16.msra.mxu0 %v9192
    %10344 = vmatpush.bf16.msra.mxu0 %v9188
    %10345 = vmatpush.bf16.msra.mxu0 %v9184
    %10346 = vmatpush.bf16.msra.mxu0 %v9180
    %10347 = vmatpush.bf16.msra.mxu0 %v9176
    %10348 = vmatpush.bf16.msra.mxu0 %v9172
    %10349 = vmatpush.bf16.msra.mxu0 %v9168
    %10350 = vmatmul.bf16.gmra.mxu0 %v7000
    %v10351 = vpop.f32.mrf.mxu0
    %v10352 = vadd.f32 %v10339, %v10351
    %v10353 = vpop.f32.mrf.mxu0
    %10354 = vdwg.mxu0
    %10355 = vmatpush.bf16.msra.mxu0 %v9228
    %10356 = vmatpush.bf16.msra.mxu0 %v9224
    %10357 = vmatpush.bf16.msra.mxu0 %v9220
    %10358 = vmatpush.bf16.msra.mxu0 %v9216
    %10359 = vmatpush.bf16.msra.mxu0 %v9212
    %10360 = vmatpush.bf16.msra.mxu0 %v9208
    %10361 = vmatpush.bf16.msra.mxu0 %v9204
    %10362 = vmatpush.bf16.msra.mxu0 %v9200
    %10363 = vmatmul.bf16.gmra.mxu0 %v7001
    %v10364 = vpop.f32.mrf.mxu0
    %v10365 = vadd.f32 %v10352, %v10364
    %v10366 = vpop.f32.mrf.mxu0
    %10367 = vdwg.mxu0
    %10368 = vmatpush.bf16.msra.mxu0 %v9260
    %10369 = vmatpush.bf16.msra.mxu0 %v9256
    %10370 = vmatpush.bf16.msra.mxu0 %v9252
    %10371 = vmatpush.bf16.msra.mxu0 %v9248
    %10372 = vmatpush.bf16.msra.mxu0 %v9244
    %10373 = vmatpush.bf16.msra.mxu0 %v9240
    %10374 = vmatpush.bf16.msra.mxu0 %v9236
    %10375 = vmatpush.bf16.msra.mxu0 %v9232
    %10376 = vmatmul.bf16.gmra.mxu0 %v7002
    %v10377 = vpop.f32.mrf.mxu0
    %v10378 = vadd.f32 %v10365, %v10377
    %v10379 = vpop.f32.mrf.mxu0
    %10380 = vdwg.mxu0
    %10381 = vmatpush.bf16.msra.mxu0 %v9292
    %10382 = vmatpush.bf16.msra.mxu0 %v9288
    %10383 = vmatpush.bf16.msra.mxu0 %v9284
    %10384 = vmatpush.bf16.msra.mxu0 %v9280
    %10385 = vmatpush.bf16.msra.mxu0 %v9276
    %10386 = vmatpush.bf16.msra.mxu0 %v9272
    %10387 = vmatpush.bf16.msra.mxu0 %v9268
    %10388 = vmatpush.bf16.msra.mxu0 %v9264
    %10389 = vmatmul.bf16.gmra.mxu0 %v7003
    %v10390 = vpop.f32.mrf.mxu0
    %v10391 = vadd.f32 %v10378, %v10390
    %v10392 = vpop.f32.mrf.mxu0
    %10393 = vdwg.mxu0
    %10394 = vmatpush.bf16.msra.mxu0 %v9324
    %10395 = vmatpush.bf16.msra.mxu0 %v9320
    %10396 = vmatpush.bf16.msra.mxu0 %v9316
    %10397 = vmatpush.bf16.msra.mxu0 %v9312
    %10398 = vmatpush.bf16.msra.mxu0 %v9308
    %10399 = vmatpush.bf16.msra.mxu0 %v9304
    %10400 = vmatpush.bf16.msra.mxu0 %v9300
    %10401 = vmatpush.bf16.msra.mxu0 %v9296
    %10402 = vmatmul.bf16.gmra.mxu0 %v7004
    %v10403 = vpop.f32.mrf.mxu0
    %v10404 = vadd.f32 %v10391, %v10403
    %v10405 = vpop.f32.mrf.mxu0
    %10406 = vdwg.mxu0
    %10407 = vmatpush.bf16.msra.mxu0 %v9356
    %10408 = vmatpush.bf16.msra.mxu0 %v9352
    %10409 = vmatpush.bf16.msra.mxu0 %v9348
    %10410 = vmatpush.bf16.msra.mxu0 %v9344
    %10411 = vmatpush.bf16.msra.mxu0 %v9340
    %10412 = vmatpush.bf16.msra.mxu0 %v9336
    %10413 = vmatpush.bf16.msra.mxu0 %v9332
    %10414 = vmatpush.bf16.msra.mxu0 %v9328
    %10415 = vmatmul.bf16.gmra.mxu0 %v7005
    %v10416 = vpop.f32.mrf.mxu0
    %v10417 = vadd.f32 %v10404, %v10416
    %v10418 = vpop.f32.mrf.mxu0
    %10419 = vdwg.mxu0
    %10420 = vmatpush.bf16.msra.mxu0 %v9388
    %10421 = vmatpush.bf16.msra.mxu0 %v9384
    %10422 = vmatpush.bf16.msra.mxu0 %v9380
    %10423 = vmatpush.bf16.msra.mxu0 %v9376
    %10424 = vmatpush.bf16.msra.mxu0 %v9372
    %10425 = vmatpush.bf16.msra.mxu0 %v9368
    %10426 = vmatpush.bf16.msra.mxu0 %v9364
    %10427 = vmatpush.bf16.msra.mxu0 %v9360
    %10428 = vmatmul.bf16.gmra.mxu0 %v7006
    %v10429 = vpop.f32.mrf.mxu0
    %v10430 = vadd.f32 %v10417, %v10429
    %v10431 = vpop.f32.mrf.mxu0
    %10432 = vdwg.mxu0
    %10433 = vmatpush.bf16.msra.mxu0 %v9420
    %10434 = vmatpush.bf16.msra.mxu0 %v9416
    %10435 = vmatpush.bf16.msra.mxu0 %v9412
    %10436 = vmatpush.bf16.msra.mxu0 %v9408
    %10437 = vmatpush.bf16.msra.mxu0 %v9404
    %10438 = vmatpush.bf16.msra.mxu0 %v9400
    %10439 = vmatpush.bf16.msra.mxu0 %v9396
    %10440 = vmatpush.bf16.msra.mxu0 %v9392
    %10441 = vmatmul.bf16.gmra.mxu0 %v7007
    %v10442 = vpop.f32.mrf.mxu0
    %v10443 = vadd.f32 %v10430, %v10442
    %v10444 = vpop.f32.mrf.mxu0
    %10445 = vdwg.mxu0
    %10446 = vmatpush.bf16.msra.mxu0 %v9452
    %10447 = vmatpush.bf16.msra.mxu0 %v9448
    %10448 = vmatpush.bf16.msra.mxu0 %v9444
    %10449 = vmatpush.bf16.msra.mxu0 %v9440
    %10450 = vmatpush.bf16.msra.mxu0 %v9436
    %10451 = vmatpush.bf16.msra.mxu0 %v9432
    %10452 = vmatpush.bf16.msra.mxu0 %v9428
    %10453 = vmatpush.bf16.msra.mxu0 %v9424
    %10454 = vmatmul.bf16.gmra.mxu0 %v7008
    %v10455 = vpop.f32.mrf.mxu0
    %v10456 = vadd.f32 %v10443, %v10455
    %v10457 = vpop.f32.mrf.mxu0
    %10458 = vdwg.mxu0
    %10459 = vmatpush.bf16.msra.mxu0 %v9484
    %10460 = vmatpush.bf16.msra.mxu0 %v9480
    %10461 = vmatpush.bf16.msra.mxu0 %v9476
    %10462 = vmatpush.bf16.msra.mxu0 %v9472
    %10463 = vmatpush.bf16.msra.mxu0 %v9468
    %10464 = vmatpush.bf16.msra.mxu0 %v9464
    %10465 = vmatpush.bf16.msra.mxu0 %v9460
    %10466 = vmatpush.bf16.msra.mxu0 %v9456
    %10467 = vmatmul.bf16.gmra.mxu0 %v7009
    %v10468 = vpop.f32.mrf.mxu0
    %v10469 = vadd.f32 %v10456, %v10468
    %v10470 = vpop.f32.mrf.mxu0
    %10471 = vdwg.mxu0
    %10472 = vmatpush.bf16.msra.mxu0 %v9516
    %10473 = vmatpush.bf16.msra.mxu0 %v9512
    %10474 = vmatpush.bf16.msra.mxu0 %v9508
    %10475 = vmatpush.bf16.msra.mxu0 %v9504
    %10476 = vmatpush.bf16.msra.mxu0 %v9500
    %10477 = vmatpush.bf16.msra.mxu0 %v9496
    %10478 = vmatpush.bf16.msra.mxu0 %v9492
    %10479 = vmatpush.bf16.msra.mxu0 %v9488
    %10480 = vmatmul.bf16.gmra.mxu0 %v7010
    %v10481 = vpop.f32.mrf.mxu0
    %v10482 = vadd.f32 %v10469, %v10481
    %v10483 = vpop.f32.mrf.mxu0
    %10484 = vdwg.mxu0
    %10485 = vmatpush.bf16.msra.mxu0 %v9548
    %10486 = vmatpush.bf16.msra.mxu0 %v9544
    %10487 = vmatpush.bf16.msra.mxu0 %v9540
    %10488 = vmatpush.bf16.msra.mxu0 %v9536
    %10489 = vmatpush.bf16.msra.mxu0 %v9532
    %10490 = vmatpush.bf16.msra.mxu0 %v9528
    %10491 = vmatpush.bf16.msra.mxu0 %v9524
    %10492 = vmatpush.bf16.msra.mxu0 %v9520
    %10493 = vmatmul.bf16.gmra.mxu0 %v7011
    %v10494 = vpop.f32.mrf.mxu0
    %v10495 = vadd.f32 %v10482, %v10494
    %v10496 = vpop.f32.mrf.mxu0
    %10497 = vdwg.mxu0
    %10498 = vmatpush.bf16.msra.mxu0 %v9580
    %10499 = vmatpush.bf16.msra.mxu0 %v9576
    %10500 = vmatpush.bf16.msra.mxu0 %v9572
    %10501 = vmatpush.bf16.msra.mxu0 %v9568
    %10502 = vmatpush.bf16.msra.mxu0 %v9564
    %10503 = vmatpush.bf16.msra.mxu0 %v9560
    %10504 = vmatpush.bf16.msra.mxu0 %v9556
    %10505 = vmatpush.bf16.msra.mxu0 %v9552
    %10506 = vmatmul.bf16.gmra.mxu0 %v7012
    %v10507 = vpop.f32.mrf.mxu0
    %v10508 = vadd.f32 %v10495, %v10507
    %v10509 = vpop.f32.mrf.mxu0
    %10510 = vdwg.mxu0
    %10511 = vmatpush.bf16.msra.mxu0 %v9101
    %10512 = vmatpush.bf16.msra.mxu0 %v9097
    %10513 = vmatpush.bf16.msra.mxu0 %v9093
    %10514 = vmatpush.bf16.msra.mxu0 %v9089
    %10515 = vmatpush.bf16.msra.mxu0 %v9085
    %10516 = vmatpush.bf16.msra.mxu0 %v9081
    %10517 = vmatpush.bf16.msra.mxu0 %v9077
    %10518 = vmatpush.bf16.msra.mxu0 %v9073
    %10519 = vmatmul.bf16.gmra.mxu0 %v6997
    %v10520 = vpop.f32.mrf.mxu0
    %v10521 = vadd.f32 %v7529, %v10520
    %v10522 = vpop.f32.mrf.mxu0
    %10523 = vdwg.mxu0
    %10524 = vmatpush.bf16.msra.mxu0 %v9133
    %10525 = vmatpush.bf16.msra.mxu0 %v9129
    %10526 = vmatpush.bf16.msra.mxu0 %v9125
    %10527 = vmatpush.bf16.msra.mxu0 %v9121
    %10528 = vmatpush.bf16.msra.mxu0 %v9117
    %10529 = vmatpush.bf16.msra.mxu0 %v9113
    %10530 = vmatpush.bf16.msra.mxu0 %v9109
    %10531 = vmatpush.bf16.msra.mxu0 %v9105
    %10532 = vmatmul.bf16.gmra.mxu0 %v6998
    %v10533 = vpop.f32.mrf.mxu0
    %v10534 = vadd.f32 %v10521, %v10533
    %v10535 = vpop.f32.mrf.mxu0
    %10536 = vdwg.mxu0
    %10537 = vmatpush.bf16.msra.mxu0 %v9165
    %10538 = vmatpush.bf16.msra.mxu0 %v9161
    %10539 = vmatpush.bf16.msra.mxu0 %v9157
    %10540 = vmatpush.bf16.msra.mxu0 %v9153
    %10541 = vmatpush.bf16.msra.mxu0 %v9149
    %10542 = vmatpush.bf16.msra.mxu0 %v9145
    %10543 = vmatpush.bf16.msra.mxu0 %v9141
    %10544 = vmatpush.bf16.msra.mxu0 %v9137
    %10545 = vmatmul.bf16.gmra.mxu0 %v6999
    %v10546 = vpop.f32.mrf.mxu0
    %v10547 = vadd.f32 %v10534, %v10546
    %v10548 = vpop.f32.mrf.mxu0
    %10549 = vdwg.mxu0
    %10550 = vmatpush.bf16.msra.mxu0 %v9197
    %10551 = vmatpush.bf16.msra.mxu0 %v9193
    %10552 = vmatpush.bf16.msra.mxu0 %v9189
    %10553 = vmatpush.bf16.msra.mxu0 %v9185
    %10554 = vmatpush.bf16.msra.mxu0 %v9181
    %10555 = vmatpush.bf16.msra.mxu0 %v9177
    %10556 = vmatpush.bf16.msra.mxu0 %v9173
    %10557 = vmatpush.bf16.msra.mxu0 %v9169
    %10558 = vmatmul.bf16.gmra.mxu0 %v7000
    %v10559 = vpop.f32.mrf.mxu0
    %v10560 = vadd.f32 %v10547, %v10559
    %v10561 = vpop.f32.mrf.mxu0
    %10562 = vdwg.mxu0
    %10563 = vmatpush.bf16.msra.mxu0 %v9229
    %10564 = vmatpush.bf16.msra.mxu0 %v9225
    %10565 = vmatpush.bf16.msra.mxu0 %v9221
    %10566 = vmatpush.bf16.msra.mxu0 %v9217
    %10567 = vmatpush.bf16.msra.mxu0 %v9213
    %10568 = vmatpush.bf16.msra.mxu0 %v9209
    %10569 = vmatpush.bf16.msra.mxu0 %v9205
    %10570 = vmatpush.bf16.msra.mxu0 %v9201
    %10571 = vmatmul.bf16.gmra.mxu0 %v7001
    %v10572 = vpop.f32.mrf.mxu0
    %v10573 = vadd.f32 %v10560, %v10572
    %v10574 = vpop.f32.mrf.mxu0
    %10575 = vdwg.mxu0
    %10576 = vmatpush.bf16.msra.mxu0 %v9261
    %10577 = vmatpush.bf16.msra.mxu0 %v9257
    %10578 = vmatpush.bf16.msra.mxu0 %v9253
    %10579 = vmatpush.bf16.msra.mxu0 %v9249
    %10580 = vmatpush.bf16.msra.mxu0 %v9245
    %10581 = vmatpush.bf16.msra.mxu0 %v9241
    %10582 = vmatpush.bf16.msra.mxu0 %v9237
    %10583 = vmatpush.bf16.msra.mxu0 %v9233
    %10584 = vmatmul.bf16.gmra.mxu0 %v7002
    %v10585 = vpop.f32.mrf.mxu0
    %v10586 = vadd.f32 %v10573, %v10585
    %v10587 = vpop.f32.mrf.mxu0
    %10588 = vdwg.mxu0
    %10589 = vmatpush.bf16.msra.mxu0 %v9293
    %10590 = vmatpush.bf16.msra.mxu0 %v9289
    %10591 = vmatpush.bf16.msra.mxu0 %v9285
    %10592 = vmatpush.bf16.msra.mxu0 %v9281
    %10593 = vmatpush.bf16.msra.mxu0 %v9277
    %10594 = vmatpush.bf16.msra.mxu0 %v9273
    %10595 = vmatpush.bf16.msra.mxu0 %v9269
    %10596 = vmatpush.bf16.msra.mxu0 %v9265
    %10597 = vmatmul.bf16.gmra.mxu0 %v7003
    %v10598 = vpop.f32.mrf.mxu0
    %v10599 = vadd.f32 %v10586, %v10598
    %v10600 = vpop.f32.mrf.mxu0
    %10601 = vdwg.mxu0
    %10602 = vmatpush.bf16.msra.mxu0 %v9325
    %10603 = vmatpush.bf16.msra.mxu0 %v9321
    %10604 = vmatpush.bf16.msra.mxu0 %v9317
    %10605 = vmatpush.bf16.msra.mxu0 %v9313
    %10606 = vmatpush.bf16.msra.mxu0 %v9309
    %10607 = vmatpush.bf16.msra.mxu0 %v9305
    %10608 = vmatpush.bf16.msra.mxu0 %v9301
    %10609 = vmatpush.bf16.msra.mxu0 %v9297
    %10610 = vmatmul.bf16.gmra.mxu0 %v7004
    %v10611 = vpop.f32.mrf.mxu0
    %v10612 = vadd.f32 %v10599, %v10611
    %v10613 = vpop.f32.mrf.mxu0
    %10614 = vdwg.mxu0
    %10615 = vmatpush.bf16.msra.mxu0 %v9357
    %10616 = vmatpush.bf16.msra.mxu0 %v9353
    %10617 = vmatpush.bf16.msra.mxu0 %v9349
    %10618 = vmatpush.bf16.msra.mxu0 %v9345
    %10619 = vmatpush.bf16.msra.mxu0 %v9341
    %10620 = vmatpush.bf16.msra.mxu0 %v9337
    %10621 = vmatpush.bf16.msra.mxu0 %v9333
    %10622 = vmatpush.bf16.msra.mxu0 %v9329
    %10623 = vmatmul.bf16.gmra.mxu0 %v7005
    %v10624 = vpop.f32.mrf.mxu0
    %v10625 = vadd.f32 %v10612, %v10624
    %v10626 = vpop.f32.mrf.mxu0
    %10627 = vdwg.mxu0
    %10628 = vmatpush.bf16.msra.mxu0 %v9389
    %10629 = vmatpush.bf16.msra.mxu0 %v9385
    %10630 = vmatpush.bf16.msra.mxu0 %v9381
    %10631 = vmatpush.bf16.msra.mxu0 %v9377
    %10632 = vmatpush.bf16.msra.mxu0 %v9373
    %10633 = vmatpush.bf16.msra.mxu0 %v9369
    %10634 = vmatpush.bf16.msra.mxu0 %v9365
    %10635 = vmatpush.bf16.msra.mxu0 %v9361
    %10636 = vmatmul.bf16.gmra.mxu0 %v7006
    %v10637 = vpop.f32.mrf.mxu0
    %v10638 = vadd.f32 %v10625, %v10637
    %v10639 = vpop.f32.mrf.mxu0
    %10640 = vdwg.mxu0
    %10641 = vmatpush.bf16.msra.mxu0 %v9421
    %10642 = vmatpush.bf16.msra.mxu0 %v9417
    %10643 = vmatpush.bf16.msra.mxu0 %v9413
    %10644 = vmatpush.bf16.msra.mxu0 %v9409
    %10645 = vmatpush.bf16.msra.mxu0 %v9405
    %10646 = vmatpush.bf16.msra.mxu0 %v9401
    %10647 = vmatpush.bf16.msra.mxu0 %v9397
    %10648 = vmatpush.bf16.msra.mxu0 %v9393
    %10649 = vmatmul.bf16.gmra.mxu0 %v7007
    %v10650 = vpop.f32.mrf.mxu0
    %v10651 = vadd.f32 %v10638, %v10650
    %v10652 = vpop.f32.mrf.mxu0
    %10653 = vdwg.mxu0
    %10654 = vmatpush.bf16.msra.mxu0 %v9453
    %10655 = vmatpush.bf16.msra.mxu0 %v9449
    %10656 = vmatpush.bf16.msra.mxu0 %v9445
    %10657 = vmatpush.bf16.msra.mxu0 %v9441
    %10658 = vmatpush.bf16.msra.mxu0 %v9437
    %10659 = vmatpush.bf16.msra.mxu0 %v9433
    %10660 = vmatpush.bf16.msra.mxu0 %v9429
    %10661 = vmatpush.bf16.msra.mxu0 %v9425
    %10662 = vmatmul.bf16.gmra.mxu0 %v7008
    %v10663 = vpop.f32.mrf.mxu0
    %v10664 = vadd.f32 %v10651, %v10663
    %v10665 = vpop.f32.mrf.mxu0
    %10666 = vdwg.mxu0
    %10667 = vmatpush.bf16.msra.mxu0 %v9485
    %10668 = vmatpush.bf16.msra.mxu0 %v9481
    %10669 = vmatpush.bf16.msra.mxu0 %v9477
    %10670 = vmatpush.bf16.msra.mxu0 %v9473
    %10671 = vmatpush.bf16.msra.mxu0 %v9469
    %10672 = vmatpush.bf16.msra.mxu0 %v9465
    %10673 = vmatpush.bf16.msra.mxu0 %v9461
    %10674 = vmatpush.bf16.msra.mxu0 %v9457
    %10675 = vmatmul.bf16.gmra.mxu0 %v7009
    %v10676 = vpop.f32.mrf.mxu0
    %v10677 = vadd.f32 %v10664, %v10676
    %v10678 = vpop.f32.mrf.mxu0
    %10679 = vdwg.mxu0
    %10680 = vmatpush.bf16.msra.mxu0 %v9517
    %10681 = vmatpush.bf16.msra.mxu0 %v9513
    %10682 = vmatpush.bf16.msra.mxu0 %v9509
    %10683 = vmatpush.bf16.msra.mxu0 %v9505
    %10684 = vmatpush.bf16.msra.mxu0 %v9501
    %10685 = vmatpush.bf16.msra.mxu0 %v9497
    %10686 = vmatpush.bf16.msra.mxu0 %v9493
    %10687 = vmatpush.bf16.msra.mxu0 %v9489
    %10688 = vmatmul.bf16.gmra.mxu0 %v7010
    %v10689 = vpop.f32.mrf.mxu0
    %v10690 = vadd.f32 %v10677, %v10689
    %v10691 = vpop.f32.mrf.mxu0
    %10692 = vdwg.mxu0
    %10693 = vmatpush.bf16.msra.mxu0 %v9549
    %10694 = vmatpush.bf16.msra.mxu0 %v9545
    %10695 = vmatpush.bf16.msra.mxu0 %v9541
    %10696 = vmatpush.bf16.msra.mxu0 %v9537
    %10697 = vmatpush.bf16.msra.mxu0 %v9533
    %10698 = vmatpush.bf16.msra.mxu0 %v9529
    %10699 = vmatpush.bf16.msra.mxu0 %v9525
    %10700 = vmatpush.bf16.msra.mxu0 %v9521
    %10701 = vmatmul.bf16.gmra.mxu0 %v7011
    %v10702 = vpop.f32.mrf.mxu0
    %v10703 = vadd.f32 %v10690, %v10702
    %v10704 = vpop.f32.mrf.mxu0
    %10705 = vdwg.mxu0
    %10706 = vmatpush.bf16.msra.mxu0 %v9581
    %10707 = vmatpush.bf16.msra.mxu0 %v9577
    %10708 = vmatpush.bf16.msra.mxu0 %v9573
    %10709 = vmatpush.bf16.msra.mxu0 %v9569
    %10710 = vmatpush.bf16.msra.mxu0 %v9565
    %10711 = vmatpush.bf16.msra.mxu0 %v9561
    %10712 = vmatpush.bf16.msra.mxu0 %v9557
    %10713 = vmatpush.bf16.msra.mxu0 %v9553
    %10714 = vmatmul.bf16.gmra.mxu0 %v7012
    %v10715 = vpop.f32.mrf.mxu0
    %v10716 = vadd.f32 %v10703, %v10715
    %v10717 = vpop.f32.mrf.mxu0
    %10718 = vdwg.mxu0
    %10719 = vmatpush.bf16.msra.mxu0 %v9102
    %10720 = vmatpush.bf16.msra.mxu0 %v9098
    %10721 = vmatpush.bf16.msra.mxu0 %v9094
    %10722 = vmatpush.bf16.msra.mxu0 %v9090
    %10723 = vmatpush.bf16.msra.mxu0 %v9086
    %10724 = vmatpush.bf16.msra.mxu0 %v9082
    %10725 = vmatpush.bf16.msra.mxu0 %v9078
    %10726 = vmatpush.bf16.msra.mxu0 %v9074
    %10727 = vmatmul.bf16.gmra.mxu0 %v6997
    %v10728 = vpop.f32.mrf.mxu0
    %v10729 = vadd.f32 %v7530, %v10728
    %v10730 = vpop.f32.mrf.mxu0
    %10731 = vdwg.mxu0
    %10732 = vmatpush.bf16.msra.mxu0 %v9134
    %10733 = vmatpush.bf16.msra.mxu0 %v9130
    %10734 = vmatpush.bf16.msra.mxu0 %v9126
    %10735 = vmatpush.bf16.msra.mxu0 %v9122
    %10736 = vmatpush.bf16.msra.mxu0 %v9118
    %10737 = vmatpush.bf16.msra.mxu0 %v9114
    %10738 = vmatpush.bf16.msra.mxu0 %v9110
    %10739 = vmatpush.bf16.msra.mxu0 %v9106
    %10740 = vmatmul.bf16.gmra.mxu0 %v6998
    %v10741 = vpop.f32.mrf.mxu0
    %v10742 = vadd.f32 %v10729, %v10741
    %v10743 = vpop.f32.mrf.mxu0
    %10744 = vdwg.mxu0
    %10745 = vmatpush.bf16.msra.mxu0 %v9166
    %10746 = vmatpush.bf16.msra.mxu0 %v9162
    %10747 = vmatpush.bf16.msra.mxu0 %v9158
    %10748 = vmatpush.bf16.msra.mxu0 %v9154
    %10749 = vmatpush.bf16.msra.mxu0 %v9150
    %10750 = vmatpush.bf16.msra.mxu0 %v9146
    %10751 = vmatpush.bf16.msra.mxu0 %v9142
    %10752 = vmatpush.bf16.msra.mxu0 %v9138
    %10753 = vmatmul.bf16.gmra.mxu0 %v6999
    %v10754 = vpop.f32.mrf.mxu0
    %v10755 = vadd.f32 %v10742, %v10754
    %v10756 = vpop.f32.mrf.mxu0
    %10757 = vdwg.mxu0
    %10758 = vmatpush.bf16.msra.mxu0 %v9198
    %10759 = vmatpush.bf16.msra.mxu0 %v9194
    %10760 = vmatpush.bf16.msra.mxu0 %v9190
    %10761 = vmatpush.bf16.msra.mxu0 %v9186
    %10762 = vmatpush.bf16.msra.mxu0 %v9182
    %10763 = vmatpush.bf16.msra.mxu0 %v9178
    %10764 = vmatpush.bf16.msra.mxu0 %v9174
    %10765 = vmatpush.bf16.msra.mxu0 %v9170
    %10766 = vmatmul.bf16.gmra.mxu0 %v7000
    %v10767 = vpop.f32.mrf.mxu0
    %v10768 = vadd.f32 %v10755, %v10767
    %v10769 = vpop.f32.mrf.mxu0
    %10770 = vdwg.mxu0
    %10771 = vmatpush.bf16.msra.mxu0 %v9230
    %10772 = vmatpush.bf16.msra.mxu0 %v9226
    %10773 = vmatpush.bf16.msra.mxu0 %v9222
    %10774 = vmatpush.bf16.msra.mxu0 %v9218
    %10775 = vmatpush.bf16.msra.mxu0 %v9214
    %10776 = vmatpush.bf16.msra.mxu0 %v9210
    %10777 = vmatpush.bf16.msra.mxu0 %v9206
    %10778 = vmatpush.bf16.msra.mxu0 %v9202
    %10779 = vmatmul.bf16.gmra.mxu0 %v7001
    %v10780 = vpop.f32.mrf.mxu0
    %v10781 = vadd.f32 %v10768, %v10780
    %v10782 = vpop.f32.mrf.mxu0
    %10783 = vdwg.mxu0
    %10784 = vmatpush.bf16.msra.mxu0 %v9262
    %10785 = vmatpush.bf16.msra.mxu0 %v9258
    %10786 = vmatpush.bf16.msra.mxu0 %v9254
    %10787 = vmatpush.bf16.msra.mxu0 %v9250
    %10788 = vmatpush.bf16.msra.mxu0 %v9246
    %10789 = vmatpush.bf16.msra.mxu0 %v9242
    %10790 = vmatpush.bf16.msra.mxu0 %v9238
    %10791 = vmatpush.bf16.msra.mxu0 %v9234
    %10792 = vmatmul.bf16.gmra.mxu0 %v7002
    %v10793 = vpop.f32.mrf.mxu0
    %v10794 = vadd.f32 %v10781, %v10793
    %v10795 = vpop.f32.mrf.mxu0
    %10796 = vdwg.mxu0
    %10797 = vmatpush.bf16.msra.mxu0 %v9294
    %10798 = vmatpush.bf16.msra.mxu0 %v9290
    %10799 = vmatpush.bf16.msra.mxu0 %v9286
    %10800 = vmatpush.bf16.msra.mxu0 %v9282
    %10801 = vmatpush.bf16.msra.mxu0 %v9278
    %10802 = vmatpush.bf16.msra.mxu0 %v9274
    %10803 = vmatpush.bf16.msra.mxu0 %v9270
    %10804 = vmatpush.bf16.msra.mxu0 %v9266
    %10805 = vmatmul.bf16.gmra.mxu0 %v7003
    %v10806 = vpop.f32.mrf.mxu0
    %v10807 = vadd.f32 %v10794, %v10806
    %v10808 = vpop.f32.mrf.mxu0
    %10809 = vdwg.mxu0
    %10810 = vmatpush.bf16.msra.mxu0 %v9326
    %10811 = vmatpush.bf16.msra.mxu0 %v9322
    %10812 = vmatpush.bf16.msra.mxu0 %v9318
    %10813 = vmatpush.bf16.msra.mxu0 %v9314
    %10814 = vmatpush.bf16.msra.mxu0 %v9310
    %10815 = vmatpush.bf16.msra.mxu0 %v9306
    %10816 = vmatpush.bf16.msra.mxu0 %v9302
    %10817 = vmatpush.bf16.msra.mxu0 %v9298
    %10818 = vmatmul.bf16.gmra.mxu0 %v7004
    %v10819 = vpop.f32.mrf.mxu0
    %v10820 = vadd.f32 %v10807, %v10819
    %v10821 = vpop.f32.mrf.mxu0
    %10822 = vdwg.mxu0
    %10823 = vmatpush.bf16.msra.mxu0 %v9358
    %10824 = vmatpush.bf16.msra.mxu0 %v9354
    %10825 = vmatpush.bf16.msra.mxu0 %v9350
    %10826 = vmatpush.bf16.msra.mxu0 %v9346
    %10827 = vmatpush.bf16.msra.mxu0 %v9342
    %10828 = vmatpush.bf16.msra.mxu0 %v9338
    %10829 = vmatpush.bf16.msra.mxu0 %v9334
    %10830 = vmatpush.bf16.msra.mxu0 %v9330
    %10831 = vmatmul.bf16.gmra.mxu0 %v7005
    %v10832 = vpop.f32.mrf.mxu0
    %v10833 = vadd.f32 %v10820, %v10832
    %v10834 = vpop.f32.mrf.mxu0
    %10835 = vdwg.mxu0
    %10836 = vmatpush.bf16.msra.mxu0 %v9390
    %10837 = vmatpush.bf16.msra.mxu0 %v9386
    %10838 = vmatpush.bf16.msra.mxu0 %v9382
    %10839 = vmatpush.bf16.msra.mxu0 %v9378
    %10840 = vmatpush.bf16.msra.mxu0 %v9374
    %10841 = vmatpush.bf16.msra.mxu0 %v9370
    %10842 = vmatpush.bf16.msra.mxu0 %v9366
    %10843 = vmatpush.bf16.msra.mxu0 %v9362
    %10844 = vmatmul.bf16.gmra.mxu0 %v7006
    %v10845 = vpop.f32.mrf.mxu0
    %v10846 = vadd.f32 %v10833, %v10845
    %v10847 = vpop.f32.mrf.mxu0
    %10848 = vdwg.mxu0
    %10849 = vmatpush.bf16.msra.mxu0 %v9422
    %10850 = vmatpush.bf16.msra.mxu0 %v9418
    %10851 = vmatpush.bf16.msra.mxu0 %v9414
    %10852 = vmatpush.bf16.msra.mxu0 %v9410
    %10853 = vmatpush.bf16.msra.mxu0 %v9406
    %10854 = vmatpush.bf16.msra.mxu0 %v9402
    %10855 = vmatpush.bf16.msra.mxu0 %v9398
    %10856 = vmatpush.bf16.msra.mxu0 %v9394
    %10857 = vmatmul.bf16.gmra.mxu0 %v7007
    %v10858 = vpop.f32.mrf.mxu0
    %v10859 = vadd.f32 %v10846, %v10858
    %v10860 = vpop.f32.mrf.mxu0
    %10861 = vdwg.mxu0
    %10862 = vmatpush.bf16.msra.mxu0 %v9454
    %10863 = vmatpush.bf16.msra.mxu0 %v9450
    %10864 = vmatpush.bf16.msra.mxu0 %v9446
    %10865 = vmatpush.bf16.msra.mxu0 %v9442
    %10866 = vmatpush.bf16.msra.mxu0 %v9438
    %10867 = vmatpush.bf16.msra.mxu0 %v9434
    %10868 = vmatpush.bf16.msra.mxu0 %v9430
    %10869 = vmatpush.bf16.msra.mxu0 %v9426
    %10870 = vmatmul.bf16.gmra.mxu0 %v7008
    %v10871 = vpop.f32.mrf.mxu0
    %v10872 = vadd.f32 %v10859, %v10871
    %v10873 = vpop.f32.mrf.mxu0
    %10874 = vdwg.mxu0
    %10875 = vmatpush.bf16.msra.mxu0 %v9486
    %10876 = vmatpush.bf16.msra.mxu0 %v9482
    %10877 = vmatpush.bf16.msra.mxu0 %v9478
    %10878 = vmatpush.bf16.msra.mxu0 %v9474
    %10879 = vmatpush.bf16.msra.mxu0 %v9470
    %10880 = vmatpush.bf16.msra.mxu0 %v9466
    %10881 = vmatpush.bf16.msra.mxu0 %v9462
    %10882 = vmatpush.bf16.msra.mxu0 %v9458
    %10883 = vmatmul.bf16.gmra.mxu0 %v7009
    %v10884 = vpop.f32.mrf.mxu0
    %v10885 = vadd.f32 %v10872, %v10884
    %v10886 = vpop.f32.mrf.mxu0
    %10887 = vdwg.mxu0
    %10888 = vmatpush.bf16.msra.mxu0 %v9518
    %10889 = vmatpush.bf16.msra.mxu0 %v9514
    %10890 = vmatpush.bf16.msra.mxu0 %v9510
    %10891 = vmatpush.bf16.msra.mxu0 %v9506
    %10892 = vmatpush.bf16.msra.mxu0 %v9502
    %10893 = vmatpush.bf16.msra.mxu0 %v9498
    %10894 = vmatpush.bf16.msra.mxu0 %v9494
    %10895 = vmatpush.bf16.msra.mxu0 %v9490
    %10896 = vmatmul.bf16.gmra.mxu0 %v7010
    %v10897 = vpop.f32.mrf.mxu0
    %v10898 = vadd.f32 %v10885, %v10897
    %v10899 = vpop.f32.mrf.mxu0
    %10900 = vdwg.mxu0
    %10901 = vmatpush.bf16.msra.mxu0 %v9550
    %10902 = vmatpush.bf16.msra.mxu0 %v9546
    %10903 = vmatpush.bf16.msra.mxu0 %v9542
    %10904 = vmatpush.bf16.msra.mxu0 %v9538
    %10905 = vmatpush.bf16.msra.mxu0 %v9534
    %10906 = vmatpush.bf16.msra.mxu0 %v9530
    %10907 = vmatpush.bf16.msra.mxu0 %v9526
    %10908 = vmatpush.bf16.msra.mxu0 %v9522
    %10909 = vmatmul.bf16.gmra.mxu0 %v7011
    %v10910 = vpop.f32.mrf.mxu0
    %v10911 = vadd.f32 %v10898, %v10910
    %v10912 = vpop.f32.mrf.mxu0
    %10913 = vdwg.mxu0
    %10914 = vmatpush.bf16.msra.mxu0 %v9582
    %10915 = vmatpush.bf16.msra.mxu0 %v9578
    %10916 = vmatpush.bf16.msra.mxu0 %v9574
    %10917 = vmatpush.bf16.msra.mxu0 %v9570
    %10918 = vmatpush.bf16.msra.mxu0 %v9566
    %10919 = vmatpush.bf16.msra.mxu0 %v9562
    %10920 = vmatpush.bf16.msra.mxu0 %v9558
    %10921 = vmatpush.bf16.msra.mxu0 %v9554
    %10922 = vmatmul.bf16.gmra.mxu0 %v7012
    %v10923 = vpop.f32.mrf.mxu0
    %v10924 = vadd.f32 %v10911, %v10923
    %v10925 = vpop.f32.mrf.mxu0
    %10926 = vdwg.mxu0
    %v10927 = vpack.c.bf16 %v10300, %v10300
    %v10928 = vpack.c.bf16 %v10508, %v10508
    %v10929 = vld [vmem:[%s13] sm:$0xf]
    %v10930 = vld [vmem:[%s13 + $0x4] sm:$0xf]
    %v10931 = vld [vmem:[%s13 + $0x8] sm:$0xf]
    %v10932 = vld [vmem:[%s13 + $0xc] sm:$0xf]
    %v10933 = vld [vmem:[%s13 + $0x10] sm:$0xf]
    %v10934 = vld [vmem:[%s13 + $0x14] sm:$0xf]
    %v10935 = vld [vmem:[%s13 + $0x18] sm:$0xf]
    %v10936 = vld [vmem:[%s13 + $0x1c] sm:$0xf]
    %v10937 = vld [vmem:[%s13 + $0x20] sm:$0xf]
    %v10938 = vld [vmem:[%s13 + $0x24] sm:$0xf]
    %v10939 = vld [vmem:[%s13 + $0x28] sm:$0xf]
    %v10940 = vld [vmem:[%s13 + $0x2c] sm:$0xf]
    %v10941 = vld [vmem:[%s13 + $0x30] sm:$0xf]
    %v10942 = vld [vmem:[%s13 + $0x34] sm:$0xf]
    %v10943 = vld [vmem:[%s13 + $0x38] sm:$0xf]
    %v10944 = vld [vmem:[%s13 + $0x3c] sm:$0xf]
    %v10945 = vld [vmem:[%s13 + $0x40] sm:$0xf]
    %v10946 = vld [vmem:[%s13 + $0x44] sm:$0xf]
    %v10947 = vld [vmem:[%s13 + $0x48] sm:$0xf]
    %v10948 = vld [vmem:[%s13 + $0x4c] sm:$0xf]
    %v10949 = vld [vmem:[%s13 + $0x50] sm:$0xf]
    %v10950 = vld [vmem:[%s13 + $0x54] sm:$0xf]
    %v10951 = vld [vmem:[%s13 + $0x58] sm:$0xf]
    %v10952 = vld [vmem:[%s13 + $0x5c] sm:$0xf]
    %v10953 = vld [vmem:[%s13 + $0x60] sm:$0xf]
    %v10954 = vld [vmem:[%s13 + $0x64] sm:$0xf]
    %v10955 = vld [vmem:[%s13 + $0x68] sm:$0xf]
    %v10956 = vld [vmem:[%s13 + $0x6c] sm:$0xf]
    %v10957 = vld [vmem:[%s13 + $0x70] sm:$0xf]
    %v10958 = vld [vmem:[%s13 + $0x74] sm:$0xf]
    %v10959 = vld [vmem:[%s13 + $0x78] sm:$0xf]
    %v10960 = vld [vmem:[%s13 + $0x7c] sm:$0xf]
    %v10961 = vld [vmem:[#allocation29] sm:$0x1]
    %v10963 = vperm.slane %v10961, 0
    %v10997 = vunpack.c.l.b16 %v10929
    %v10998 = vunpack.c.l.b16 %v10930
    %v10999 = vunpack.c.l.b16 %v10931
    %v11000 = vunpack.c.l.b16 %v10932
    %v11001 = vunpack.c.l.b16 %v10933
    %v11002 = vunpack.c.l.b16 %v10934
    %v11003 = vunpack.c.l.b16 %v10935
    %v11004 = vunpack.c.l.b16 %v10936
    %v11005 = vunpack.c.l.b16 %v10937
    %v11006 = vunpack.c.l.b16 %v10938
    %v11007 = vunpack.c.l.b16 %v10939
    %v11008 = vunpack.c.l.b16 %v10940
    %v11009 = vunpack.c.l.b16 %v10941
    %v11010 = vunpack.c.l.b16 %v10942
    %v11011 = vunpack.c.l.b16 %v10943
    %v11012 = vunpack.c.l.b16 %v10944
    %v11013 = vunpack.c.l.b16 %v10945
    %v11014 = vunpack.c.l.b16 %v10946
    %v11015 = vunpack.c.l.b16 %v10947
    %v11016 = vunpack.c.l.b16 %v10948
    %v11017 = vunpack.c.l.b16 %v10949
    %v11018 = vunpack.c.l.b16 %v10950
    %v11019 = vunpack.c.l.b16 %v10951
    %v11020 = vunpack.c.l.b16 %v10952
    %v11021 = vunpack.c.l.b16 %v10953
    %v11022 = vunpack.c.l.b16 %v10954
    %v11023 = vunpack.c.l.b16 %v10955
    %v11024 = vunpack.c.l.b16 %v10956
    %v11025 = vunpack.c.l.b16 %v10957
    %v11026 = vunpack.c.l.b16 %v10958
    %v11027 = vunpack.c.l.b16 %v10959
    %v11028 = vunpack.c.l.b16 %v10960
    %v11029 = vpack.c.b16 %v10998, %v10997
    %v11030 = vpack.c.b16 %v11000, %v10999
    %v11031 = vpack.c.b16 %v11002, %v11001
    %v11032 = vpack.c.b16 %v11004, %v11003
    %v11033 = vpack.c.b16 %v11006, %v11005
    %v11034 = vpack.c.b16 %v11008, %v11007
    %v11035 = vpack.c.b16 %v11010, %v11009
    %v11036 = vpack.c.b16 %v11012, %v11011
    %v11037 = vpack.c.b16 %v11014, %v11013
    %v11038 = vpack.c.b16 %v11016, %v11015
    %v11039 = vpack.c.b16 %v11018, %v11017
    %v11040 = vpack.c.b16 %v11020, %v11019
    %v11041 = vpack.c.b16 %v11022, %v11021
    %v11042 = vpack.c.b16 %v11024, %v11023
    %v11043 = vpack.c.b16 %v11026, %v11025
    %v11044 = vpack.c.b16 %v11028, %v11027
    %11061 = vmatpush.bf16.msra.mxu0 %v11036
    %11062 = vmatpush.bf16.msra.mxu0 %v11035
    %11063 = vmatpush.bf16.msra.mxu0 %v11034
    %11064 = vmatpush.bf16.msra.mxu0 %v11033
    %11065 = vmatpush.bf16.msra.mxu0 %v11032
    %11066 = vmatpush.bf16.msra.mxu0 %v11031
    %11067 = vmatpush.bf16.msra.mxu0 %v11030
    %11068 = vmatpush.bf16.msra.mxu0 %v11029
    %11069 = vmatmul.bf16.gmra.mxu0 %v10927
    %v11070 = vpop.f32.mrf.mxu0
    %v11071 = vadd.f32 %v10963, %v11070
    %v11072 = vpop.f32.mrf.mxu0
    %11073 = vdwg.mxu0
    %11074 = vmatpush.bf16.msra.mxu0 %v11044
    %11075 = vmatpush.bf16.msra.mxu0 %v11043
    %11076 = vmatpush.bf16.msra.mxu0 %v11042
    %11077 = vmatpush.bf16.msra.mxu0 %v11041
    %11078 = vmatpush.bf16.msra.mxu0 %v11040
    %11079 = vmatpush.bf16.msra.mxu0 %v11039
    %11080 = vmatpush.bf16.msra.mxu0 %v11038
    %11081 = vmatpush.bf16.msra.mxu0 %v11037
    %11082 = vmatmul.bf16.gmra.mxu0 %v10928
    %v11083 = vpop.f32.mrf.mxu0
    %v11084 = vadd.f32 %v11071, %v11083
    %v11085 = vpop.f32.mrf.mxu0
    %11086 = vdwg.mxu0
    %v11087 = vpack.c.bf16 %v10716, %v10716
    %v11088 = vpack.c.bf16 %v10924, %v10924
    %v11089 = vld [vmem:[%s15] sm:$0xf]
    %v11090 = vld [vmem:[%s15 + $0x4] sm:$0xf]
    %v11091 = vld [vmem:[%s15 + $0x8] sm:$0xf]
    %v11092 = vld [vmem:[%s15 + $0xc] sm:$0xf]
    %v11093 = vld [vmem:[%s15 + $0x10] sm:$0xf]
    %v11094 = vld [vmem:[%s15 + $0x14] sm:$0xf]
    %v11095 = vld [vmem:[%s15 + $0x18] sm:$0xf]
    %v11096 = vld [vmem:[%s15 + $0x1c] sm:$0xf]
    %v11097 = vld [vmem:[%s15 + $0x20] sm:$0xf]
    %v11098 = vld [vmem:[%s15 + $0x24] sm:$0xf]
    %v11099 = vld [vmem:[%s15 + $0x28] sm:$0xf]
    %v11100 = vld [vmem:[%s15 + $0x2c] sm:$0xf]
    %v11101 = vld [vmem:[%s15 + $0x30] sm:$0xf]
    %v11102 = vld [vmem:[%s15 + $0x34] sm:$0xf]
    %v11103 = vld [vmem:[%s15 + $0x38] sm:$0xf]
    %v11104 = vld [vmem:[%s15 + $0x3c] sm:$0xf]
    %v11105 = vld [vmem:[%s15 + $0x40] sm:$0xf]
    %v11106 = vld [vmem:[%s15 + $0x44] sm:$0xf]
    %v11107 = vld [vmem:[%s15 + $0x48] sm:$0xf]
    %v11108 = vld [vmem:[%s15 + $0x4c] sm:$0xf]
    %v11109 = vld [vmem:[%s15 + $0x50] sm:$0xf]
    %v11110 = vld [vmem:[%s15 + $0x54] sm:$0xf]
    %v11111 = vld [vmem:[%s15 + $0x58] sm:$0xf]
    %v11112 = vld [vmem:[%s15 + $0x5c] sm:$0xf]
    %v11113 = vld [vmem:[%s15 + $0x60] sm:$0xf]
    %v11114 = vld [vmem:[%s15 + $0x64] sm:$0xf]
    %v11115 = vld [vmem:[%s15 + $0x68] sm:$0xf]
    %v11116 = vld [vmem:[%s15 + $0x6c] sm:$0xf]
    %v11117 = vld [vmem:[%s15 + $0x70] sm:$0xf]
    %v11118 = vld [vmem:[%s15 + $0x74] sm:$0xf]
    %v11119 = vld [vmem:[%s15 + $0x78] sm:$0xf]
    %v11120 = vld [vmem:[%s15 + $0x7c] sm:$0xf]
    %v11121 = vld [vmem:[#allocation8] sm:$0x1]
    %v11123 = vperm.slane %v11121, 0
    %v11157 = vunpack.c.l.b16 %v11089
    %v11158 = vunpack.c.l.b16 %v11090
    %v11159 = vunpack.c.l.b16 %v11091
    %v11160 = vunpack.c.l.b16 %v11092
    %v11161 = vunpack.c.l.b16 %v11093
    %v11162 = vunpack.c.l.b16 %v11094
    %v11163 = vunpack.c.l.b16 %v11095
    %v11164 = vunpack.c.l.b16 %v11096
    %v11165 = vunpack.c.l.b16 %v11097
    %v11166 = vunpack.c.l.b16 %v11098
    %v11167 = vunpack.c.l.b16 %v11099
    %v11168 = vunpack.c.l.b16 %v11100
    %v11169 = vunpack.c.l.b16 %v11101
    %v11170 = vunpack.c.l.b16 %v11102
    %v11171 = vunpack.c.l.b16 %v11103
    %v11172 = vunpack.c.l.b16 %v11104
    %v11173 = vunpack.c.l.b16 %v11105
    %v11174 = vunpack.c.l.b16 %v11106
    %v11175 = vunpack.c.l.b16 %v11107
    %v11176 = vunpack.c.l.b16 %v11108
    %v11177 = vunpack.c.l.b16 %v11109
    %v11178 = vunpack.c.l.b16 %v11110
    %v11179 = vunpack.c.l.b16 %v11111
    %v11180 = vunpack.c.l.b16 %v11112
    %v11181 = vunpack.c.l.b16 %v11113
    %v11182 = vunpack.c.l.b16 %v11114
    %v11183 = vunpack.c.l.b16 %v11115
    %v11184 = vunpack.c.l.b16 %v11116
    %v11185 = vunpack.c.l.b16 %v11117
    %v11186 = vunpack.c.l.b16 %v11118
    %v11187 = vunpack.c.l.b16 %v11119
    %v11188 = vunpack.c.l.b16 %v11120
    %v11189 = vpack.c.b16 %v11158, %v11157
    %v11190 = vpack.c.b16 %v11160, %v11159
    %v11191 = vpack.c.b16 %v11162, %v11161
    %v11192 = vpack.c.b16 %v11164, %v11163
    %v11193 = vpack.c.b16 %v11166, %v11165
    %v11194 = vpack.c.b16 %v11168, %v11167
    %v11195 = vpack.c.b16 %v11170, %v11169
    %v11196 = vpack.c.b16 %v11172, %v11171
    %v11197 = vpack.c.b16 %v11174, %v11173
    %v11198 = vpack.c.b16 %v11176, %v11175
    %v11199 = vpack.c.b16 %v11178, %v11177
    %v11200 = vpack.c.b16 %v11180, %v11179
    %v11201 = vpack.c.b16 %v11182, %v11181
    %v11202 = vpack.c.b16 %v11184, %v11183
    %v11203 = vpack.c.b16 %v11186, %v11185
    %v11204 = vpack.c.b16 %v11188, %v11187
    %11221 = vmatpush.bf16.msra.mxu0 %v11196
    %11222 = vmatpush.bf16.msra.mxu0 %v11195
    %11223 = vmatpush.bf16.msra.mxu0 %v11194
    %11224 = vmatpush.bf16.msra.mxu0 %v11193
    %11225 = vmatpush.bf16.msra.mxu0 %v11192
    %11226 = vmatpush.bf16.msra.mxu0 %v11191
    %11227 = vmatpush.bf16.msra.mxu0 %v11190
    %11228 = vmatpush.bf16.msra.mxu0 %v11189
    %11229 = vmatmul.bf16.gmra.mxu0 %v11087
    %v11230 = vpop.f32.mrf.mxu0
    %v11231 = vadd.f32 %v11123, %v11230
    %v11232 = vpop.f32.mrf.mxu0
    %11233 = vdwg.mxu0
    %11234 = vmatpush.bf16.msra.mxu0 %v11204
    %11235 = vmatpush.bf16.msra.mxu0 %v11203
    %11236 = vmatpush.bf16.msra.mxu0 %v11202
    %11237 = vmatpush.bf16.msra.mxu0 %v11201
    %11238 = vmatpush.bf16.msra.mxu0 %v11200
    %11239 = vmatpush.bf16.msra.mxu0 %v11199
    %11240 = vmatpush.bf16.msra.mxu0 %v11198
    %11241 = vmatpush.bf16.msra.mxu0 %v11197
    %11242 = vmatmul.bf16.gmra.mxu0 %v11088
    %v11243 = vpop.f32.mrf.mxu0
    %v11244 = vadd.f32 %v11231, %v11243
    %v11245 = vpop.f32.mrf.mxu0
    %11246 = vdwg.mxu0
    %11248 = vset.pattern.permute.xlu0 0
    %11249 = vperm.xlu0 %11248, %v11244
    %v11250 = vpop.permute.xlu0 %11249
    %v11252 = vadd.f32 %v11250, %v11084
    %vm11253 = vcmask 25600
    %v11254 = vsel %vm11253, %v11084, 0.0
    %11255 = vadd.xlane.f32.xlu0 %v11254
    %v11256 = vpop.xlane.xlu0 %11255
    %v11257 = vrcp.pop 4.0
    %v11258 = vmul.f32 4.0, %v11257
    %v11259 = vsub.f32 1.0, %v11258
    %v11260 = vmul.f32 %v11257, %v11259
    %v11261 = vadd.f32 %v11257, %v11260
    %vm11262 = vweird.f32 %v11257
    %v11263 = vsel %vm11262, %v11257, %v11261
    %v11264 = vmul.f32 %v11256, %v11263
    %v11265 = vsub.f32 %v11252, %v11264
    %v11266 = vsel %vm11253, %v11265, -inf
    %11267 = vmax.xlane.f32.xlu0 %v11266
    %v11268 = vpop.xlane.xlu0 %11267
    %v11269 = vsub.f32 %v11265, %v11268
    %v11270 = vmul.f32 %v11269, 1.442695
    %v11271 = vpow.pop %v11270
    %v11272 = vsel %vm11253, %v11271, 0.0
    %11273 = vadd.xlane.f32.xlu0 %v11272
    %v11274 = vpop.xlane.xlu0 %11273
    %v11275 = vlog2.pop %v11274
    %v11276 = vmul.f32 %v11275, 0.6931472
    %v11277 = vsub.f32 %v11269, %v11276
    %11278 = vst.msk [vmem:[#allocation30] sm:$0x3] %vm11253, %v11277
    // Predicated region
    $region122: #{conv_block_forward.1} parent=1 // pred_check
      _
    $region123: #{conv_block_forward.1} parent=1 // pred_check_branch
      %11280 = sbr.rel (0) target = $region125
    $region124: #{conv_block_forward.1} parent=1 // pred_region
      %11282 = vsyncadd [#allocation11], 0
      %s11284 = sshll.u32 [#allocation30], 4
      %s11285 = int_to_ptr.vmem [resolvable:$true] %s11284
      %s11286 = sshll.u32 %s17, 4
      %s11287 = int_to_ptr.hbm [resolvable:$true] %s11286
      %11289 = dma.vmem_to_hbm [thread:$0]  %s11285, 32, %s11287, [#allocation11]
    $region125: #{conv_block_forward.1} parent=1 // pred_fallthru
      _
    // Predicated region
    $region126: #{conv_block_forward.1} parent=1 // pred_check
      _
    $region127: #{conv_block_forward.1} parent=1 // pred_check_branch
      %11291 = sbr.rel (0) target = $region129
    $region128: #{conv_block_forward.1} parent=1 // pred_region
      %11293 = dma.done [#allocation11], 32
    $region129: #{conv_block_forward.1} parent=1 // pred_fallthru
      _
    %11294 = vsyncpa [#allocation10], 1
    %11295 = vsyncpa [#allocation13], 1
    %11296 = vsyncpa [#allocation16], 1
    %11297 = vsyncpa [#allocation19], 1
    %11298 = vsyncpa [#allocation22], 1
    %11299 = vsyncpa [#allocation25], 1
    %11300 = vsyncpa [#allocation28], 1
    %11301 = vsyncpa [#allocation11], 1

</llo_original>
